<compile_context>
chip_gen: v7x
topology: tpu7x:2x2x1
jax: 0.10.0
libtpu: 0.0.40
codegen_flags: <defaults>
</compile_context>

<pallas_src>
import math

import jax
import jax.numpy as jnp
from jax.experimental import pallas as pl
from jax.experimental.pallas import tpu as pltpu


def _attn_lstm_kernel(xproj_ref, a_ref, aproj_ref, wh_ref, out_ref):
    # xproj_ref: (T, N, 4H)  x@Wx + b, time-major (hoisted off the recurrence)
    # a_ref:     (N, S, H)   projected CNN features (S = 4*4 spatial locations)
    # aproj_ref: (N, S, 4H)  A_flat @ Wattn (Wattn commuted through softmax sum)
    # wh_ref:    (H, 4H)     hidden-to-hidden weights (only per-step MXU matmul)
    # out_ref:   (N, T, H)   hidden states for all timesteps (single block)
    t_len = xproj_ref.shape[0]
    a_flat = a_ref[...]                                   # (N, S, H)
    a_proj = aproj_ref[...]                               # (N, S, 4H)
    wh = wh_ref[...]                                      # (H, 4H)
    _, _, h_dim = a_flat.shape
    inv_sqrt_h = 1.0 / math.sqrt(h_dim)

    def sigmoid(z):
        # EUP tanh + FMA; avoids the VPU add+divide of 1/(1+exp(-z)).
        return 0.5 * jnp.tanh(0.5 * z) + 0.5

    # h0 = c0 = mean-pooled projected feature map.
    h = jnp.mean(a_flat, axis=1)                          # (N, H)
    c = h

    # Fully unrolled recurrence (T is static & tiny) -> no per-step grid
    # overhead; the scheduler sees the whole dependence chain.
    for t in range(t_len):
        # --- scaled dot-product attention over S spatial locations (VPU/XLU) ---
        scores = jnp.sum(h[:, None, :] * a_flat, axis=-1) * inv_sqrt_h   # (N, S)
        scores = scores - jnp.max(scores, axis=-1, keepdims=True)
        e = jnp.exp(scores)
        denom = jnp.sum(e, axis=-1, keepdims=True)
        # Exact reciprocal to preserve the 1e-4 check (approx=True would move
        # this fully onto the EUP fast path at a small accuracy cost).
        w = e * pl.reciprocal(denom, approx=False)                        # (N, S)
        # attn @ Wattn with Wattn commuted through the softmax-weighted sum.
        attn_gates = jnp.sum(w[:, :, None] * a_proj, axis=1)             # (N, 4H)

        # --- LSTM gates: only h @ Wh remains on the serial MXU path ---
        gates = (xproj_ref[t]
                 + jnp.dot(h, wh, preferred_element_type=jnp.float32)
                 + attn_gates)                                           # (N, 4H)

        i_g = sigmoid(gates[:, 0:h_dim])
        f_g = sigmoid(gates[:, h_dim:2 * h_dim])
        o_g = sigmoid(gates[:, 2 * h_dim:3 * h_dim])
        g_g = jnp.tanh(gates[:, 3 * h_dim:4 * h_dim])

        c = f_g * c + i_g * g_g
        h = o_g * jnp.tanh(c)

        # Static-slice store into the (single) resident output block; the HBM
        # writeback is one DMA at the end of the (single) grid step.
        out_ref[:, t:t + 1, :] = h[:, None, :].astype(out_ref.dtype)


def attention_lstm_forward(x, A, Wx, Wh, Wattn, b):
    """x: (N, T, D); A: (N, H, Da, Da); Wx: (D, 4H); Wh/Wattn: (H, 4H); b: (4H,).
    Returns h: (N, T, H) — hidden states for all timesteps."""
    n, t_len, d = x.shape
    _, h_dim, da, _ = A.shape
    s = da * da
    assert Wx.shape == (d, 4 * h_dim)

    f32 = jnp.float32
    x_f = x.astype(f32)
    a_flat = jnp.transpose(A.reshape(n, h_dim, s), (0, 2, 1)).astype(f32)   # (N, S, H)

    # Hoisted, recurrence-independent projections (one well-shaped matmul each;
    # these run fully pipelined in XLA outside the sequential chain).
    x_proj = jnp.einsum("ntd,dk->tnk", x_f, Wx.astype(f32)) + b.astype(f32)  # (T, N, 4H)
    a_proj = jnp.einsum("nsh,hk->nsk", a_flat, Wattn.astype(f32))            # (N, S, 4H)

    # Pad the batch to a multiple of 8 so vreg sublanes / MXU rows / stores are
    # fully occupied (N=2 would use 2 of 8 sublanes for the same cycle cost).
    n_pad = max(8, ((n + 7) // 8) * 8)
    pad = n_pad - n
    if pad:
        x_proj = jnp.pad(x_proj, ((0, 0), (0, pad), (0, 0)))
        a_flat = jnp.pad(a_flat, ((0, pad), (0, 0), (0, 0)))
        a_proj = jnp.pad(a_proj, ((0, pad), (0, 0), (0, 0)))

    cost = pl.CostEstimate(
        flops=int(t_len * (2 * n_pad * h_dim * 4 * h_dim      # h @ Wh
                           + 2 * n_pad * s * h_dim            # attention scores
                           + 2 * n_pad * s * 4 * h_dim        # weighted A_proj sum
                           + 12 * n_pad * h_dim)),            # gate elementwise
        transcendentals=int(t_len * n_pad * (s + 5 * h_dim)),
        bytes_accessed=int(4 * (x_proj.size + a_flat.size + a_proj.size
                                + Wh.size + n_pad * t_len * h_dim)),
    )

    h_all = pl.pallas_call(
        _attn_lstm_kernel,
        out_shape=jax.ShapeDtypeStruct((n_pad, t_len, h_dim), f32),
        grid=(1,),                                     # single invocation
        in_specs=[
            pl.BlockSpec((t_len, n_pad, 4 * h_dim), lambda i: (0, 0, 0)),  # x@Wx+b
            pl.BlockSpec((n_pad, s, h_dim), lambda i: (0, 0, 0)),          # A_flat
            pl.BlockSpec((n_pad, s, 4 * h_dim), lambda i: (0, 0, 0)),      # A_flat@Wattn
            pl.BlockSpec((h_dim, 4 * h_dim), lambda i: (0, 0)),            # Wh
        ],
        out_specs=pl.BlockSpec((n_pad, t_len, h_dim), lambda i: (0, 0, 0)),
        compiler_params=pltpu.CompilerParams(
            dimension_semantics=("arbitrary",),        # trivially a single step
        ),
        cost_estimate=cost,
    )(x_proj, a_flat, a_proj, Wh.astype(f32))

    return h_all[:n]                                   # strip batch padding


def _reference_forward(x, A, Wx, Wh, Wattn, b):
    """Plain-JAX reference matching the PyTorch attention_forward semantics."""
    n, t_len, d = x.shape
    _, h_dim, da, _ = A.shape
    a_flat = A.reshape(n, h_dim, da * da)
    h_prev = jnp.mean(a_flat, axis=-1)
    c_prev = h_prev
    hs = []
    for t in range(t_len):
        scores = jnp.einsum("nh,nhs->ns", h_prev, a_flat) / math.sqrt(h_dim)
        w = jax.nn.softmax(scores, axis=-1)
        attn = jnp.einsum("nhs,ns->nh", a_flat, w)
        gates = x[:, t, :] @ Wx + h_prev @ Wh + attn @ Wattn + b
        i_g = jax.nn.sigmoid(gates[:, 0:h_dim])
        f_g = jax.nn.sigmoid(gates[:, h_dim:2 * h_dim])
        o_g = jax.nn.sigmoid(gates[:, 2 * h_dim:3 * h_dim])
        g_g = jnp.tanh(gates[:, 3 * h_dim:4 * h_dim])
        c_prev = f_g * c_prev + i_g * g_g
        h_prev = o_g * jnp.tanh(c_prev)
        hs.append(h_prev)
    return jnp.stack(hs, axis=1)


if __name__ == "__main__":
    # Small shapes consistent with the module: N=2, T=8, D=32, H=32, 4x4 features.
    N, T, D, H, DA = 2, 8, 32, 32, 4

    key = jax.random.PRNGKey(0)
    kx, ka, kwx, kwh, kwa = jax.random.split(key, 5)

    x = jax.random.normal(kx, (N, T, D), dtype=jnp.float32)
    A = jax.random.normal(ka, (N, H, DA, DA), dtype=jnp.float32)
    # Parameter init mirroring torch.randn(...)/sqrt(fan_in), b = zeros.
    Wx = jax.random.normal(kwx, (D, 4 * H), dtype=jnp.float32) / math.sqrt(D)
    Wh = jax.random.normal(kwh, (H, 4 * H), dtype=jnp.float32) / math.sqrt(H)
    Wattn = jax.random.normal(kwa, (H, 4 * H), dtype=jnp.float32) / math.sqrt(H)
    b = jnp.zeros((4 * H,), dtype=jnp.float32)

    out = attention_lstm_forward(x, A, Wx, Wh, Wattn, b)
    out = jax.block_until_ready(out)

    ref = _reference_forward(x, A, Wx, Wh, Wattn, b)
    assert out.shape == (N, T, H)
    assert jnp.allclose(out, ref, atol=1e-4, rtol=1e-4), \
        f"max abs err {jnp.max(jnp.abs(out - ref))}"

    print("KERNEL_OK")
</pallas_src>

<mosaic_0001>
module attributes {stable_mosaic.version = 11 : i64} {
  func.func @_attn_lstm_kernel(%arg0: i32, %arg1: memref<8x8x128xf32, #tpu.memory_space<vmem>>, %arg2: memref<8x16x32xf32, #tpu.memory_space<vmem>>, %arg3: memref<8x16x128xf32, #tpu.memory_space<vmem>>, %arg4: memref<32x128xf32, #tpu.memory_space<vmem>>, %arg5: memref<8x8x32xf32, #tpu.memory_space<vmem>>) attributes {dimension_semantics = [#tpu.dimension_semantics<arbitrary>], iteration_bounds = array<i64: 1>, scalar_prefetch = 0 : i64, scratch_operands = 0 : i64, tpu.core_type = #tpu.core_type<tc>, window_params = [{pipeline_mode = #tpu.pipeline_mode<synchronous>, transform_indices = @transform_0, window_bounds = array<i64: 8, 8, 128>}, {pipeline_mode = #tpu.pipeline_mode<synchronous>, transform_indices = @transform_1, window_bounds = array<i64: 8, 16, 32>}, {pipeline_mode = #tpu.pipeline_mode<synchronous>, transform_indices = @transform_2, window_bounds = array<i64: 8, 16, 128>}, {pipeline_mode = #tpu.pipeline_mode<synchronous>, transform_indices = @transform_3, window_bounds = array<i64: 32, 128>}, {pipeline_mode = #tpu.pipeline_mode<synchronous>, transform_indices = @transform_4, window_bounds = array<i64: 8, 8, 32>}]} {
    %c0 = arith.constant 0 : index
    %c0_0 = arith.constant 0 : index
    %c0_1 = arith.constant 0 : index
    %0 = vector.load %arg2[%c0, %c0_0, %c0_1] : memref<8x16x32xf32, #tpu.memory_space<vmem>>, vector<8x16x32xf32>
    %c0_2 = arith.constant 0 : index
    %c0_3 = arith.constant 0 : index
    %c0_4 = arith.constant 0 : index
    %1 = vector.load %arg3[%c0_2, %c0_3, %c0_4] : memref<8x16x128xf32, #tpu.memory_space<vmem>>, vector<8x16x128xf32>
    %c0_5 = arith.constant 0 : index
    %c0_6 = arith.constant 0 : index
    %2 = vector.load %arg4[%c0_5, %c0_6] : memref<32x128xf32, #tpu.memory_space<vmem>>, vector<32x128xf32>
    %cst = arith.constant dense<0.000000e+00> : vector<8x32xf32>
    %3 = vector.multi_reduction <add>, %0, %cst [1] : vector<8x16x32xf32> to vector<8x32xf32>
    %cst_7 = arith.constant 1.600000e+01 : f32
    %4 = vector.broadcast %cst_7 : f32 to vector<8x32xf32>
    %5 = arith.divf %3, %4 : vector<8x32xf32>
    %6 = vector.shape_cast %5 : vector<8x32xf32> to vector<8x1x32xf32>
    %7 = vector.broadcast %6 : vector<8x1x32xf32> to vector<8x16x32xf32>
    %8 = arith.mulf %7, %0 : vector<8x16x32xf32>
    %cst_8 = arith.constant dense<0.000000e+00> : vector<8x16xf32>
    %9 = vector.multi_reduction <add>, %8, %cst_8 [2] : vector<8x16x32xf32> to vector<8x16xf32>
    %cst_9 = arith.constant 0.176776692 : f32
    %10 = vector.broadcast %cst_9 : f32 to vector<8x16xf32>
    %11 = arith.mulf %9, %10 : vector<8x16xf32>
    %cst_10 = arith.constant dense<0xFF800000> : vector<8xf32>
    %12 = vector.multi_reduction <maximumf>, %11, %cst_10 [1] : vector<8x16xf32> to vector<8xf32>
    %13 = vector.shape_cast %12 : vector<8xf32> to vector<8x1xf32>
    %14 = vector.broadcast %13 : vector<8x1xf32> to vector<8x16xf32>
    %15 = arith.subf %11, %14 : vector<8x16xf32>
    %16 = math.exp %15 : vector<8x16xf32>
    %cst_11 = arith.constant dense<0.000000e+00> : vector<8xf32>
    %17 = vector.multi_reduction <add>, %16, %cst_11 [1] : vector<8x16xf32> to vector<8xf32>
    %18 = vector.shape_cast %17 : vector<8xf32> to vector<8x1xf32>
    %19 = tpu.reciprocal %18 : vector<8x1xf32> -> vector<8x1xf32>
    %20 = vector.broadcast %19 : vector<8x1xf32> to vector<8x16xf32>
    %21 = arith.mulf %16, %20 : vector<8x16xf32>
    %22 = vector.shape_cast %21 : vector<8x16xf32> to vector<8x16x1xf32>
    %23 = vector.broadcast %22 : vector<8x16x1xf32> to vector<8x16x128xf32>
    %24 = arith.mulf %23, %1 : vector<8x16x128xf32>
    %cst_12 = arith.constant dense<0.000000e+00> : vector<8x128xf32>
    %25 = vector.multi_reduction <add>, %24, %cst_12 [1] : vector<8x16x128xf32> to vector<8x128xf32>
    %c0_13 = arith.constant 0 : index
    %c0_14 = arith.constant 0 : index
    %c0_15 = arith.constant 0 : index
    %26 = vector.load %arg1[%c0_13, %c0_14, %c0_15] : memref<8x8x128xf32, #tpu.memory_space<vmem>>, vector<1x8x128xf32>
    %27 = vector.shape_cast %26 : vector<1x8x128xf32> to vector<8x128xf32>
    %cst_16 = arith.constant dense<0.000000e+00> : vector<8x128xf32>
    %28 = tpu.matmul %5, %2, %cst_16 {dimension_numbers = #tpu.dot_dimension_numbers<[1], [0], [0], [1], [0, 0, 1, 1], [], []>} : vector<8x32xf32>, vector<32x128xf32>, vector<8x128xf32> -> vector<8x128xf32>
    %29 = arith.addf %27, %28 : vector<8x128xf32>
    %30 = arith.addf %29, %25 : vector<8x128xf32>
    %31 = vector.extract_strided_slice %30 {offsets = [0, 0], sizes = [8, 32], strides = [1, 1]} : vector<8x128xf32> to vector<8x32xf32>
    %cst_17 = arith.constant 5.000000e-01 : f32
    %32 = vector.broadcast %cst_17 : f32 to vector<8x32xf32>
    %33 = arith.mulf %32, %31 : vector<8x32xf32>
    %34 = math.tanh %33 : vector<8x32xf32>
    %cst_18 = arith.constant 5.000000e-01 : f32
    %35 = vector.broadcast %cst_18 : f32 to vector<8x32xf32>
    %36 = arith.mulf %35, %34 : vector<8x32xf32>
    %cst_19 = arith.constant 5.000000e-01 : f32
    %37 = vector.broadcast %cst_19 : f32 to vector<8x32xf32>
    %38 = arith.addf %36, %37 : vector<8x32xf32>
    %39 = vector.extract_strided_slice %30 {offsets = [0, 32], sizes = [8, 32], strides = [1, 1]} : vector<8x128xf32> to vector<8x32xf32>
    %cst_20 = arith.constant 5.000000e-01 : f32
    %40 = vector.broadcast %cst_20 : f32 to vector<8x32xf32>
    %41 = arith.mulf %40, %39 : vector<8x32xf32>
    %42 = math.tanh %41 : vector<8x32xf32>
    %cst_21 = arith.constant 5.000000e-01 : f32
    %43 = vector.broadcast %cst_21 : f32 to vector<8x32xf32>
    %44 = arith.mulf %43, %42 : vector<8x32xf32>
    %cst_22 = arith.constant 5.000000e-01 : f32
    %45 = vector.broadcast %cst_22 : f32 to vector<8x32xf32>
    %46 = arith.addf %44, %45 : vector<8x32xf32>
    %47 = vector.extract_strided_slice %30 {offsets = [0, 64], sizes = [8, 32], strides = [1, 1]} : vector<8x128xf32> to vector<8x32xf32>
    %cst_23 = arith.constant 5.000000e-01 : f32
    %48 = vector.broadcast %cst_23 : f32 to vector<8x32xf32>
    %49 = arith.mulf %48, %47 : vector<8x32xf32>
    %50 = math.tanh %49 : vector<8x32xf32>
    %cst_24 = arith.constant 5.000000e-01 : f32
    %51 = vector.broadcast %cst_24 : f32 to vector<8x32xf32>
    %52 = arith.mulf %51, %50 : vector<8x32xf32>
    %cst_25 = arith.constant 5.000000e-01 : f32
    %53 = vector.broadcast %cst_25 : f32 to vector<8x32xf32>
    %54 = arith.addf %52, %53 : vector<8x32xf32>
    %55 = vector.extract_strided_slice %30 {offsets = [0, 96], sizes = [8, 32], strides = [1, 1]} : vector<8x128xf32> to vector<8x32xf32>
    %56 = math.tanh %55 : vector<8x32xf32>
    %57 = arith.mulf %46, %5 : vector<8x32xf32>
    %58 = arith.mulf %38, %56 : vector<8x32xf32>
    %59 = arith.addf %57, %58 : vector<8x32xf32>
    %60 = math.tanh %59 : vector<8x32xf32>
    %61 = arith.mulf %54, %60 : vector<8x32xf32>
    %62 = vector.shape_cast %61 : vector<8x32xf32> to vector<8x1x32xf32>
    %c0_26 = arith.constant 0 : index
    %c0_27 = arith.constant 0 : index
    %c0_28 = arith.constant 0 : index
    %63 = vector.load %arg5[%c0_26, %c0_27, %c0_28] : memref<8x8x32xf32, #tpu.memory_space<vmem>>, vector<8x1x32xf32>
    tpu.vector_store %arg5[%c0_26, %c0_27, %c0_28], %62 {strides = array<i32>} : memref<8x8x32xf32, #tpu.memory_space<vmem>>, vector<8x1x32xf32>,
    %64 = vector.shape_cast %61 : vector<8x32xf32> to vector<8x1x32xf32>
    %65 = vector.broadcast %64 : vector<8x1x32xf32> to vector<8x16x32xf32>
    %66 = arith.mulf %65, %0 : vector<8x16x32xf32>
    %cst_29 = arith.constant dense<0.000000e+00> : vector<8x16xf32>
    %67 = vector.multi_reduction <add>, %66, %cst_29 [2] : vector<8x16x32xf32> to vector<8x16xf32>
    %cst_30 = arith.constant 0.176776692 : f32
    %68 = vector.broadcast %cst_30 : f32 to vector<8x16xf32>
    %69 = arith.mulf %67, %68 : vector<8x16xf32>
    %cst_31 = arith.constant dense<0xFF800000> : vector<8xf32>
    %70 = vector.multi_reduction <maximumf>, %69, %cst_31 [1] : vector<8x16xf32> to vector<8xf32>
    %71 = vector.shape_cast %70 : vector<8xf32> to vector<8x1xf32>
    %72 = vector.broadcast %71 : vector<8x1xf32> to vector<8x16xf32>
    %73 = arith.subf %69, %72 : vector<8x16xf32>
    %74 = math.exp %73 : vector<8x16xf32>
    %cst_32 = arith.constant dense<0.000000e+00> : vector<8xf32>
    %75 = vector.multi_reduction <add>, %74, %cst_32 [1] : vector<8x16xf32> to vector<8xf32>
    %76 = vector.shape_cast %75 : vector<8xf32> to vector<8x1xf32>
    %77 = tpu.reciprocal %76 : vector<8x1xf32> -> vector<8x1xf32>
    %78 = vector.broadcast %77 : vector<8x1xf32> to vector<8x16xf32>
    %79 = arith.mulf %74, %78 : vector<8x16xf32>
    %80 = vector.shape_cast %79 : vector<8x16xf32> to vector<8x16x1xf32>
    %81 = vector.broadcast %80 : vector<8x16x1xf32> to vector<8x16x128xf32>
    %82 = arith.mulf %81, %1 : vector<8x16x128xf32>
    %cst_33 = arith.constant dense<0.000000e+00> : vector<8x128xf32>
    %83 = vector.multi_reduction <add>, %82, %cst_33 [1] : vector<8x16x128xf32> to vector<8x128xf32>
    %c1 = arith.constant 1 : index
    %c0_34 = arith.constant 0 : index
    %c0_35 = arith.constant 0 : index
    %84 = vector.load %arg1[%c1, %c0_34, %c0_35] : memref<8x8x128xf32, #tpu.memory_space<vmem>>, vector<1x8x128xf32>
    %85 = vector.shape_cast %84 : vector<1x8x128xf32> to vector<8x128xf32>
    %cst_36 = arith.constant dense<0.000000e+00> : vector<8x128xf32>
    %86 = tpu.matmul %61, %2, %cst_36 {dimension_numbers = #tpu.dot_dimension_numbers<[1], [0], [0], [1], [0, 0, 1, 1], [], []>} : vector<8x32xf32>, vector<32x128xf32>, vector<8x128xf32> -> vector<8x128xf32>
    %87 = arith.addf %85, %86 : vector<8x128xf32>
    %88 = arith.addf %87, %83 : vector<8x128xf32>
    %89 = vector.extract_strided_slice %88 {offsets = [0, 0], sizes = [8, 32], strides = [1, 1]} : vector<8x128xf32> to vector<8x32xf32>
    %cst_37 = arith.constant 5.000000e-01 : f32
    %90 = vector.broadcast %cst_37 : f32 to vector<8x32xf32>
    %91 = arith.mulf %90, %89 : vector<8x32xf32>
    %92 = math.tanh %91 : vector<8x32xf32>
    %cst_38 = arith.constant 5.000000e-01 : f32
    %93 = vector.broadcast %cst_38 : f32 to vector<8x32xf32>
    %94 = arith.mulf %93, %92 : vector<8x32xf32>
    %cst_39 = arith.constant 5.000000e-01 : f32
    %95 = vector.broadcast %cst_39 : f32 to vector<8x32xf32>
    %96 = arith.addf %94, %95 : vector<8x32xf32>
    %97 = vector.extract_strided_slice %88 {offsets = [0, 32], sizes = [8, 32], strides = [1, 1]} : vector<8x128xf32> to vector<8x32xf32>
    %cst_40 = arith.constant 5.000000e-01 : f32
    %98 = vector.broadcast %cst_40 : f32 to vector<8x32xf32>
    %99 = arith.mulf %98, %97 : vector<8x32xf32>
    %100 = math.tanh %99 : vector<8x32xf32>
    %cst_41 = arith.constant 5.000000e-01 : f32
    %101 = vector.broadcast %cst_41 : f32 to vector<8x32xf32>
    %102 = arith.mulf %101, %100 : vector<8x32xf32>
    %cst_42 = arith.constant 5.000000e-01 : f32
    %103 = vector.broadcast %cst_42 : f32 to vector<8x32xf32>
    %104 = arith.addf %102, %103 : vector<8x32xf32>
    %105 = vector.extract_strided_slice %88 {offsets = [0, 64], sizes = [8, 32], strides = [1, 1]} : vector<8x128xf32> to vector<8x32xf32>
    %cst_43 = arith.constant 5.000000e-01 : f32
    %106 = vector.broadcast %cst_43 : f32 to vector<8x32xf32>
    %107 = arith.mulf %106, %105 : vector<8x32xf32>
    %108 = math.tanh %107 : vector<8x32xf32>
    %cst_44 = arith.constant 5.000000e-01 : f32
    %109 = vector.broadcast %cst_44 : f32 to vector<8x32xf32>
    %110 = arith.mulf %109, %108 : vector<8x32xf32>
    %cst_45 = arith.constant 5.000000e-01 : f32
    %111 = vector.broadcast %cst_45 : f32 to vector<8x32xf32>
    %112 = arith.addf %110, %111 : vector<8x32xf32>
    %113 = vector.extract_strided_slice %88 {offsets = [0, 96], sizes = [8, 32], strides = [1, 1]} : vector<8x128xf32> to vector<8x32xf32>
    %114 = math.tanh %113 : vector<8x32xf32>
    %115 = arith.mulf %104, %59 : vector<8x32xf32>
    %116 = arith.mulf %96, %114 : vector<8x32xf32>
    %117 = arith.addf %115, %116 : vector<8x32xf32>
    %118 = math.tanh %117 : vector<8x32xf32>
    %119 = arith.mulf %112, %118 : vector<8x32xf32>
    %120 = vector.shape_cast %119 : vector<8x32xf32> to vector<8x1x32xf32>
    %c0_46 = arith.constant 0 : index
    %c1_47 = arith.constant 1 : index
    %c0_48 = arith.constant 0 : index
    %121 = vector.load %arg5[%c0_46, %c1_47, %c0_48] : memref<8x8x32xf32, #tpu.memory_space<vmem>>, vector<8x1x32xf32>
    tpu.vector_store %arg5[%c0_46, %c1_47, %c0_48], %120 {strides = array<i32>} : memref<8x8x32xf32, #tpu.memory_space<vmem>>, vector<8x1x32xf32>,
    %122 = vector.shape_cast %119 : vector<8x32xf32> to vector<8x1x32xf32>
    %123 = vector.broadcast %122 : vector<8x1x32xf32> to vector<8x16x32xf32>
    %124 = arith.mulf %123, %0 : vector<8x16x32xf32>
    %cst_49 = arith.constant dense<0.000000e+00> : vector<8x16xf32>
    %125 = vector.multi_reduction <add>, %124, %cst_49 [2] : vector<8x16x32xf32> to vector<8x16xf32>
    %cst_50 = arith.constant 0.176776692 : f32
    %126 = vector.broadcast %cst_50 : f32 to vector<8x16xf32>
    %127 = arith.mulf %125, %126 : vector<8x16xf32>
    %cst_51 = arith.constant dense<0xFF800000> : vector<8xf32>
    %128 = vector.multi_reduction <maximumf>, %127, %cst_51 [1] : vector<8x16xf32> to vector<8xf32>
    %129 = vector.shape_cast %128 : vector<8xf32> to vector<8x1xf32>
    %130 = vector.broadcast %129 : vector<8x1xf32> to vector<8x16xf32>
    %131 = arith.subf %127, %130 : vector<8x16xf32>
    %132 = math.exp %131 : vector<8x16xf32>
    %cst_52 = arith.constant dense<0.000000e+00> : vector<8xf32>
    %133 = vector.multi_reduction <add>, %132, %cst_52 [1] : vector<8x16xf32> to vector<8xf32>
    %134 = vector.shape_cast %133 : vector<8xf32> to vector<8x1xf32>
    %135 = tpu.reciprocal %134 : vector<8x1xf32> -> vector<8x1xf32>
    %136 = vector.broadcast %135 : vector<8x1xf32> to vector<8x16xf32>
    %137 = arith.mulf %132, %136 : vector<8x16xf32>
    %138 = vector.shape_cast %137 : vector<8x16xf32> to vector<8x16x1xf32>
    %139 = vector.broadcast %138 : vector<8x16x1xf32> to vector<8x16x128xf32>
    %140 = arith.mulf %139, %1 : vector<8x16x128xf32>
    %cst_53 = arith.constant dense<0.000000e+00> : vector<8x128xf32>
    %141 = vector.multi_reduction <add>, %140, %cst_53 [1] : vector<8x16x128xf32> to vector<8x128xf32>
    %c2 = arith.constant 2 : index
    %c0_54 = arith.constant 0 : index
    %c0_55 = arith.constant 0 : index
    %142 = vector.load %arg1[%c2, %c0_54, %c0_55] : memref<8x8x128xf32, #tpu.memory_space<vmem>>, vector<1x8x128xf32>
    %143 = vector.shape_cast %142 : vector<1x8x128xf32> to vector<8x128xf32>
    %cst_56 = arith.constant dense<0.000000e+00> : vector<8x128xf32>
    %144 = tpu.matmul %119, %2, %cst_56 {dimension_numbers = #tpu.dot_dimension_numbers<[1], [0], [0], [1], [0, 0, 1, 1], [], []>} : vector<8x32xf32>, vector<32x128xf32>, vector<8x128xf32> -> vector<8x128xf32>
    %145 = arith.addf %143, %144 : vector<8x128xf32>
    %146 = arith.addf %145, %141 : vector<8x128xf32>
    %147 = vector.extract_strided_slice %146 {offsets = [0, 0], sizes = [8, 32], strides = [1, 1]} : vector<8x128xf32> to vector<8x32xf32>
    %cst_57 = arith.constant 5.000000e-01 : f32
    %148 = vector.broadcast %cst_57 : f32 to vector<8x32xf32>
    %149 = arith.mulf %148, %147 : vector<8x32xf32>
    %150 = math.tanh %149 : vector<8x32xf32>
    %cst_58 = arith.constant 5.000000e-01 : f32
    %151 = vector.broadcast %cst_58 : f32 to vector<8x32xf32>
    %152 = arith.mulf %151, %150 : vector<8x32xf32>
    %cst_59 = arith.constant 5.000000e-01 : f32
    %153 = vector.broadcast %cst_59 : f32 to vector<8x32xf32>
    %154 = arith.addf %152, %153 : vector<8x32xf32>
    %155 = vector.extract_strided_slice %146 {offsets = [0, 32], sizes = [8, 32], strides = [1, 1]} : vector<8x128xf32> to vector<8x32xf32>
    %cst_60 = arith.constant 5.000000e-01 : f32
    %156 = vector.broadcast %cst_60 : f32 to vector<8x32xf32>
    %157 = arith.mulf %156, %155 : vector<8x32xf32>
    %158 = math.tanh %157 : vector<8x32xf32>
    %cst_61 = arith.constant 5.000000e-01 : f32
    %159 = vector.broadcast %cst_61 : f32 to vector<8x32xf32>
    %160 = arith.mulf %159, %158 : vector<8x32xf32>
    %cst_62 = arith.constant 5.000000e-01 : f32
    %161 = vector.broadcast %cst_62 : f32 to vector<8x32xf32>
    %162 = arith.addf %160, %161 : vector<8x32xf32>
    %163 = vector.extract_strided_slice %146 {offsets = [0, 64], sizes = [8, 32], strides = [1, 1]} : vector<8x128xf32> to vector<8x32xf32>
    %cst_63 = arith.constant 5.000000e-01 : f32
    %164 = vector.broadcast %cst_63 : f32 to vector<8x32xf32>
    %165 = arith.mulf %164, %163 : vector<8x32xf32>
    %166 = math.tanh %165 : vector<8x32xf32>
    %cst_64 = arith.constant 5.000000e-01 : f32
    %167 = vector.broadcast %cst_64 : f32 to vector<8x32xf32>
    %168 = arith.mulf %167, %166 : vector<8x32xf32>
    %cst_65 = arith.constant 5.000000e-01 : f32
    %169 = vector.broadcast %cst_65 : f32 to vector<8x32xf32>
    %170 = arith.addf %168, %169 : vector<8x32xf32>
    %171 = vector.extract_strided_slice %146 {offsets = [0, 96], sizes = [8, 32], strides = [1, 1]} : vector<8x128xf32> to vector<8x32xf32>
    %172 = math.tanh %171 : vector<8x32xf32>
    %173 = arith.mulf %162, %117 : vector<8x32xf32>
    %174 = arith.mulf %154, %172 : vector<8x32xf32>
    %175 = arith.addf %173, %174 : vector<8x32xf32>
    %176 = math.tanh %175 : vector<8x32xf32>
    %177 = arith.mulf %170, %176 : vector<8x32xf32>
    %178 = vector.shape_cast %177 : vector<8x32xf32> to vector<8x1x32xf32>
    %c0_66 = arith.constant 0 : index
    %c2_67 = arith.constant 2 : index
    %c0_68 = arith.constant 0 : index
    %179 = vector.load %arg5[%c0_66, %c2_67, %c0_68] : memref<8x8x32xf32, #tpu.memory_space<vmem>>, vector<8x1x32xf32>
    tpu.vector_store %arg5[%c0_66, %c2_67, %c0_68], %178 {strides = array<i32>} : memref<8x8x32xf32, #tpu.memory_space<vmem>>, vector<8x1x32xf32>,
    %180 = vector.shape_cast %177 : vector<8x32xf32> to vector<8x1x32xf32>
    %181 = vector.broadcast %180 : vector<8x1x32xf32> to vector<8x16x32xf32>
    %182 = arith.mulf %181, %0 : vector<8x16x32xf32>
    %cst_69 = arith.constant dense<0.000000e+00> : vector<8x16xf32>
    %183 = vector.multi_reduction <add>, %182, %cst_69 [2] : vector<8x16x32xf32> to vector<8x16xf32>
    %cst_70 = arith.constant 0.176776692 : f32
    %184 = vector.broadcast %cst_70 : f32 to vector<8x16xf32>
    %185 = arith.mulf %183, %184 : vector<8x16xf32>
    %cst_71 = arith.constant dense<0xFF800000> : vector<8xf32>
    %186 = vector.multi_reduction <maximumf>, %185, %cst_71 [1] : vector<8x16xf32> to vector<8xf32>
    %187 = vector.shape_cast %186 : vector<8xf32> to vector<8x1xf32>
    %188 = vector.broadcast %187 : vector<8x1xf32> to vector<8x16xf32>
    %189 = arith.subf %185, %188 : vector<8x16xf32>
    %190 = math.exp %189 : vector<8x16xf32>
    %cst_72 = arith.constant dense<0.000000e+00> : vector<8xf32>
    %191 = vector.multi_reduction <add>, %190, %cst_72 [1] : vector<8x16xf32> to vector<8xf32>
    %192 = vector.shape_cast %191 : vector<8xf32> to vector<8x1xf32>
    %193 = tpu.reciprocal %192 : vector<8x1xf32> -> vector<8x1xf32>
    %194 = vector.broadcast %193 : vector<8x1xf32> to vector<8x16xf32>
    %195 = arith.mulf %190, %194 : vector<8x16xf32>
    %196 = vector.shape_cast %195 : vector<8x16xf32> to vector<8x16x1xf32>
    %197 = vector.broadcast %196 : vector<8x16x1xf32> to vector<8x16x128xf32>
    %198 = arith.mulf %197, %1 : vector<8x16x128xf32>
    %cst_73 = arith.constant dense<0.000000e+00> : vector<8x128xf32>
    %199 = vector.multi_reduction <add>, %198, %cst_73 [1] : vector<8x16x128xf32> to vector<8x128xf32>
    %c3 = arith.constant 3 : index
    %c0_74 = arith.constant 0 : index
    %c0_75 = arith.constant 0 : index
    %200 = vector.load %arg1[%c3, %c0_74, %c0_75] : memref<8x8x128xf32, #tpu.memory_space<vmem>>, vector<1x8x128xf32>
    %201 = vector.shape_cast %200 : vector<1x8x128xf32> to vector<8x128xf32>
    %cst_76 = arith.constant dense<0.000000e+00> : vector<8x128xf32>
    %202 = tpu.matmul %177, %2, %cst_76 {dimension_numbers = #tpu.dot_dimension_numbers<[1], [0], [0], [1], [0, 0, 1, 1], [], []>} : vector<8x32xf32>, vector<32x128xf32>, vector<8x128xf32> -> vector<8x128xf32>
    %203 = arith.addf %201, %202 : vector<8x128xf32>
    %204 = arith.addf %203, %199 : vector<8x128xf32>
    %205 = vector.extract_strided_slice %204 {offsets = [0, 0], sizes = [8, 32], strides = [1, 1]} : vector<8x128xf32> to vector<8x32xf32>
    %cst_77 = arith.constant 5.000000e-01 : f32
    %206 = vector.broadcast %cst_77 : f32 to vector<8x32xf32>
    %207 = arith.mulf %206, %205 : vector<8x32xf32>
    %208 = math.tanh %207 : vector<8x32xf32>
    %cst_78 = arith.constant 5.000000e-01 : f32
    %209 = vector.broadcast %cst_78 : f32 to vector<8x32xf32>
    %210 = arith.mulf %209, %208 : vector<8x32xf32>
    %cst_79 = arith.constant 5.000000e-01 : f32
    %211 = vector.broadcast %cst_79 : f32 to vector<8x32xf32>
    %212 = arith.addf %210, %211 : vector<8x32xf32>
    %213 = vector.extract_strided_slice %204 {offsets = [0, 32], sizes = [8, 32], strides = [1, 1]} : vector<8x128xf32> to vector<8x32xf32>
    %cst_80 = arith.constant 5.000000e-01 : f32
    %214 = vector.broadcast %cst_80 : f32 to vector<8x32xf32>
    %215 = arith.mulf %214, %213 : vector<8x32xf32>
    %216 = math.tanh %215 : vector<8x32xf32>
    %cst_81 = arith.constant 5.000000e-01 : f32
    %217 = vector.broadcast %cst_81 : f32 to vector<8x32xf32>
    %218 = arith.mulf %217, %216 : vector<8x32xf32>
    %cst_82 = arith.constant 5.000000e-01 : f32
    %219 = vector.broadcast %cst_82 : f32 to vector<8x32xf32>
    %220 = arith.addf %218, %219 : vector<8x32xf32>
    %221 = vector.extract_strided_slice %204 {offsets = [0, 64], sizes = [8, 32], strides = [1, 1]} : vector<8x128xf32> to vector<8x32xf32>
    %cst_83 = arith.constant 5.000000e-01 : f32
    %222 = vector.broadcast %cst_83 : f32 to vector<8x32xf32>
    %223 = arith.mulf %222, %221 : vector<8x32xf32>
    %224 = math.tanh %223 : vector<8x32xf32>
    %cst_84 = arith.constant 5.000000e-01 : f32
    %225 = vector.broadcast %cst_84 : f32 to vector<8x32xf32>
    %226 = arith.mulf %225, %224 : vector<8x32xf32>
    %cst_85 = arith.constant 5.000000e-01 : f32
    %227 = vector.broadcast %cst_85 : f32 to vector<8x32xf32>
    %228 = arith.addf %226, %227 : vector<8x32xf32>
    %229 = vector.extract_strided_slice %204 {offsets = [0, 96], sizes = [8, 32], strides = [1, 1]} : vector<8x128xf32> to vector<8x32xf32>
    %230 = math.tanh %229 : vector<8x32xf32>
    %231 = arith.mulf %220, %175 : vector<8x32xf32>
    %232 = arith.mulf %212, %230 : vector<8x32xf32>
    %233 = arith.addf %231, %232 : vector<8x32xf32>
    %234 = math.tanh %233 : vector<8x32xf32>
    %235 = arith.mulf %228, %234 : vector<8x32xf32>
    %236 = vector.shape_cast %235 : vector<8x32xf32> to vector<8x1x32xf32>
    %c0_86 = arith.constant 0 : index
    %c3_87 = arith.constant 3 : index
    %c0_88 = arith.constant 0 : index
    %237 = vector.load %arg5[%c0_86, %c3_87, %c0_88] : memref<8x8x32xf32, #tpu.memory_space<vmem>>, vector<8x1x32xf32>
    tpu.vector_store %arg5[%c0_86, %c3_87, %c0_88], %236 {strides = array<i32>} : memref<8x8x32xf32, #tpu.memory_space<vmem>>, vector<8x1x32xf32>,
    %238 = vector.shape_cast %235 : vector<8x32xf32> to vector<8x1x32xf32>
    %239 = vector.broadcast %238 : vector<8x1x32xf32> to vector<8x16x32xf32>
    %240 = arith.mulf %239, %0 : vector<8x16x32xf32>
    %cst_89 = arith.constant dense<0.000000e+00> : vector<8x16xf32>
    %241 = vector.multi_reduction <add>, %240, %cst_89 [2] : vector<8x16x32xf32> to vector<8x16xf32>
    %cst_90 = arith.constant 0.176776692 : f32
    %242 = vector.broadcast %cst_90 : f32 to vector<8x16xf32>
    %243 = arith.mulf %241, %242 : vector<8x16xf32>
    %cst_91 = arith.constant dense<0xFF800000> : vector<8xf32>
    %244 = vector.multi_reduction <maximumf>, %243, %cst_91 [1] : vector<8x16xf32> to vector<8xf32>
    %245 = vector.shape_cast %244 : vector<8xf32> to vector<8x1xf32>
    %246 = vector.broadcast %245 : vector<8x1xf32> to vector<8x16xf32>
    %247 = arith.subf %243, %246 : vector<8x16xf32>
    %248 = math.exp %247 : vector<8x16xf32>
    %cst_92 = arith.constant dense<0.000000e+00> : vector<8xf32>
    %249 = vector.multi_reduction <add>, %248, %cst_92 [1] : vector<8x16xf32> to vector<8xf32>
    %250 = vector.shape_cast %249 : vector<8xf32> to vector<8x1xf32>
    %251 = tpu.reciprocal %250 : vector<8x1xf32> -> vector<8x1xf32>
    %252 = vector.broadcast %251 : vector<8x1xf32> to vector<8x16xf32>
    %253 = arith.mulf %248, %252 : vector<8x16xf32>
    %254 = vector.shape_cast %253 : vector<8x16xf32> to vector<8x16x1xf32>
    %255 = vector.broadcast %254 : vector<8x16x1xf32> to vector<8x16x128xf32>
    %256 = arith.mulf %255, %1 : vector<8x16x128xf32>
    %cst_93 = arith.constant dense<0.000000e+00> : vector<8x128xf32>
    %257 = vector.multi_reduction <add>, %256, %cst_93 [1] : vector<8x16x128xf32> to vector<8x128xf32>
    %c4 = arith.constant 4 : index
    %c0_94 = arith.constant 0 : index
    %c0_95 = arith.constant 0 : index
    %258 = vector.load %arg1[%c4, %c0_94, %c0_95] : memref<8x8x128xf32, #tpu.memory_space<vmem>>, vector<1x8x128xf32>
    %259 = vector.shape_cast %258 : vector<1x8x128xf32> to vector<8x128xf32>
    %cst_96 = arith.constant dense<0.000000e+00> : vector<8x128xf32>
    %260 = tpu.matmul %235, %2, %cst_96 {dimension_numbers = #tpu.dot_dimension_numbers<[1], [0], [0], [1], [0, 0, 1, 1], [], []>} : vector<8x32xf32>, vector<32x128xf32>, vector<8x128xf32> -> vector<8x128xf32>
    %261 = arith.addf %259, %260 : vector<8x128xf32>
    %262 = arith.addf %261, %257 : vector<8x128xf32>
    %263 = vector.extract_strided_slice %262 {offsets = [0, 0], sizes = [8, 32], strides = [1, 1]} : vector<8x128xf32> to vector<8x32xf32>
    %cst_97 = arith.constant 5.000000e-01 : f32
    %264 = vector.broadcast %cst_97 : f32 to vector<8x32xf32>
    %265 = arith.mulf %264, %263 : vector<8x32xf32>
    %266 = math.tanh %265 : vector<8x32xf32>
    %cst_98 = arith.constant 5.000000e-01 : f32
    %267 = vector.broadcast %cst_98 : f32 to vector<8x32xf32>
    %268 = arith.mulf %267, %266 : vector<8x32xf32>
    %cst_99 = arith.constant 5.000000e-01 : f32
    %269 = vector.broadcast %cst_99 : f32 to vector<8x32xf32>
    %270 = arith.addf %268, %269 : vector<8x32xf32>
    %271 = vector.extract_strided_slice %262 {offsets = [0, 32], sizes = [8, 32], strides = [1, 1]} : vector<8x128xf32> to vector<8x32xf32>
    %cst_100 = arith.constant 5.000000e-01 : f32
    %272 = vector.broadcast %cst_100 : f32 to vector<8x32xf32>
    %273 = arith.mulf %272, %271 : vector<8x32xf32>
    %274 = math.tanh %273 : vector<8x32xf32>
    %cst_101 = arith.constant 5.000000e-01 : f32
    %275 = vector.broadcast %cst_101 : f32 to vector<8x32xf32>
    %276 = arith.mulf %275, %274 : vector<8x32xf32>
    %cst_102 = arith.constant 5.000000e-01 : f32
    %277 = vector.broadcast %cst_102 : f32 to vector<8x32xf32>
    %278 = arith.addf %276, %277 : vector<8x32xf32>
    %279 = vector.extract_strided_slice %262 {offsets = [0, 64], sizes = [8, 32], strides = [1, 1]} : vector<8x128xf32> to vector<8x32xf32>
    %cst_103 = arith.constant 5.000000e-01 : f32
    %280 = vector.broadcast %cst_103 : f32 to vector<8x32xf32>
    %281 = arith.mulf %280, %279 : vector<8x32xf32>
    %282 = math.tanh %281 : vector<8x32xf32>
    %cst_104 = arith.constant 5.000000e-01 : f32
    %283 = vector.broadcast %cst_104 : f32 to vector<8x32xf32>
    %284 = arith.mulf %283, %282 : vector<8x32xf32>
    %cst_105 = arith.constant 5.000000e-01 : f32
    %285 = vector.broadcast %cst_105 : f32 to vector<8x32xf32>
    %286 = arith.addf %284, %285 : vector<8x32xf32>
    %287 = vector.extract_strided_slice %262 {offsets = [0, 96], sizes = [8, 32], strides = [1, 1]} : vector<8x128xf32> to vector<8x32xf32>
    %288 = math.tanh %287 : vector<8x32xf32>
    %289 = arith.mulf %278, %233 : vector<8x32xf32>
    %290 = arith.mulf %270, %288 : vector<8x32xf32>
    %291 = arith.addf %289, %290 : vector<8x32xf32>
    %292 = math.tanh %291 : vector<8x32xf32>
    %293 = arith.mulf %286, %292 : vector<8x32xf32>
    %294 = vector.shape_cast %293 : vector<8x32xf32> to vector<8x1x32xf32>
    %c0_106 = arith.constant 0 : index
    %c4_107 = arith.constant 4 : index
    %c0_108 = arith.constant 0 : index
    %295 = vector.load %arg5[%c0_106, %c4_107, %c0_108] : memref<8x8x32xf32, #tpu.memory_space<vmem>>, vector<8x1x32xf32>
    tpu.vector_store %arg5[%c0_106, %c4_107, %c0_108], %294 {strides = array<i32>} : memref<8x8x32xf32, #tpu.memory_space<vmem>>, vector<8x1x32xf32>,
    %296 = vector.shape_cast %293 : vector<8x32xf32> to vector<8x1x32xf32>
    %297 = vector.broadcast %296 : vector<8x1x32xf32> to vector<8x16x32xf32>
    %298 = arith.mulf %297, %0 : vector<8x16x32xf32>
    %cst_109 = arith.constant dense<0.000000e+00> : vector<8x16xf32>
    %299 = vector.multi_reduction <add>, %298, %cst_109 [2] : vector<8x16x32xf32> to vector<8x16xf32>
    %cst_110 = arith.constant 0.176776692 : f32
    %300 = vector.broadcast %cst_110 : f32 to vector<8x16xf32>
    %301 = arith.mulf %299, %300 : vector<8x16xf32>
    %cst_111 = arith.constant dense<0xFF800000> : vector<8xf32>
    %302 = vector.multi_reduction <maximumf>, %301, %cst_111 [1] : vector<8x16xf32> to vector<8xf32>
    %303 = vector.shape_cast %302 : vector<8xf32> to vector<8x1xf32>
    %304 = vector.broadcast %303 : vector<8x1xf32> to vector<8x16xf32>
    %305 = arith.subf %301, %304 : vector<8x16xf32>
    %306 = math.exp %305 : vector<8x16xf32>
    %cst_112 = arith.constant dense<0.000000e+00> : vector<8xf32>
    %307 = vector.multi_reduction <add>, %306, %cst_112 [1] : vector<8x16xf32> to vector<8xf32>
    %308 = vector.shape_cast %307 : vector<8xf32> to vector<8x1xf32>
    %309 = tpu.reciprocal %308 : vector<8x1xf32> -> vector<8x1xf32>
    %310 = vector.broadcast %309 : vector<8x1xf32> to vector<8x16xf32>
    %311 = arith.mulf %306, %310 : vector<8x16xf32>
    %312 = vector.shape_cast %311 : vector<8x16xf32> to vector<8x16x1xf32>
    %313 = vector.broadcast %312 : vector<8x16x1xf32> to vector<8x16x128xf32>
    %314 = arith.mulf %313, %1 : vector<8x16x128xf32>
    %cst_113 = arith.constant dense<0.000000e+00> : vector<8x128xf32>
    %315 = vector.multi_reduction <add>, %314, %cst_113 [1] : vector<8x16x128xf32> to vector<8x128xf32>
    %c5 = arith.constant 5 : index
    %c0_114 = arith.constant 0 : index
    %c0_115 = arith.constant 0 : index
    %316 = vector.load %arg1[%c5, %c0_114, %c0_115] : memref<8x8x128xf32, #tpu.memory_space<vmem>>, vector<1x8x128xf32>
    %317 = vector.shape_cast %316 : vector<1x8x128xf32> to vector<8x128xf32>
    %cst_116 = arith.constant dense<0.000000e+00> : vector<8x128xf32>
    %318 = tpu.matmul %293, %2, %cst_116 {dimension_numbers = #tpu.dot_dimension_numbers<[1], [0], [0], [1], [0, 0, 1, 1], [], []>} : vector<8x32xf32>, vector<32x128xf32>, vector<8x128xf32> -> vector<8x128xf32>
    %319 = arith.addf %317, %318 : vector<8x128xf32>
    %320 = arith.addf %319, %315 : vector<8x128xf32>
    %321 = vector.extract_strided_slice %320 {offsets = [0, 0], sizes = [8, 32], strides = [1, 1]} : vector<8x128xf32> to vector<8x32xf32>
    %cst_117 = arith.constant 5.000000e-01 : f32
    %322 = vector.broadcast %cst_117 : f32 to vector<8x32xf32>
    %323 = arith.mulf %322, %321 : vector<8x32xf32>
    %324 = math.tanh %323 : vector<8x32xf32>
    %cst_118 = arith.constant 5.000000e-01 : f32
    %325 = vector.broadcast %cst_118 : f32 to vector<8x32xf32>
    %326 = arith.mulf %325, %324 : vector<8x32xf32>
    %cst_119 = arith.constant 5.000000e-01 : f32
    %327 = vector.broadcast %cst_119 : f32 to vector<8x32xf32>
    %328 = arith.addf %326, %327 : vector<8x32xf32>
    %329 = vector.extract_strided_slice %320 {offsets = [0, 32], sizes = [8, 32], strides = [1, 1]} : vector<8x128xf32> to vector<8x32xf32>
    %cst_120 = arith.constant 5.000000e-01 : f32
    %330 = vector.broadcast %cst_120 : f32 to vector<8x32xf32>
    %331 = arith.mulf %330, %329 : vector<8x32xf32>
    %332 = math.tanh %331 : vector<8x32xf32>
    %cst_121 = arith.constant 5.000000e-01 : f32
    %333 = vector.broadcast %cst_121 : f32 to vector<8x32xf32>
    %334 = arith.mulf %333, %332 : vector<8x32xf32>
    %cst_122 = arith.constant 5.000000e-01 : f32
    %335 = vector.broadcast %cst_122 : f32 to vector<8x32xf32>
    %336 = arith.addf %334, %335 : vector<8x32xf32>
    %337 = vector.extract_strided_slice %320 {offsets = [0, 64], sizes = [8, 32], strides = [1, 1]} : vector<8x128xf32> to vector<8x32xf32>
    %cst_123 = arith.constant 5.000000e-01 : f32
    %338 = vector.broadcast %cst_123 : f32 to vector<8x32xf32>
    %339 = arith.mulf %338, %337 : vector<8x32xf32>
    %340 = math.tanh %339 : vector<8x32xf32>
    %cst_124 = arith.constant 5.000000e-01 : f32
    %341 = vector.broadcast %cst_124 : f32 to vector<8x32xf32>
    %342 = arith.mulf %341, %340 : vector<8x32xf32>
    %cst_125 = arith.constant 5.000000e-01 : f32
    %343 = vector.broadcast %cst_125 : f32 to vector<8x32xf32>
    %344 = arith.addf %342, %343 : vector<8x32xf32>
    %345 = vector.extract_strided_slice %320 {offsets = [0, 96], sizes = [8, 32], strides = [1, 1]} : vector<8x128xf32> to vector<8x32xf32>
    %346 = math.tanh %345 : vector<8x32xf32>
    %347 = arith.mulf %336, %291 : vector<8x32xf32>
    %348 = arith.mulf %328, %346 : vector<8x32xf32>
    %349 = arith.addf %347, %348 : vector<8x32xf32>
    %350 = math.tanh %349 : vector<8x32xf32>
    %351 = arith.mulf %344, %350 : vector<8x32xf32>
    %352 = vector.shape_cast %351 : vector<8x32xf32> to vector<8x1x32xf32>
    %c0_126 = arith.constant 0 : index
    %c5_127 = arith.constant 5 : index
    %c0_128 = arith.constant 0 : index
    %353 = vector.load %arg5[%c0_126, %c5_127, %c0_128] : memref<8x8x32xf32, #tpu.memory_space<vmem>>, vector<8x1x32xf32>
    tpu.vector_store %arg5[%c0_126, %c5_127, %c0_128], %352 {strides = array<i32>} : memref<8x8x32xf32, #tpu.memory_space<vmem>>, vector<8x1x32xf32>,
    %354 = vector.shape_cast %351 : vector<8x32xf32> to vector<8x1x32xf32>
    %355 = vector.broadcast %354 : vector<8x1x32xf32> to vector<8x16x32xf32>
    %356 = arith.mulf %355, %0 : vector<8x16x32xf32>
    %cst_129 = arith.constant dense<0.000000e+00> : vector<8x16xf32>
    %357 = vector.multi_reduction <add>, %356, %cst_129 [2] : vector<8x16x32xf32> to vector<8x16xf32>
    %cst_130 = arith.constant 0.176776692 : f32
    %358 = vector.broadcast %cst_130 : f32 to vector<8x16xf32>
    %359 = arith.mulf %357, %358 : vector<8x16xf32>
    %cst_131 = arith.constant dense<0xFF800000> : vector<8xf32>
    %360 = vector.multi_reduction <maximumf>, %359, %cst_131 [1] : vector<8x16xf32> to vector<8xf32>
    %361 = vector.shape_cast %360 : vector<8xf32> to vector<8x1xf32>
    %362 = vector.broadcast %361 : vector<8x1xf32> to vector<8x16xf32>
    %363 = arith.subf %359, %362 : vector<8x16xf32>
    %364 = math.exp %363 : vector<8x16xf32>
    %cst_132 = arith.constant dense<0.000000e+00> : vector<8xf32>
    %365 = vector.multi_reduction <add>, %364, %cst_132 [1] : vector<8x16xf32> to vector<8xf32>
    %366 = vector.shape_cast %365 : vector<8xf32> to vector<8x1xf32>
    %367 = tpu.reciprocal %366 : vector<8x1xf32> -> vector<8x1xf32>
    %368 = vector.broadcast %367 : vector<8x1xf32> to vector<8x16xf32>
    %369 = arith.mulf %364, %368 : vector<8x16xf32>
    %370 = vector.shape_cast %369 : vector<8x16xf32> to vector<8x16x1xf32>
    %371 = vector.broadcast %370 : vector<8x16x1xf32> to vector<8x16x128xf32>
    %372 = arith.mulf %371, %1 : vector<8x16x128xf32>
    %cst_133 = arith.constant dense<0.000000e+00> : vector<8x128xf32>
    %373 = vector.multi_reduction <add>, %372, %cst_133 [1] : vector<8x16x128xf32> to vector<8x128xf32>
    %c6 = arith.constant 6 : index
    %c0_134 = arith.constant 0 : index
    %c0_135 = arith.constant 0 : index
    %374 = vector.load %arg1[%c6, %c0_134, %c0_135] : memref<8x8x128xf32, #tpu.memory_space<vmem>>, vector<1x8x128xf32>
    %375 = vector.shape_cast %374 : vector<1x8x128xf32> to vector<8x128xf32>
    %cst_136 = arith.constant dense<0.000000e+00> : vector<8x128xf32>
    %376 = tpu.matmul %351, %2, %cst_136 {dimension_numbers = #tpu.dot_dimension_numbers<[1], [0], [0], [1], [0, 0, 1, 1], [], []>} : vector<8x32xf32>, vector<32x128xf32>, vector<8x128xf32> -> vector<8x128xf32>
    %377 = arith.addf %375, %376 : vector<8x128xf32>
    %378 = arith.addf %377, %373 : vector<8x128xf32>
    %379 = vector.extract_strided_slice %378 {offsets = [0, 0], sizes = [8, 32], strides = [1, 1]} : vector<8x128xf32> to vector<8x32xf32>
    %cst_137 = arith.constant 5.000000e-01 : f32
    %380 = vector.broadcast %cst_137 : f32 to vector<8x32xf32>
    %381 = arith.mulf %380, %379 : vector<8x32xf32>
    %382 = math.tanh %381 : vector<8x32xf32>
    %cst_138 = arith.constant 5.000000e-01 : f32
    %383 = vector.broadcast %cst_138 : f32 to vector<8x32xf32>
    %384 = arith.mulf %383, %382 : vector<8x32xf32>
    %cst_139 = arith.constant 5.000000e-01 : f32
    %385 = vector.broadcast %cst_139 : f32 to vector<8x32xf32>
    %386 = arith.addf %384, %385 : vector<8x32xf32>
    %387 = vector.extract_strided_slice %378 {offsets = [0, 32], sizes = [8, 32], strides = [1, 1]} : vector<8x128xf32> to vector<8x32xf32>
    %cst_140 = arith.constant 5.000000e-01 : f32
    %388 = vector.broadcast %cst_140 : f32 to vector<8x32xf32>
    %389 = arith.mulf %388, %387 : vector<8x32xf32>
    %390 = math.tanh %389 : vector<8x32xf32>
    %cst_141 = arith.constant 5.000000e-01 : f32
    %391 = vector.broadcast %cst_141 : f32 to vector<8x32xf32>
    %392 = arith.mulf %391, %390 : vector<8x32xf32>
    %cst_142 = arith.constant 5.000000e-01 : f32
    %393 = vector.broadcast %cst_142 : f32 to vector<8x32xf32>
    %394 = arith.addf %392, %393 : vector<8x32xf32>
    %395 = vector.extract_strided_slice %378 {offsets = [0, 64], sizes = [8, 32], strides = [1, 1]} : vector<8x128xf32> to vector<8x32xf32>
    %cst_143 = arith.constant 5.000000e-01 : f32
    %396 = vector.broadcast %cst_143 : f32 to vector<8x32xf32>
    %397 = arith.mulf %396, %395 : vector<8x32xf32>
    %398 = math.tanh %397 : vector<8x32xf32>
    %cst_144 = arith.constant 5.000000e-01 : f32
    %399 = vector.broadcast %cst_144 : f32 to vector<8x32xf32>
    %400 = arith.mulf %399, %398 : vector<8x32xf32>
    %cst_145 = arith.constant 5.000000e-01 : f32
    %401 = vector.broadcast %cst_145 : f32 to vector<8x32xf32>
    %402 = arith.addf %400, %401 : vector<8x32xf32>
    %403 = vector.extract_strided_slice %378 {offsets = [0, 96], sizes = [8, 32], strides = [1, 1]} : vector<8x128xf32> to vector<8x32xf32>
    %404 = math.tanh %403 : vector<8x32xf32>
    %405 = arith.mulf %394, %349 : vector<8x32xf32>
    %406 = arith.mulf %386, %404 : vector<8x32xf32>
    %407 = arith.addf %405, %406 : vector<8x32xf32>
    %408 = math.tanh %407 : vector<8x32xf32>
    %409 = arith.mulf %402, %408 : vector<8x32xf32>
    %410 = vector.shape_cast %409 : vector<8x32xf32> to vector<8x1x32xf32>
    %c0_146 = arith.constant 0 : index
    %c6_147 = arith.constant 6 : index
    %c0_148 = arith.constant 0 : index
    %411 = vector.load %arg5[%c0_146, %c6_147, %c0_148] : memref<8x8x32xf32, #tpu.memory_space<vmem>>, vector<8x1x32xf32>
    tpu.vector_store %arg5[%c0_146, %c6_147, %c0_148], %410 {strides = array<i32>} : memref<8x8x32xf32, #tpu.memory_space<vmem>>, vector<8x1x32xf32>,
    %412 = vector.shape_cast %409 : vector<8x32xf32> to vector<8x1x32xf32>
    %413 = vector.broadcast %412 : vector<8x1x32xf32> to vector<8x16x32xf32>
    %414 = arith.mulf %413, %0 : vector<8x16x32xf32>
    %cst_149 = arith.constant dense<0.000000e+00> : vector<8x16xf32>
    %415 = vector.multi_reduction <add>, %414, %cst_149 [2] : vector<8x16x32xf32> to vector<8x16xf32>
    %cst_150 = arith.constant 0.176776692 : f32
    %416 = vector.broadcast %cst_150 : f32 to vector<8x16xf32>
    %417 = arith.mulf %415, %416 : vector<8x16xf32>
    %cst_151 = arith.constant dense<0xFF800000> : vector<8xf32>
    %418 = vector.multi_reduction <maximumf>, %417, %cst_151 [1] : vector<8x16xf32> to vector<8xf32>
    %419 = vector.shape_cast %418 : vector<8xf32> to vector<8x1xf32>
    %420 = vector.broadcast %419 : vector<8x1xf32> to vector<8x16xf32>
    %421 = arith.subf %417, %420 : vector<8x16xf32>
    %422 = math.exp %421 : vector<8x16xf32>
    %cst_152 = arith.constant dense<0.000000e+00> : vector<8xf32>
    %423 = vector.multi_reduction <add>, %422, %cst_152 [1] : vector<8x16xf32> to vector<8xf32>
    %424 = vector.shape_cast %423 : vector<8xf32> to vector<8x1xf32>
    %425 = tpu.reciprocal %424 : vector<8x1xf32> -> vector<8x1xf32>
    %426 = vector.broadcast %425 : vector<8x1xf32> to vector<8x16xf32>
    %427 = arith.mulf %422, %426 : vector<8x16xf32>
    %428 = vector.shape_cast %427 : vector<8x16xf32> to vector<8x16x1xf32>
    %429 = vector.broadcast %428 : vector<8x16x1xf32> to vector<8x16x128xf32>
    %430 = arith.mulf %429, %1 : vector<8x16x128xf32>
    %cst_153 = arith.constant dense<0.000000e+00> : vector<8x128xf32>
    %431 = vector.multi_reduction <add>, %430, %cst_153 [1] : vector<8x16x128xf32> to vector<8x128xf32>
    %c7 = arith.constant 7 : index
    %c0_154 = arith.constant 0 : index
    %c0_155 = arith.constant 0 : index
    %432 = vector.load %arg1[%c7, %c0_154, %c0_155] : memref<8x8x128xf32, #tpu.memory_space<vmem>>, vector<1x8x128xf32>
    %433 = vector.shape_cast %432 : vector<1x8x128xf32> to vector<8x128xf32>
    %cst_156 = arith.constant dense<0.000000e+00> : vector<8x128xf32>
    %434 = tpu.matmul %409, %2, %cst_156 {dimension_numbers = #tpu.dot_dimension_numbers<[1], [0], [0], [1], [0, 0, 1, 1], [], []>} : vector<8x32xf32>, vector<32x128xf32>, vector<8x128xf32> -> vector<8x128xf32>
    %435 = arith.addf %433, %434 : vector<8x128xf32>
    %436 = arith.addf %435, %431 : vector<8x128xf32>
    %437 = vector.extract_strided_slice %436 {offsets = [0, 0], sizes = [8, 32], strides = [1, 1]} : vector<8x128xf32> to vector<8x32xf32>
    %cst_157 = arith.constant 5.000000e-01 : f32
    %438 = vector.broadcast %cst_157 : f32 to vector<8x32xf32>
    %439 = arith.mulf %438, %437 : vector<8x32xf32>
    %440 = math.tanh %439 : vector<8x32xf32>
    %cst_158 = arith.constant 5.000000e-01 : f32
    %441 = vector.broadcast %cst_158 : f32 to vector<8x32xf32>
    %442 = arith.mulf %441, %440 : vector<8x32xf32>
    %cst_159 = arith.constant 5.000000e-01 : f32
    %443 = vector.broadcast %cst_159 : f32 to vector<8x32xf32>
    %444 = arith.addf %442, %443 : vector<8x32xf32>
    %445 = vector.extract_strided_slice %436 {offsets = [0, 32], sizes = [8, 32], strides = [1, 1]} : vector<8x128xf32> to vector<8x32xf32>
    %cst_160 = arith.constant 5.000000e-01 : f32
    %446 = vector.broadcast %cst_160 : f32 to vector<8x32xf32>
    %447 = arith.mulf %446, %445 : vector<8x32xf32>
    %448 = math.tanh %447 : vector<8x32xf32>
    %cst_161 = arith.constant 5.000000e-01 : f32
    %449 = vector.broadcast %cst_161 : f32 to vector<8x32xf32>
    %450 = arith.mulf %449, %448 : vector<8x32xf32>
    %cst_162 = arith.constant 5.000000e-01 : f32
    %451 = vector.broadcast %cst_162 : f32 to vector<8x32xf32>
    %452 = arith.addf %450, %451 : vector<8x32xf32>
    %453 = vector.extract_strided_slice %436 {offsets = [0, 64], sizes = [8, 32], strides = [1, 1]} : vector<8x128xf32> to vector<8x32xf32>
    %cst_163 = arith.constant 5.000000e-01 : f32
    %454 = vector.broadcast %cst_163 : f32 to vector<8x32xf32>
    %455 = arith.mulf %454, %453 : vector<8x32xf32>
    %456 = math.tanh %455 : vector<8x32xf32>
    %cst_164 = arith.constant 5.000000e-01 : f32
    %457 = vector.broadcast %cst_164 : f32 to vector<8x32xf32>
    %458 = arith.mulf %457, %456 : vector<8x32xf32>
    %cst_165 = arith.constant 5.000000e-01 : f32
    %459 = vector.broadcast %cst_165 : f32 to vector<8x32xf32>
    %460 = arith.addf %458, %459 : vector<8x32xf32>
    %461 = vector.extract_strided_slice %436 {offsets = [0, 96], sizes = [8, 32], strides = [1, 1]} : vector<8x128xf32> to vector<8x32xf32>
    %462 = math.tanh %461 : vector<8x32xf32>
    %463 = arith.mulf %452, %407 : vector<8x32xf32>
    %464 = arith.mulf %444, %462 : vector<8x32xf32>
    %465 = arith.addf %463, %464 : vector<8x32xf32>
    %466 = math.tanh %465 : vector<8x32xf32>
    %467 = arith.mulf %460, %466 : vector<8x32xf32>
    %468 = vector.shape_cast %467 : vector<8x32xf32> to vector<8x1x32xf32>
    %c0_166 = arith.constant 0 : index
    %c7_167 = arith.constant 7 : index
    %c0_168 = arith.constant 0 : index
    %469 = vector.load %arg5[%c0_166, %c7_167, %c0_168] : memref<8x8x32xf32, #tpu.memory_space<vmem>>, vector<8x1x32xf32>
    tpu.vector_store %arg5[%c0_166, %c7_167, %c0_168], %468 {strides = array<i32>} : memref<8x8x32xf32, #tpu.memory_space<vmem>>, vector<8x1x32xf32>,
    return
  }
  func.func @transform_0(%arg0: i32) -> (i32, i32, i32) {
    %c0_i32 = arith.constant 0 : i32
    %c0_i32_0 = arith.constant 0 : i32
    %c0_i32_1 = arith.constant 0 : i32
    %c0_i32_2 = arith.constant 0 : i32
    return %c0_i32, %c0_i32_0, %c0_i32_1 : i32, i32, i32
  }
  func.func @transform_1(%arg0: i32) -> (i32, i32, i32) {
    %c0_i32 = arith.constant 0 : i32
    %c0_i32_0 = arith.constant 0 : i32
    %c0_i32_1 = arith.constant 0 : i32
    %c0_i32_2 = arith.constant 0 : i32
    return %c0_i32, %c0_i32_0, %c0_i32_1 : i32, i32, i32
  }
  func.func @transform_2(%arg0: i32) -> (i32, i32, i32) {
    %c0_i32 = arith.constant 0 : i32
    %c0_i32_0 = arith.constant 0 : i32
    %c0_i32_1 = arith.constant 0 : i32
    %c0_i32_2 = arith.constant 0 : i32
    return %c0_i32, %c0_i32_0, %c0_i32_1 : i32, i32, i32
  }
  func.func @transform_3(%arg0: i32) -> (i32, i32) {
    %c0_i32 = arith.constant 0 : i32
    %c0_i32_0 = arith.constant 0 : i32
    %c0_i32_1 = arith.constant 0 : i32
    return %c0_i32, %c0_i32_0 : i32, i32
  }
  func.func @transform_4(%arg0: i32) -> (i32, i32, i32) {
    %c0_i32 = arith.constant 0 : i32
    %c0_i32_0 = arith.constant 0 : i32
    %c0_i32_1 = arith.constant 0 : i32
    %c0_i32_2 = arith.constant 0 : i32
    return %c0_i32, %c0_i32_0, %c0_i32_1 : i32, i32, i32
  }
}

</mosaic_0001>

<llo_original>
// kernel: tpu_custom_call.1
$region0: #{tpu_custom_call.1}
  #allocation0 [shape = 'u32[]', space=smem, size = 0x4, offset = 0x4, fixed_abs, tag = 'smem constant byte address 0x4 - core index']
  #allocation1 [shape = 'u32[144,128]{1,0:T(1,128)}', space=vmem, size = 0x12000, scoped, tag = 'internal scratch']
  %s0 = inlined_call_operand.hbm [shape: f32[8,8,128], index: 0, kind: input, shape index: {}]
  %s1 = inlined_call_operand.hbm [shape: f32[8,16,32], index: 1, kind: input, shape index: {}]
  %s2 = inlined_call_operand.hbm [shape: f32[8,16,128], index: 2, kind: input, shape index: {}]
  %s3 = inlined_call_operand.hbm [shape: f32[32,128], index: 3, kind: input, shape index: {}]
  %s4 = inlined_call_operand.hbm [shape: f32[8,8,32], index: 4, kind: output, shape index: {}]
  %s5 = sld [smem:[#allocation0]]
  $region42: #{tpu_custom_call.1} parent=0
    _
  %s7 = ssub.s32 1, %s5
  %s8 = scalar_select 0, %s7, %s5
  $region1: #{tpu_custom_call.1} parent=0
    #allocation2 [shape = 'u8[32768]{0}', space=vmem, size = 0x8000, scoped, tag = 'input window, operand 0, single buffered']
    #allocation3 [shape = 's32[1]{0}', space=sflag, size = 0x4, scoped, tag = 'scoped memory for tpu_custom_call.1']
    #allocation4 [shape = 's32[1]{0}', space=sflag, size = 0x4, scoped, tag = 'scoped memory for tpu_custom_call.1']
    #allocation5 [shape = 'u8[65536]{0}', space=vmem, size = 0x10000, scoped, tag = 'input window, operand 1, single buffered']
    #allocation6 [shape = 's32[1]{0}', space=sflag, size = 0x4, scoped, tag = 'scoped memory for tpu_custom_call.1']
    #allocation7 [shape = 'u8[65536]{0}', space=vmem, size = 0x10000, scoped, tag = 'input window, operand 2, single buffered']
    #allocation8 [shape = 'u8[16384]{0}', space=vmem, size = 0x4000, scoped, tag = 'input window, operand 3, single buffered']
    #allocation9 [shape = 's32[1]{0}', space=sflag, size = 0x4, scoped, tag = 'scoped memory for tpu_custom_call.1']
    #allocation10 [shape = 'u8[32768]{0}', space=vmem, size = 0x8000, scoped, tag = 'output window, operand 0, single buffered']
    %9 = vsyncpa [#allocation3], 0
    %10 = vsyncpa [#allocation6], 0
    %11 = vsyncpa [#allocation9], 0
    %12 = vsyncpa [#allocation4], 0
    // Predicated region
    $region2: #{tpu_custom_call.1} parent=1 // pred_check
      _
    $region3: #{tpu_custom_call.1} parent=1 // pred_check_branch
      %14 = sbr.rel (0) target = $region5
    $region4: #{tpu_custom_call.1} parent=1 // pred_region
      %s16 = ssub.s32 1024, 1024
      %17 = vsyncadd [#allocation3], %s16
      %s18 = sshll.u32 [#allocation2], 4
      %s19 = int_to_ptr.vmem [resolvable:$true] %s18
      %24 = dma.hbm_to_vmem [thread:$0]  %s0, 1024, %s19, [#allocation3], 128, 128, 8
    $region5: #{tpu_custom_call.1} parent=1 // pred_fallthru
      _
    // Predicated region
    $region6: #{tpu_custom_call.1} parent=1 // pred_check
      _
    $region7: #{tpu_custom_call.1} parent=1 // pred_check_branch
      %26 = sbr.rel (0) target = $region9
    $region8: #{tpu_custom_call.1} parent=1 // pred_region
      %s28 = ssub.s32 2048, 2048
      %29 = vsyncadd [#allocation6], %s28
      %s30 = sshll.u32 [#allocation5], 4
      %s31 = int_to_ptr.vmem [resolvable:$true] %s30
      %36 = dma.hbm_to_vmem [thread:$0]  %s1, 2048, %s31, [#allocation6], 128, 128, 8
    $region9: #{tpu_custom_call.1} parent=1 // pred_fallthru
      _
    // Predicated region
    $region10: #{tpu_custom_call.1} parent=1 // pred_check
      _
    $region11: #{tpu_custom_call.1} parent=1 // pred_check_branch
      %38 = sbr.rel (0) target = $region13
    $region12: #{tpu_custom_call.1} parent=1 // pred_region
      %s40 = ssub.s32 2048, 2048
      %41 = vsyncadd [#allocation6], %s40
      %s42 = sshll.u32 [#allocation7], 4
      %s43 = int_to_ptr.vmem [resolvable:$true] %s42
      %48 = dma.hbm_to_vmem [thread:$0]  %s2, 2048, %s43, [#allocation6], 128, 128, 8
    $region13: #{tpu_custom_call.1} parent=1 // pred_fallthru
      _
    // Predicated region
    $region14: #{tpu_custom_call.1} parent=1 // pred_check
      _
    $region15: #{tpu_custom_call.1} parent=1 // pred_check_branch
      %50 = sbr.rel (0) target = $region17
    $region16: #{tpu_custom_call.1} parent=1 // pred_region
      %s52 = ssub.s32 512, 512
      %53 = vsyncadd [#allocation9], %s52
      %s54 = sshll.u32 [#allocation8], 4
      %s55 = int_to_ptr.vmem [resolvable:$true] %s54
      %60 = dma.hbm_to_vmem [thread:$0]  %s3, 512, %s55, [#allocation9], 128, 128, 8
    $region17: #{tpu_custom_call.1} parent=1 // pred_fallthru
      _
    // Predicated region
    $region18: #{tpu_custom_call.1} parent=1 // pred_check
      _
    $region19: #{tpu_custom_call.1} parent=1 // pred_check_branch
      %62 = sbr.rel (0) target = $region21
    $region20: #{tpu_custom_call.1} parent=1 // pred_region
      %63 = dma.done [#allocation3], 1024
    $region21: #{tpu_custom_call.1} parent=1 // pred_fallthru
      _
    // Predicated region
    $region22: #{tpu_custom_call.1} parent=1 // pred_check
      _
    $region23: #{tpu_custom_call.1} parent=1 // pred_check_branch
      %65 = sbr.rel (0) target = $region25
    $region24: #{tpu_custom_call.1} parent=1 // pred_region
      %66 = dma.done [#allocation6], 2048
    $region25: #{tpu_custom_call.1} parent=1 // pred_fallthru
      _
    // Predicated region
    $region26: #{tpu_custom_call.1} parent=1 // pred_check
      _
    $region27: #{tpu_custom_call.1} parent=1 // pred_check_branch
      %68 = sbr.rel (0) target = $region29
    $region28: #{tpu_custom_call.1} parent=1 // pred_region
      %69 = dma.done [#allocation6], 2048
    $region29: #{tpu_custom_call.1} parent=1 // pred_fallthru
      _
    // Predicated region
    $region30: #{tpu_custom_call.1} parent=1 // pred_check
      _
    $region31: #{tpu_custom_call.1} parent=1 // pred_check_branch
      %71 = sbr.rel (0) target = $region33
    $region32: #{tpu_custom_call.1} parent=1 // pred_region
      %72 = dma.done [#allocation9], 512
    $region33: #{tpu_custom_call.1} parent=1 // pred_fallthru
      _
    %v73 = vld [vmem:[#allocation5] sm:$0xff]
    %v74 = vld [vmem:[#allocation5 + $0x8] sm:$0xff]
    %v75 = vld [vmem:[#allocation5 + $0x10] sm:$0xff]
    %v76 = vld [vmem:[#allocation5 + $0x18] sm:$0xff]
    %v77 = vld [vmem:[#allocation5 + $0x20] sm:$0xff]
    %v78 = vld [vmem:[#allocation5 + $0x28] sm:$0xff]
    %v79 = vld [vmem:[#allocation5 + $0x30] sm:$0xff]
    %v80 = vld [vmem:[#allocation5 + $0x38] sm:$0xff]
    %v81 = vld [vmem:[#allocation5 + $0x40] sm:$0xff]
    %v82 = vld [vmem:[#allocation5 + $0x48] sm:$0xff]
    %v83 = vld [vmem:[#allocation5 + $0x50] sm:$0xff]
    %v84 = vld [vmem:[#allocation5 + $0x58] sm:$0xff]
    %v85 = vld [vmem:[#allocation5 + $0x60] sm:$0xff]
    %v86 = vld [vmem:[#allocation5 + $0x68] sm:$0xff]
    %v87 = vld [vmem:[#allocation5 + $0x70] sm:$0xff]
    %v88 = vld [vmem:[#allocation5 + $0x78] sm:$0xff]
    %v89 = vld [vmem:[#allocation7] sm:$0xff]
    %v90 = vld [vmem:[#allocation7 + $0x8] sm:$0xff]
    %v91 = vld [vmem:[#allocation7 + $0x10] sm:$0xff]
    %v92 = vld [vmem:[#allocation7 + $0x18] sm:$0xff]
    %v93 = vld [vmem:[#allocation7 + $0x20] sm:$0xff]
    %v94 = vld [vmem:[#allocation7 + $0x28] sm:$0xff]
    %v95 = vld [vmem:[#allocation7 + $0x30] sm:$0xff]
    %v96 = vld [vmem:[#allocation7 + $0x38] sm:$0xff]
    %v97 = vld [vmem:[#allocation7 + $0x40] sm:$0xff]
    %v98 = vld [vmem:[#allocation7 + $0x48] sm:$0xff]
    %v99 = vld [vmem:[#allocation7 + $0x50] sm:$0xff]
    %v100 = vld [vmem:[#allocation7 + $0x58] sm:$0xff]
    %v101 = vld [vmem:[#allocation7 + $0x60] sm:$0xff]
    %v102 = vld [vmem:[#allocation7 + $0x68] sm:$0xff]
    %v103 = vld [vmem:[#allocation7 + $0x70] sm:$0xff]
    %v104 = vld [vmem:[#allocation7 + $0x78] sm:$0xff]
    %v105 = vld [vmem:[#allocation8] sm:$0xff]
    %v106 = vld [vmem:[#allocation8 + $0x8] sm:$0xff]
    %v107 = vld [vmem:[#allocation8 + $0x10] sm:$0xff]
    %v108 = vld [vmem:[#allocation8 + $0x18] sm:$0xff]
    %vm109 = vcmask 261120
    %v110 = vsel %vm109, %v73, 0.0
    %v111 = vsel %vm109, %v74, 0.0
    %v112 = vadd.f32 %v110, %v111
    %v113 = vrot.slane %v112, 4
    %v114 = vadd.f32 %v112, %v113
    %v115 = vrot.slane %v114, 2
    %v116 = vadd.f32 %v114, %v115
    %v117 = vrot.slane %v116, 1
    %v118 = vadd.f32 %v116, %v117
    %v119 = vsel %vm109, %v75, 0.0
    %v120 = vsel %vm109, %v76, 0.0
    %v121 = vadd.f32 %v119, %v120
    %v122 = vrot.slane %v121, 4
    %v123 = vadd.f32 %v121, %v122
    %v124 = vrot.slane %v123, 2
    %v125 = vadd.f32 %v123, %v124
    %v126 = vrot.slane %v125, 1
    %v127 = vadd.f32 %v125, %v126
    %v128 = vsel %vm109, %v77, 0.0
    %v129 = vsel %vm109, %v78, 0.0
    %v130 = vadd.f32 %v128, %v129
    %v131 = vrot.slane %v130, 4
    %v132 = vadd.f32 %v130, %v131
    %v133 = vrot.slane %v132, 2
    %v134 = vadd.f32 %v132, %v133
    %v135 = vrot.slane %v134, 1
    %v136 = vadd.f32 %v134, %v135
    %v137 = vsel %vm109, %v79, 0.0
    %v138 = vsel %vm109, %v80, 0.0
    %v139 = vadd.f32 %v137, %v138
    %v140 = vrot.slane %v139, 4
    %v141 = vadd.f32 %v139, %v140
    %v142 = vrot.slane %v141, 2
    %v143 = vadd.f32 %v141, %v142
    %v144 = vrot.slane %v143, 1
    %v145 = vadd.f32 %v143, %v144
    %v146 = vsel %vm109, %v81, 0.0
    %v147 = vsel %vm109, %v82, 0.0
    %v148 = vadd.f32 %v146, %v147
    %v149 = vrot.slane %v148, 4
    %v150 = vadd.f32 %v148, %v149
    %v151 = vrot.slane %v150, 2
    %v152 = vadd.f32 %v150, %v151
    %v153 = vrot.slane %v152, 1
    %v154 = vadd.f32 %v152, %v153
    %v155 = vsel %vm109, %v83, 0.0
    %v156 = vsel %vm109, %v84, 0.0
    %v157 = vadd.f32 %v155, %v156
    %v158 = vrot.slane %v157, 4
    %v159 = vadd.f32 %v157, %v158
    %v160 = vrot.slane %v159, 2
    %v161 = vadd.f32 %v159, %v160
    %v162 = vrot.slane %v161, 1
    %v163 = vadd.f32 %v161, %v162
    %v164 = vsel %vm109, %v85, 0.0
    %v165 = vsel %vm109, %v86, 0.0
    %v166 = vadd.f32 %v164, %v165
    %v167 = vrot.slane %v166, 4
    %v168 = vadd.f32 %v166, %v167
    %v169 = vrot.slane %v168, 2
    %v170 = vadd.f32 %v168, %v169
    %v171 = vrot.slane %v170, 1
    %v172 = vadd.f32 %v170, %v171
    %v173 = vsel %vm109, %v87, 0.0
    %v174 = vsel %vm109, %v88, 0.0
    %v175 = vadd.f32 %v173, %v174
    %v176 = vrot.slane %v175, 4
    %v177 = vadd.f32 %v175, %v176
    %v178 = vrot.slane %v177, 2
    %v179 = vadd.f32 %v177, %v178
    %v180 = vrot.slane %v179, 1
    %v181 = vadd.f32 %v179, %v180
    %v182 = vrcp.pop 16.0
    %v183 = vmul.f32 %v118, %v182
    %v184 = vmul.f32 %v127, %v182
    %v185 = vmul.f32 %v136, %v182
    %v186 = vmul.f32 %v145, %v182
    %v187 = vmul.f32 %v154, %v182
    %v188 = vmul.f32 %v163, %v182
    %v189 = vmul.f32 %v172, %v182
    %v190 = vmul.f32 %v181, %v182
    %v191 = vmul.f32 %v183, %v73
    %v192 = vmul.f32 %v183, %v74
    %v193 = vmul.f32 %v184, %v75
    %v194 = vmul.f32 %v184, %v76
    %v195 = vmul.f32 %v185, %v77
    %v196 = vmul.f32 %v185, %v78
    %v197 = vmul.f32 %v186, %v79
    %v198 = vmul.f32 %v186, %v80
    %v199 = vmul.f32 %v187, %v81
    %v200 = vmul.f32 %v187, %v82
    %v201 = vmul.f32 %v188, %v83
    %v202 = vmul.f32 %v188, %v84
    %v203 = vmul.f32 %v189, %v85
    %v204 = vmul.f32 %v189, %v86
    %v205 = vmul.f32 %v190, %v87
    %v206 = vmul.f32 %v190, %v88
    %v207 = vsel %vm109, %v191, 0.0
    %208 = vadd.xlane.f32.xlu0 %v207
    %v209 = vpop.xlane.xlu0 %208
    %v210 = vsel %vm109, %v192, 0.0
    %211 = vadd.xlane.f32.xlu0 %v210
    %v212 = vpop.xlane.xlu0 %211
    %v213 = vsel %vm109, %v193, 0.0
    %214 = vadd.xlane.f32.xlu0 %v213
    %v215 = vpop.xlane.xlu0 %214
    %v216 = vsel %vm109, %v194, 0.0
    %217 = vadd.xlane.f32.xlu0 %v216
    %v218 = vpop.xlane.xlu0 %217
    %v219 = vsel %vm109, %v195, 0.0
    %220 = vadd.xlane.f32.xlu0 %v219
    %v221 = vpop.xlane.xlu0 %220
    %v222 = vsel %vm109, %v196, 0.0
    %223 = vadd.xlane.f32.xlu0 %v222
    %v224 = vpop.xlane.xlu0 %223
    %v225 = vsel %vm109, %v197, 0.0
    %226 = vadd.xlane.f32.xlu0 %v225
    %v227 = vpop.xlane.xlu0 %226
    %v228 = vsel %vm109, %v198, 0.0
    %229 = vadd.xlane.f32.xlu0 %v228
    %v230 = vpop.xlane.xlu0 %229
    %v231 = vsel %vm109, %v199, 0.0
    %232 = vadd.xlane.f32.xlu0 %v231
    %v233 = vpop.xlane.xlu0 %232
    %v234 = vsel %vm109, %v200, 0.0
    %235 = vadd.xlane.f32.xlu0 %v234
    %v236 = vpop.xlane.xlu0 %235
    %v237 = vsel %vm109, %v201, 0.0
    %238 = vadd.xlane.f32.xlu0 %v237
    %v239 = vpop.xlane.xlu0 %238
    %v240 = vsel %vm109, %v202, 0.0
    %241 = vadd.xlane.f32.xlu0 %v240
    %v242 = vpop.xlane.xlu0 %241
    %v243 = vsel %vm109, %v203, 0.0
    %244 = vadd.xlane.f32.xlu0 %v243
    %v245 = vpop.xlane.xlu0 %244
    %v246 = vsel %vm109, %v204, 0.0
    %247 = vadd.xlane.f32.xlu0 %v246
    %v248 = vpop.xlane.xlu0 %247
    %v249 = vsel %vm109, %v205, 0.0
    %250 = vadd.xlane.f32.xlu0 %v249
    %v251 = vpop.xlane.xlu0 %250
    %v252 = vsel %vm109, %v206, 0.0
    %253 = vadd.xlane.f32.xlu0 %v252
    %v254 = vpop.xlane.xlu0 %253
    %v255 = vmul.f32 %v209, 0.17677669
    %v256 = vmul.f32 %v212, 0.17677669
    %v257 = vmul.f32 %v215, 0.17677669
    %v258 = vmul.f32 %v218, 0.17677669
    %v259 = vmul.f32 %v221, 0.17677669
    %v260 = vmul.f32 %v224, 0.17677669
    %v261 = vmul.f32 %v227, 0.17677669
    %v262 = vmul.f32 %v230, 0.17677669
    %v263 = vmul.f32 %v233, 0.17677669
    %v264 = vmul.f32 %v236, 0.17677669
    %v265 = vmul.f32 %v239, 0.17677669
    %v266 = vmul.f32 %v242, 0.17677669
    %v267 = vmul.f32 %v245, 0.17677669
    %v268 = vmul.f32 %v248, 0.17677669
    %v269 = vmul.f32 %v251, 0.17677669
    %v270 = vmul.f32 %v254, 0.17677669
    %v287 = vlaneseq
    %v288 = vand.u32 %v287, 127
    %v289 = vlaneseq
    %v290 = vshrl.u32 %v289, 7
    %v291 = vsub.s32 %v288, %v290
    %v292 = vrot.slane %v255, %v291
    %v293 = vadd.s32 %v288, 4294967288
    %v294 = vlaneseq
    %v295 = vshrl.u32 %v294, 7
    %v296 = vsub.s32 %v293, %v295
    %v297 = vrot.slane %v256, %v296
    %vm298 = vcmask 130112
    %v299 = vsel %vm298, %v297, %v292
    %v300 = vlaneseq
    %v301 = vshrl.u32 %v300, 7
    %v302 = vsub.s32 %v288, %v301
    %v303 = vrot.slane %v257, %v302
    %v304 = vlaneseq
    %v305 = vshrl.u32 %v304, 7
    %v306 = vsub.s32 %v293, %v305
    %v307 = vrot.slane %v258, %v306
    %v308 = vsel %vm298, %v307, %v303
    %v309 = vlaneseq
    %v310 = vshrl.u32 %v309, 7
    %v311 = vsub.s32 %v288, %v310
    %v312 = vrot.slane %v259, %v311
    %v313 = vlaneseq
    %v314 = vshrl.u32 %v313, 7
    %v315 = vsub.s32 %v293, %v314
    %v316 = vrot.slane %v260, %v315
    %v317 = vsel %vm298, %v316, %v312
    %v318 = vlaneseq
    %v319 = vshrl.u32 %v318, 7
    %v320 = vsub.s32 %v288, %v319
    %v321 = vrot.slane %v261, %v320
    %v322 = vlaneseq
    %v323 = vshrl.u32 %v322, 7
    %v324 = vsub.s32 %v293, %v323
    %v325 = vrot.slane %v262, %v324
    %v326 = vsel %vm298, %v325, %v321
    %v327 = vlaneseq
    %v328 = vshrl.u32 %v327, 7
    %v329 = vsub.s32 %v288, %v328
    %v330 = vrot.slane %v263, %v329
    %v331 = vlaneseq
    %v332 = vshrl.u32 %v331, 7
    %v333 = vsub.s32 %v293, %v332
    %v334 = vrot.slane %v264, %v333
    %v335 = vsel %vm298, %v334, %v330
    %v336 = vlaneseq
    %v337 = vshrl.u32 %v336, 7
    %v338 = vsub.s32 %v288, %v337
    %v339 = vrot.slane %v265, %v338
    %v340 = vlaneseq
    %v341 = vshrl.u32 %v340, 7
    %v342 = vsub.s32 %v293, %v341
    %v343 = vrot.slane %v266, %v342
    %v344 = vsel %vm298, %v343, %v339
    %v345 = vlaneseq
    %v346 = vshrl.u32 %v345, 7
    %v347 = vsub.s32 %v288, %v346
    %v348 = vrot.slane %v267, %v347
    %v349 = vlaneseq
    %v350 = vshrl.u32 %v349, 7
    %v351 = vsub.s32 %v293, %v350
    %v352 = vrot.slane %v268, %v351
    %v353 = vsel %vm298, %v352, %v348
    %v354 = vlaneseq
    %v355 = vshrl.u32 %v354, 7
    %v356 = vsub.s32 %v288, %v355
    %v357 = vrot.slane %v269, %v356
    %v358 = vlaneseq
    %v359 = vshrl.u32 %v358, 7
    %v360 = vsub.s32 %v293, %v359
    %v361 = vrot.slane %v270, %v360
    %v362 = vsel %vm298, %v361, %v357
    %vm363 = vcmask 1041409
    %v364 = vsel %vm363, %v308, %v299
    %vm365 = vcmask 1042434
    %v366 = vsel %vm365, %v317, %v364
    %vm367 = vcmask 1043459
    %v368 = vsel %vm367, %v326, %v366
    %vm369 = vcmask 1044484
    %v370 = vsel %vm369, %v335, %v368
    %vm371 = vcmask 1045509
    %v372 = vsel %vm371, %v344, %v370
    %vm373 = vcmask 1046534
    %v374 = vsel %vm373, %v353, %v372
    %vm375 = vcmask 1047559
    %v376 = vsel %vm375, %v362, %v374
    %vm378 = vcmask 130048
    %v379 = vsel %vm378, %v376, -inf
    %380 = vmax.xlane.f32.xlu0 %v379
    %v381 = vpop.xlane.xlu0 %380
    %v383 = vlaneseq
    %v384 = vshrl.u32 %v383, 7
    %v385 = vsub.s32 0, %v384
    %v386 = vrot.slane %v381, %v385
    %v387 = vlaneseq
    %v388 = vshrl.u32 %v387, 7
    %v389 = vsub.s32 1, %v388
    %v390 = vrot.slane %v381, %v389
    %v391 = vlaneseq
    %v392 = vshrl.u32 %v391, 7
    %v393 = vsub.s32 2, %v392
    %v394 = vrot.slane %v381, %v393
    %v395 = vlaneseq
    %v396 = vshrl.u32 %v395, 7
    %v397 = vsub.s32 3, %v396
    %v398 = vrot.slane %v381, %v397
    %v399 = vlaneseq
    %v400 = vshrl.u32 %v399, 7
    %v401 = vsub.s32 4, %v400
    %v402 = vrot.slane %v381, %v401
    %v403 = vlaneseq
    %v404 = vshrl.u32 %v403, 7
    %v405 = vsub.s32 5, %v404
    %v406 = vrot.slane %v381, %v405
    %v407 = vlaneseq
    %v408 = vshrl.u32 %v407, 7
    %v409 = vsub.s32 6, %v408
    %v410 = vrot.slane %v381, %v409
    %v411 = vlaneseq
    %v412 = vshrl.u32 %v411, 7
    %v413 = vsub.s32 7, %v412
    %v414 = vrot.slane %v381, %v413
    %v423 = vsub.f32 %v255, %v386
    %v424 = vsub.f32 %v256, %v386
    %v425 = vsub.f32 %v257, %v390
    %v426 = vsub.f32 %v258, %v390
    %v427 = vsub.f32 %v259, %v394
    %v428 = vsub.f32 %v260, %v394
    %v429 = vsub.f32 %v261, %v398
    %v430 = vsub.f32 %v262, %v398
    %v431 = vsub.f32 %v263, %v402
    %v432 = vsub.f32 %v264, %v402
    %v433 = vsub.f32 %v265, %v406
    %v434 = vsub.f32 %v266, %v406
    %v435 = vsub.f32 %v267, %v410
    %v436 = vsub.f32 %v268, %v410
    %v437 = vsub.f32 %v269, %v414
    %v438 = vsub.f32 %v270, %v414
    %v439 = vmul.f32 %v423, 1.442695
    %v440 = vpow.pop %v439
    %v441 = vmul.f32 %v424, 1.442695
    %v442 = vpow.pop %v441
    %v443 = vmul.f32 %v425, 1.442695
    %v444 = vpow.pop %v443
    %v445 = vmul.f32 %v426, 1.442695
    %v446 = vpow.pop %v445
    %v447 = vmul.f32 %v427, 1.442695
    %v448 = vpow.pop %v447
    %v449 = vmul.f32 %v428, 1.442695
    %v450 = vpow.pop %v449
    %v451 = vmul.f32 %v429, 1.442695
    %v452 = vpow.pop %v451
    %v453 = vmul.f32 %v430, 1.442695
    %v454 = vpow.pop %v453
    %v455 = vmul.f32 %v431, 1.442695
    %v456 = vpow.pop %v455
    %v457 = vmul.f32 %v432, 1.442695
    %v458 = vpow.pop %v457
    %v459 = vmul.f32 %v433, 1.442695
    %v460 = vpow.pop %v459
    %v461 = vmul.f32 %v434, 1.442695
    %v462 = vpow.pop %v461
    %v463 = vmul.f32 %v435, 1.442695
    %v464 = vpow.pop %v463
    %v465 = vmul.f32 %v436, 1.442695
    %v466 = vpow.pop %v465
    %v467 = vmul.f32 %v437, 1.442695
    %v468 = vpow.pop %v467
    %v469 = vmul.f32 %v438, 1.442695
    %v470 = vpow.pop %v469
    %487 = vset.pattern.permute.xlu0 0
    %488 = vperm.xlu0 %487, %v440
    %v489 = vpop.permute.xlu0 %488
    %490 = vset.pattern.permute.xlu0 0
    %491 = vperm.xlu0 %490, %v442
    %v492 = vpop.permute.xlu0 %491
    %493 = vset.pattern.permute.xlu0 0
    %494 = vperm.xlu0 %493, %v444
    %v495 = vpop.permute.xlu0 %494
    %496 = vset.pattern.permute.xlu0 0
    %497 = vperm.xlu0 %496, %v446
    %v498 = vpop.permute.xlu0 %497
    %499 = vset.pattern.permute.xlu0 0
    %500 = vperm.xlu0 %499, %v448
    %v501 = vpop.permute.xlu0 %500
    %502 = vset.pattern.permute.xlu0 0
    %503 = vperm.xlu0 %502, %v450
    %v504 = vpop.permute.xlu0 %503
    %505 = vset.pattern.permute.xlu0 0
    %506 = vperm.xlu0 %505, %v452
    %v507 = vpop.permute.xlu0 %506
    %508 = vset.pattern.permute.xlu0 0
    %509 = vperm.xlu0 %508, %v454
    %v510 = vpop.permute.xlu0 %509
    %511 = vset.pattern.permute.xlu0 0
    %512 = vperm.xlu0 %511, %v456
    %v513 = vpop.permute.xlu0 %512
    %514 = vset.pattern.permute.xlu0 0
    %515 = vperm.xlu0 %514, %v458
    %v516 = vpop.permute.xlu0 %515
    %517 = vset.pattern.permute.xlu0 0
    %518 = vperm.xlu0 %517, %v460
    %v519 = vpop.permute.xlu0 %518
    %520 = vset.pattern.permute.xlu0 0
    %521 = vperm.xlu0 %520, %v462
    %v522 = vpop.permute.xlu0 %521
    %523 = vset.pattern.permute.xlu0 0
    %524 = vperm.xlu0 %523, %v464
    %v525 = vpop.permute.xlu0 %524
    %526 = vset.pattern.permute.xlu0 0
    %527 = vperm.xlu0 %526, %v466
    %v528 = vpop.permute.xlu0 %527
    %529 = vset.pattern.permute.xlu0 0
    %530 = vperm.xlu0 %529, %v468
    %v531 = vpop.permute.xlu0 %530
    %532 = vset.pattern.permute.xlu0 0
    %533 = vperm.xlu0 %532, %v470
    %v534 = vpop.permute.xlu0 %533
    %v535 = vlaneseq
    %v536 = vshrl.u32 %v535, 7
    %v537 = vsub.s32 %v288, %v536
    %v538 = vrot.slane %v489, %v537
    %v539 = vlaneseq
    %v540 = vshrl.u32 %v539, 7
    %v541 = vsub.s32 %v293, %v540
    %v542 = vrot.slane %v492, %v541
    %v543 = vsel %vm298, %v542, %v538
    %v544 = vlaneseq
    %v545 = vshrl.u32 %v544, 7
    %v546 = vsub.s32 %v288, %v545
    %v547 = vrot.slane %v495, %v546
    %v548 = vlaneseq
    %v549 = vshrl.u32 %v548, 7
    %v550 = vsub.s32 %v293, %v549
    %v551 = vrot.slane %v498, %v550
    %v552 = vsel %vm298, %v551, %v547
    %v553 = vlaneseq
    %v554 = vshrl.u32 %v553, 7
    %v555 = vsub.s32 %v288, %v554
    %v556 = vrot.slane %v501, %v555
    %v557 = vlaneseq
    %v558 = vshrl.u32 %v557, 7
    %v559 = vsub.s32 %v293, %v558
    %v560 = vrot.slane %v504, %v559
    %v561 = vsel %vm298, %v560, %v556
    %v562 = vlaneseq
    %v563 = vshrl.u32 %v562, 7
    %v564 = vsub.s32 %v288, %v563
    %v565 = vrot.slane %v507, %v564
    %v566 = vlaneseq
    %v567 = vshrl.u32 %v566, 7
    %v568 = vsub.s32 %v293, %v567
    %v569 = vrot.slane %v510, %v568
    %v570 = vsel %vm298, %v569, %v565
    %v571 = vlaneseq
    %v572 = vshrl.u32 %v571, 7
    %v573 = vsub.s32 %v288, %v572
    %v574 = vrot.slane %v513, %v573
    %v575 = vlaneseq
    %v576 = vshrl.u32 %v575, 7
    %v577 = vsub.s32 %v293, %v576
    %v578 = vrot.slane %v516, %v577
    %v579 = vsel %vm298, %v578, %v574
    %v580 = vlaneseq
    %v581 = vshrl.u32 %v580, 7
    %v582 = vsub.s32 %v288, %v581
    %v583 = vrot.slane %v519, %v582
    %v584 = vlaneseq
    %v585 = vshrl.u32 %v584, 7
    %v586 = vsub.s32 %v293, %v585
    %v587 = vrot.slane %v522, %v586
    %v588 = vsel %vm298, %v587, %v583
    %v589 = vlaneseq
    %v590 = vshrl.u32 %v589, 7
    %v591 = vsub.s32 %v288, %v590
    %v592 = vrot.slane %v525, %v591
    %v593 = vlaneseq
    %v594 = vshrl.u32 %v593, 7
    %v595 = vsub.s32 %v293, %v594
    %v596 = vrot.slane %v528, %v595
    %v597 = vsel %vm298, %v596, %v592
    %v598 = vlaneseq
    %v599 = vshrl.u32 %v598, 7
    %v600 = vsub.s32 %v288, %v599
    %v601 = vrot.slane %v531, %v600
    %v602 = vlaneseq
    %v603 = vshrl.u32 %v602, 7
    %v604 = vsub.s32 %v293, %v603
    %v605 = vrot.slane %v534, %v604
    %v606 = vsel %vm298, %v605, %v601
    %v607 = vsel %vm363, %v552, %v543
    %v608 = vsel %vm365, %v561, %v607
    %v609 = vsel %vm367, %v570, %v608
    %v610 = vsel %vm369, %v579, %v609
    %v611 = vsel %vm371, %v588, %v610
    %v612 = vsel %vm373, %v597, %v611
    %v613 = vsel %vm375, %v606, %v612
    %v615 = vsel %vm378, %v613, 0.0
    %616 = vadd.xlane.f32.xlu0 %v615
    %v617 = vpop.xlane.xlu0 %616
    %v618 = vrcp.pop %v617
    %v620 = vlaneseq
    %v621 = vshrl.u32 %v620, 7
    %v622 = vsub.s32 0, %v621
    %v623 = vrot.slane %v618, %v622
    %v624 = vlaneseq
    %v625 = vshrl.u32 %v624, 7
    %v626 = vsub.s32 1, %v625
    %v627 = vrot.slane %v618, %v626
    %v628 = vlaneseq
    %v629 = vshrl.u32 %v628, 7
    %v630 = vsub.s32 2, %v629
    %v631 = vrot.slane %v618, %v630
    %v632 = vlaneseq
    %v633 = vshrl.u32 %v632, 7
    %v634 = vsub.s32 3, %v633
    %v635 = vrot.slane %v618, %v634
    %v636 = vlaneseq
    %v637 = vshrl.u32 %v636, 7
    %v638 = vsub.s32 4, %v637
    %v639 = vrot.slane %v618, %v638
    %v640 = vlaneseq
    %v641 = vshrl.u32 %v640, 7
    %v642 = vsub.s32 5, %v641
    %v643 = vrot.slane %v618, %v642
    %v644 = vlaneseq
    %v645 = vshrl.u32 %v644, 7
    %v646 = vsub.s32 6, %v645
    %v647 = vrot.slane %v618, %v646
    %v648 = vlaneseq
    %v649 = vshrl.u32 %v648, 7
    %v650 = vsub.s32 7, %v649
    %v651 = vrot.slane %v618, %v650
    %v660 = vmul.f32 %v440, %v623
    %v661 = vmul.f32 %v442, %v623
    %v662 = vmul.f32 %v444, %v627
    %v663 = vmul.f32 %v446, %v627
    %v664 = vmul.f32 %v448, %v631
    %v665 = vmul.f32 %v450, %v631
    %v666 = vmul.f32 %v452, %v635
    %v667 = vmul.f32 %v454, %v635
    %v668 = vmul.f32 %v456, %v639
    %v669 = vmul.f32 %v458, %v639
    %v670 = vmul.f32 %v460, %v643
    %v671 = vmul.f32 %v462, %v643
    %v672 = vmul.f32 %v464, %v647
    %v673 = vmul.f32 %v466, %v647
    %v674 = vmul.f32 %v468, %v651
    %v675 = vmul.f32 %v470, %v651
    %677 = vset.pattern.permute.xlu0 0
    %678 = vperm.xlu0 %677, %v660
    %v679 = vpop.permute.xlu0 %678
    %682 = vset.pattern.permute.xlu0 0
    %683 = vperm.xlu0 %682, %v661
    %v684 = vpop.permute.xlu0 %683
    %687 = vset.pattern.permute.xlu0 0
    %688 = vperm.xlu0 %687, %v662
    %v689 = vpop.permute.xlu0 %688
    %692 = vset.pattern.permute.xlu0 0
    %693 = vperm.xlu0 %692, %v663
    %v694 = vpop.permute.xlu0 %693
    %697 = vset.pattern.permute.xlu0 0
    %698 = vperm.xlu0 %697, %v664
    %v699 = vpop.permute.xlu0 %698
    %702 = vset.pattern.permute.xlu0 0
    %703 = vperm.xlu0 %702, %v665
    %v704 = vpop.permute.xlu0 %703
    %707 = vset.pattern.permute.xlu0 0
    %708 = vperm.xlu0 %707, %v666
    %v709 = vpop.permute.xlu0 %708
    %712 = vset.pattern.permute.xlu0 0
    %713 = vperm.xlu0 %712, %v667
    %v714 = vpop.permute.xlu0 %713
    %717 = vset.pattern.permute.xlu0 0
    %718 = vperm.xlu0 %717, %v668
    %v719 = vpop.permute.xlu0 %718
    %722 = vset.pattern.permute.xlu0 0
    %723 = vperm.xlu0 %722, %v669
    %v724 = vpop.permute.xlu0 %723
    %727 = vset.pattern.permute.xlu0 0
    %728 = vperm.xlu0 %727, %v670
    %v729 = vpop.permute.xlu0 %728
    %732 = vset.pattern.permute.xlu0 0
    %733 = vperm.xlu0 %732, %v671
    %v734 = vpop.permute.xlu0 %733
    %737 = vset.pattern.permute.xlu0 0
    %738 = vperm.xlu0 %737, %v672
    %v739 = vpop.permute.xlu0 %738
    %742 = vset.pattern.permute.xlu0 0
    %743 = vperm.xlu0 %742, %v673
    %v744 = vpop.permute.xlu0 %743
    %747 = vset.pattern.permute.xlu0 0
    %748 = vperm.xlu0 %747, %v674
    %v749 = vpop.permute.xlu0 %748
    %752 = vset.pattern.permute.xlu0 0
    %753 = vperm.xlu0 %752, %v675
    %v754 = vpop.permute.xlu0 %753
    %v756 = vmul.f32 %v679, %v89
    %v757 = vmul.f32 %v684, %v90
    %v758 = vmul.f32 %v689, %v91
    %v759 = vmul.f32 %v694, %v92
    %v760 = vmul.f32 %v699, %v93
    %v761 = vmul.f32 %v704, %v94
    %v762 = vmul.f32 %v709, %v95
    %v763 = vmul.f32 %v714, %v96
    %v764 = vmul.f32 %v719, %v97
    %v765 = vmul.f32 %v724, %v98
    %v766 = vmul.f32 %v729, %v99
    %v767 = vmul.f32 %v734, %v100
    %v768 = vmul.f32 %v739, %v101
    %v769 = vmul.f32 %v744, %v102
    %v770 = vmul.f32 %v749, %v103
    %v771 = vmul.f32 %v754, %v104
    %v772 = vadd.f32 %v756, %v757
    %v773 = vrot.slane %v772, 4
    %v774 = vadd.f32 %v772, %v773
    %v775 = vrot.slane %v774, 2
    %v776 = vadd.f32 %v774, %v775
    %v777 = vrot.slane %v776, 1
    %v778 = vadd.f32 %v776, %v777
    %v779 = vadd.f32 %v758, %v759
    %v780 = vrot.slane %v779, 4
    %v781 = vadd.f32 %v779, %v780
    %v782 = vrot.slane %v781, 2
    %v783 = vadd.f32 %v781, %v782
    %v784 = vrot.slane %v783, 1
    %v785 = vadd.f32 %v783, %v784
    %v786 = vadd.f32 %v760, %v761
    %v787 = vrot.slane %v786, 4
    %v788 = vadd.f32 %v786, %v787
    %v789 = vrot.slane %v788, 2
    %v790 = vadd.f32 %v788, %v789
    %v791 = vrot.slane %v790, 1
    %v792 = vadd.f32 %v790, %v791
    %v793 = vadd.f32 %v762, %v763
    %v794 = vrot.slane %v793, 4
    %v795 = vadd.f32 %v793, %v794
    %v796 = vrot.slane %v795, 2
    %v797 = vadd.f32 %v795, %v796
    %v798 = vrot.slane %v797, 1
    %v799 = vadd.f32 %v797, %v798
    %v800 = vadd.f32 %v764, %v765
    %v801 = vrot.slane %v800, 4
    %v802 = vadd.f32 %v800, %v801
    %v803 = vrot.slane %v802, 2
    %v804 = vadd.f32 %v802, %v803
    %v805 = vrot.slane %v804, 1
    %v806 = vadd.f32 %v804, %v805
    %v807 = vadd.f32 %v766, %v767
    %v808 = vrot.slane %v807, 4
    %v809 = vadd.f32 %v807, %v808
    %v810 = vrot.slane %v809, 2
    %v811 = vadd.f32 %v809, %v810
    %v812 = vrot.slane %v811, 1
    %v813 = vadd.f32 %v811, %v812
    %v814 = vadd.f32 %v768, %v769
    %v815 = vrot.slane %v814, 4
    %v816 = vadd.f32 %v814, %v815
    %v817 = vrot.slane %v816, 2
    %v818 = vadd.f32 %v816, %v817
    %v819 = vrot.slane %v818, 1
    %v820 = vadd.f32 %v818, %v819
    %v821 = vadd.f32 %v770, %v771
    %v822 = vrot.slane %v821, 4
    %v823 = vadd.f32 %v821, %v822
    %v824 = vrot.slane %v823, 2
    %v825 = vadd.f32 %v823, %v824
    %v826 = vrot.slane %v825, 1
    %v827 = vadd.f32 %v825, %v826
    %v828 = vld [vmem:[#allocation2] sm:$0xff]
    %v837 = vsel %vm363, %v184, %v183
    %v838 = vsel %vm365, %v185, %v837
    %v839 = vsel %vm367, %v186, %v838
    %v840 = vsel %vm369, %v187, %v839
    %v841 = vsel %vm371, %v188, %v840
    %v842 = vsel %vm373, %v189, %v841
    %v843 = vsel %vm375, %v190, %v842
    %v844 = vsel %vm109, %v843, 0
    %846 = vmatprep.subr.mxu0 0.0
    %847 = vmatpush1.msra.mxu0 %v105
    %848 = vmatprep.subr.mxu0 0.0
    %849 = vmatpush1.msra.mxu0 %v106
    %850 = vmatprep.subr.mxu0 0.0
    %851 = vmatpush1.msra.mxu0 %v107
    %852 = vmatprep.subr.mxu0 0.0
    %853 = vmatpush1.msra.mxu0 %v108
    %854 = vmatprep.subr.mxu0 0.0
    %855 = vmatpush1.msra.mxu0 0.0
    %856 = vmatprep.subr.mxu0 0.0
    %857 = vmatpush1.msra.mxu0 0.0
    %858 = vmatprep.subr.mxu0 0.0
    %859 = vmatpush1.msra.mxu0 0.0
    %860 = vmatprep.subr.mxu0 0.0
    %861 = vmatpush1.msra.mxu0 0.0
    %862 = vmatprep.subr.mxu0 0.0
    %863 = vmatpush1.msra.mxu0 0.0
    %864 = vmatprep.subr.mxu0 0.0
    %865 = vmatpush1.msra.mxu0 0.0
    %866 = vmatprep.subr.mxu0 0.0
    %867 = vmatpush1.msra.mxu0 0.0
    %868 = vmatprep.subr.mxu0 0.0
    %869 = vmatpush1.msra.mxu0 0.0
    %870 = vmatprep.subr.mxu0 0.0
    %871 = vmatpush1.msra.mxu0 0.0
    %872 = vmatprep.subr.mxu0 0.0
    %873 = vmatpush1.msra.mxu0 0.0
    %874 = vmatprep.subr.mxu0 0.0
    %875 = vmatpush1.msra.mxu0 0.0
    %876 = vmatprep.subr.mxu0 0.0
    %877 = vmatpush1.msra.mxu0 0.0
    %878 = vmatprep.subr.mxu0 0.0
    %879 = vmatpush1.msra.mxu0 0.0
    %880 = vmatprep.subr.mxu0 0.0
    %881 = vmatpush1.msra.mxu0 0.0
    %882 = vmatprep.subr.mxu0 0.0
    %883 = vmatpush1.msra.mxu0 0.0
    %884 = vmatprep.subr.mxu0 0.0
    %885 = vmatpush1.msra.mxu0 0.0
    %886 = vmatprep.subr.mxu0 0.0
    %887 = vmatpush1.msra.mxu0 0.0
    %888 = vmatprep.subr.mxu0 0.0
    %889 = vmatpush1.msra.mxu0 0.0
    %890 = vmatprep.subr.mxu0 0.0
    %891 = vmatpush1.msra.mxu0 0.0
    %892 = vmatprep.subr.mxu0 0.0
    %893 = vmatpush1.msra.mxu0 0.0
    %894 = vmatprep.subr.mxu0 0.0
    %895 = vmatpush1.msra.mxu0 0.0
    %896 = vmatprep.subr.mxu0 0.0
    %897 = vmatpush1.msra.mxu0 0.0
    %898 = vmatprep.subr.mxu0 0.0
    %899 = vmatpush1.msra.mxu0 0.0
    %900 = vmatprep.subr.mxu0 0.0
    %901 = vmatpush1.msra.mxu0 0.0
    %902 = vmatprep.subr.mxu0 0.0
    %903 = vmatpush1.msra.mxu0 0.0
    %904 = vmatprep.subr.mxu0 0.0
    %905 = vmatpush1.msra.mxu0 0.0
    %906 = vmatprep.subr.mxu0 0.0
    %907 = vmatpush1.msra.mxu0 0.0
    %908 = vmatprep.subr.mxu0 0.0
    %909 = vmatpush1.msra.mxu0 0.0
    %910 = vmatprep.mubr.f32.mxu0 0.0
    %911 = vmatmul.mubr.f32.gmra.mrb[0].mxu0 %v844
    %v912 = vpop.f32.mrb[0].mxu0
    %v913 = vadd.f32 0.0, %v912
    %v914 = vpop.f32.mrb[0].mxu0
    %915 = vdwg.mxu0
    %v916 = vadd.f32 %v828, %v913
    %v925 = vsel %vm363, %v785, %v778
    %v926 = vsel %vm365, %v792, %v925
    %v927 = vsel %vm367, %v799, %v926
    %v928 = vsel %vm369, %v806, %v927
    %v929 = vsel %vm371, %v813, %v928
    %v930 = vsel %vm373, %v820, %v929
    %v931 = vsel %vm375, %v827, %v930
    %v933 = vadd.f32 %v916, %v931
    %v934 = vmul.f32 %v933, 0.5
    %v935 = vtanh.pop %v934
    %v936 = vmul.f32 %v935, 0.5
    %v937 = vadd.f32 %v936, 0.5
    %v938 = vtanh.pop %v933
    %939 = vrot.lane.b32.xlu0 %v843, 32
    %v940 = vpop.permute.xlu0 %939
    %v942 = vmul.f32 %v937, %v940
    %944 = vrot.lane.b32.xlu0 %v938, 32
    %v945 = vpop.permute.xlu0 %944
    %v947 = vmul.f32 %v937, %v945
    %949 = vrot.lane.b32.xlu0 %v947, 32
    %v950 = vpop.permute.xlu0 %949
    %v952 = vadd.f32 %v942, %v950
    %v953 = vtanh.pop %v952
    %955 = vrot.lane.b32.xlu0 %v953, 32
    %v956 = vpop.permute.xlu0 %955
    %v958 = vmul.f32 %v937, %v956
    %v960 = vcombine.high %v958, %v958
    %v962 = vunpack.c.l.s4 1966171168
    %v963 = vunpack.c.0.s8 %v962
    %v964 = vlaneseq
    %v965 = vshrl.u32 %v964, 7
    %v966 = vsub.s32 %v963, %v965
    %v967 = vrot.slane %v958, %v966
    %v969 = vunpack.c.l.s4 1966171168
    %v970 = vunpack.c.0.s8 %v969
    %v971 = vlaneseq
    %v972 = vshrl.u32 %v971, 7
    %v973 = vsub.s32 %v970, %v972
    %v974 = vrot.slane %v960, %v973
    %v975 = vcombine.high %v967, %v967
    %v976 = vcombine.high %v974, %v974
    %v978 = vunpack.c.l.s4 1966171168
    %v979 = vunpack.c.0.s8 %v978
    %v980 = vlaneseq
    %v981 = vshrl.u32 %v980, 7
    %v982 = vsub.s32 %v979, %v981
    %v983 = vrot.slane %v967, %v982
    %v985 = vunpack.c.l.s4 1966171168
    %v986 = vunpack.c.0.s8 %v985
    %v987 = vlaneseq
    %v988 = vshrl.u32 %v987, 7
    %v989 = vsub.s32 %v986, %v988
    %v990 = vrot.slane %v974, %v989
    %v992 = vunpack.c.l.s4 1966171168
    %v993 = vunpack.c.0.s8 %v992
    %v994 = vlaneseq
    %v995 = vshrl.u32 %v994, 7
    %v996 = vsub.s32 %v993, %v995
    %v997 = vrot.slane %v975, %v996
    %v999 = vunpack.c.l.s4 1966171168
    %v1000 = vunpack.c.0.s8 %v999
    %v1001 = vlaneseq
    %v1002 = vshrl.u32 %v1001, 7
    %v1003 = vsub.s32 %v1000, %v1002
    %v1004 = vrot.slane %v976, %v1003
    %v1005 = vcombine.high %v983, %v983
    %v1006 = vcombine.high %v990, %v990
    %v1007 = vcombine.high %v997, %v997
    %v1008 = vcombine.high %v1004, %v1004
    %v1009 = vlaneseq
    %v1010 = vshrl.u32 %v1009, 7
    %v1011 = vsub.s32 0, %v1010
    %v1012 = vrot.slane %v983, %v1011
    %v1013 = vlaneseq
    %v1014 = vshrl.u32 %v1013, 7
    %v1015 = vsub.s32 0, %v1014
    %v1016 = vrot.slane %v997, %v1015
    %v1017 = vlaneseq
    %v1018 = vshrl.u32 %v1017, 7
    %v1019 = vsub.s32 0, %v1018
    %v1020 = vrot.slane %v1005, %v1019
    %v1021 = vlaneseq
    %v1022 = vshrl.u32 %v1021, 7
    %v1023 = vsub.s32 0, %v1022
    %v1024 = vrot.slane %v1007, %v1023
    %v1025 = vlaneseq
    %v1026 = vshrl.u32 %v1025, 7
    %v1027 = vsub.s32 0, %v1026
    %v1028 = vrot.slane %v990, %v1027
    %v1029 = vlaneseq
    %v1030 = vshrl.u32 %v1029, 7
    %v1031 = vsub.s32 0, %v1030
    %v1032 = vrot.slane %v1004, %v1031
    %v1033 = vlaneseq
    %v1034 = vshrl.u32 %v1033, 7
    %v1035 = vsub.s32 0, %v1034
    %v1036 = vrot.slane %v1006, %v1035
    %v1037 = vlaneseq
    %v1038 = vshrl.u32 %v1037, 7
    %v1039 = vsub.s32 0, %v1038
    %v1040 = vrot.slane %v1008, %v1039
    %1041 = vrot.lane.b32.xlu0 %v1012, 64
    %v1042 = vpop.permute.xlu0 %1041
    %1043 = vrot.lane.b32.xlu0 %v1016, 64
    %v1044 = vpop.permute.xlu0 %1043
    %1045 = vrot.lane.b32.xlu0 %v1020, 64
    %v1046 = vpop.permute.xlu0 %1045
    %1047 = vrot.lane.b32.xlu0 %v1024, 64
    %v1048 = vpop.permute.xlu0 %1047
    %1049 = vrot.lane.b32.xlu0 %v1028, 64
    %v1050 = vpop.permute.xlu0 %1049
    %1051 = vrot.lane.b32.xlu0 %v1032, 64
    %v1052 = vpop.permute.xlu0 %1051
    %1053 = vrot.lane.b32.xlu0 %v1036, 64
    %v1054 = vpop.permute.xlu0 %1053
    %1055 = vrot.lane.b32.xlu0 %v1040, 64
    %v1056 = vpop.permute.xlu0 %1055
    %vm1065 = vcmask 253952
    %1066 = vst.msk [vmem:[#allocation10] sm:$0x1] %vm1065, %v1042
    %1067 = vst.msk [vmem:[#allocation10 + $0x8] sm:$0x1] %vm1065, %v1044
    %1068 = vst.msk [vmem:[#allocation10 + $0x10] sm:$0x1] %vm1065, %v1046
    %1069 = vst.msk [vmem:[#allocation10 + $0x18] sm:$0x1] %vm1065, %v1048
    %1070 = vst.msk [vmem:[#allocation10 + $0x20] sm:$0x1] %vm1065, %v1050
    %1071 = vst.msk [vmem:[#allocation10 + $0x28] sm:$0x1] %vm1065, %v1052
    %1072 = vst.msk [vmem:[#allocation10 + $0x30] sm:$0x1] %vm1065, %v1054
    %1073 = vst.msk [vmem:[#allocation10 + $0x38] sm:$0x1] %vm1065, %v1056
    %1098 = vrot.lane.b32.xlu0 %v73, 64
    %v1099 = vpop.permute.xlu0 %1098
    %1100 = vrot.lane.b32.xlu0 %v74, 64
    %v1101 = vpop.permute.xlu0 %1100
    %1102 = vrot.lane.b32.xlu0 %v75, 64
    %v1103 = vpop.permute.xlu0 %1102
    %1104 = vrot.lane.b32.xlu0 %v76, 64
    %v1105 = vpop.permute.xlu0 %1104
    %1106 = vrot.lane.b32.xlu0 %v77, 64
    %v1107 = vpop.permute.xlu0 %1106
    %1108 = vrot.lane.b32.xlu0 %v78, 64
    %v1109 = vpop.permute.xlu0 %1108
    %1110 = vrot.lane.b32.xlu0 %v79, 64
    %v1111 = vpop.permute.xlu0 %1110
    %1112 = vrot.lane.b32.xlu0 %v80, 64
    %v1113 = vpop.permute.xlu0 %1112
    %1114 = vrot.lane.b32.xlu0 %v81, 64
    %v1115 = vpop.permute.xlu0 %1114
    %1116 = vrot.lane.b32.xlu0 %v82, 64
    %v1117 = vpop.permute.xlu0 %1116
    %1118 = vrot.lane.b32.xlu0 %v83, 64
    %v1119 = vpop.permute.xlu0 %1118
    %1120 = vrot.lane.b32.xlu0 %v84, 64
    %v1121 = vpop.permute.xlu0 %1120
    %1122 = vrot.lane.b32.xlu0 %v85, 64
    %v1123 = vpop.permute.xlu0 %1122
    %1124 = vrot.lane.b32.xlu0 %v86, 64
    %v1125 = vpop.permute.xlu0 %1124
    %1126 = vrot.lane.b32.xlu0 %v87, 64
    %v1127 = vpop.permute.xlu0 %1126
    %1128 = vrot.lane.b32.xlu0 %v88, 64
    %v1129 = vpop.permute.xlu0 %1128
    %v1146 = vmul.f32 %v1012, %v1099
    %v1147 = vmul.f32 %v1012, %v1101
    %v1148 = vmul.f32 %v1016, %v1103
    %v1149 = vmul.f32 %v1016, %v1105
    %v1150 = vmul.f32 %v1020, %v1107
    %v1151 = vmul.f32 %v1020, %v1109
    %v1152 = vmul.f32 %v1024, %v1111
    %v1153 = vmul.f32 %v1024, %v1113
    %v1154 = vmul.f32 %v1028, %v1115
    %v1155 = vmul.f32 %v1028, %v1117
    %v1156 = vmul.f32 %v1032, %v1119
    %v1157 = vmul.f32 %v1032, %v1121
    %v1158 = vmul.f32 %v1036, %v1123
    %v1159 = vmul.f32 %v1036, %v1125
    %v1160 = vmul.f32 %v1040, %v1127
    %v1161 = vmul.f32 %v1040, %v1129
    %1178 = vrot.lane.b32.xlu0 %v1146, 64
    %v1179 = vpop.permute.xlu0 %1178
    %1180 = vrot.lane.b32.xlu0 %v1147, 64
    %v1181 = vpop.permute.xlu0 %1180
    %1182 = vrot.lane.b32.xlu0 %v1148, 64
    %v1183 = vpop.permute.xlu0 %1182
    %1184 = vrot.lane.b32.xlu0 %v1149, 64
    %v1185 = vpop.permute.xlu0 %1184
    %1186 = vrot.lane.b32.xlu0 %v1150, 64
    %v1187 = vpop.permute.xlu0 %1186
    %1188 = vrot.lane.b32.xlu0 %v1151, 64
    %v1189 = vpop.permute.xlu0 %1188
    %1190 = vrot.lane.b32.xlu0 %v1152, 64
    %v1191 = vpop.permute.xlu0 %1190
    %1192 = vrot.lane.b32.xlu0 %v1153, 64
    %v1193 = vpop.permute.xlu0 %1192
    %1194 = vrot.lane.b32.xlu0 %v1154, 64
    %v1195 = vpop.permute.xlu0 %1194
    %1196 = vrot.lane.b32.xlu0 %v1155, 64
    %v1197 = vpop.permute.xlu0 %1196
    %1198 = vrot.lane.b32.xlu0 %v1156, 64
    %v1199 = vpop.permute.xlu0 %1198
    %1200 = vrot.lane.b32.xlu0 %v1157, 64
    %v1201 = vpop.permute.xlu0 %1200
    %1202 = vrot.lane.b32.xlu0 %v1158, 64
    %v1203 = vpop.permute.xlu0 %1202
    %1204 = vrot.lane.b32.xlu0 %v1159, 64
    %v1205 = vpop.permute.xlu0 %1204
    %1206 = vrot.lane.b32.xlu0 %v1160, 64
    %v1207 = vpop.permute.xlu0 %1206
    %1208 = vrot.lane.b32.xlu0 %v1161, 64
    %v1209 = vpop.permute.xlu0 %1208
    %v1226 = vsel %vm109, %v1179, 0.0
    %1227 = vadd.xlane.f32.xlu0 %v1226
    %v1228 = vpop.xlane.xlu0 %1227
    %v1229 = vsel %vm109, %v1181, 0.0
    %1230 = vadd.xlane.f32.xlu0 %v1229
    %v1231 = vpop.xlane.xlu0 %1230
    %v1232 = vsel %vm109, %v1183, 0.0
    %1233 = vadd.xlane.f32.xlu0 %v1232
    %v1234 = vpop.xlane.xlu0 %1233
    %v1235 = vsel %vm109, %v1185, 0.0
    %1236 = vadd.xlane.f32.xlu0 %v1235
    %v1237 = vpop.xlane.xlu0 %1236
    %v1238 = vsel %vm109, %v1187, 0.0
    %1239 = vadd.xlane.f32.xlu0 %v1238
    %v1240 = vpop.xlane.xlu0 %1239
    %v1241 = vsel %vm109, %v1189, 0.0
    %1242 = vadd.xlane.f32.xlu0 %v1241
    %v1243 = vpop.xlane.xlu0 %1242
    %v1244 = vsel %vm109, %v1191, 0.0
    %1245 = vadd.xlane.f32.xlu0 %v1244
    %v1246 = vpop.xlane.xlu0 %1245
    %v1247 = vsel %vm109, %v1193, 0.0
    %1248 = vadd.xlane.f32.xlu0 %v1247
    %v1249 = vpop.xlane.xlu0 %1248
    %v1250 = vsel %vm109, %v1195, 0.0
    %1251 = vadd.xlane.f32.xlu0 %v1250
    %v1252 = vpop.xlane.xlu0 %1251
    %v1253 = vsel %vm109, %v1197, 0.0
    %1254 = vadd.xlane.f32.xlu0 %v1253
    %v1255 = vpop.xlane.xlu0 %1254
    %v1256 = vsel %vm109, %v1199, 0.0
    %1257 = vadd.xlane.f32.xlu0 %v1256
    %v1258 = vpop.xlane.xlu0 %1257
    %v1259 = vsel %vm109, %v1201, 0.0
    %1260 = vadd.xlane.f32.xlu0 %v1259
    %v1261 = vpop.xlane.xlu0 %1260
    %v1262 = vsel %vm109, %v1203, 0.0
    %1263 = vadd.xlane.f32.xlu0 %v1262
    %v1264 = vpop.xlane.xlu0 %1263
    %v1265 = vsel %vm109, %v1205, 0.0
    %1266 = vadd.xlane.f32.xlu0 %v1265
    %v1267 = vpop.xlane.xlu0 %1266
    %v1268 = vsel %vm109, %v1207, 0.0
    %1269 = vadd.xlane.f32.xlu0 %v1268
    %v1270 = vpop.xlane.xlu0 %1269
    %v1271 = vsel %vm109, %v1209, 0.0
    %1272 = vadd.xlane.f32.xlu0 %v1271
    %v1273 = vpop.xlane.xlu0 %1272
    %v1274 = vmul.f32 %v1228, 0.17677669
    %v1275 = vmul.f32 %v1231, 0.17677669
    %v1276 = vmul.f32 %v1234, 0.17677669
    %v1277 = vmul.f32 %v1237, 0.17677669
    %v1278 = vmul.f32 %v1240, 0.17677669
    %v1279 = vmul.f32 %v1243, 0.17677669
    %v1280 = vmul.f32 %v1246, 0.17677669
    %v1281 = vmul.f32 %v1249, 0.17677669
    %v1282 = vmul.f32 %v1252, 0.17677669
    %v1283 = vmul.f32 %v1255, 0.17677669
    %v1284 = vmul.f32 %v1258, 0.17677669
    %v1285 = vmul.f32 %v1261, 0.17677669
    %v1286 = vmul.f32 %v1264, 0.17677669
    %v1287 = vmul.f32 %v1267, 0.17677669
    %v1288 = vmul.f32 %v1270, 0.17677669
    %v1289 = vmul.f32 %v1273, 0.17677669
    %v1306 = vlaneseq
    %v1307 = vshrl.u32 %v1306, 7
    %v1308 = vsub.s32 %v288, %v1307
    %v1309 = vrot.slane %v1274, %v1308
    %v1310 = vlaneseq
    %v1311 = vshrl.u32 %v1310, 7
    %v1312 = vsub.s32 %v293, %v1311
    %v1313 = vrot.slane %v1275, %v1312
    %v1314 = vsel %vm298, %v1313, %v1309
    %v1315 = vlaneseq
    %v1316 = vshrl.u32 %v1315, 7
    %v1317 = vsub.s32 %v288, %v1316
    %v1318 = vrot.slane %v1276, %v1317
    %v1319 = vlaneseq
    %v1320 = vshrl.u32 %v1319, 7
    %v1321 = vsub.s32 %v293, %v1320
    %v1322 = vrot.slane %v1277, %v1321
    %v1323 = vsel %vm298, %v1322, %v1318
    %v1324 = vlaneseq
    %v1325 = vshrl.u32 %v1324, 7
    %v1326 = vsub.s32 %v288, %v1325
    %v1327 = vrot.slane %v1278, %v1326
    %v1328 = vlaneseq
    %v1329 = vshrl.u32 %v1328, 7
    %v1330 = vsub.s32 %v293, %v1329
    %v1331 = vrot.slane %v1279, %v1330
    %v1332 = vsel %vm298, %v1331, %v1327
    %v1333 = vlaneseq
    %v1334 = vshrl.u32 %v1333, 7
    %v1335 = vsub.s32 %v288, %v1334
    %v1336 = vrot.slane %v1280, %v1335
    %v1337 = vlaneseq
    %v1338 = vshrl.u32 %v1337, 7
    %v1339 = vsub.s32 %v293, %v1338
    %v1340 = vrot.slane %v1281, %v1339
    %v1341 = vsel %vm298, %v1340, %v1336
    %v1342 = vlaneseq
    %v1343 = vshrl.u32 %v1342, 7
    %v1344 = vsub.s32 %v288, %v1343
    %v1345 = vrot.slane %v1282, %v1344
    %v1346 = vlaneseq
    %v1347 = vshrl.u32 %v1346, 7
    %v1348 = vsub.s32 %v293, %v1347
    %v1349 = vrot.slane %v1283, %v1348
    %v1350 = vsel %vm298, %v1349, %v1345
    %v1351 = vlaneseq
    %v1352 = vshrl.u32 %v1351, 7
    %v1353 = vsub.s32 %v288, %v1352
    %v1354 = vrot.slane %v1284, %v1353
    %v1355 = vlaneseq
    %v1356 = vshrl.u32 %v1355, 7
    %v1357 = vsub.s32 %v293, %v1356
    %v1358 = vrot.slane %v1285, %v1357
    %v1359 = vsel %vm298, %v1358, %v1354
    %v1360 = vlaneseq
    %v1361 = vshrl.u32 %v1360, 7
    %v1362 = vsub.s32 %v288, %v1361
    %v1363 = vrot.slane %v1286, %v1362
    %v1364 = vlaneseq
    %v1365 = vshrl.u32 %v1364, 7
    %v1366 = vsub.s32 %v293, %v1365
    %v1367 = vrot.slane %v1287, %v1366
    %v1368 = vsel %vm298, %v1367, %v1363
    %v1369 = vlaneseq
    %v1370 = vshrl.u32 %v1369, 7
    %v1371 = vsub.s32 %v288, %v1370
    %v1372 = vrot.slane %v1288, %v1371
    %v1373 = vlaneseq
    %v1374 = vshrl.u32 %v1373, 7
    %v1375 = vsub.s32 %v293, %v1374
    %v1376 = vrot.slane %v1289, %v1375
    %v1377 = vsel %vm298, %v1376, %v1372
    %v1378 = vsel %vm363, %v1323, %v1314
    %v1379 = vsel %vm365, %v1332, %v1378
    %v1380 = vsel %vm367, %v1341, %v1379
    %v1381 = vsel %vm369, %v1350, %v1380
    %v1382 = vsel %vm371, %v1359, %v1381
    %v1383 = vsel %vm373, %v1368, %v1382
    %v1384 = vsel %vm375, %v1377, %v1383
    %v1386 = vsel %vm378, %v1384, -inf
    %1387 = vmax.xlane.f32.xlu0 %v1386
    %v1388 = vpop.xlane.xlu0 %1387
    %v1390 = vlaneseq
    %v1391 = vshrl.u32 %v1390, 7
    %v1392 = vsub.s32 0, %v1391
    %v1393 = vrot.slane %v1388, %v1392
    %v1394 = vlaneseq
    %v1395 = vshrl.u32 %v1394, 7
    %v1396 = vsub.s32 1, %v1395
    %v1397 = vrot.slane %v1388, %v1396
    %v1398 = vlaneseq
    %v1399 = vshrl.u32 %v1398, 7
    %v1400 = vsub.s32 2, %v1399
    %v1401 = vrot.slane %v1388, %v1400
    %v1402 = vlaneseq
    %v1403 = vshrl.u32 %v1402, 7
    %v1404 = vsub.s32 3, %v1403
    %v1405 = vrot.slane %v1388, %v1404
    %v1406 = vlaneseq
    %v1407 = vshrl.u32 %v1406, 7
    %v1408 = vsub.s32 4, %v1407
    %v1409 = vrot.slane %v1388, %v1408
    %v1410 = vlaneseq
    %v1411 = vshrl.u32 %v1410, 7
    %v1412 = vsub.s32 5, %v1411
    %v1413 = vrot.slane %v1388, %v1412
    %v1414 = vlaneseq
    %v1415 = vshrl.u32 %v1414, 7
    %v1416 = vsub.s32 6, %v1415
    %v1417 = vrot.slane %v1388, %v1416
    %v1418 = vlaneseq
    %v1419 = vshrl.u32 %v1418, 7
    %v1420 = vsub.s32 7, %v1419
    %v1421 = vrot.slane %v1388, %v1420
    %v1430 = vsub.f32 %v1274, %v1393
    %v1431 = vsub.f32 %v1275, %v1393
    %v1432 = vsub.f32 %v1276, %v1397
    %v1433 = vsub.f32 %v1277, %v1397
    %v1434 = vsub.f32 %v1278, %v1401
    %v1435 = vsub.f32 %v1279, %v1401
    %v1436 = vsub.f32 %v1280, %v1405
    %v1437 = vsub.f32 %v1281, %v1405
    %v1438 = vsub.f32 %v1282, %v1409
    %v1439 = vsub.f32 %v1283, %v1409
    %v1440 = vsub.f32 %v1284, %v1413
    %v1441 = vsub.f32 %v1285, %v1413
    %v1442 = vsub.f32 %v1286, %v1417
    %v1443 = vsub.f32 %v1287, %v1417
    %v1444 = vsub.f32 %v1288, %v1421
    %v1445 = vsub.f32 %v1289, %v1421
    %v1446 = vmul.f32 %v1430, 1.442695
    %v1447 = vpow.pop %v1446
    %v1448 = vmul.f32 %v1431, 1.442695
    %v1449 = vpow.pop %v1448
    %v1450 = vmul.f32 %v1432, 1.442695
    %v1451 = vpow.pop %v1450
    %v1452 = vmul.f32 %v1433, 1.442695
    %v1453 = vpow.pop %v1452
    %v1454 = vmul.f32 %v1434, 1.442695
    %v1455 = vpow.pop %v1454
    %v1456 = vmul.f32 %v1435, 1.442695
    %v1457 = vpow.pop %v1456
    %v1458 = vmul.f32 %v1436, 1.442695
    %v1459 = vpow.pop %v1458
    %v1460 = vmul.f32 %v1437, 1.442695
    %v1461 = vpow.pop %v1460
    %v1462 = vmul.f32 %v1438, 1.442695
    %v1463 = vpow.pop %v1462
    %v1464 = vmul.f32 %v1439, 1.442695
    %v1465 = vpow.pop %v1464
    %v1466 = vmul.f32 %v1440, 1.442695
    %v1467 = vpow.pop %v1466
    %v1468 = vmul.f32 %v1441, 1.442695
    %v1469 = vpow.pop %v1468
    %v1470 = vmul.f32 %v1442, 1.442695
    %v1471 = vpow.pop %v1470
    %v1472 = vmul.f32 %v1443, 1.442695
    %v1473 = vpow.pop %v1472
    %v1474 = vmul.f32 %v1444, 1.442695
    %v1475 = vpow.pop %v1474
    %v1476 = vmul.f32 %v1445, 1.442695
    %v1477 = vpow.pop %v1476
    %1494 = vset.pattern.permute.xlu0 0
    %1495 = vperm.xlu0 %1494, %v1447
    %v1496 = vpop.permute.xlu0 %1495
    %1497 = vset.pattern.permute.xlu0 0
    %1498 = vperm.xlu0 %1497, %v1449
    %v1499 = vpop.permute.xlu0 %1498
    %1500 = vset.pattern.permute.xlu0 0
    %1501 = vperm.xlu0 %1500, %v1451
    %v1502 = vpop.permute.xlu0 %1501
    %1503 = vset.pattern.permute.xlu0 0
    %1504 = vperm.xlu0 %1503, %v1453
    %v1505 = vpop.permute.xlu0 %1504
    %1506 = vset.pattern.permute.xlu0 0
    %1507 = vperm.xlu0 %1506, %v1455
    %v1508 = vpop.permute.xlu0 %1507
    %1509 = vset.pattern.permute.xlu0 0
    %1510 = vperm.xlu0 %1509, %v1457
    %v1511 = vpop.permute.xlu0 %1510
    %1512 = vset.pattern.permute.xlu0 0
    %1513 = vperm.xlu0 %1512, %v1459
    %v1514 = vpop.permute.xlu0 %1513
    %1515 = vset.pattern.permute.xlu0 0
    %1516 = vperm.xlu0 %1515, %v1461
    %v1517 = vpop.permute.xlu0 %1516
    %1518 = vset.pattern.permute.xlu0 0
    %1519 = vperm.xlu0 %1518, %v1463
    %v1520 = vpop.permute.xlu0 %1519
    %1521 = vset.pattern.permute.xlu0 0
    %1522 = vperm.xlu0 %1521, %v1465
    %v1523 = vpop.permute.xlu0 %1522
    %1524 = vset.pattern.permute.xlu0 0
    %1525 = vperm.xlu0 %1524, %v1467
    %v1526 = vpop.permute.xlu0 %1525
    %1527 = vset.pattern.permute.xlu0 0
    %1528 = vperm.xlu0 %1527, %v1469
    %v1529 = vpop.permute.xlu0 %1528
    %1530 = vset.pattern.permute.xlu0 0
    %1531 = vperm.xlu0 %1530, %v1471
    %v1532 = vpop.permute.xlu0 %1531
    %1533 = vset.pattern.permute.xlu0 0
    %1534 = vperm.xlu0 %1533, %v1473
    %v1535 = vpop.permute.xlu0 %1534
    %1536 = vset.pattern.permute.xlu0 0
    %1537 = vperm.xlu0 %1536, %v1475
    %v1538 = vpop.permute.xlu0 %1537
    %1539 = vset.pattern.permute.xlu0 0
    %1540 = vperm.xlu0 %1539, %v1477
    %v1541 = vpop.permute.xlu0 %1540
    %v1542 = vlaneseq
    %v1543 = vshrl.u32 %v1542, 7
    %v1544 = vsub.s32 %v288, %v1543
    %v1545 = vrot.slane %v1496, %v1544
    %v1546 = vlaneseq
    %v1547 = vshrl.u32 %v1546, 7
    %v1548 = vsub.s32 %v293, %v1547
    %v1549 = vrot.slane %v1499, %v1548
    %v1550 = vsel %vm298, %v1549, %v1545
    %v1551 = vlaneseq
    %v1552 = vshrl.u32 %v1551, 7
    %v1553 = vsub.s32 %v288, %v1552
    %v1554 = vrot.slane %v1502, %v1553
    %v1555 = vlaneseq
    %v1556 = vshrl.u32 %v1555, 7
    %v1557 = vsub.s32 %v293, %v1556
    %v1558 = vrot.slane %v1505, %v1557
    %v1559 = vsel %vm298, %v1558, %v1554
    %v1560 = vlaneseq
    %v1561 = vshrl.u32 %v1560, 7
    %v1562 = vsub.s32 %v288, %v1561
    %v1563 = vrot.slane %v1508, %v1562
    %v1564 = vlaneseq
    %v1565 = vshrl.u32 %v1564, 7
    %v1566 = vsub.s32 %v293, %v1565
    %v1567 = vrot.slane %v1511, %v1566
    %v1568 = vsel %vm298, %v1567, %v1563
    %v1569 = vlaneseq
    %v1570 = vshrl.u32 %v1569, 7
    %v1571 = vsub.s32 %v288, %v1570
    %v1572 = vrot.slane %v1514, %v1571
    %v1573 = vlaneseq
    %v1574 = vshrl.u32 %v1573, 7
    %v1575 = vsub.s32 %v293, %v1574
    %v1576 = vrot.slane %v1517, %v1575
    %v1577 = vsel %vm298, %v1576, %v1572
    %v1578 = vlaneseq
    %v1579 = vshrl.u32 %v1578, 7
    %v1580 = vsub.s32 %v288, %v1579
    %v1581 = vrot.slane %v1520, %v1580
    %v1582 = vlaneseq
    %v1583 = vshrl.u32 %v1582, 7
    %v1584 = vsub.s32 %v293, %v1583
    %v1585 = vrot.slane %v1523, %v1584
    %v1586 = vsel %vm298, %v1585, %v1581
    %v1587 = vlaneseq
    %v1588 = vshrl.u32 %v1587, 7
    %v1589 = vsub.s32 %v288, %v1588
    %v1590 = vrot.slane %v1526, %v1589
    %v1591 = vlaneseq
    %v1592 = vshrl.u32 %v1591, 7
    %v1593 = vsub.s32 %v293, %v1592
    %v1594 = vrot.slane %v1529, %v1593
    %v1595 = vsel %vm298, %v1594, %v1590
    %v1596 = vlaneseq
    %v1597 = vshrl.u32 %v1596, 7
    %v1598 = vsub.s32 %v288, %v1597
    %v1599 = vrot.slane %v1532, %v1598
    %v1600 = vlaneseq
    %v1601 = vshrl.u32 %v1600, 7
    %v1602 = vsub.s32 %v293, %v1601
    %v1603 = vrot.slane %v1535, %v1602
    %v1604 = vsel %vm298, %v1603, %v1599
    %v1605 = vlaneseq
    %v1606 = vshrl.u32 %v1605, 7
    %v1607 = vsub.s32 %v288, %v1606
    %v1608 = vrot.slane %v1538, %v1607
    %v1609 = vlaneseq
    %v1610 = vshrl.u32 %v1609, 7
    %v1611 = vsub.s32 %v293, %v1610
    %v1612 = vrot.slane %v1541, %v1611
    %v1613 = vsel %vm298, %v1612, %v1608
    %v1614 = vsel %vm363, %v1559, %v1550
    %v1615 = vsel %vm365, %v1568, %v1614
    %v1616 = vsel %vm367, %v1577, %v1615
    %v1617 = vsel %vm369, %v1586, %v1616
    %v1618 = vsel %vm371, %v1595, %v1617
    %v1619 = vsel %vm373, %v1604, %v1618
    %v1620 = vsel %vm375, %v1613, %v1619
    %v1622 = vsel %vm378, %v1620, 0.0
    %1623 = vadd.xlane.f32.xlu0 %v1622
    %v1624 = vpop.xlane.xlu0 %1623
    %v1625 = vrcp.pop %v1624
    %v1627 = vlaneseq
    %v1628 = vshrl.u32 %v1627, 7
    %v1629 = vsub.s32 0, %v1628
    %v1630 = vrot.slane %v1625, %v1629
    %v1631 = vlaneseq
    %v1632 = vshrl.u32 %v1631, 7
    %v1633 = vsub.s32 1, %v1632
    %v1634 = vrot.slane %v1625, %v1633
    %v1635 = vlaneseq
    %v1636 = vshrl.u32 %v1635, 7
    %v1637 = vsub.s32 2, %v1636
    %v1638 = vrot.slane %v1625, %v1637
    %v1639 = vlaneseq
    %v1640 = vshrl.u32 %v1639, 7
    %v1641 = vsub.s32 3, %v1640
    %v1642 = vrot.slane %v1625, %v1641
    %v1643 = vlaneseq
    %v1644 = vshrl.u32 %v1643, 7
    %v1645 = vsub.s32 4, %v1644
    %v1646 = vrot.slane %v1625, %v1645
    %v1647 = vlaneseq
    %v1648 = vshrl.u32 %v1647, 7
    %v1649 = vsub.s32 5, %v1648
    %v1650 = vrot.slane %v1625, %v1649
    %v1651 = vlaneseq
    %v1652 = vshrl.u32 %v1651, 7
    %v1653 = vsub.s32 6, %v1652
    %v1654 = vrot.slane %v1625, %v1653
    %v1655 = vlaneseq
    %v1656 = vshrl.u32 %v1655, 7
    %v1657 = vsub.s32 7, %v1656
    %v1658 = vrot.slane %v1625, %v1657
    %v1667 = vmul.f32 %v1447, %v1630
    %v1668 = vmul.f32 %v1449, %v1630
    %v1669 = vmul.f32 %v1451, %v1634
    %v1670 = vmul.f32 %v1453, %v1634
    %v1671 = vmul.f32 %v1455, %v1638
    %v1672 = vmul.f32 %v1457, %v1638
    %v1673 = vmul.f32 %v1459, %v1642
    %v1674 = vmul.f32 %v1461, %v1642
    %v1675 = vmul.f32 %v1463, %v1646
    %v1676 = vmul.f32 %v1465, %v1646
    %v1677 = vmul.f32 %v1467, %v1650
    %v1678 = vmul.f32 %v1469, %v1650
    %v1679 = vmul.f32 %v1471, %v1654
    %v1680 = vmul.f32 %v1473, %v1654
    %v1681 = vmul.f32 %v1475, %v1658
    %v1682 = vmul.f32 %v1477, %v1658
    %1684 = vset.pattern.permute.xlu0 0
    %1685 = vperm.xlu0 %1684, %v1667
    %v1686 = vpop.permute.xlu0 %1685
    %1689 = vset.pattern.permute.xlu0 0
    %1690 = vperm.xlu0 %1689, %v1668
    %v1691 = vpop.permute.xlu0 %1690
    %1694 = vset.pattern.permute.xlu0 0
    %1695 = vperm.xlu0 %1694, %v1669
    %v1696 = vpop.permute.xlu0 %1695
    %1699 = vset.pattern.permute.xlu0 0
    %1700 = vperm.xlu0 %1699, %v1670
    %v1701 = vpop.permute.xlu0 %1700
    %1704 = vset.pattern.permute.xlu0 0
    %1705 = vperm.xlu0 %1704, %v1671
    %v1706 = vpop.permute.xlu0 %1705
    %1709 = vset.pattern.permute.xlu0 0
    %1710 = vperm.xlu0 %1709, %v1672
    %v1711 = vpop.permute.xlu0 %1710
    %1714 = vset.pattern.permute.xlu0 0
    %1715 = vperm.xlu0 %1714, %v1673
    %v1716 = vpop.permute.xlu0 %1715
    %1719 = vset.pattern.permute.xlu0 0
    %1720 = vperm.xlu0 %1719, %v1674
    %v1721 = vpop.permute.xlu0 %1720
    %1724 = vset.pattern.permute.xlu0 0
    %1725 = vperm.xlu0 %1724, %v1675
    %v1726 = vpop.permute.xlu0 %1725
    %1729 = vset.pattern.permute.xlu0 0
    %1730 = vperm.xlu0 %1729, %v1676
    %v1731 = vpop.permute.xlu0 %1730
    %1734 = vset.pattern.permute.xlu0 0
    %1735 = vperm.xlu0 %1734, %v1677
    %v1736 = vpop.permute.xlu0 %1735
    %1739 = vset.pattern.permute.xlu0 0
    %1740 = vperm.xlu0 %1739, %v1678
    %v1741 = vpop.permute.xlu0 %1740
    %1744 = vset.pattern.permute.xlu0 0
    %1745 = vperm.xlu0 %1744, %v1679
    %v1746 = vpop.permute.xlu0 %1745
    %1749 = vset.pattern.permute.xlu0 0
    %1750 = vperm.xlu0 %1749, %v1680
    %v1751 = vpop.permute.xlu0 %1750
    %1754 = vset.pattern.permute.xlu0 0
    %1755 = vperm.xlu0 %1754, %v1681
    %v1756 = vpop.permute.xlu0 %1755
    %1759 = vset.pattern.permute.xlu0 0
    %1760 = vperm.xlu0 %1759, %v1682
    %v1761 = vpop.permute.xlu0 %1760
    %v1763 = vmul.f32 %v1686, %v89
    %v1764 = vmul.f32 %v1691, %v90
    %v1765 = vmul.f32 %v1696, %v91
    %v1766 = vmul.f32 %v1701, %v92
    %v1767 = vmul.f32 %v1706, %v93
    %v1768 = vmul.f32 %v1711, %v94
    %v1769 = vmul.f32 %v1716, %v95
    %v1770 = vmul.f32 %v1721, %v96
    %v1771 = vmul.f32 %v1726, %v97
    %v1772 = vmul.f32 %v1731, %v98
    %v1773 = vmul.f32 %v1736, %v99
    %v1774 = vmul.f32 %v1741, %v100
    %v1775 = vmul.f32 %v1746, %v101
    %v1776 = vmul.f32 %v1751, %v102
    %v1777 = vmul.f32 %v1756, %v103
    %v1778 = vmul.f32 %v1761, %v104
    %v1779 = vadd.f32 %v1763, %v1764
    %v1780 = vrot.slane %v1779, 4
    %v1781 = vadd.f32 %v1779, %v1780
    %v1782 = vrot.slane %v1781, 2
    %v1783 = vadd.f32 %v1781, %v1782
    %v1784 = vrot.slane %v1783, 1
    %v1785 = vadd.f32 %v1783, %v1784
    %v1786 = vadd.f32 %v1765, %v1766
    %v1787 = vrot.slane %v1786, 4
    %v1788 = vadd.f32 %v1786, %v1787
    %v1789 = vrot.slane %v1788, 2
    %v1790 = vadd.f32 %v1788, %v1789
    %v1791 = vrot.slane %v1790, 1
    %v1792 = vadd.f32 %v1790, %v1791
    %v1793 = vadd.f32 %v1767, %v1768
    %v1794 = vrot.slane %v1793, 4
    %v1795 = vadd.f32 %v1793, %v1794
    %v1796 = vrot.slane %v1795, 2
    %v1797 = vadd.f32 %v1795, %v1796
    %v1798 = vrot.slane %v1797, 1
    %v1799 = vadd.f32 %v1797, %v1798
    %v1800 = vadd.f32 %v1769, %v1770
    %v1801 = vrot.slane %v1800, 4
    %v1802 = vadd.f32 %v1800, %v1801
    %v1803 = vrot.slane %v1802, 2
    %v1804 = vadd.f32 %v1802, %v1803
    %v1805 = vrot.slane %v1804, 1
    %v1806 = vadd.f32 %v1804, %v1805
    %v1807 = vadd.f32 %v1771, %v1772
    %v1808 = vrot.slane %v1807, 4
    %v1809 = vadd.f32 %v1807, %v1808
    %v1810 = vrot.slane %v1809, 2
    %v1811 = vadd.f32 %v1809, %v1810
    %v1812 = vrot.slane %v1811, 1
    %v1813 = vadd.f32 %v1811, %v1812
    %v1814 = vadd.f32 %v1773, %v1774
    %v1815 = vrot.slane %v1814, 4
    %v1816 = vadd.f32 %v1814, %v1815
    %v1817 = vrot.slane %v1816, 2
    %v1818 = vadd.f32 %v1816, %v1817
    %v1819 = vrot.slane %v1818, 1
    %v1820 = vadd.f32 %v1818, %v1819
    %v1821 = vadd.f32 %v1775, %v1776
    %v1822 = vrot.slane %v1821, 4
    %v1823 = vadd.f32 %v1821, %v1822
    %v1824 = vrot.slane %v1823, 2
    %v1825 = vadd.f32 %v1823, %v1824
    %v1826 = vrot.slane %v1825, 1
    %v1827 = vadd.f32 %v1825, %v1826
    %v1828 = vadd.f32 %v1777, %v1778
    %v1829 = vrot.slane %v1828, 4
    %v1830 = vadd.f32 %v1828, %v1829
    %v1831 = vrot.slane %v1830, 2
    %v1832 = vadd.f32 %v1830, %v1831
    %v1833 = vrot.slane %v1832, 1
    %v1834 = vadd.f32 %v1832, %v1833
    %s1835 = scalar_lea.vmem [#allocation2], 8
    %v1836 = vld [vmem:[%s1835] sm:$0xff]
    %1837 = vrot.lane.b32.xlu0 %v958, 64
    %v1838 = vpop.permute.xlu0 %1837
    %v1839 = vsel %vm109, %v1838, 0
    %1841 = vmatprep.subr.mxu0 0.0
    %1842 = vmatpush1.msra.mxu0 %v105
    %1843 = vmatprep.subr.mxu0 0.0
    %1844 = vmatpush1.msra.mxu0 %v106
    %1845 = vmatprep.subr.mxu0 0.0
    %1846 = vmatpush1.msra.mxu0 %v107
    %1847 = vmatprep.subr.mxu0 0.0
    %1848 = vmatpush1.msra.mxu0 %v108
    %1849 = vmatprep.subr.mxu0 0.0
    %1850 = vmatpush1.msra.mxu0 0.0
    %1851 = vmatprep.subr.mxu0 0.0
    %1852 = vmatpush1.msra.mxu0 0.0
    %1853 = vmatprep.subr.mxu0 0.0
    %1854 = vmatpush1.msra.mxu0 0.0
    %1855 = vmatprep.subr.mxu0 0.0
    %1856 = vmatpush1.msra.mxu0 0.0
    %1857 = vmatprep.subr.mxu0 0.0
    %1858 = vmatpush1.msra.mxu0 0.0
    %1859 = vmatprep.subr.mxu0 0.0
    %1860 = vmatpush1.msra.mxu0 0.0
    %1861 = vmatprep.subr.mxu0 0.0
    %1862 = vmatpush1.msra.mxu0 0.0
    %1863 = vmatprep.subr.mxu0 0.0
    %1864 = vmatpush1.msra.mxu0 0.0
    %1865 = vmatprep.subr.mxu0 0.0
    %1866 = vmatpush1.msra.mxu0 0.0
    %1867 = vmatprep.subr.mxu0 0.0
    %1868 = vmatpush1.msra.mxu0 0.0
    %1869 = vmatprep.subr.mxu0 0.0
    %1870 = vmatpush1.msra.mxu0 0.0
    %1871 = vmatprep.subr.mxu0 0.0
    %1872 = vmatpush1.msra.mxu0 0.0
    %1873 = vmatprep.subr.mxu0 0.0
    %1874 = vmatpush1.msra.mxu0 0.0
    %1875 = vmatprep.subr.mxu0 0.0
    %1876 = vmatpush1.msra.mxu0 0.0
    %1877 = vmatprep.subr.mxu0 0.0
    %1878 = vmatpush1.msra.mxu0 0.0
    %1879 = vmatprep.subr.mxu0 0.0
    %1880 = vmatpush1.msra.mxu0 0.0
    %1881 = vmatprep.subr.mxu0 0.0
    %1882 = vmatpush1.msra.mxu0 0.0
    %1883 = vmatprep.subr.mxu0 0.0
    %1884 = vmatpush1.msra.mxu0 0.0
    %1885 = vmatprep.subr.mxu0 0.0
    %1886 = vmatpush1.msra.mxu0 0.0
    %1887 = vmatprep.subr.mxu0 0.0
    %1888 = vmatpush1.msra.mxu0 0.0
    %1889 = vmatprep.subr.mxu0 0.0
    %1890 = vmatpush1.msra.mxu0 0.0
    %1891 = vmatprep.subr.mxu0 0.0
    %1892 = vmatpush1.msra.mxu0 0.0
    %1893 = vmatprep.subr.mxu0 0.0
    %1894 = vmatpush1.msra.mxu0 0.0
    %1895 = vmatprep.subr.mxu0 0.0
    %1896 = vmatpush1.msra.mxu0 0.0
    %1897 = vmatprep.subr.mxu0 0.0
    %1898 = vmatpush1.msra.mxu0 0.0
    %1899 = vmatprep.subr.mxu0 0.0
    %1900 = vmatpush1.msra.mxu0 0.0
    %1901 = vmatprep.subr.mxu0 0.0
    %1902 = vmatpush1.msra.mxu0 0.0
    %1903 = vmatprep.subr.mxu0 0.0
    %1904 = vmatpush1.msra.mxu0 0.0
    %1905 = vmatprep.mubr.f32.mxu0 0.0
    %1906 = vmatmul.mubr.f32.gmra.mrb[0].mxu0 %v1839
    %v1907 = vpop.f32.mrb[0].mxu0
    %v1908 = vadd.f32 0.0, %v1907
    %v1909 = vpop.f32.mrb[0].mxu0
    %1910 = vdwg.mxu0
    %v1911 = vadd.f32 %v1836, %v1908
    %v1920 = vsel %vm363, %v1792, %v1785
    %v1921 = vsel %vm365, %v1799, %v1920
    %v1922 = vsel %vm367, %v1806, %v1921
    %v1923 = vsel %vm369, %v1813, %v1922
    %v1924 = vsel %vm371, %v1820, %v1923
    %v1925 = vsel %vm373, %v1827, %v1924
    %v1926 = vsel %vm375, %v1834, %v1925
    %v1928 = vadd.f32 %v1911, %v1926
    %v1929 = vmul.f32 %v1928, 0.5
    %v1930 = vtanh.pop %v1929
    %v1931 = vmul.f32 %v1930, 0.5
    %v1932 = vadd.f32 %v1931, 0.5
    %v1933 = vtanh.pop %v1928
    %v1934 = vmul.f32 %v1932, %v952
    %1936 = vrot.lane.b32.xlu0 %v1933, 32
    %v1937 = vpop.permute.xlu0 %1936
    %v1939 = vmul.f32 %v1932, %v1937
    %1941 = vrot.lane.b32.xlu0 %v1939, 32
    %v1942 = vpop.permute.xlu0 %1941
    %v1944 = vadd.f32 %v1934, %v1942
    %v1945 = vtanh.pop %v1944
    %1947 = vrot.lane.b32.xlu0 %v1945, 32
    %v1948 = vpop.permute.xlu0 %1947
    %v1950 = vmul.f32 %v1932, %v1948
    %v1952 = vcombine.high %v1950, %v1950
    %v1954 = vunpack.c.l.s4 1966171168
    %v1955 = vunpack.c.0.s8 %v1954
    %v1956 = vlaneseq
    %v1957 = vshrl.u32 %v1956, 7
    %v1958 = vsub.s32 %v1955, %v1957
    %v1959 = vrot.slane %v1950, %v1958
    %v1961 = vunpack.c.l.s4 1966171168
    %v1962 = vunpack.c.0.s8 %v1961
    %v1963 = vlaneseq
    %v1964 = vshrl.u32 %v1963, 7
    %v1965 = vsub.s32 %v1962, %v1964
    %v1966 = vrot.slane %v1952, %v1965
    %v1967 = vcombine.high %v1959, %v1959
    %v1968 = vcombine.high %v1966, %v1966
    %v1970 = vunpack.c.l.s4 1966171168
    %v1971 = vunpack.c.0.s8 %v1970
    %v1972 = vlaneseq
    %v1973 = vshrl.u32 %v1972, 7
    %v1974 = vsub.s32 %v1971, %v1973
    %v1975 = vrot.slane %v1959, %v1974
    %v1977 = vunpack.c.l.s4 1966171168
    %v1978 = vunpack.c.0.s8 %v1977
    %v1979 = vlaneseq
    %v1980 = vshrl.u32 %v1979, 7
    %v1981 = vsub.s32 %v1978, %v1980
    %v1982 = vrot.slane %v1966, %v1981
    %v1984 = vunpack.c.l.s4 1966171168
    %v1985 = vunpack.c.0.s8 %v1984
    %v1986 = vlaneseq
    %v1987 = vshrl.u32 %v1986, 7
    %v1988 = vsub.s32 %v1985, %v1987
    %v1989 = vrot.slane %v1967, %v1988
    %v1991 = vunpack.c.l.s4 1966171168
    %v1992 = vunpack.c.0.s8 %v1991
    %v1993 = vlaneseq
    %v1994 = vshrl.u32 %v1993, 7
    %v1995 = vsub.s32 %v1992, %v1994
    %v1996 = vrot.slane %v1968, %v1995
    %v1997 = vcombine.high %v1975, %v1975
    %v1998 = vcombine.high %v1982, %v1982
    %v1999 = vcombine.high %v1989, %v1989
    %v2000 = vcombine.high %v1996, %v1996
    %v2001 = vlaneseq
    %v2002 = vshrl.u32 %v2001, 7
    %v2003 = vsub.s32 0, %v2002
    %v2004 = vrot.slane %v1975, %v2003
    %v2005 = vlaneseq
    %v2006 = vshrl.u32 %v2005, 7
    %v2007 = vsub.s32 0, %v2006
    %v2008 = vrot.slane %v1989, %v2007
    %v2009 = vlaneseq
    %v2010 = vshrl.u32 %v2009, 7
    %v2011 = vsub.s32 0, %v2010
    %v2012 = vrot.slane %v1997, %v2011
    %v2013 = vlaneseq
    %v2014 = vshrl.u32 %v2013, 7
    %v2015 = vsub.s32 0, %v2014
    %v2016 = vrot.slane %v1999, %v2015
    %v2017 = vlaneseq
    %v2018 = vshrl.u32 %v2017, 7
    %v2019 = vsub.s32 0, %v2018
    %v2020 = vrot.slane %v1982, %v2019
    %v2021 = vlaneseq
    %v2022 = vshrl.u32 %v2021, 7
    %v2023 = vsub.s32 0, %v2022
    %v2024 = vrot.slane %v1996, %v2023
    %v2025 = vlaneseq
    %v2026 = vshrl.u32 %v2025, 7
    %v2027 = vsub.s32 0, %v2026
    %v2028 = vrot.slane %v1998, %v2027
    %v2029 = vlaneseq
    %v2030 = vshrl.u32 %v2029, 7
    %v2031 = vsub.s32 0, %v2030
    %v2032 = vrot.slane %v2000, %v2031
    %2033 = vrot.lane.b32.xlu0 %v2004, 64
    %v2034 = vpop.permute.xlu0 %2033
    %2035 = vrot.lane.b32.xlu0 %v2008, 64
    %v2036 = vpop.permute.xlu0 %2035
    %2037 = vrot.lane.b32.xlu0 %v2012, 64
    %v2038 = vpop.permute.xlu0 %2037
    %2039 = vrot.lane.b32.xlu0 %v2016, 64
    %v2040 = vpop.permute.xlu0 %2039
    %2041 = vrot.lane.b32.xlu0 %v2020, 64
    %v2042 = vpop.permute.xlu0 %2041
    %2043 = vrot.lane.b32.xlu0 %v2024, 64
    %v2044 = vpop.permute.xlu0 %2043
    %2045 = vrot.lane.b32.xlu0 %v2028, 64
    %v2046 = vpop.permute.xlu0 %2045
    %2047 = vrot.lane.b32.xlu0 %v2032, 64
    %v2048 = vpop.permute.xlu0 %2047
    %2057 = vst.msk [vmem:[#allocation10 + $0x1] sm:$0x1] %vm1065, %v2034
    %2058 = vst.msk [vmem:[#allocation10 + $0x9] sm:$0x1] %vm1065, %v2036
    %2059 = vst.msk [vmem:[#allocation10 + $0x11] sm:$0x1] %vm1065, %v2038
    %2060 = vst.msk [vmem:[#allocation10 + $0x19] sm:$0x1] %vm1065, %v2040
    %2061 = vst.msk [vmem:[#allocation10 + $0x21] sm:$0x1] %vm1065, %v2042
    %2062 = vst.msk [vmem:[#allocation10 + $0x29] sm:$0x1] %vm1065, %v2044
    %2063 = vst.msk [vmem:[#allocation10 + $0x31] sm:$0x1] %vm1065, %v2046
    %2064 = vst.msk [vmem:[#allocation10 + $0x39] sm:$0x1] %vm1065, %v2048
    %v2073 = vmul.f32 %v2004, %v1099
    %v2074 = vmul.f32 %v2004, %v1101
    %v2075 = vmul.f32 %v2008, %v1103
    %v2076 = vmul.f32 %v2008, %v1105
    %v2077 = vmul.f32 %v2012, %v1107
    %v2078 = vmul.f32 %v2012, %v1109
    %v2079 = vmul.f32 %v2016, %v1111
    %v2080 = vmul.f32 %v2016, %v1113
    %v2081 = vmul.f32 %v2020, %v1115
    %v2082 = vmul.f32 %v2020, %v1117
    %v2083 = vmul.f32 %v2024, %v1119
    %v2084 = vmul.f32 %v2024, %v1121
    %v2085 = vmul.f32 %v2028, %v1123
    %v2086 = vmul.f32 %v2028, %v1125
    %v2087 = vmul.f32 %v2032, %v1127
    %v2088 = vmul.f32 %v2032, %v1129
    %2105 = vrot.lane.b32.xlu0 %v2073, 64
    %v2106 = vpop.permute.xlu0 %2105
    %2107 = vrot.lane.b32.xlu0 %v2074, 64
    %v2108 = vpop.permute.xlu0 %2107
    %2109 = vrot.lane.b32.xlu0 %v2075, 64
    %v2110 = vpop.permute.xlu0 %2109
    %2111 = vrot.lane.b32.xlu0 %v2076, 64
    %v2112 = vpop.permute.xlu0 %2111
    %2113 = vrot.lane.b32.xlu0 %v2077, 64
    %v2114 = vpop.permute.xlu0 %2113
    %2115 = vrot.lane.b32.xlu0 %v2078, 64
    %v2116 = vpop.permute.xlu0 %2115
    %2117 = vrot.lane.b32.xlu0 %v2079, 64
    %v2118 = vpop.permute.xlu0 %2117
    %2119 = vrot.lane.b32.xlu0 %v2080, 64
    %v2120 = vpop.permute.xlu0 %2119
    %2121 = vrot.lane.b32.xlu0 %v2081, 64
    %v2122 = vpop.permute.xlu0 %2121
    %2123 = vrot.lane.b32.xlu0 %v2082, 64
    %v2124 = vpop.permute.xlu0 %2123
    %2125 = vrot.lane.b32.xlu0 %v2083, 64
    %v2126 = vpop.permute.xlu0 %2125
    %2127 = vrot.lane.b32.xlu0 %v2084, 64
    %v2128 = vpop.permute.xlu0 %2127
    %2129 = vrot.lane.b32.xlu0 %v2085, 64
    %v2130 = vpop.permute.xlu0 %2129
    %2131 = vrot.lane.b32.xlu0 %v2086, 64
    %v2132 = vpop.permute.xlu0 %2131
    %2133 = vrot.lane.b32.xlu0 %v2087, 64
    %v2134 = vpop.permute.xlu0 %2133
    %2135 = vrot.lane.b32.xlu0 %v2088, 64
    %v2136 = vpop.permute.xlu0 %2135
    %v2153 = vsel %vm109, %v2106, 0.0
    %2154 = vadd.xlane.f32.xlu0 %v2153
    %v2155 = vpop.xlane.xlu0 %2154
    %v2156 = vsel %vm109, %v2108, 0.0
    %2157 = vadd.xlane.f32.xlu0 %v2156
    %v2158 = vpop.xlane.xlu0 %2157
    %v2159 = vsel %vm109, %v2110, 0.0
    %2160 = vadd.xlane.f32.xlu0 %v2159
    %v2161 = vpop.xlane.xlu0 %2160
    %v2162 = vsel %vm109, %v2112, 0.0
    %2163 = vadd.xlane.f32.xlu0 %v2162
    %v2164 = vpop.xlane.xlu0 %2163
    %v2165 = vsel %vm109, %v2114, 0.0
    %2166 = vadd.xlane.f32.xlu0 %v2165
    %v2167 = vpop.xlane.xlu0 %2166
    %v2168 = vsel %vm109, %v2116, 0.0
    %2169 = vadd.xlane.f32.xlu0 %v2168
    %v2170 = vpop.xlane.xlu0 %2169
    %v2171 = vsel %vm109, %v2118, 0.0
    %2172 = vadd.xlane.f32.xlu0 %v2171
    %v2173 = vpop.xlane.xlu0 %2172
    %v2174 = vsel %vm109, %v2120, 0.0
    %2175 = vadd.xlane.f32.xlu0 %v2174
    %v2176 = vpop.xlane.xlu0 %2175
    %v2177 = vsel %vm109, %v2122, 0.0
    %2178 = vadd.xlane.f32.xlu0 %v2177
    %v2179 = vpop.xlane.xlu0 %2178
    %v2180 = vsel %vm109, %v2124, 0.0
    %2181 = vadd.xlane.f32.xlu0 %v2180
    %v2182 = vpop.xlane.xlu0 %2181
    %v2183 = vsel %vm109, %v2126, 0.0
    %2184 = vadd.xlane.f32.xlu0 %v2183
    %v2185 = vpop.xlane.xlu0 %2184
    %v2186 = vsel %vm109, %v2128, 0.0
    %2187 = vadd.xlane.f32.xlu0 %v2186
    %v2188 = vpop.xlane.xlu0 %2187
    %v2189 = vsel %vm109, %v2130, 0.0
    %2190 = vadd.xlane.f32.xlu0 %v2189
    %v2191 = vpop.xlane.xlu0 %2190
    %v2192 = vsel %vm109, %v2132, 0.0
    %2193 = vadd.xlane.f32.xlu0 %v2192
    %v2194 = vpop.xlane.xlu0 %2193
    %v2195 = vsel %vm109, %v2134, 0.0
    %2196 = vadd.xlane.f32.xlu0 %v2195
    %v2197 = vpop.xlane.xlu0 %2196
    %v2198 = vsel %vm109, %v2136, 0.0
    %2199 = vadd.xlane.f32.xlu0 %v2198
    %v2200 = vpop.xlane.xlu0 %2199
    %v2201 = vmul.f32 %v2155, 0.17677669
    %v2202 = vmul.f32 %v2158, 0.17677669
    %v2203 = vmul.f32 %v2161, 0.17677669
    %v2204 = vmul.f32 %v2164, 0.17677669
    %v2205 = vmul.f32 %v2167, 0.17677669
    %v2206 = vmul.f32 %v2170, 0.17677669
    %v2207 = vmul.f32 %v2173, 0.17677669
    %v2208 = vmul.f32 %v2176, 0.17677669
    %v2209 = vmul.f32 %v2179, 0.17677669
    %v2210 = vmul.f32 %v2182, 0.17677669
    %v2211 = vmul.f32 %v2185, 0.17677669
    %v2212 = vmul.f32 %v2188, 0.17677669
    %v2213 = vmul.f32 %v2191, 0.17677669
    %v2214 = vmul.f32 %v2194, 0.17677669
    %v2215 = vmul.f32 %v2197, 0.17677669
    %v2216 = vmul.f32 %v2200, 0.17677669
    %v2233 = vlaneseq
    %v2234 = vshrl.u32 %v2233, 7
    %v2235 = vsub.s32 %v288, %v2234
    %v2236 = vrot.slane %v2201, %v2235
    %v2237 = vlaneseq
    %v2238 = vshrl.u32 %v2237, 7
    %v2239 = vsub.s32 %v293, %v2238
    %v2240 = vrot.slane %v2202, %v2239
    %v2241 = vsel %vm298, %v2240, %v2236
    %v2242 = vlaneseq
    %v2243 = vshrl.u32 %v2242, 7
    %v2244 = vsub.s32 %v288, %v2243
    %v2245 = vrot.slane %v2203, %v2244
    %v2246 = vlaneseq
    %v2247 = vshrl.u32 %v2246, 7
    %v2248 = vsub.s32 %v293, %v2247
    %v2249 = vrot.slane %v2204, %v2248
    %v2250 = vsel %vm298, %v2249, %v2245
    %v2251 = vlaneseq
    %v2252 = vshrl.u32 %v2251, 7
    %v2253 = vsub.s32 %v288, %v2252
    %v2254 = vrot.slane %v2205, %v2253
    %v2255 = vlaneseq
    %v2256 = vshrl.u32 %v2255, 7
    %v2257 = vsub.s32 %v293, %v2256
    %v2258 = vrot.slane %v2206, %v2257
    %v2259 = vsel %vm298, %v2258, %v2254
    %v2260 = vlaneseq
    %v2261 = vshrl.u32 %v2260, 7
    %v2262 = vsub.s32 %v288, %v2261
    %v2263 = vrot.slane %v2207, %v2262
    %v2264 = vlaneseq
    %v2265 = vshrl.u32 %v2264, 7
    %v2266 = vsub.s32 %v293, %v2265
    %v2267 = vrot.slane %v2208, %v2266
    %v2268 = vsel %vm298, %v2267, %v2263
    %v2269 = vlaneseq
    %v2270 = vshrl.u32 %v2269, 7
    %v2271 = vsub.s32 %v288, %v2270
    %v2272 = vrot.slane %v2209, %v2271
    %v2273 = vlaneseq
    %v2274 = vshrl.u32 %v2273, 7
    %v2275 = vsub.s32 %v293, %v2274
    %v2276 = vrot.slane %v2210, %v2275
    %v2277 = vsel %vm298, %v2276, %v2272
    %v2278 = vlaneseq
    %v2279 = vshrl.u32 %v2278, 7
    %v2280 = vsub.s32 %v288, %v2279
    %v2281 = vrot.slane %v2211, %v2280
    %v2282 = vlaneseq
    %v2283 = vshrl.u32 %v2282, 7
    %v2284 = vsub.s32 %v293, %v2283
    %v2285 = vrot.slane %v2212, %v2284
    %v2286 = vsel %vm298, %v2285, %v2281
    %v2287 = vlaneseq
    %v2288 = vshrl.u32 %v2287, 7
    %v2289 = vsub.s32 %v288, %v2288
    %v2290 = vrot.slane %v2213, %v2289
    %v2291 = vlaneseq
    %v2292 = vshrl.u32 %v2291, 7
    %v2293 = vsub.s32 %v293, %v2292
    %v2294 = vrot.slane %v2214, %v2293
    %v2295 = vsel %vm298, %v2294, %v2290
    %v2296 = vlaneseq
    %v2297 = vshrl.u32 %v2296, 7
    %v2298 = vsub.s32 %v288, %v2297
    %v2299 = vrot.slane %v2215, %v2298
    %v2300 = vlaneseq
    %v2301 = vshrl.u32 %v2300, 7
    %v2302 = vsub.s32 %v293, %v2301
    %v2303 = vrot.slane %v2216, %v2302
    %v2304 = vsel %vm298, %v2303, %v2299
    %v2305 = vsel %vm363, %v2250, %v2241
    %v2306 = vsel %vm365, %v2259, %v2305
    %v2307 = vsel %vm367, %v2268, %v2306
    %v2308 = vsel %vm369, %v2277, %v2307
    %v2309 = vsel %vm371, %v2286, %v2308
    %v2310 = vsel %vm373, %v2295, %v2309
    %v2311 = vsel %vm375, %v2304, %v2310
    %v2313 = vsel %vm378, %v2311, -inf
    %2314 = vmax.xlane.f32.xlu0 %v2313
    %v2315 = vpop.xlane.xlu0 %2314
    %v2317 = vlaneseq
    %v2318 = vshrl.u32 %v2317, 7
    %v2319 = vsub.s32 0, %v2318
    %v2320 = vrot.slane %v2315, %v2319
    %v2321 = vlaneseq
    %v2322 = vshrl.u32 %v2321, 7
    %v2323 = vsub.s32 1, %v2322
    %v2324 = vrot.slane %v2315, %v2323
    %v2325 = vlaneseq
    %v2326 = vshrl.u32 %v2325, 7
    %v2327 = vsub.s32 2, %v2326
    %v2328 = vrot.slane %v2315, %v2327
    %v2329 = vlaneseq
    %v2330 = vshrl.u32 %v2329, 7
    %v2331 = vsub.s32 3, %v2330
    %v2332 = vrot.slane %v2315, %v2331
    %v2333 = vlaneseq
    %v2334 = vshrl.u32 %v2333, 7
    %v2335 = vsub.s32 4, %v2334
    %v2336 = vrot.slane %v2315, %v2335
    %v2337 = vlaneseq
    %v2338 = vshrl.u32 %v2337, 7
    %v2339 = vsub.s32 5, %v2338
    %v2340 = vrot.slane %v2315, %v2339
    %v2341 = vlaneseq
    %v2342 = vshrl.u32 %v2341, 7
    %v2343 = vsub.s32 6, %v2342
    %v2344 = vrot.slane %v2315, %v2343
    %v2345 = vlaneseq
    %v2346 = vshrl.u32 %v2345, 7
    %v2347 = vsub.s32 7, %v2346
    %v2348 = vrot.slane %v2315, %v2347
    %v2357 = vsub.f32 %v2201, %v2320
    %v2358 = vsub.f32 %v2202, %v2320
    %v2359 = vsub.f32 %v2203, %v2324
    %v2360 = vsub.f32 %v2204, %v2324
    %v2361 = vsub.f32 %v2205, %v2328
    %v2362 = vsub.f32 %v2206, %v2328
    %v2363 = vsub.f32 %v2207, %v2332
    %v2364 = vsub.f32 %v2208, %v2332
    %v2365 = vsub.f32 %v2209, %v2336
    %v2366 = vsub.f32 %v2210, %v2336
    %v2367 = vsub.f32 %v2211, %v2340
    %v2368 = vsub.f32 %v2212, %v2340
    %v2369 = vsub.f32 %v2213, %v2344
    %v2370 = vsub.f32 %v2214, %v2344
    %v2371 = vsub.f32 %v2215, %v2348
    %v2372 = vsub.f32 %v2216, %v2348
    %v2373 = vmul.f32 %v2357, 1.442695
    %v2374 = vpow.pop %v2373
    %v2375 = vmul.f32 %v2358, 1.442695
    %v2376 = vpow.pop %v2375
    %v2377 = vmul.f32 %v2359, 1.442695
    %v2378 = vpow.pop %v2377
    %v2379 = vmul.f32 %v2360, 1.442695
    %v2380 = vpow.pop %v2379
    %v2381 = vmul.f32 %v2361, 1.442695
    %v2382 = vpow.pop %v2381
    %v2383 = vmul.f32 %v2362, 1.442695
    %v2384 = vpow.pop %v2383
    %v2385 = vmul.f32 %v2363, 1.442695
    %v2386 = vpow.pop %v2385
    %v2387 = vmul.f32 %v2364, 1.442695
    %v2388 = vpow.pop %v2387
    %v2389 = vmul.f32 %v2365, 1.442695
    %v2390 = vpow.pop %v2389
    %v2391 = vmul.f32 %v2366, 1.442695
    %v2392 = vpow.pop %v2391
    %v2393 = vmul.f32 %v2367, 1.442695
    %v2394 = vpow.pop %v2393
    %v2395 = vmul.f32 %v2368, 1.442695
    %v2396 = vpow.pop %v2395
    %v2397 = vmul.f32 %v2369, 1.442695
    %v2398 = vpow.pop %v2397
    %v2399 = vmul.f32 %v2370, 1.442695
    %v2400 = vpow.pop %v2399
    %v2401 = vmul.f32 %v2371, 1.442695
    %v2402 = vpow.pop %v2401
    %v2403 = vmul.f32 %v2372, 1.442695
    %v2404 = vpow.pop %v2403
    %2421 = vset.pattern.permute.xlu0 0
    %2422 = vperm.xlu0 %2421, %v2374
    %v2423 = vpop.permute.xlu0 %2422
    %2424 = vset.pattern.permute.xlu0 0
    %2425 = vperm.xlu0 %2424, %v2376
    %v2426 = vpop.permute.xlu0 %2425
    %2427 = vset.pattern.permute.xlu0 0
    %2428 = vperm.xlu0 %2427, %v2378
    %v2429 = vpop.permute.xlu0 %2428
    %2430 = vset.pattern.permute.xlu0 0
    %2431 = vperm.xlu0 %2430, %v2380
    %v2432 = vpop.permute.xlu0 %2431
    %2433 = vset.pattern.permute.xlu0 0
    %2434 = vperm.xlu0 %2433, %v2382
    %v2435 = vpop.permute.xlu0 %2434
    %2436 = vset.pattern.permute.xlu0 0
    %2437 = vperm.xlu0 %2436, %v2384
    %v2438 = vpop.permute.xlu0 %2437
    %2439 = vset.pattern.permute.xlu0 0
    %2440 = vperm.xlu0 %2439, %v2386
    %v2441 = vpop.permute.xlu0 %2440
    %2442 = vset.pattern.permute.xlu0 0
    %2443 = vperm.xlu0 %2442, %v2388
    %v2444 = vpop.permute.xlu0 %2443
    %2445 = vset.pattern.permute.xlu0 0
    %2446 = vperm.xlu0 %2445, %v2390
    %v2447 = vpop.permute.xlu0 %2446
    %2448 = vset.pattern.permute.xlu0 0
    %2449 = vperm.xlu0 %2448, %v2392
    %v2450 = vpop.permute.xlu0 %2449
    %2451 = vset.pattern.permute.xlu0 0
    %2452 = vperm.xlu0 %2451, %v2394
    %v2453 = vpop.permute.xlu0 %2452
    %2454 = vset.pattern.permute.xlu0 0
    %2455 = vperm.xlu0 %2454, %v2396
    %v2456 = vpop.permute.xlu0 %2455
    %2457 = vset.pattern.permute.xlu0 0
    %2458 = vperm.xlu0 %2457, %v2398
    %v2459 = vpop.permute.xlu0 %2458
    %2460 = vset.pattern.permute.xlu0 0
    %2461 = vperm.xlu0 %2460, %v2400
    %v2462 = vpop.permute.xlu0 %2461
    %2463 = vset.pattern.permute.xlu0 0
    %2464 = vperm.xlu0 %2463, %v2402
    %v2465 = vpop.permute.xlu0 %2464
    %2466 = vset.pattern.permute.xlu0 0
    %2467 = vperm.xlu0 %2466, %v2404
    %v2468 = vpop.permute.xlu0 %2467
    %v2469 = vlaneseq
    %v2470 = vshrl.u32 %v2469, 7
    %v2471 = vsub.s32 %v288, %v2470
    %v2472 = vrot.slane %v2423, %v2471
    %v2473 = vlaneseq
    %v2474 = vshrl.u32 %v2473, 7
    %v2475 = vsub.s32 %v293, %v2474
    %v2476 = vrot.slane %v2426, %v2475
    %v2477 = vsel %vm298, %v2476, %v2472
    %v2478 = vlaneseq
    %v2479 = vshrl.u32 %v2478, 7
    %v2480 = vsub.s32 %v288, %v2479
    %v2481 = vrot.slane %v2429, %v2480
    %v2482 = vlaneseq
    %v2483 = vshrl.u32 %v2482, 7
    %v2484 = vsub.s32 %v293, %v2483
    %v2485 = vrot.slane %v2432, %v2484
    %v2486 = vsel %vm298, %v2485, %v2481
    %v2487 = vlaneseq
    %v2488 = vshrl.u32 %v2487, 7
    %v2489 = vsub.s32 %v288, %v2488
    %v2490 = vrot.slane %v2435, %v2489
    %v2491 = vlaneseq
    %v2492 = vshrl.u32 %v2491, 7
    %v2493 = vsub.s32 %v293, %v2492
    %v2494 = vrot.slane %v2438, %v2493
    %v2495 = vsel %vm298, %v2494, %v2490
    %v2496 = vlaneseq
    %v2497 = vshrl.u32 %v2496, 7
    %v2498 = vsub.s32 %v288, %v2497
    %v2499 = vrot.slane %v2441, %v2498
    %v2500 = vlaneseq
    %v2501 = vshrl.u32 %v2500, 7
    %v2502 = vsub.s32 %v293, %v2501
    %v2503 = vrot.slane %v2444, %v2502
    %v2504 = vsel %vm298, %v2503, %v2499
    %v2505 = vlaneseq
    %v2506 = vshrl.u32 %v2505, 7
    %v2507 = vsub.s32 %v288, %v2506
    %v2508 = vrot.slane %v2447, %v2507
    %v2509 = vlaneseq
    %v2510 = vshrl.u32 %v2509, 7
    %v2511 = vsub.s32 %v293, %v2510
    %v2512 = vrot.slane %v2450, %v2511
    %v2513 = vsel %vm298, %v2512, %v2508
    %v2514 = vlaneseq
    %v2515 = vshrl.u32 %v2514, 7
    %v2516 = vsub.s32 %v288, %v2515
    %v2517 = vrot.slane %v2453, %v2516
    %v2518 = vlaneseq
    %v2519 = vshrl.u32 %v2518, 7
    %v2520 = vsub.s32 %v293, %v2519
    %v2521 = vrot.slane %v2456, %v2520
    %v2522 = vsel %vm298, %v2521, %v2517
    %v2523 = vlaneseq
    %v2524 = vshrl.u32 %v2523, 7
    %v2525 = vsub.s32 %v288, %v2524
    %v2526 = vrot.slane %v2459, %v2525
    %v2527 = vlaneseq
    %v2528 = vshrl.u32 %v2527, 7
    %v2529 = vsub.s32 %v293, %v2528
    %v2530 = vrot.slane %v2462, %v2529
    %v2531 = vsel %vm298, %v2530, %v2526
    %v2532 = vlaneseq
    %v2533 = vshrl.u32 %v2532, 7
    %v2534 = vsub.s32 %v288, %v2533
    %v2535 = vrot.slane %v2465, %v2534
    %v2536 = vlaneseq
    %v2537 = vshrl.u32 %v2536, 7
    %v2538 = vsub.s32 %v293, %v2537
    %v2539 = vrot.slane %v2468, %v2538
    %v2540 = vsel %vm298, %v2539, %v2535
    %v2541 = vsel %vm363, %v2486, %v2477
    %v2542 = vsel %vm365, %v2495, %v2541
    %v2543 = vsel %vm367, %v2504, %v2542
    %v2544 = vsel %vm369, %v2513, %v2543
    %v2545 = vsel %vm371, %v2522, %v2544
    %v2546 = vsel %vm373, %v2531, %v2545
    %v2547 = vsel %vm375, %v2540, %v2546
    %v2549 = vsel %vm378, %v2547, 0.0
    %2550 = vadd.xlane.f32.xlu0 %v2549
    %v2551 = vpop.xlane.xlu0 %2550
    %v2552 = vrcp.pop %v2551
    %v2554 = vlaneseq
    %v2555 = vshrl.u32 %v2554, 7
    %v2556 = vsub.s32 0, %v2555
    %v2557 = vrot.slane %v2552, %v2556
    %v2558 = vlaneseq
    %v2559 = vshrl.u32 %v2558, 7
    %v2560 = vsub.s32 1, %v2559
    %v2561 = vrot.slane %v2552, %v2560
    %v2562 = vlaneseq
    %v2563 = vshrl.u32 %v2562, 7
    %v2564 = vsub.s32 2, %v2563
    %v2565 = vrot.slane %v2552, %v2564
    %v2566 = vlaneseq
    %v2567 = vshrl.u32 %v2566, 7
    %v2568 = vsub.s32 3, %v2567
    %v2569 = vrot.slane %v2552, %v2568
    %v2570 = vlaneseq
    %v2571 = vshrl.u32 %v2570, 7
    %v2572 = vsub.s32 4, %v2571
    %v2573 = vrot.slane %v2552, %v2572
    %v2574 = vlaneseq
    %v2575 = vshrl.u32 %v2574, 7
    %v2576 = vsub.s32 5, %v2575
    %v2577 = vrot.slane %v2552, %v2576
    %v2578 = vlaneseq
    %v2579 = vshrl.u32 %v2578, 7
    %v2580 = vsub.s32 6, %v2579
    %v2581 = vrot.slane %v2552, %v2580
    %v2582 = vlaneseq
    %v2583 = vshrl.u32 %v2582, 7
    %v2584 = vsub.s32 7, %v2583
    %v2585 = vrot.slane %v2552, %v2584
    %v2594 = vmul.f32 %v2374, %v2557
    %v2595 = vmul.f32 %v2376, %v2557
    %v2596 = vmul.f32 %v2378, %v2561
    %v2597 = vmul.f32 %v2380, %v2561
    %v2598 = vmul.f32 %v2382, %v2565
    %v2599 = vmul.f32 %v2384, %v2565
    %v2600 = vmul.f32 %v2386, %v2569
    %v2601 = vmul.f32 %v2388, %v2569
    %v2602 = vmul.f32 %v2390, %v2573
    %v2603 = vmul.f32 %v2392, %v2573
    %v2604 = vmul.f32 %v2394, %v2577
    %v2605 = vmul.f32 %v2396, %v2577
    %v2606 = vmul.f32 %v2398, %v2581
    %v2607 = vmul.f32 %v2400, %v2581
    %v2608 = vmul.f32 %v2402, %v2585
    %v2609 = vmul.f32 %v2404, %v2585
    %2611 = vset.pattern.permute.xlu0 0
    %2612 = vperm.xlu0 %2611, %v2594
    %v2613 = vpop.permute.xlu0 %2612
    %2616 = vset.pattern.permute.xlu0 0
    %2617 = vperm.xlu0 %2616, %v2595
    %v2618 = vpop.permute.xlu0 %2617
    %2621 = vset.pattern.permute.xlu0 0
    %2622 = vperm.xlu0 %2621, %v2596
    %v2623 = vpop.permute.xlu0 %2622
    %2626 = vset.pattern.permute.xlu0 0
    %2627 = vperm.xlu0 %2626, %v2597
    %v2628 = vpop.permute.xlu0 %2627
    %2631 = vset.pattern.permute.xlu0 0
    %2632 = vperm.xlu0 %2631, %v2598
    %v2633 = vpop.permute.xlu0 %2632
    %2636 = vset.pattern.permute.xlu0 0
    %2637 = vperm.xlu0 %2636, %v2599
    %v2638 = vpop.permute.xlu0 %2637
    %2641 = vset.pattern.permute.xlu0 0
    %2642 = vperm.xlu0 %2641, %v2600
    %v2643 = vpop.permute.xlu0 %2642
    %2646 = vset.pattern.permute.xlu0 0
    %2647 = vperm.xlu0 %2646, %v2601
    %v2648 = vpop.permute.xlu0 %2647
    %2651 = vset.pattern.permute.xlu0 0
    %2652 = vperm.xlu0 %2651, %v2602
    %v2653 = vpop.permute.xlu0 %2652
    %2656 = vset.pattern.permute.xlu0 0
    %2657 = vperm.xlu0 %2656, %v2603
    %v2658 = vpop.permute.xlu0 %2657
    %2661 = vset.pattern.permute.xlu0 0
    %2662 = vperm.xlu0 %2661, %v2604
    %v2663 = vpop.permute.xlu0 %2662
    %2666 = vset.pattern.permute.xlu0 0
    %2667 = vperm.xlu0 %2666, %v2605
    %v2668 = vpop.permute.xlu0 %2667
    %2671 = vset.pattern.permute.xlu0 0
    %2672 = vperm.xlu0 %2671, %v2606
    %v2673 = vpop.permute.xlu0 %2672
    %2676 = vset.pattern.permute.xlu0 0
    %2677 = vperm.xlu0 %2676, %v2607
    %v2678 = vpop.permute.xlu0 %2677
    %2681 = vset.pattern.permute.xlu0 0
    %2682 = vperm.xlu0 %2681, %v2608
    %v2683 = vpop.permute.xlu0 %2682
    %2686 = vset.pattern.permute.xlu0 0
    %2687 = vperm.xlu0 %2686, %v2609
    %v2688 = vpop.permute.xlu0 %2687
    %v2690 = vmul.f32 %v2613, %v89
    %v2691 = vmul.f32 %v2618, %v90
    %v2692 = vmul.f32 %v2623, %v91
    %v2693 = vmul.f32 %v2628, %v92
    %v2694 = vmul.f32 %v2633, %v93
    %v2695 = vmul.f32 %v2638, %v94
    %v2696 = vmul.f32 %v2643, %v95
    %v2697 = vmul.f32 %v2648, %v96
    %v2698 = vmul.f32 %v2653, %v97
    %v2699 = vmul.f32 %v2658, %v98
    %v2700 = vmul.f32 %v2663, %v99
    %v2701 = vmul.f32 %v2668, %v100
    %v2702 = vmul.f32 %v2673, %v101
    %v2703 = vmul.f32 %v2678, %v102
    %v2704 = vmul.f32 %v2683, %v103
    %v2705 = vmul.f32 %v2688, %v104
    %v2706 = vadd.f32 %v2690, %v2691
    %v2707 = vrot.slane %v2706, 4
    %v2708 = vadd.f32 %v2706, %v2707
    %v2709 = vrot.slane %v2708, 2
    %v2710 = vadd.f32 %v2708, %v2709
    %v2711 = vrot.slane %v2710, 1
    %v2712 = vadd.f32 %v2710, %v2711
    %v2713 = vadd.f32 %v2692, %v2693
    %v2714 = vrot.slane %v2713, 4
    %v2715 = vadd.f32 %v2713, %v2714
    %v2716 = vrot.slane %v2715, 2
    %v2717 = vadd.f32 %v2715, %v2716
    %v2718 = vrot.slane %v2717, 1
    %v2719 = vadd.f32 %v2717, %v2718
    %v2720 = vadd.f32 %v2694, %v2695
    %v2721 = vrot.slane %v2720, 4
    %v2722 = vadd.f32 %v2720, %v2721
    %v2723 = vrot.slane %v2722, 2
    %v2724 = vadd.f32 %v2722, %v2723
    %v2725 = vrot.slane %v2724, 1
    %v2726 = vadd.f32 %v2724, %v2725
    %v2727 = vadd.f32 %v2696, %v2697
    %v2728 = vrot.slane %v2727, 4
    %v2729 = vadd.f32 %v2727, %v2728
    %v2730 = vrot.slane %v2729, 2
    %v2731 = vadd.f32 %v2729, %v2730
    %v2732 = vrot.slane %v2731, 1
    %v2733 = vadd.f32 %v2731, %v2732
    %v2734 = vadd.f32 %v2698, %v2699
    %v2735 = vrot.slane %v2734, 4
    %v2736 = vadd.f32 %v2734, %v2735
    %v2737 = vrot.slane %v2736, 2
    %v2738 = vadd.f32 %v2736, %v2737
    %v2739 = vrot.slane %v2738, 1
    %v2740 = vadd.f32 %v2738, %v2739
    %v2741 = vadd.f32 %v2700, %v2701
    %v2742 = vrot.slane %v2741, 4
    %v2743 = vadd.f32 %v2741, %v2742
    %v2744 = vrot.slane %v2743, 2
    %v2745 = vadd.f32 %v2743, %v2744
    %v2746 = vrot.slane %v2745, 1
    %v2747 = vadd.f32 %v2745, %v2746
    %v2748 = vadd.f32 %v2702, %v2703
    %v2749 = vrot.slane %v2748, 4
    %v2750 = vadd.f32 %v2748, %v2749
    %v2751 = vrot.slane %v2750, 2
    %v2752 = vadd.f32 %v2750, %v2751
    %v2753 = vrot.slane %v2752, 1
    %v2754 = vadd.f32 %v2752, %v2753
    %v2755 = vadd.f32 %v2704, %v2705
    %v2756 = vrot.slane %v2755, 4
    %v2757 = vadd.f32 %v2755, %v2756
    %v2758 = vrot.slane %v2757, 2
    %v2759 = vadd.f32 %v2757, %v2758
    %v2760 = vrot.slane %v2759, 1
    %v2761 = vadd.f32 %v2759, %v2760
    %s2762 = scalar_lea.vmem [#allocation2], 16
    %v2763 = vld [vmem:[%s2762] sm:$0xff]
    %2764 = vrot.lane.b32.xlu0 %v1950, 64
    %v2765 = vpop.permute.xlu0 %2764
    %v2766 = vsel %vm109, %v2765, 0
    %2768 = vmatprep.subr.mxu0 0.0
    %2769 = vmatpush1.msra.mxu0 %v105
    %2770 = vmatprep.subr.mxu0 0.0
    %2771 = vmatpush1.msra.mxu0 %v106
    %2772 = vmatprep.subr.mxu0 0.0
    %2773 = vmatpush1.msra.mxu0 %v107
    %2774 = vmatprep.subr.mxu0 0.0
    %2775 = vmatpush1.msra.mxu0 %v108
    %2776 = vmatprep.subr.mxu0 0.0
    %2777 = vmatpush1.msra.mxu0 0.0
    %2778 = vmatprep.subr.mxu0 0.0
    %2779 = vmatpush1.msra.mxu0 0.0
    %2780 = vmatprep.subr.mxu0 0.0
    %2781 = vmatpush1.msra.mxu0 0.0
    %2782 = vmatprep.subr.mxu0 0.0
    %2783 = vmatpush1.msra.mxu0 0.0
    %2784 = vmatprep.subr.mxu0 0.0
    %2785 = vmatpush1.msra.mxu0 0.0
    %2786 = vmatprep.subr.mxu0 0.0
    %2787 = vmatpush1.msra.mxu0 0.0
    %2788 = vmatprep.subr.mxu0 0.0
    %2789 = vmatpush1.msra.mxu0 0.0
    %2790 = vmatprep.subr.mxu0 0.0
    %2791 = vmatpush1.msra.mxu0 0.0
    %2792 = vmatprep.subr.mxu0 0.0
    %2793 = vmatpush1.msra.mxu0 0.0
    %2794 = vmatprep.subr.mxu0 0.0
    %2795 = vmatpush1.msra.mxu0 0.0
    %2796 = vmatprep.subr.mxu0 0.0
    %2797 = vmatpush1.msra.mxu0 0.0
    %2798 = vmatprep.subr.mxu0 0.0
    %2799 = vmatpush1.msra.mxu0 0.0
    %2800 = vmatprep.subr.mxu0 0.0
    %2801 = vmatpush1.msra.mxu0 0.0
    %2802 = vmatprep.subr.mxu0 0.0
    %2803 = vmatpush1.msra.mxu0 0.0
    %2804 = vmatprep.subr.mxu0 0.0
    %2805 = vmatpush1.msra.mxu0 0.0
    %2806 = vmatprep.subr.mxu0 0.0
    %2807 = vmatpush1.msra.mxu0 0.0
    %2808 = vmatprep.subr.mxu0 0.0
    %2809 = vmatpush1.msra.mxu0 0.0
    %2810 = vmatprep.subr.mxu0 0.0
    %2811 = vmatpush1.msra.mxu0 0.0
    %2812 = vmatprep.subr.mxu0 0.0
    %2813 = vmatpush1.msra.mxu0 0.0
    %2814 = vmatprep.subr.mxu0 0.0
    %2815 = vmatpush1.msra.mxu0 0.0
    %2816 = vmatprep.subr.mxu0 0.0
    %2817 = vmatpush1.msra.mxu0 0.0
    %2818 = vmatprep.subr.mxu0 0.0
    %2819 = vmatpush1.msra.mxu0 0.0
    %2820 = vmatprep.subr.mxu0 0.0
    %2821 = vmatpush1.msra.mxu0 0.0
    %2822 = vmatprep.subr.mxu0 0.0
    %2823 = vmatpush1.msra.mxu0 0.0
    %2824 = vmatprep.subr.mxu0 0.0
    %2825 = vmatpush1.msra.mxu0 0.0
    %2826 = vmatprep.subr.mxu0 0.0
    %2827 = vmatpush1.msra.mxu0 0.0
    %2828 = vmatprep.subr.mxu0 0.0
    %2829 = vmatpush1.msra.mxu0 0.0
    %2830 = vmatprep.subr.mxu0 0.0
    %2831 = vmatpush1.msra.mxu0 0.0
    %2832 = vmatprep.mubr.f32.mxu0 0.0
    %2833 = vmatmul.mubr.f32.gmra.mrb[0].mxu0 %v2766
    %v2834 = vpop.f32.mrb[0].mxu0
    %v2835 = vadd.f32 0.0, %v2834
    %v2836 = vpop.f32.mrb[0].mxu0
    %2837 = vdwg.mxu0
    %v2838 = vadd.f32 %v2763, %v2835
    %v2847 = vsel %vm363, %v2719, %v2712
    %v2848 = vsel %vm365, %v2726, %v2847
    %v2849 = vsel %vm367, %v2733, %v2848
    %v2850 = vsel %vm369, %v2740, %v2849
    %v2851 = vsel %vm371, %v2747, %v2850
    %v2852 = vsel %vm373, %v2754, %v2851
    %v2853 = vsel %vm375, %v2761, %v2852
    %v2855 = vadd.f32 %v2838, %v2853
    %v2856 = vmul.f32 %v2855, 0.5
    %v2857 = vtanh.pop %v2856
    %v2858 = vmul.f32 %v2857, 0.5
    %v2859 = vadd.f32 %v2858, 0.5
    %v2860 = vtanh.pop %v2855
    %v2861 = vmul.f32 %v2859, %v1944
    %2863 = vrot.lane.b32.xlu0 %v2860, 32
    %v2864 = vpop.permute.xlu0 %2863
    %v2866 = vmul.f32 %v2859, %v2864
    %2868 = vrot.lane.b32.xlu0 %v2866, 32
    %v2869 = vpop.permute.xlu0 %2868
    %v2871 = vadd.f32 %v2861, %v2869
    %v2872 = vtanh.pop %v2871
    %2874 = vrot.lane.b32.xlu0 %v2872, 32
    %v2875 = vpop.permute.xlu0 %2874
    %v2877 = vmul.f32 %v2859, %v2875
    %v2879 = vcombine.high %v2877, %v2877
    %v2881 = vunpack.c.l.s4 1966171168
    %v2882 = vunpack.c.0.s8 %v2881
    %v2883 = vlaneseq
    %v2884 = vshrl.u32 %v2883, 7
    %v2885 = vsub.s32 %v2882, %v2884
    %v2886 = vrot.slane %v2877, %v2885
    %v2888 = vunpack.c.l.s4 1966171168
    %v2889 = vunpack.c.0.s8 %v2888
    %v2890 = vlaneseq
    %v2891 = vshrl.u32 %v2890, 7
    %v2892 = vsub.s32 %v2889, %v2891
    %v2893 = vrot.slane %v2879, %v2892
    %v2894 = vcombine.high %v2886, %v2886
    %v2895 = vcombine.high %v2893, %v2893
    %v2897 = vunpack.c.l.s4 1966171168
    %v2898 = vunpack.c.0.s8 %v2897
    %v2899 = vlaneseq
    %v2900 = vshrl.u32 %v2899, 7
    %v2901 = vsub.s32 %v2898, %v2900
    %v2902 = vrot.slane %v2886, %v2901
    %v2904 = vunpack.c.l.s4 1966171168
    %v2905 = vunpack.c.0.s8 %v2904
    %v2906 = vlaneseq
    %v2907 = vshrl.u32 %v2906, 7
    %v2908 = vsub.s32 %v2905, %v2907
    %v2909 = vrot.slane %v2893, %v2908
    %v2911 = vunpack.c.l.s4 1966171168
    %v2912 = vunpack.c.0.s8 %v2911
    %v2913 = vlaneseq
    %v2914 = vshrl.u32 %v2913, 7
    %v2915 = vsub.s32 %v2912, %v2914
    %v2916 = vrot.slane %v2894, %v2915
    %v2918 = vunpack.c.l.s4 1966171168
    %v2919 = vunpack.c.0.s8 %v2918
    %v2920 = vlaneseq
    %v2921 = vshrl.u32 %v2920, 7
    %v2922 = vsub.s32 %v2919, %v2921
    %v2923 = vrot.slane %v2895, %v2922
    %v2924 = vcombine.high %v2902, %v2902
    %v2925 = vcombine.high %v2909, %v2909
    %v2926 = vcombine.high %v2916, %v2916
    %v2927 = vcombine.high %v2923, %v2923
    %v2928 = vlaneseq
    %v2929 = vshrl.u32 %v2928, 7
    %v2930 = vsub.s32 0, %v2929
    %v2931 = vrot.slane %v2902, %v2930
    %v2932 = vlaneseq
    %v2933 = vshrl.u32 %v2932, 7
    %v2934 = vsub.s32 0, %v2933
    %v2935 = vrot.slane %v2916, %v2934
    %v2936 = vlaneseq
    %v2937 = vshrl.u32 %v2936, 7
    %v2938 = vsub.s32 0, %v2937
    %v2939 = vrot.slane %v2924, %v2938
    %v2940 = vlaneseq
    %v2941 = vshrl.u32 %v2940, 7
    %v2942 = vsub.s32 0, %v2941
    %v2943 = vrot.slane %v2926, %v2942
    %v2944 = vlaneseq
    %v2945 = vshrl.u32 %v2944, 7
    %v2946 = vsub.s32 0, %v2945
    %v2947 = vrot.slane %v2909, %v2946
    %v2948 = vlaneseq
    %v2949 = vshrl.u32 %v2948, 7
    %v2950 = vsub.s32 0, %v2949
    %v2951 = vrot.slane %v2923, %v2950
    %v2952 = vlaneseq
    %v2953 = vshrl.u32 %v2952, 7
    %v2954 = vsub.s32 0, %v2953
    %v2955 = vrot.slane %v2925, %v2954
    %v2956 = vlaneseq
    %v2957 = vshrl.u32 %v2956, 7
    %v2958 = vsub.s32 0, %v2957
    %v2959 = vrot.slane %v2927, %v2958
    %2960 = vrot.lane.b32.xlu0 %v2931, 64
    %v2961 = vpop.permute.xlu0 %2960
    %2962 = vrot.lane.b32.xlu0 %v2935, 64
    %v2963 = vpop.permute.xlu0 %2962
    %2964 = vrot.lane.b32.xlu0 %v2939, 64
    %v2965 = vpop.permute.xlu0 %2964
    %2966 = vrot.lane.b32.xlu0 %v2943, 64
    %v2967 = vpop.permute.xlu0 %2966
    %2968 = vrot.lane.b32.xlu0 %v2947, 64
    %v2969 = vpop.permute.xlu0 %2968
    %2970 = vrot.lane.b32.xlu0 %v2951, 64
    %v2971 = vpop.permute.xlu0 %2970
    %2972 = vrot.lane.b32.xlu0 %v2955, 64
    %v2973 = vpop.permute.xlu0 %2972
    %2974 = vrot.lane.b32.xlu0 %v2959, 64
    %v2975 = vpop.permute.xlu0 %2974
    %2984 = vst.msk [vmem:[#allocation10 + $0x2] sm:$0x1] %vm1065, %v2961
    %2985 = vst.msk [vmem:[#allocation10 + $0xa] sm:$0x1] %vm1065, %v2963
    %2986 = vst.msk [vmem:[#allocation10 + $0x12] sm:$0x1] %vm1065, %v2965
    %2987 = vst.msk [vmem:[#allocation10 + $0x1a] sm:$0x1] %vm1065, %v2967
    %2988 = vst.msk [vmem:[#allocation10 + $0x22] sm:$0x1] %vm1065, %v2969
    %2989 = vst.msk [vmem:[#allocation10 + $0x2a] sm:$0x1] %vm1065, %v2971
    %2990 = vst.msk [vmem:[#allocation10 + $0x32] sm:$0x1] %vm1065, %v2973
    %2991 = vst.msk [vmem:[#allocation10 + $0x3a] sm:$0x1] %vm1065, %v2975
    %v3000 = vmul.f32 %v2931, %v1099
    %v3001 = vmul.f32 %v2931, %v1101
    %v3002 = vmul.f32 %v2935, %v1103
    %v3003 = vmul.f32 %v2935, %v1105
    %v3004 = vmul.f32 %v2939, %v1107
    %v3005 = vmul.f32 %v2939, %v1109
    %v3006 = vmul.f32 %v2943, %v1111
    %v3007 = vmul.f32 %v2943, %v1113
    %v3008 = vmul.f32 %v2947, %v1115
    %v3009 = vmul.f32 %v2947, %v1117
    %v3010 = vmul.f32 %v2951, %v1119
    %v3011 = vmul.f32 %v2951, %v1121
    %v3012 = vmul.f32 %v2955, %v1123
    %v3013 = vmul.f32 %v2955, %v1125
    %v3014 = vmul.f32 %v2959, %v1127
    %v3015 = vmul.f32 %v2959, %v1129
    %3032 = vrot.lane.b32.xlu0 %v3000, 64
    %v3033 = vpop.permute.xlu0 %3032
    %3034 = vrot.lane.b32.xlu0 %v3001, 64
    %v3035 = vpop.permute.xlu0 %3034
    %3036 = vrot.lane.b32.xlu0 %v3002, 64
    %v3037 = vpop.permute.xlu0 %3036
    %3038 = vrot.lane.b32.xlu0 %v3003, 64
    %v3039 = vpop.permute.xlu0 %3038
    %3040 = vrot.lane.b32.xlu0 %v3004, 64
    %v3041 = vpop.permute.xlu0 %3040
    %3042 = vrot.lane.b32.xlu0 %v3005, 64
    %v3043 = vpop.permute.xlu0 %3042
    %3044 = vrot.lane.b32.xlu0 %v3006, 64
    %v3045 = vpop.permute.xlu0 %3044
    %3046 = vrot.lane.b32.xlu0 %v3007, 64
    %v3047 = vpop.permute.xlu0 %3046
    %3048 = vrot.lane.b32.xlu0 %v3008, 64
    %v3049 = vpop.permute.xlu0 %3048
    %3050 = vrot.lane.b32.xlu0 %v3009, 64
    %v3051 = vpop.permute.xlu0 %3050
    %3052 = vrot.lane.b32.xlu0 %v3010, 64
    %v3053 = vpop.permute.xlu0 %3052
    %3054 = vrot.lane.b32.xlu0 %v3011, 64
    %v3055 = vpop.permute.xlu0 %3054
    %3056 = vrot.lane.b32.xlu0 %v3012, 64
    %v3057 = vpop.permute.xlu0 %3056
    %3058 = vrot.lane.b32.xlu0 %v3013, 64
    %v3059 = vpop.permute.xlu0 %3058
    %3060 = vrot.lane.b32.xlu0 %v3014, 64
    %v3061 = vpop.permute.xlu0 %3060
    %3062 = vrot.lane.b32.xlu0 %v3015, 64
    %v3063 = vpop.permute.xlu0 %3062
    %v3080 = vsel %vm109, %v3033, 0.0
    %3081 = vadd.xlane.f32.xlu0 %v3080
    %v3082 = vpop.xlane.xlu0 %3081
    %v3083 = vsel %vm109, %v3035, 0.0
    %3084 = vadd.xlane.f32.xlu0 %v3083
    %v3085 = vpop.xlane.xlu0 %3084
    %v3086 = vsel %vm109, %v3037, 0.0
    %3087 = vadd.xlane.f32.xlu0 %v3086
    %v3088 = vpop.xlane.xlu0 %3087
    %v3089 = vsel %vm109, %v3039, 0.0
    %3090 = vadd.xlane.f32.xlu0 %v3089
    %v3091 = vpop.xlane.xlu0 %3090
    %v3092 = vsel %vm109, %v3041, 0.0
    %3093 = vadd.xlane.f32.xlu0 %v3092
    %v3094 = vpop.xlane.xlu0 %3093
    %v3095 = vsel %vm109, %v3043, 0.0
    %3096 = vadd.xlane.f32.xlu0 %v3095
    %v3097 = vpop.xlane.xlu0 %3096
    %v3098 = vsel %vm109, %v3045, 0.0
    %3099 = vadd.xlane.f32.xlu0 %v3098
    %v3100 = vpop.xlane.xlu0 %3099
    %v3101 = vsel %vm109, %v3047, 0.0
    %3102 = vadd.xlane.f32.xlu0 %v3101
    %v3103 = vpop.xlane.xlu0 %3102
    %v3104 = vsel %vm109, %v3049, 0.0
    %3105 = vadd.xlane.f32.xlu0 %v3104
    %v3106 = vpop.xlane.xlu0 %3105
    %v3107 = vsel %vm109, %v3051, 0.0
    %3108 = vadd.xlane.f32.xlu0 %v3107
    %v3109 = vpop.xlane.xlu0 %3108
    %v3110 = vsel %vm109, %v3053, 0.0
    %3111 = vadd.xlane.f32.xlu0 %v3110
    %v3112 = vpop.xlane.xlu0 %3111
    %v3113 = vsel %vm109, %v3055, 0.0
    %3114 = vadd.xlane.f32.xlu0 %v3113
    %v3115 = vpop.xlane.xlu0 %3114
    %v3116 = vsel %vm109, %v3057, 0.0
    %3117 = vadd.xlane.f32.xlu0 %v3116
    %v3118 = vpop.xlane.xlu0 %3117
    %v3119 = vsel %vm109, %v3059, 0.0
    %3120 = vadd.xlane.f32.xlu0 %v3119
    %v3121 = vpop.xlane.xlu0 %3120
    %v3122 = vsel %vm109, %v3061, 0.0
    %3123 = vadd.xlane.f32.xlu0 %v3122
    %v3124 = vpop.xlane.xlu0 %3123
    %v3125 = vsel %vm109, %v3063, 0.0
    %3126 = vadd.xlane.f32.xlu0 %v3125
    %v3127 = vpop.xlane.xlu0 %3126
    %v3128 = vmul.f32 %v3082, 0.17677669
    %v3129 = vmul.f32 %v3085, 0.17677669
    %v3130 = vmul.f32 %v3088, 0.17677669
    %v3131 = vmul.f32 %v3091, 0.17677669
    %v3132 = vmul.f32 %v3094, 0.17677669
    %v3133 = vmul.f32 %v3097, 0.17677669
    %v3134 = vmul.f32 %v3100, 0.17677669
    %v3135 = vmul.f32 %v3103, 0.17677669
    %v3136 = vmul.f32 %v3106, 0.17677669
    %v3137 = vmul.f32 %v3109, 0.17677669
    %v3138 = vmul.f32 %v3112, 0.17677669
    %v3139 = vmul.f32 %v3115, 0.17677669
    %v3140 = vmul.f32 %v3118, 0.17677669
    %v3141 = vmul.f32 %v3121, 0.17677669
    %v3142 = vmul.f32 %v3124, 0.17677669
    %v3143 = vmul.f32 %v3127, 0.17677669
    %v3160 = vlaneseq
    %v3161 = vshrl.u32 %v3160, 7
    %v3162 = vsub.s32 %v288, %v3161
    %v3163 = vrot.slane %v3128, %v3162
    %v3164 = vlaneseq
    %v3165 = vshrl.u32 %v3164, 7
    %v3166 = vsub.s32 %v293, %v3165
    %v3167 = vrot.slane %v3129, %v3166
    %v3168 = vsel %vm298, %v3167, %v3163
    %v3169 = vlaneseq
    %v3170 = vshrl.u32 %v3169, 7
    %v3171 = vsub.s32 %v288, %v3170
    %v3172 = vrot.slane %v3130, %v3171
    %v3173 = vlaneseq
    %v3174 = vshrl.u32 %v3173, 7
    %v3175 = vsub.s32 %v293, %v3174
    %v3176 = vrot.slane %v3131, %v3175
    %v3177 = vsel %vm298, %v3176, %v3172
    %v3178 = vlaneseq
    %v3179 = vshrl.u32 %v3178, 7
    %v3180 = vsub.s32 %v288, %v3179
    %v3181 = vrot.slane %v3132, %v3180
    %v3182 = vlaneseq
    %v3183 = vshrl.u32 %v3182, 7
    %v3184 = vsub.s32 %v293, %v3183
    %v3185 = vrot.slane %v3133, %v3184
    %v3186 = vsel %vm298, %v3185, %v3181
    %v3187 = vlaneseq
    %v3188 = vshrl.u32 %v3187, 7
    %v3189 = vsub.s32 %v288, %v3188
    %v3190 = vrot.slane %v3134, %v3189
    %v3191 = vlaneseq
    %v3192 = vshrl.u32 %v3191, 7
    %v3193 = vsub.s32 %v293, %v3192
    %v3194 = vrot.slane %v3135, %v3193
    %v3195 = vsel %vm298, %v3194, %v3190
    %v3196 = vlaneseq
    %v3197 = vshrl.u32 %v3196, 7
    %v3198 = vsub.s32 %v288, %v3197
    %v3199 = vrot.slane %v3136, %v3198
    %v3200 = vlaneseq
    %v3201 = vshrl.u32 %v3200, 7
    %v3202 = vsub.s32 %v293, %v3201
    %v3203 = vrot.slane %v3137, %v3202
    %v3204 = vsel %vm298, %v3203, %v3199
    %v3205 = vlaneseq
    %v3206 = vshrl.u32 %v3205, 7
    %v3207 = vsub.s32 %v288, %v3206
    %v3208 = vrot.slane %v3138, %v3207
    %v3209 = vlaneseq
    %v3210 = vshrl.u32 %v3209, 7
    %v3211 = vsub.s32 %v293, %v3210
    %v3212 = vrot.slane %v3139, %v3211
    %v3213 = vsel %vm298, %v3212, %v3208
    %v3214 = vlaneseq
    %v3215 = vshrl.u32 %v3214, 7
    %v3216 = vsub.s32 %v288, %v3215
    %v3217 = vrot.slane %v3140, %v3216
    %v3218 = vlaneseq
    %v3219 = vshrl.u32 %v3218, 7
    %v3220 = vsub.s32 %v293, %v3219
    %v3221 = vrot.slane %v3141, %v3220
    %v3222 = vsel %vm298, %v3221, %v3217
    %v3223 = vlaneseq
    %v3224 = vshrl.u32 %v3223, 7
    %v3225 = vsub.s32 %v288, %v3224
    %v3226 = vrot.slane %v3142, %v3225
    %v3227 = vlaneseq
    %v3228 = vshrl.u32 %v3227, 7
    %v3229 = vsub.s32 %v293, %v3228
    %v3230 = vrot.slane %v3143, %v3229
    %v3231 = vsel %vm298, %v3230, %v3226
    %v3232 = vsel %vm363, %v3177, %v3168
    %v3233 = vsel %vm365, %v3186, %v3232
    %v3234 = vsel %vm367, %v3195, %v3233
    %v3235 = vsel %vm369, %v3204, %v3234
    %v3236 = vsel %vm371, %v3213, %v3235
    %v3237 = vsel %vm373, %v3222, %v3236
    %v3238 = vsel %vm375, %v3231, %v3237
    %v3240 = vsel %vm378, %v3238, -inf
    %3241 = vmax.xlane.f32.xlu0 %v3240
    %v3242 = vpop.xlane.xlu0 %3241
    %v3244 = vlaneseq
    %v3245 = vshrl.u32 %v3244, 7
    %v3246 = vsub.s32 0, %v3245
    %v3247 = vrot.slane %v3242, %v3246
    %v3248 = vlaneseq
    %v3249 = vshrl.u32 %v3248, 7
    %v3250 = vsub.s32 1, %v3249
    %v3251 = vrot.slane %v3242, %v3250
    %v3252 = vlaneseq
    %v3253 = vshrl.u32 %v3252, 7
    %v3254 = vsub.s32 2, %v3253
    %v3255 = vrot.slane %v3242, %v3254
    %v3256 = vlaneseq
    %v3257 = vshrl.u32 %v3256, 7
    %v3258 = vsub.s32 3, %v3257
    %v3259 = vrot.slane %v3242, %v3258
    %v3260 = vlaneseq
    %v3261 = vshrl.u32 %v3260, 7
    %v3262 = vsub.s32 4, %v3261
    %v3263 = vrot.slane %v3242, %v3262
    %v3264 = vlaneseq
    %v3265 = vshrl.u32 %v3264, 7
    %v3266 = vsub.s32 5, %v3265
    %v3267 = vrot.slane %v3242, %v3266
    %v3268 = vlaneseq
    %v3269 = vshrl.u32 %v3268, 7
    %v3270 = vsub.s32 6, %v3269
    %v3271 = vrot.slane %v3242, %v3270
    %v3272 = vlaneseq
    %v3273 = vshrl.u32 %v3272, 7
    %v3274 = vsub.s32 7, %v3273
    %v3275 = vrot.slane %v3242, %v3274
    %v3284 = vsub.f32 %v3128, %v3247
    %v3285 = vsub.f32 %v3129, %v3247
    %v3286 = vsub.f32 %v3130, %v3251
    %v3287 = vsub.f32 %v3131, %v3251
    %v3288 = vsub.f32 %v3132, %v3255
    %v3289 = vsub.f32 %v3133, %v3255
    %v3290 = vsub.f32 %v3134, %v3259
    %v3291 = vsub.f32 %v3135, %v3259
    %v3292 = vsub.f32 %v3136, %v3263
    %v3293 = vsub.f32 %v3137, %v3263
    %v3294 = vsub.f32 %v3138, %v3267
    %v3295 = vsub.f32 %v3139, %v3267
    %v3296 = vsub.f32 %v3140, %v3271
    %v3297 = vsub.f32 %v3141, %v3271
    %v3298 = vsub.f32 %v3142, %v3275
    %v3299 = vsub.f32 %v3143, %v3275
    %v3300 = vmul.f32 %v3284, 1.442695
    %v3301 = vpow.pop %v3300
    %v3302 = vmul.f32 %v3285, 1.442695
    %v3303 = vpow.pop %v3302
    %v3304 = vmul.f32 %v3286, 1.442695
    %v3305 = vpow.pop %v3304
    %v3306 = vmul.f32 %v3287, 1.442695
    %v3307 = vpow.pop %v3306
    %v3308 = vmul.f32 %v3288, 1.442695
    %v3309 = vpow.pop %v3308
    %v3310 = vmul.f32 %v3289, 1.442695
    %v3311 = vpow.pop %v3310
    %v3312 = vmul.f32 %v3290, 1.442695
    %v3313 = vpow.pop %v3312
    %v3314 = vmul.f32 %v3291, 1.442695
    %v3315 = vpow.pop %v3314
    %v3316 = vmul.f32 %v3292, 1.442695
    %v3317 = vpow.pop %v3316
    %v3318 = vmul.f32 %v3293, 1.442695
    %v3319 = vpow.pop %v3318
    %v3320 = vmul.f32 %v3294, 1.442695
    %v3321 = vpow.pop %v3320
    %v3322 = vmul.f32 %v3295, 1.442695
    %v3323 = vpow.pop %v3322
    %v3324 = vmul.f32 %v3296, 1.442695
    %v3325 = vpow.pop %v3324
    %v3326 = vmul.f32 %v3297, 1.442695
    %v3327 = vpow.pop %v3326
    %v3328 = vmul.f32 %v3298, 1.442695
    %v3329 = vpow.pop %v3328
    %v3330 = vmul.f32 %v3299, 1.442695
    %v3331 = vpow.pop %v3330
    %3348 = vset.pattern.permute.xlu0 0
    %3349 = vperm.xlu0 %3348, %v3301
    %v3350 = vpop.permute.xlu0 %3349
    %3351 = vset.pattern.permute.xlu0 0
    %3352 = vperm.xlu0 %3351, %v3303
    %v3353 = vpop.permute.xlu0 %3352
    %3354 = vset.pattern.permute.xlu0 0
    %3355 = vperm.xlu0 %3354, %v3305
    %v3356 = vpop.permute.xlu0 %3355
    %3357 = vset.pattern.permute.xlu0 0
    %3358 = vperm.xlu0 %3357, %v3307
    %v3359 = vpop.permute.xlu0 %3358
    %3360 = vset.pattern.permute.xlu0 0
    %3361 = vperm.xlu0 %3360, %v3309
    %v3362 = vpop.permute.xlu0 %3361
    %3363 = vset.pattern.permute.xlu0 0
    %3364 = vperm.xlu0 %3363, %v3311
    %v3365 = vpop.permute.xlu0 %3364
    %3366 = vset.pattern.permute.xlu0 0
    %3367 = vperm.xlu0 %3366, %v3313
    %v3368 = vpop.permute.xlu0 %3367
    %3369 = vset.pattern.permute.xlu0 0
    %3370 = vperm.xlu0 %3369, %v3315
    %v3371 = vpop.permute.xlu0 %3370
    %3372 = vset.pattern.permute.xlu0 0
    %3373 = vperm.xlu0 %3372, %v3317
    %v3374 = vpop.permute.xlu0 %3373
    %3375 = vset.pattern.permute.xlu0 0
    %3376 = vperm.xlu0 %3375, %v3319
    %v3377 = vpop.permute.xlu0 %3376
    %3378 = vset.pattern.permute.xlu0 0
    %3379 = vperm.xlu0 %3378, %v3321
    %v3380 = vpop.permute.xlu0 %3379
    %3381 = vset.pattern.permute.xlu0 0
    %3382 = vperm.xlu0 %3381, %v3323
    %v3383 = vpop.permute.xlu0 %3382
    %3384 = vset.pattern.permute.xlu0 0
    %3385 = vperm.xlu0 %3384, %v3325
    %v3386 = vpop.permute.xlu0 %3385
    %3387 = vset.pattern.permute.xlu0 0
    %3388 = vperm.xlu0 %3387, %v3327
    %v3389 = vpop.permute.xlu0 %3388
    %3390 = vset.pattern.permute.xlu0 0
    %3391 = vperm.xlu0 %3390, %v3329
    %v3392 = vpop.permute.xlu0 %3391
    %3393 = vset.pattern.permute.xlu0 0
    %3394 = vperm.xlu0 %3393, %v3331
    %v3395 = vpop.permute.xlu0 %3394
    %v3396 = vlaneseq
    %v3397 = vshrl.u32 %v3396, 7
    %v3398 = vsub.s32 %v288, %v3397
    %v3399 = vrot.slane %v3350, %v3398
    %v3400 = vlaneseq
    %v3401 = vshrl.u32 %v3400, 7
    %v3402 = vsub.s32 %v293, %v3401
    %v3403 = vrot.slane %v3353, %v3402
    %v3404 = vsel %vm298, %v3403, %v3399
    %v3405 = vlaneseq
    %v3406 = vshrl.u32 %v3405, 7
    %v3407 = vsub.s32 %v288, %v3406
    %v3408 = vrot.slane %v3356, %v3407
    %v3409 = vlaneseq
    %v3410 = vshrl.u32 %v3409, 7
    %v3411 = vsub.s32 %v293, %v3410
    %v3412 = vrot.slane %v3359, %v3411
    %v3413 = vsel %vm298, %v3412, %v3408
    %v3414 = vlaneseq
    %v3415 = vshrl.u32 %v3414, 7
    %v3416 = vsub.s32 %v288, %v3415
    %v3417 = vrot.slane %v3362, %v3416
    %v3418 = vlaneseq
    %v3419 = vshrl.u32 %v3418, 7
    %v3420 = vsub.s32 %v293, %v3419
    %v3421 = vrot.slane %v3365, %v3420
    %v3422 = vsel %vm298, %v3421, %v3417
    %v3423 = vlaneseq
    %v3424 = vshrl.u32 %v3423, 7
    %v3425 = vsub.s32 %v288, %v3424
    %v3426 = vrot.slane %v3368, %v3425
    %v3427 = vlaneseq
    %v3428 = vshrl.u32 %v3427, 7
    %v3429 = vsub.s32 %v293, %v3428
    %v3430 = vrot.slane %v3371, %v3429
    %v3431 = vsel %vm298, %v3430, %v3426
    %v3432 = vlaneseq
    %v3433 = vshrl.u32 %v3432, 7
    %v3434 = vsub.s32 %v288, %v3433
    %v3435 = vrot.slane %v3374, %v3434
    %v3436 = vlaneseq
    %v3437 = vshrl.u32 %v3436, 7
    %v3438 = vsub.s32 %v293, %v3437
    %v3439 = vrot.slane %v3377, %v3438
    %v3440 = vsel %vm298, %v3439, %v3435
    %v3441 = vlaneseq
    %v3442 = vshrl.u32 %v3441, 7
    %v3443 = vsub.s32 %v288, %v3442
    %v3444 = vrot.slane %v3380, %v3443
    %v3445 = vlaneseq
    %v3446 = vshrl.u32 %v3445, 7
    %v3447 = vsub.s32 %v293, %v3446
    %v3448 = vrot.slane %v3383, %v3447
    %v3449 = vsel %vm298, %v3448, %v3444
    %v3450 = vlaneseq
    %v3451 = vshrl.u32 %v3450, 7
    %v3452 = vsub.s32 %v288, %v3451
    %v3453 = vrot.slane %v3386, %v3452
    %v3454 = vlaneseq
    %v3455 = vshrl.u32 %v3454, 7
    %v3456 = vsub.s32 %v293, %v3455
    %v3457 = vrot.slane %v3389, %v3456
    %v3458 = vsel %vm298, %v3457, %v3453
    %v3459 = vlaneseq
    %v3460 = vshrl.u32 %v3459, 7
    %v3461 = vsub.s32 %v288, %v3460
    %v3462 = vrot.slane %v3392, %v3461
    %v3463 = vlaneseq
    %v3464 = vshrl.u32 %v3463, 7
    %v3465 = vsub.s32 %v293, %v3464
    %v3466 = vrot.slane %v3395, %v3465
    %v3467 = vsel %vm298, %v3466, %v3462
    %v3468 = vsel %vm363, %v3413, %v3404
    %v3469 = vsel %vm365, %v3422, %v3468
    %v3470 = vsel %vm367, %v3431, %v3469
    %v3471 = vsel %vm369, %v3440, %v3470
    %v3472 = vsel %vm371, %v3449, %v3471
    %v3473 = vsel %vm373, %v3458, %v3472
    %v3474 = vsel %vm375, %v3467, %v3473
    %v3476 = vsel %vm378, %v3474, 0.0
    %3477 = vadd.xlane.f32.xlu0 %v3476
    %v3478 = vpop.xlane.xlu0 %3477
    %v3479 = vrcp.pop %v3478
    %v3481 = vlaneseq
    %v3482 = vshrl.u32 %v3481, 7
    %v3483 = vsub.s32 0, %v3482
    %v3484 = vrot.slane %v3479, %v3483
    %v3485 = vlaneseq
    %v3486 = vshrl.u32 %v3485, 7
    %v3487 = vsub.s32 1, %v3486
    %v3488 = vrot.slane %v3479, %v3487
    %v3489 = vlaneseq
    %v3490 = vshrl.u32 %v3489, 7
    %v3491 = vsub.s32 2, %v3490
    %v3492 = vrot.slane %v3479, %v3491
    %v3493 = vlaneseq
    %v3494 = vshrl.u32 %v3493, 7
    %v3495 = vsub.s32 3, %v3494
    %v3496 = vrot.slane %v3479, %v3495
    %v3497 = vlaneseq
    %v3498 = vshrl.u32 %v3497, 7
    %v3499 = vsub.s32 4, %v3498
    %v3500 = vrot.slane %v3479, %v3499
    %v3501 = vlaneseq
    %v3502 = vshrl.u32 %v3501, 7
    %v3503 = vsub.s32 5, %v3502
    %v3504 = vrot.slane %v3479, %v3503
    %v3505 = vlaneseq
    %v3506 = vshrl.u32 %v3505, 7
    %v3507 = vsub.s32 6, %v3506
    %v3508 = vrot.slane %v3479, %v3507
    %v3509 = vlaneseq
    %v3510 = vshrl.u32 %v3509, 7
    %v3511 = vsub.s32 7, %v3510
    %v3512 = vrot.slane %v3479, %v3511
    %v3521 = vmul.f32 %v3301, %v3484
    %v3522 = vmul.f32 %v3303, %v3484
    %v3523 = vmul.f32 %v3305, %v3488
    %v3524 = vmul.f32 %v3307, %v3488
    %v3525 = vmul.f32 %v3309, %v3492
    %v3526 = vmul.f32 %v3311, %v3492
    %v3527 = vmul.f32 %v3313, %v3496
    %v3528 = vmul.f32 %v3315, %v3496
    %v3529 = vmul.f32 %v3317, %v3500
    %v3530 = vmul.f32 %v3319, %v3500
    %v3531 = vmul.f32 %v3321, %v3504
    %v3532 = vmul.f32 %v3323, %v3504
    %v3533 = vmul.f32 %v3325, %v3508
    %v3534 = vmul.f32 %v3327, %v3508
    %v3535 = vmul.f32 %v3329, %v3512
    %v3536 = vmul.f32 %v3331, %v3512
    %3538 = vset.pattern.permute.xlu0 0
    %3539 = vperm.xlu0 %3538, %v3521
    %v3540 = vpop.permute.xlu0 %3539
    %3543 = vset.pattern.permute.xlu0 0
    %3544 = vperm.xlu0 %3543, %v3522
    %v3545 = vpop.permute.xlu0 %3544
    %3548 = vset.pattern.permute.xlu0 0
    %3549 = vperm.xlu0 %3548, %v3523
    %v3550 = vpop.permute.xlu0 %3549
    %3553 = vset.pattern.permute.xlu0 0
    %3554 = vperm.xlu0 %3553, %v3524
    %v3555 = vpop.permute.xlu0 %3554
    %3558 = vset.pattern.permute.xlu0 0
    %3559 = vperm.xlu0 %3558, %v3525
    %v3560 = vpop.permute.xlu0 %3559
    %3563 = vset.pattern.permute.xlu0 0
    %3564 = vperm.xlu0 %3563, %v3526
    %v3565 = vpop.permute.xlu0 %3564
    %3568 = vset.pattern.permute.xlu0 0
    %3569 = vperm.xlu0 %3568, %v3527
    %v3570 = vpop.permute.xlu0 %3569
    %3573 = vset.pattern.permute.xlu0 0
    %3574 = vperm.xlu0 %3573, %v3528
    %v3575 = vpop.permute.xlu0 %3574
    %3578 = vset.pattern.permute.xlu0 0
    %3579 = vperm.xlu0 %3578, %v3529
    %v3580 = vpop.permute.xlu0 %3579
    %3583 = vset.pattern.permute.xlu0 0
    %3584 = vperm.xlu0 %3583, %v3530
    %v3585 = vpop.permute.xlu0 %3584
    %3588 = vset.pattern.permute.xlu0 0
    %3589 = vperm.xlu0 %3588, %v3531
    %v3590 = vpop.permute.xlu0 %3589
    %3593 = vset.pattern.permute.xlu0 0
    %3594 = vperm.xlu0 %3593, %v3532
    %v3595 = vpop.permute.xlu0 %3594
    %3598 = vset.pattern.permute.xlu0 0
    %3599 = vperm.xlu0 %3598, %v3533
    %v3600 = vpop.permute.xlu0 %3599
    %3603 = vset.pattern.permute.xlu0 0
    %3604 = vperm.xlu0 %3603, %v3534
    %v3605 = vpop.permute.xlu0 %3604
    %3608 = vset.pattern.permute.xlu0 0
    %3609 = vperm.xlu0 %3608, %v3535
    %v3610 = vpop.permute.xlu0 %3609
    %3613 = vset.pattern.permute.xlu0 0
    %3614 = vperm.xlu0 %3613, %v3536
    %v3615 = vpop.permute.xlu0 %3614
    %v3617 = vmul.f32 %v3540, %v89
    %v3618 = vmul.f32 %v3545, %v90
    %v3619 = vmul.f32 %v3550, %v91
    %v3620 = vmul.f32 %v3555, %v92
    %v3621 = vmul.f32 %v3560, %v93
    %v3622 = vmul.f32 %v3565, %v94
    %v3623 = vmul.f32 %v3570, %v95
    %v3624 = vmul.f32 %v3575, %v96
    %v3625 = vmul.f32 %v3580, %v97
    %v3626 = vmul.f32 %v3585, %v98
    %v3627 = vmul.f32 %v3590, %v99
    %v3628 = vmul.f32 %v3595, %v100
    %v3629 = vmul.f32 %v3600, %v101
    %v3630 = vmul.f32 %v3605, %v102
    %v3631 = vmul.f32 %v3610, %v103
    %v3632 = vmul.f32 %v3615, %v104
    %v3633 = vadd.f32 %v3617, %v3618
    %v3634 = vrot.slane %v3633, 4
    %v3635 = vadd.f32 %v3633, %v3634
    %v3636 = vrot.slane %v3635, 2
    %v3637 = vadd.f32 %v3635, %v3636
    %v3638 = vrot.slane %v3637, 1
    %v3639 = vadd.f32 %v3637, %v3638
    %v3640 = vadd.f32 %v3619, %v3620
    %v3641 = vrot.slane %v3640, 4
    %v3642 = vadd.f32 %v3640, %v3641
    %v3643 = vrot.slane %v3642, 2
    %v3644 = vadd.f32 %v3642, %v3643
    %v3645 = vrot.slane %v3644, 1
    %v3646 = vadd.f32 %v3644, %v3645
    %v3647 = vadd.f32 %v3621, %v3622
    %v3648 = vrot.slane %v3647, 4
    %v3649 = vadd.f32 %v3647, %v3648
    %v3650 = vrot.slane %v3649, 2
    %v3651 = vadd.f32 %v3649, %v3650
    %v3652 = vrot.slane %v3651, 1
    %v3653 = vadd.f32 %v3651, %v3652
    %v3654 = vadd.f32 %v3623, %v3624
    %v3655 = vrot.slane %v3654, 4
    %v3656 = vadd.f32 %v3654, %v3655
    %v3657 = vrot.slane %v3656, 2
    %v3658 = vadd.f32 %v3656, %v3657
    %v3659 = vrot.slane %v3658, 1
    %v3660 = vadd.f32 %v3658, %v3659
    %v3661 = vadd.f32 %v3625, %v3626
    %v3662 = vrot.slane %v3661, 4
    %v3663 = vadd.f32 %v3661, %v3662
    %v3664 = vrot.slane %v3663, 2
    %v3665 = vadd.f32 %v3663, %v3664
    %v3666 = vrot.slane %v3665, 1
    %v3667 = vadd.f32 %v3665, %v3666
    %v3668 = vadd.f32 %v3627, %v3628
    %v3669 = vrot.slane %v3668, 4
    %v3670 = vadd.f32 %v3668, %v3669
    %v3671 = vrot.slane %v3670, 2
    %v3672 = vadd.f32 %v3670, %v3671
    %v3673 = vrot.slane %v3672, 1
    %v3674 = vadd.f32 %v3672, %v3673
    %v3675 = vadd.f32 %v3629, %v3630
    %v3676 = vrot.slane %v3675, 4
    %v3677 = vadd.f32 %v3675, %v3676
    %v3678 = vrot.slane %v3677, 2
    %v3679 = vadd.f32 %v3677, %v3678
    %v3680 = vrot.slane %v3679, 1
    %v3681 = vadd.f32 %v3679, %v3680
    %v3682 = vadd.f32 %v3631, %v3632
    %v3683 = vrot.slane %v3682, 4
    %v3684 = vadd.f32 %v3682, %v3683
    %v3685 = vrot.slane %v3684, 2
    %v3686 = vadd.f32 %v3684, %v3685
    %v3687 = vrot.slane %v3686, 1
    %v3688 = vadd.f32 %v3686, %v3687
    %s3689 = scalar_lea.vmem [#allocation2], 24
    %v3690 = vld [vmem:[%s3689] sm:$0xff]
    %3691 = vrot.lane.b32.xlu0 %v2877, 64
    %v3692 = vpop.permute.xlu0 %3691
    %v3693 = vsel %vm109, %v3692, 0
    %3695 = vmatprep.subr.mxu0 0.0
    %3696 = vmatpush1.msra.mxu0 %v105
    %3697 = vmatprep.subr.mxu0 0.0
    %3698 = vmatpush1.msra.mxu0 %v106
    %3699 = vmatprep.subr.mxu0 0.0
    %3700 = vmatpush1.msra.mxu0 %v107
    %3701 = vmatprep.subr.mxu0 0.0
    %3702 = vmatpush1.msra.mxu0 %v108
    %3703 = vmatprep.subr.mxu0 0.0
    %3704 = vmatpush1.msra.mxu0 0.0
    %3705 = vmatprep.subr.mxu0 0.0
    %3706 = vmatpush1.msra.mxu0 0.0
    %3707 = vmatprep.subr.mxu0 0.0
    %3708 = vmatpush1.msra.mxu0 0.0
    %3709 = vmatprep.subr.mxu0 0.0
    %3710 = vmatpush1.msra.mxu0 0.0
    %3711 = vmatprep.subr.mxu0 0.0
    %3712 = vmatpush1.msra.mxu0 0.0
    %3713 = vmatprep.subr.mxu0 0.0
    %3714 = vmatpush1.msra.mxu0 0.0
    %3715 = vmatprep.subr.mxu0 0.0
    %3716 = vmatpush1.msra.mxu0 0.0
    %3717 = vmatprep.subr.mxu0 0.0
    %3718 = vmatpush1.msra.mxu0 0.0
    %3719 = vmatprep.subr.mxu0 0.0
    %3720 = vmatpush1.msra.mxu0 0.0
    %3721 = vmatprep.subr.mxu0 0.0
    %3722 = vmatpush1.msra.mxu0 0.0
    %3723 = vmatprep.subr.mxu0 0.0
    %3724 = vmatpush1.msra.mxu0 0.0
    %3725 = vmatprep.subr.mxu0 0.0
    %3726 = vmatpush1.msra.mxu0 0.0
    %3727 = vmatprep.subr.mxu0 0.0
    %3728 = vmatpush1.msra.mxu0 0.0
    %3729 = vmatprep.subr.mxu0 0.0
    %3730 = vmatpush1.msra.mxu0 0.0
    %3731 = vmatprep.subr.mxu0 0.0
    %3732 = vmatpush1.msra.mxu0 0.0
    %3733 = vmatprep.subr.mxu0 0.0
    %3734 = vmatpush1.msra.mxu0 0.0
    %3735 = vmatprep.subr.mxu0 0.0
    %3736 = vmatpush1.msra.mxu0 0.0
    %3737 = vmatprep.subr.mxu0 0.0
    %3738 = vmatpush1.msra.mxu0 0.0
    %3739 = vmatprep.subr.mxu0 0.0
    %3740 = vmatpush1.msra.mxu0 0.0
    %3741 = vmatprep.subr.mxu0 0.0
    %3742 = vmatpush1.msra.mxu0 0.0
    %3743 = vmatprep.subr.mxu0 0.0
    %3744 = vmatpush1.msra.mxu0 0.0
    %3745 = vmatprep.subr.mxu0 0.0
    %3746 = vmatpush1.msra.mxu0 0.0
    %3747 = vmatprep.subr.mxu0 0.0
    %3748 = vmatpush1.msra.mxu0 0.0
    %3749 = vmatprep.subr.mxu0 0.0
    %3750 = vmatpush1.msra.mxu0 0.0
    %3751 = vmatprep.subr.mxu0 0.0
    %3752 = vmatpush1.msra.mxu0 0.0
    %3753 = vmatprep.subr.mxu0 0.0
    %3754 = vmatpush1.msra.mxu0 0.0
    %3755 = vmatprep.subr.mxu0 0.0
    %3756 = vmatpush1.msra.mxu0 0.0
    %3757 = vmatprep.subr.mxu0 0.0
    %3758 = vmatpush1.msra.mxu0 0.0
    %3759 = vmatprep.mubr.f32.mxu0 0.0
    %3760 = vmatmul.mubr.f32.gmra.mrb[0].mxu0 %v3693
    %v3761 = vpop.f32.mrb[0].mxu0
    %v3762 = vadd.f32 0.0, %v3761
    %v3763 = vpop.f32.mrb[0].mxu0
    %3764 = vdwg.mxu0
    %v3765 = vadd.f32 %v3690, %v3762
    %v3774 = vsel %vm363, %v3646, %v3639
    %v3775 = vsel %vm365, %v3653, %v3774
    %v3776 = vsel %vm367, %v3660, %v3775
    %v3777 = vsel %vm369, %v3667, %v3776
    %v3778 = vsel %vm371, %v3674, %v3777
    %v3779 = vsel %vm373, %v3681, %v3778
    %v3780 = vsel %vm375, %v3688, %v3779
    %v3782 = vadd.f32 %v3765, %v3780
    %v3783 = vmul.f32 %v3782, 0.5
    %v3784 = vtanh.pop %v3783
    %v3785 = vmul.f32 %v3784, 0.5
    %v3786 = vadd.f32 %v3785, 0.5
    %v3787 = vtanh.pop %v3782
    %v3788 = vmul.f32 %v3786, %v2871
    %3790 = vrot.lane.b32.xlu0 %v3787, 32
    %v3791 = vpop.permute.xlu0 %3790
    %v3793 = vmul.f32 %v3786, %v3791
    %3795 = vrot.lane.b32.xlu0 %v3793, 32
    %v3796 = vpop.permute.xlu0 %3795
    %v3798 = vadd.f32 %v3788, %v3796
    %v3799 = vtanh.pop %v3798
    %3801 = vrot.lane.b32.xlu0 %v3799, 32
    %v3802 = vpop.permute.xlu0 %3801
    %v3804 = vmul.f32 %v3786, %v3802
    %v3806 = vcombine.high %v3804, %v3804
    %v3808 = vunpack.c.l.s4 1966171168
    %v3809 = vunpack.c.0.s8 %v3808
    %v3810 = vlaneseq
    %v3811 = vshrl.u32 %v3810, 7
    %v3812 = vsub.s32 %v3809, %v3811
    %v3813 = vrot.slane %v3804, %v3812
    %v3815 = vunpack.c.l.s4 1966171168
    %v3816 = vunpack.c.0.s8 %v3815
    %v3817 = vlaneseq
    %v3818 = vshrl.u32 %v3817, 7
    %v3819 = vsub.s32 %v3816, %v3818
    %v3820 = vrot.slane %v3806, %v3819
    %v3821 = vcombine.high %v3813, %v3813
    %v3822 = vcombine.high %v3820, %v3820
    %v3824 = vunpack.c.l.s4 1966171168
    %v3825 = vunpack.c.0.s8 %v3824
    %v3826 = vlaneseq
    %v3827 = vshrl.u32 %v3826, 7
    %v3828 = vsub.s32 %v3825, %v3827
    %v3829 = vrot.slane %v3813, %v3828
    %v3831 = vunpack.c.l.s4 1966171168
    %v3832 = vunpack.c.0.s8 %v3831
    %v3833 = vlaneseq
    %v3834 = vshrl.u32 %v3833, 7
    %v3835 = vsub.s32 %v3832, %v3834
    %v3836 = vrot.slane %v3820, %v3835
    %v3838 = vunpack.c.l.s4 1966171168
    %v3839 = vunpack.c.0.s8 %v3838
    %v3840 = vlaneseq
    %v3841 = vshrl.u32 %v3840, 7
    %v3842 = vsub.s32 %v3839, %v3841
    %v3843 = vrot.slane %v3821, %v3842
    %v3845 = vunpack.c.l.s4 1966171168
    %v3846 = vunpack.c.0.s8 %v3845
    %v3847 = vlaneseq
    %v3848 = vshrl.u32 %v3847, 7
    %v3849 = vsub.s32 %v3846, %v3848
    %v3850 = vrot.slane %v3822, %v3849
    %v3851 = vcombine.high %v3829, %v3829
    %v3852 = vcombine.high %v3836, %v3836
    %v3853 = vcombine.high %v3843, %v3843
    %v3854 = vcombine.high %v3850, %v3850
    %v3855 = vlaneseq
    %v3856 = vshrl.u32 %v3855, 7
    %v3857 = vsub.s32 0, %v3856
    %v3858 = vrot.slane %v3829, %v3857
    %v3859 = vlaneseq
    %v3860 = vshrl.u32 %v3859, 7
    %v3861 = vsub.s32 0, %v3860
    %v3862 = vrot.slane %v3843, %v3861
    %v3863 = vlaneseq
    %v3864 = vshrl.u32 %v3863, 7
    %v3865 = vsub.s32 0, %v3864
    %v3866 = vrot.slane %v3851, %v3865
    %v3867 = vlaneseq
    %v3868 = vshrl.u32 %v3867, 7
    %v3869 = vsub.s32 0, %v3868
    %v3870 = vrot.slane %v3853, %v3869
    %v3871 = vlaneseq
    %v3872 = vshrl.u32 %v3871, 7
    %v3873 = vsub.s32 0, %v3872
    %v3874 = vrot.slane %v3836, %v3873
    %v3875 = vlaneseq
    %v3876 = vshrl.u32 %v3875, 7
    %v3877 = vsub.s32 0, %v3876
    %v3878 = vrot.slane %v3850, %v3877
    %v3879 = vlaneseq
    %v3880 = vshrl.u32 %v3879, 7
    %v3881 = vsub.s32 0, %v3880
    %v3882 = vrot.slane %v3852, %v3881
    %v3883 = vlaneseq
    %v3884 = vshrl.u32 %v3883, 7
    %v3885 = vsub.s32 0, %v3884
    %v3886 = vrot.slane %v3854, %v3885
    %3887 = vrot.lane.b32.xlu0 %v3858, 64
    %v3888 = vpop.permute.xlu0 %3887
    %3889 = vrot.lane.b32.xlu0 %v3862, 64
    %v3890 = vpop.permute.xlu0 %3889
    %3891 = vrot.lane.b32.xlu0 %v3866, 64
    %v3892 = vpop.permute.xlu0 %3891
    %3893 = vrot.lane.b32.xlu0 %v3870, 64
    %v3894 = vpop.permute.xlu0 %3893
    %3895 = vrot.lane.b32.xlu0 %v3874, 64
    %v3896 = vpop.permute.xlu0 %3895
    %3897 = vrot.lane.b32.xlu0 %v3878, 64
    %v3898 = vpop.permute.xlu0 %3897
    %3899 = vrot.lane.b32.xlu0 %v3882, 64
    %v3900 = vpop.permute.xlu0 %3899
    %3901 = vrot.lane.b32.xlu0 %v3886, 64
    %v3902 = vpop.permute.xlu0 %3901
    %3911 = vst.msk [vmem:[#allocation10 + $0x3] sm:$0x1] %vm1065, %v3888
    %3912 = vst.msk [vmem:[#allocation10 + $0xb] sm:$0x1] %vm1065, %v3890
    %3913 = vst.msk [vmem:[#allocation10 + $0x13] sm:$0x1] %vm1065, %v3892
    %3914 = vst.msk [vmem:[#allocation10 + $0x1b] sm:$0x1] %vm1065, %v3894
    %3915 = vst.msk [vmem:[#allocation10 + $0x23] sm:$0x1] %vm1065, %v3896
    %3916 = vst.msk [vmem:[#allocation10 + $0x2b] sm:$0x1] %vm1065, %v3898
    %3917 = vst.msk [vmem:[#allocation10 + $0x33] sm:$0x1] %vm1065, %v3900
    %3918 = vst.msk [vmem:[#allocation10 + $0x3b] sm:$0x1] %vm1065, %v3902
    %v3927 = vmul.f32 %v3858, %v1099
    %v3928 = vmul.f32 %v3858, %v1101
    %v3929 = vmul.f32 %v3862, %v1103
    %v3930 = vmul.f32 %v3862, %v1105
    %v3931 = vmul.f32 %v3866, %v1107
    %v3932 = vmul.f32 %v3866, %v1109
    %v3933 = vmul.f32 %v3870, %v1111
    %v3934 = vmul.f32 %v3870, %v1113
    %v3935 = vmul.f32 %v3874, %v1115
    %v3936 = vmul.f32 %v3874, %v1117
    %v3937 = vmul.f32 %v3878, %v1119
    %v3938 = vmul.f32 %v3878, %v1121
    %v3939 = vmul.f32 %v3882, %v1123
    %v3940 = vmul.f32 %v3882, %v1125
    %v3941 = vmul.f32 %v3886, %v1127
    %v3942 = vmul.f32 %v3886, %v1129
    %3959 = vrot.lane.b32.xlu0 %v3927, 64
    %v3960 = vpop.permute.xlu0 %3959
    %3961 = vrot.lane.b32.xlu0 %v3928, 64
    %v3962 = vpop.permute.xlu0 %3961
    %3963 = vrot.lane.b32.xlu0 %v3929, 64
    %v3964 = vpop.permute.xlu0 %3963
    %3965 = vrot.lane.b32.xlu0 %v3930, 64
    %v3966 = vpop.permute.xlu0 %3965
    %3967 = vrot.lane.b32.xlu0 %v3931, 64
    %v3968 = vpop.permute.xlu0 %3967
    %3969 = vrot.lane.b32.xlu0 %v3932, 64
    %v3970 = vpop.permute.xlu0 %3969
    %3971 = vrot.lane.b32.xlu0 %v3933, 64
    %v3972 = vpop.permute.xlu0 %3971
    %3973 = vrot.lane.b32.xlu0 %v3934, 64
    %v3974 = vpop.permute.xlu0 %3973
    %3975 = vrot.lane.b32.xlu0 %v3935, 64
    %v3976 = vpop.permute.xlu0 %3975
    %3977 = vrot.lane.b32.xlu0 %v3936, 64
    %v3978 = vpop.permute.xlu0 %3977
    %3979 = vrot.lane.b32.xlu0 %v3937, 64
    %v3980 = vpop.permute.xlu0 %3979
    %3981 = vrot.lane.b32.xlu0 %v3938, 64
    %v3982 = vpop.permute.xlu0 %3981
    %3983 = vrot.lane.b32.xlu0 %v3939, 64
    %v3984 = vpop.permute.xlu0 %3983
    %3985 = vrot.lane.b32.xlu0 %v3940, 64
    %v3986 = vpop.permute.xlu0 %3985
    %3987 = vrot.lane.b32.xlu0 %v3941, 64
    %v3988 = vpop.permute.xlu0 %3987
    %3989 = vrot.lane.b32.xlu0 %v3942, 64
    %v3990 = vpop.permute.xlu0 %3989
    %v4007 = vsel %vm109, %v3960, 0.0
    %4008 = vadd.xlane.f32.xlu0 %v4007
    %v4009 = vpop.xlane.xlu0 %4008
    %v4010 = vsel %vm109, %v3962, 0.0
    %4011 = vadd.xlane.f32.xlu0 %v4010
    %v4012 = vpop.xlane.xlu0 %4011
    %v4013 = vsel %vm109, %v3964, 0.0
    %4014 = vadd.xlane.f32.xlu0 %v4013
    %v4015 = vpop.xlane.xlu0 %4014
    %v4016 = vsel %vm109, %v3966, 0.0
    %4017 = vadd.xlane.f32.xlu0 %v4016
    %v4018 = vpop.xlane.xlu0 %4017
    %v4019 = vsel %vm109, %v3968, 0.0
    %4020 = vadd.xlane.f32.xlu0 %v4019
    %v4021 = vpop.xlane.xlu0 %4020
    %v4022 = vsel %vm109, %v3970, 0.0
    %4023 = vadd.xlane.f32.xlu0 %v4022
    %v4024 = vpop.xlane.xlu0 %4023
    %v4025 = vsel %vm109, %v3972, 0.0
    %4026 = vadd.xlane.f32.xlu0 %v4025
    %v4027 = vpop.xlane.xlu0 %4026
    %v4028 = vsel %vm109, %v3974, 0.0
    %4029 = vadd.xlane.f32.xlu0 %v4028
    %v4030 = vpop.xlane.xlu0 %4029
    %v4031 = vsel %vm109, %v3976, 0.0
    %4032 = vadd.xlane.f32.xlu0 %v4031
    %v4033 = vpop.xlane.xlu0 %4032
    %v4034 = vsel %vm109, %v3978, 0.0
    %4035 = vadd.xlane.f32.xlu0 %v4034
    %v4036 = vpop.xlane.xlu0 %4035
    %v4037 = vsel %vm109, %v3980, 0.0
    %4038 = vadd.xlane.f32.xlu0 %v4037
    %v4039 = vpop.xlane.xlu0 %4038
    %v4040 = vsel %vm109, %v3982, 0.0
    %4041 = vadd.xlane.f32.xlu0 %v4040
    %v4042 = vpop.xlane.xlu0 %4041
    %v4043 = vsel %vm109, %v3984, 0.0
    %4044 = vadd.xlane.f32.xlu0 %v4043
    %v4045 = vpop.xlane.xlu0 %4044
    %v4046 = vsel %vm109, %v3986, 0.0
    %4047 = vadd.xlane.f32.xlu0 %v4046
    %v4048 = vpop.xlane.xlu0 %4047
    %v4049 = vsel %vm109, %v3988, 0.0
    %4050 = vadd.xlane.f32.xlu0 %v4049
    %v4051 = vpop.xlane.xlu0 %4050
    %v4052 = vsel %vm109, %v3990, 0.0
    %4053 = vadd.xlane.f32.xlu0 %v4052
    %v4054 = vpop.xlane.xlu0 %4053
    %v4055 = vmul.f32 %v4009, 0.17677669
    %v4056 = vmul.f32 %v4012, 0.17677669
    %v4057 = vmul.f32 %v4015, 0.17677669
    %v4058 = vmul.f32 %v4018, 0.17677669
    %v4059 = vmul.f32 %v4021, 0.17677669
    %v4060 = vmul.f32 %v4024, 0.17677669
    %v4061 = vmul.f32 %v4027, 0.17677669
    %v4062 = vmul.f32 %v4030, 0.17677669
    %v4063 = vmul.f32 %v4033, 0.17677669
    %v4064 = vmul.f32 %v4036, 0.17677669
    %v4065 = vmul.f32 %v4039, 0.17677669
    %v4066 = vmul.f32 %v4042, 0.17677669
    %v4067 = vmul.f32 %v4045, 0.17677669
    %v4068 = vmul.f32 %v4048, 0.17677669
    %v4069 = vmul.f32 %v4051, 0.17677669
    %v4070 = vmul.f32 %v4054, 0.17677669
    %v4087 = vlaneseq
    %v4088 = vshrl.u32 %v4087, 7
    %v4089 = vsub.s32 %v288, %v4088
    %v4090 = vrot.slane %v4055, %v4089
    %v4091 = vlaneseq
    %v4092 = vshrl.u32 %v4091, 7
    %v4093 = vsub.s32 %v293, %v4092
    %v4094 = vrot.slane %v4056, %v4093
    %v4095 = vsel %vm298, %v4094, %v4090
    %v4096 = vlaneseq
    %v4097 = vshrl.u32 %v4096, 7
    %v4098 = vsub.s32 %v288, %v4097
    %v4099 = vrot.slane %v4057, %v4098
    %v4100 = vlaneseq
    %v4101 = vshrl.u32 %v4100, 7
    %v4102 = vsub.s32 %v293, %v4101
    %v4103 = vrot.slane %v4058, %v4102
    %v4104 = vsel %vm298, %v4103, %v4099
    %v4105 = vlaneseq
    %v4106 = vshrl.u32 %v4105, 7
    %v4107 = vsub.s32 %v288, %v4106
    %v4108 = vrot.slane %v4059, %v4107
    %v4109 = vlaneseq
    %v4110 = vshrl.u32 %v4109, 7
    %v4111 = vsub.s32 %v293, %v4110
    %v4112 = vrot.slane %v4060, %v4111
    %v4113 = vsel %vm298, %v4112, %v4108
    %v4114 = vlaneseq
    %v4115 = vshrl.u32 %v4114, 7
    %v4116 = vsub.s32 %v288, %v4115
    %v4117 = vrot.slane %v4061, %v4116
    %v4118 = vlaneseq
    %v4119 = vshrl.u32 %v4118, 7
    %v4120 = vsub.s32 %v293, %v4119
    %v4121 = vrot.slane %v4062, %v4120
    %v4122 = vsel %vm298, %v4121, %v4117
    %v4123 = vlaneseq
    %v4124 = vshrl.u32 %v4123, 7
    %v4125 = vsub.s32 %v288, %v4124
    %v4126 = vrot.slane %v4063, %v4125
    %v4127 = vlaneseq
    %v4128 = vshrl.u32 %v4127, 7
    %v4129 = vsub.s32 %v293, %v4128
    %v4130 = vrot.slane %v4064, %v4129
    %v4131 = vsel %vm298, %v4130, %v4126
    %v4132 = vlaneseq
    %v4133 = vshrl.u32 %v4132, 7
    %v4134 = vsub.s32 %v288, %v4133
    %v4135 = vrot.slane %v4065, %v4134
    %v4136 = vlaneseq
    %v4137 = vshrl.u32 %v4136, 7
    %v4138 = vsub.s32 %v293, %v4137
    %v4139 = vrot.slane %v4066, %v4138
    %v4140 = vsel %vm298, %v4139, %v4135
    %v4141 = vlaneseq
    %v4142 = vshrl.u32 %v4141, 7
    %v4143 = vsub.s32 %v288, %v4142
    %v4144 = vrot.slane %v4067, %v4143
    %v4145 = vlaneseq
    %v4146 = vshrl.u32 %v4145, 7
    %v4147 = vsub.s32 %v293, %v4146
    %v4148 = vrot.slane %v4068, %v4147
    %v4149 = vsel %vm298, %v4148, %v4144
    %v4150 = vlaneseq
    %v4151 = vshrl.u32 %v4150, 7
    %v4152 = vsub.s32 %v288, %v4151
    %v4153 = vrot.slane %v4069, %v4152
    %v4154 = vlaneseq
    %v4155 = vshrl.u32 %v4154, 7
    %v4156 = vsub.s32 %v293, %v4155
    %v4157 = vrot.slane %v4070, %v4156
    %v4158 = vsel %vm298, %v4157, %v4153
    %v4159 = vsel %vm363, %v4104, %v4095
    %v4160 = vsel %vm365, %v4113, %v4159
    %v4161 = vsel %vm367, %v4122, %v4160
    %v4162 = vsel %vm369, %v4131, %v4161
    %v4163 = vsel %vm371, %v4140, %v4162
    %v4164 = vsel %vm373, %v4149, %v4163
    %v4165 = vsel %vm375, %v4158, %v4164
    %v4167 = vsel %vm378, %v4165, -inf
    %4168 = vmax.xlane.f32.xlu0 %v4167
    %v4169 = vpop.xlane.xlu0 %4168
    %v4171 = vlaneseq
    %v4172 = vshrl.u32 %v4171, 7
    %v4173 = vsub.s32 0, %v4172
    %v4174 = vrot.slane %v4169, %v4173
    %v4175 = vlaneseq
    %v4176 = vshrl.u32 %v4175, 7
    %v4177 = vsub.s32 1, %v4176
    %v4178 = vrot.slane %v4169, %v4177
    %v4179 = vlaneseq
    %v4180 = vshrl.u32 %v4179, 7
    %v4181 = vsub.s32 2, %v4180
    %v4182 = vrot.slane %v4169, %v4181
    %v4183 = vlaneseq
    %v4184 = vshrl.u32 %v4183, 7
    %v4185 = vsub.s32 3, %v4184
    %v4186 = vrot.slane %v4169, %v4185
    %v4187 = vlaneseq
    %v4188 = vshrl.u32 %v4187, 7
    %v4189 = vsub.s32 4, %v4188
    %v4190 = vrot.slane %v4169, %v4189
    %v4191 = vlaneseq
    %v4192 = vshrl.u32 %v4191, 7
    %v4193 = vsub.s32 5, %v4192
    %v4194 = vrot.slane %v4169, %v4193
    %v4195 = vlaneseq
    %v4196 = vshrl.u32 %v4195, 7
    %v4197 = vsub.s32 6, %v4196
    %v4198 = vrot.slane %v4169, %v4197
    %v4199 = vlaneseq
    %v4200 = vshrl.u32 %v4199, 7
    %v4201 = vsub.s32 7, %v4200
    %v4202 = vrot.slane %v4169, %v4201
    %v4211 = vsub.f32 %v4055, %v4174
    %v4212 = vsub.f32 %v4056, %v4174
    %v4213 = vsub.f32 %v4057, %v4178
    %v4214 = vsub.f32 %v4058, %v4178
    %v4215 = vsub.f32 %v4059, %v4182
    %v4216 = vsub.f32 %v4060, %v4182
    %v4217 = vsub.f32 %v4061, %v4186
    %v4218 = vsub.f32 %v4062, %v4186
    %v4219 = vsub.f32 %v4063, %v4190
    %v4220 = vsub.f32 %v4064, %v4190
    %v4221 = vsub.f32 %v4065, %v4194
    %v4222 = vsub.f32 %v4066, %v4194
    %v4223 = vsub.f32 %v4067, %v4198
    %v4224 = vsub.f32 %v4068, %v4198
    %v4225 = vsub.f32 %v4069, %v4202
    %v4226 = vsub.f32 %v4070, %v4202
    %v4227 = vmul.f32 %v4211, 1.442695
    %v4228 = vpow.pop %v4227
    %v4229 = vmul.f32 %v4212, 1.442695
    %v4230 = vpow.pop %v4229
    %v4231 = vmul.f32 %v4213, 1.442695
    %v4232 = vpow.pop %v4231
    %v4233 = vmul.f32 %v4214, 1.442695
    %v4234 = vpow.pop %v4233
    %v4235 = vmul.f32 %v4215, 1.442695
    %v4236 = vpow.pop %v4235
    %v4237 = vmul.f32 %v4216, 1.442695
    %v4238 = vpow.pop %v4237
    %v4239 = vmul.f32 %v4217, 1.442695
    %v4240 = vpow.pop %v4239
    %v4241 = vmul.f32 %v4218, 1.442695
    %v4242 = vpow.pop %v4241
    %v4243 = vmul.f32 %v4219, 1.442695
    %v4244 = vpow.pop %v4243
    %v4245 = vmul.f32 %v4220, 1.442695
    %v4246 = vpow.pop %v4245
    %v4247 = vmul.f32 %v4221, 1.442695
    %v4248 = vpow.pop %v4247
    %v4249 = vmul.f32 %v4222, 1.442695
    %v4250 = vpow.pop %v4249
    %v4251 = vmul.f32 %v4223, 1.442695
    %v4252 = vpow.pop %v4251
    %v4253 = vmul.f32 %v4224, 1.442695
    %v4254 = vpow.pop %v4253
    %v4255 = vmul.f32 %v4225, 1.442695
    %v4256 = vpow.pop %v4255
    %v4257 = vmul.f32 %v4226, 1.442695
    %v4258 = vpow.pop %v4257
    %4275 = vset.pattern.permute.xlu0 0
    %4276 = vperm.xlu0 %4275, %v4228
    %v4277 = vpop.permute.xlu0 %4276
    %4278 = vset.pattern.permute.xlu0 0
    %4279 = vperm.xlu0 %4278, %v4230
    %v4280 = vpop.permute.xlu0 %4279
    %4281 = vset.pattern.permute.xlu0 0
    %4282 = vperm.xlu0 %4281, %v4232
    %v4283 = vpop.permute.xlu0 %4282
    %4284 = vset.pattern.permute.xlu0 0
    %4285 = vperm.xlu0 %4284, %v4234
    %v4286 = vpop.permute.xlu0 %4285
    %4287 = vset.pattern.permute.xlu0 0
    %4288 = vperm.xlu0 %4287, %v4236
    %v4289 = vpop.permute.xlu0 %4288
    %4290 = vset.pattern.permute.xlu0 0
    %4291 = vperm.xlu0 %4290, %v4238
    %v4292 = vpop.permute.xlu0 %4291
    %4293 = vset.pattern.permute.xlu0 0
    %4294 = vperm.xlu0 %4293, %v4240
    %v4295 = vpop.permute.xlu0 %4294
    %4296 = vset.pattern.permute.xlu0 0
    %4297 = vperm.xlu0 %4296, %v4242
    %v4298 = vpop.permute.xlu0 %4297
    %4299 = vset.pattern.permute.xlu0 0
    %4300 = vperm.xlu0 %4299, %v4244
    %v4301 = vpop.permute.xlu0 %4300
    %4302 = vset.pattern.permute.xlu0 0
    %4303 = vperm.xlu0 %4302, %v4246
    %v4304 = vpop.permute.xlu0 %4303
    %4305 = vset.pattern.permute.xlu0 0
    %4306 = vperm.xlu0 %4305, %v4248
    %v4307 = vpop.permute.xlu0 %4306
    %4308 = vset.pattern.permute.xlu0 0
    %4309 = vperm.xlu0 %4308, %v4250
    %v4310 = vpop.permute.xlu0 %4309
    %4311 = vset.pattern.permute.xlu0 0
    %4312 = vperm.xlu0 %4311, %v4252
    %v4313 = vpop.permute.xlu0 %4312
    %4314 = vset.pattern.permute.xlu0 0
    %4315 = vperm.xlu0 %4314, %v4254
    %v4316 = vpop.permute.xlu0 %4315
    %4317 = vset.pattern.permute.xlu0 0
    %4318 = vperm.xlu0 %4317, %v4256
    %v4319 = vpop.permute.xlu0 %4318
    %4320 = vset.pattern.permute.xlu0 0
    %4321 = vperm.xlu0 %4320, %v4258
    %v4322 = vpop.permute.xlu0 %4321
    %v4323 = vlaneseq
    %v4324 = vshrl.u32 %v4323, 7
    %v4325 = vsub.s32 %v288, %v4324
    %v4326 = vrot.slane %v4277, %v4325
    %v4327 = vlaneseq
    %v4328 = vshrl.u32 %v4327, 7
    %v4329 = vsub.s32 %v293, %v4328
    %v4330 = vrot.slane %v4280, %v4329
    %v4331 = vsel %vm298, %v4330, %v4326
    %v4332 = vlaneseq
    %v4333 = vshrl.u32 %v4332, 7
    %v4334 = vsub.s32 %v288, %v4333
    %v4335 = vrot.slane %v4283, %v4334
    %v4336 = vlaneseq
    %v4337 = vshrl.u32 %v4336, 7
    %v4338 = vsub.s32 %v293, %v4337
    %v4339 = vrot.slane %v4286, %v4338
    %v4340 = vsel %vm298, %v4339, %v4335
    %v4341 = vlaneseq
    %v4342 = vshrl.u32 %v4341, 7
    %v4343 = vsub.s32 %v288, %v4342
    %v4344 = vrot.slane %v4289, %v4343
    %v4345 = vlaneseq
    %v4346 = vshrl.u32 %v4345, 7
    %v4347 = vsub.s32 %v293, %v4346
    %v4348 = vrot.slane %v4292, %v4347
    %v4349 = vsel %vm298, %v4348, %v4344
    %v4350 = vlaneseq
    %v4351 = vshrl.u32 %v4350, 7
    %v4352 = vsub.s32 %v288, %v4351
    %v4353 = vrot.slane %v4295, %v4352
    %v4354 = vlaneseq
    %v4355 = vshrl.u32 %v4354, 7
    %v4356 = vsub.s32 %v293, %v4355
    %v4357 = vrot.slane %v4298, %v4356
    %v4358 = vsel %vm298, %v4357, %v4353
    %v4359 = vlaneseq
    %v4360 = vshrl.u32 %v4359, 7
    %v4361 = vsub.s32 %v288, %v4360
    %v4362 = vrot.slane %v4301, %v4361
    %v4363 = vlaneseq
    %v4364 = vshrl.u32 %v4363, 7
    %v4365 = vsub.s32 %v293, %v4364
    %v4366 = vrot.slane %v4304, %v4365
    %v4367 = vsel %vm298, %v4366, %v4362
    %v4368 = vlaneseq
    %v4369 = vshrl.u32 %v4368, 7
    %v4370 = vsub.s32 %v288, %v4369
    %v4371 = vrot.slane %v4307, %v4370
    %v4372 = vlaneseq
    %v4373 = vshrl.u32 %v4372, 7
    %v4374 = vsub.s32 %v293, %v4373
    %v4375 = vrot.slane %v4310, %v4374
    %v4376 = vsel %vm298, %v4375, %v4371
    %v4377 = vlaneseq
    %v4378 = vshrl.u32 %v4377, 7
    %v4379 = vsub.s32 %v288, %v4378
    %v4380 = vrot.slane %v4313, %v4379
    %v4381 = vlaneseq
    %v4382 = vshrl.u32 %v4381, 7
    %v4383 = vsub.s32 %v293, %v4382
    %v4384 = vrot.slane %v4316, %v4383
    %v4385 = vsel %vm298, %v4384, %v4380
    %v4386 = vlaneseq
    %v4387 = vshrl.u32 %v4386, 7
    %v4388 = vsub.s32 %v288, %v4387
    %v4389 = vrot.slane %v4319, %v4388
    %v4390 = vlaneseq
    %v4391 = vshrl.u32 %v4390, 7
    %v4392 = vsub.s32 %v293, %v4391
    %v4393 = vrot.slane %v4322, %v4392
    %v4394 = vsel %vm298, %v4393, %v4389
    %v4395 = vsel %vm363, %v4340, %v4331
    %v4396 = vsel %vm365, %v4349, %v4395
    %v4397 = vsel %vm367, %v4358, %v4396
    %v4398 = vsel %vm369, %v4367, %v4397
    %v4399 = vsel %vm371, %v4376, %v4398
    %v4400 = vsel %vm373, %v4385, %v4399
    %v4401 = vsel %vm375, %v4394, %v4400
    %v4403 = vsel %vm378, %v4401, 0.0
    %4404 = vadd.xlane.f32.xlu0 %v4403
    %v4405 = vpop.xlane.xlu0 %4404
    %v4406 = vrcp.pop %v4405
    %v4408 = vlaneseq
    %v4409 = vshrl.u32 %v4408, 7
    %v4410 = vsub.s32 0, %v4409
    %v4411 = vrot.slane %v4406, %v4410
    %v4412 = vlaneseq
    %v4413 = vshrl.u32 %v4412, 7
    %v4414 = vsub.s32 1, %v4413
    %v4415 = vrot.slane %v4406, %v4414
    %v4416 = vlaneseq
    %v4417 = vshrl.u32 %v4416, 7
    %v4418 = vsub.s32 2, %v4417
    %v4419 = vrot.slane %v4406, %v4418
    %v4420 = vlaneseq
    %v4421 = vshrl.u32 %v4420, 7
    %v4422 = vsub.s32 3, %v4421
    %v4423 = vrot.slane %v4406, %v4422
    %v4424 = vlaneseq
    %v4425 = vshrl.u32 %v4424, 7
    %v4426 = vsub.s32 4, %v4425
    %v4427 = vrot.slane %v4406, %v4426
    %v4428 = vlaneseq
    %v4429 = vshrl.u32 %v4428, 7
    %v4430 = vsub.s32 5, %v4429
    %v4431 = vrot.slane %v4406, %v4430
    %v4432 = vlaneseq
    %v4433 = vshrl.u32 %v4432, 7
    %v4434 = vsub.s32 6, %v4433
    %v4435 = vrot.slane %v4406, %v4434
    %v4436 = vlaneseq
    %v4437 = vshrl.u32 %v4436, 7
    %v4438 = vsub.s32 7, %v4437
    %v4439 = vrot.slane %v4406, %v4438
    %v4448 = vmul.f32 %v4228, %v4411
    %v4449 = vmul.f32 %v4230, %v4411
    %v4450 = vmul.f32 %v4232, %v4415
    %v4451 = vmul.f32 %v4234, %v4415
    %v4452 = vmul.f32 %v4236, %v4419
    %v4453 = vmul.f32 %v4238, %v4419
    %v4454 = vmul.f32 %v4240, %v4423
    %v4455 = vmul.f32 %v4242, %v4423
    %v4456 = vmul.f32 %v4244, %v4427
    %v4457 = vmul.f32 %v4246, %v4427
    %v4458 = vmul.f32 %v4248, %v4431
    %v4459 = vmul.f32 %v4250, %v4431
    %v4460 = vmul.f32 %v4252, %v4435
    %v4461 = vmul.f32 %v4254, %v4435
    %v4462 = vmul.f32 %v4256, %v4439
    %v4463 = vmul.f32 %v4258, %v4439
    %4465 = vset.pattern.permute.xlu0 0
    %4466 = vperm.xlu0 %4465, %v4448
    %v4467 = vpop.permute.xlu0 %4466
    %4470 = vset.pattern.permute.xlu0 0
    %4471 = vperm.xlu0 %4470, %v4449
    %v4472 = vpop.permute.xlu0 %4471
    %4475 = vset.pattern.permute.xlu0 0
    %4476 = vperm.xlu0 %4475, %v4450
    %v4477 = vpop.permute.xlu0 %4476
    %4480 = vset.pattern.permute.xlu0 0
    %4481 = vperm.xlu0 %4480, %v4451
    %v4482 = vpop.permute.xlu0 %4481
    %4485 = vset.pattern.permute.xlu0 0
    %4486 = vperm.xlu0 %4485, %v4452
    %v4487 = vpop.permute.xlu0 %4486
    %4490 = vset.pattern.permute.xlu0 0
    %4491 = vperm.xlu0 %4490, %v4453
    %v4492 = vpop.permute.xlu0 %4491
    %4495 = vset.pattern.permute.xlu0 0
    %4496 = vperm.xlu0 %4495, %v4454
    %v4497 = vpop.permute.xlu0 %4496
    %4500 = vset.pattern.permute.xlu0 0
    %4501 = vperm.xlu0 %4500, %v4455
    %v4502 = vpop.permute.xlu0 %4501
    %4505 = vset.pattern.permute.xlu0 0
    %4506 = vperm.xlu0 %4505, %v4456
    %v4507 = vpop.permute.xlu0 %4506
    %4510 = vset.pattern.permute.xlu0 0
    %4511 = vperm.xlu0 %4510, %v4457
    %v4512 = vpop.permute.xlu0 %4511
    %4515 = vset.pattern.permute.xlu0 0
    %4516 = vperm.xlu0 %4515, %v4458
    %v4517 = vpop.permute.xlu0 %4516
    %4520 = vset.pattern.permute.xlu0 0
    %4521 = vperm.xlu0 %4520, %v4459
    %v4522 = vpop.permute.xlu0 %4521
    %4525 = vset.pattern.permute.xlu0 0
    %4526 = vperm.xlu0 %4525, %v4460
    %v4527 = vpop.permute.xlu0 %4526
    %4530 = vset.pattern.permute.xlu0 0
    %4531 = vperm.xlu0 %4530, %v4461
    %v4532 = vpop.permute.xlu0 %4531
    %4535 = vset.pattern.permute.xlu0 0
    %4536 = vperm.xlu0 %4535, %v4462
    %v4537 = vpop.permute.xlu0 %4536
    %4540 = vset.pattern.permute.xlu0 0
    %4541 = vperm.xlu0 %4540, %v4463
    %v4542 = vpop.permute.xlu0 %4541
    %v4544 = vmul.f32 %v4467, %v89
    %v4545 = vmul.f32 %v4472, %v90
    %v4546 = vmul.f32 %v4477, %v91
    %v4547 = vmul.f32 %v4482, %v92
    %v4548 = vmul.f32 %v4487, %v93
    %v4549 = vmul.f32 %v4492, %v94
    %v4550 = vmul.f32 %v4497, %v95
    %v4551 = vmul.f32 %v4502, %v96
    %v4552 = vmul.f32 %v4507, %v97
    %v4553 = vmul.f32 %v4512, %v98
    %v4554 = vmul.f32 %v4517, %v99
    %v4555 = vmul.f32 %v4522, %v100
    %v4556 = vmul.f32 %v4527, %v101
    %v4557 = vmul.f32 %v4532, %v102
    %v4558 = vmul.f32 %v4537, %v103
    %v4559 = vmul.f32 %v4542, %v104
    %v4560 = vadd.f32 %v4544, %v4545
    %v4561 = vrot.slane %v4560, 4
    %v4562 = vadd.f32 %v4560, %v4561
    %v4563 = vrot.slane %v4562, 2
    %v4564 = vadd.f32 %v4562, %v4563
    %v4565 = vrot.slane %v4564, 1
    %v4566 = vadd.f32 %v4564, %v4565
    %v4567 = vadd.f32 %v4546, %v4547
    %v4568 = vrot.slane %v4567, 4
    %v4569 = vadd.f32 %v4567, %v4568
    %v4570 = vrot.slane %v4569, 2
    %v4571 = vadd.f32 %v4569, %v4570
    %v4572 = vrot.slane %v4571, 1
    %v4573 = vadd.f32 %v4571, %v4572
    %v4574 = vadd.f32 %v4548, %v4549
    %v4575 = vrot.slane %v4574, 4
    %v4576 = vadd.f32 %v4574, %v4575
    %v4577 = vrot.slane %v4576, 2
    %v4578 = vadd.f32 %v4576, %v4577
    %v4579 = vrot.slane %v4578, 1
    %v4580 = vadd.f32 %v4578, %v4579
    %v4581 = vadd.f32 %v4550, %v4551
    %v4582 = vrot.slane %v4581, 4
    %v4583 = vadd.f32 %v4581, %v4582
    %v4584 = vrot.slane %v4583, 2
    %v4585 = vadd.f32 %v4583, %v4584
    %v4586 = vrot.slane %v4585, 1
    %v4587 = vadd.f32 %v4585, %v4586
    %v4588 = vadd.f32 %v4552, %v4553
    %v4589 = vrot.slane %v4588, 4
    %v4590 = vadd.f32 %v4588, %v4589
    %v4591 = vrot.slane %v4590, 2
    %v4592 = vadd.f32 %v4590, %v4591
    %v4593 = vrot.slane %v4592, 1
    %v4594 = vadd.f32 %v4592, %v4593
    %v4595 = vadd.f32 %v4554, %v4555
    %v4596 = vrot.slane %v4595, 4
    %v4597 = vadd.f32 %v4595, %v4596
    %v4598 = vrot.slane %v4597, 2
    %v4599 = vadd.f32 %v4597, %v4598
    %v4600 = vrot.slane %v4599, 1
    %v4601 = vadd.f32 %v4599, %v4600
    %v4602 = vadd.f32 %v4556, %v4557
    %v4603 = vrot.slane %v4602, 4
    %v4604 = vadd.f32 %v4602, %v4603
    %v4605 = vrot.slane %v4604, 2
    %v4606 = vadd.f32 %v4604, %v4605
    %v4607 = vrot.slane %v4606, 1
    %v4608 = vadd.f32 %v4606, %v4607
    %v4609 = vadd.f32 %v4558, %v4559
    %v4610 = vrot.slane %v4609, 4
    %v4611 = vadd.f32 %v4609, %v4610
    %v4612 = vrot.slane %v4611, 2
    %v4613 = vadd.f32 %v4611, %v4612
    %v4614 = vrot.slane %v4613, 1
    %v4615 = vadd.f32 %v4613, %v4614
    %s4616 = scalar_lea.vmem [#allocation2], 32
    %v4617 = vld [vmem:[%s4616] sm:$0xff]
    %4618 = vrot.lane.b32.xlu0 %v3804, 64
    %v4619 = vpop.permute.xlu0 %4618
    %v4620 = vsel %vm109, %v4619, 0
    %4622 = vmatprep.subr.mxu0 0.0
    %4623 = vmatpush1.msra.mxu0 %v105
    %4624 = vmatprep.subr.mxu0 0.0
    %4625 = vmatpush1.msra.mxu0 %v106
    %4626 = vmatprep.subr.mxu0 0.0
    %4627 = vmatpush1.msra.mxu0 %v107
    %4628 = vmatprep.subr.mxu0 0.0
    %4629 = vmatpush1.msra.mxu0 %v108
    %4630 = vmatprep.subr.mxu0 0.0
    %4631 = vmatpush1.msra.mxu0 0.0
    %4632 = vmatprep.subr.mxu0 0.0
    %4633 = vmatpush1.msra.mxu0 0.0
    %4634 = vmatprep.subr.mxu0 0.0
    %4635 = vmatpush1.msra.mxu0 0.0
    %4636 = vmatprep.subr.mxu0 0.0
    %4637 = vmatpush1.msra.mxu0 0.0
    %4638 = vmatprep.subr.mxu0 0.0
    %4639 = vmatpush1.msra.mxu0 0.0
    %4640 = vmatprep.subr.mxu0 0.0
    %4641 = vmatpush1.msra.mxu0 0.0
    %4642 = vmatprep.subr.mxu0 0.0
    %4643 = vmatpush1.msra.mxu0 0.0
    %4644 = vmatprep.subr.mxu0 0.0
    %4645 = vmatpush1.msra.mxu0 0.0
    %4646 = vmatprep.subr.mxu0 0.0
    %4647 = vmatpush1.msra.mxu0 0.0
    %4648 = vmatprep.subr.mxu0 0.0
    %4649 = vmatpush1.msra.mxu0 0.0
    %4650 = vmatprep.subr.mxu0 0.0
    %4651 = vmatpush1.msra.mxu0 0.0
    %4652 = vmatprep.subr.mxu0 0.0
    %4653 = vmatpush1.msra.mxu0 0.0
    %4654 = vmatprep.subr.mxu0 0.0
    %4655 = vmatpush1.msra.mxu0 0.0
    %4656 = vmatprep.subr.mxu0 0.0
    %4657 = vmatpush1.msra.mxu0 0.0
    %4658 = vmatprep.subr.mxu0 0.0
    %4659 = vmatpush1.msra.mxu0 0.0
    %4660 = vmatprep.subr.mxu0 0.0
    %4661 = vmatpush1.msra.mxu0 0.0
    %4662 = vmatprep.subr.mxu0 0.0
    %4663 = vmatpush1.msra.mxu0 0.0
    %4664 = vmatprep.subr.mxu0 0.0
    %4665 = vmatpush1.msra.mxu0 0.0
    %4666 = vmatprep.subr.mxu0 0.0
    %4667 = vmatpush1.msra.mxu0 0.0
    %4668 = vmatprep.subr.mxu0 0.0
    %4669 = vmatpush1.msra.mxu0 0.0
    %4670 = vmatprep.subr.mxu0 0.0
    %4671 = vmatpush1.msra.mxu0 0.0
    %4672 = vmatprep.subr.mxu0 0.0
    %4673 = vmatpush1.msra.mxu0 0.0
    %4674 = vmatprep.subr.mxu0 0.0
    %4675 = vmatpush1.msra.mxu0 0.0
    %4676 = vmatprep.subr.mxu0 0.0
    %4677 = vmatpush1.msra.mxu0 0.0
    %4678 = vmatprep.subr.mxu0 0.0
    %4679 = vmatpush1.msra.mxu0 0.0
    %4680 = vmatprep.subr.mxu0 0.0
    %4681 = vmatpush1.msra.mxu0 0.0
    %4682 = vmatprep.subr.mxu0 0.0
    %4683 = vmatpush1.msra.mxu0 0.0
    %4684 = vmatprep.subr.mxu0 0.0
    %4685 = vmatpush1.msra.mxu0 0.0
    %4686 = vmatprep.mubr.f32.mxu0 0.0
    %4687 = vmatmul.mubr.f32.gmra.mrb[0].mxu0 %v4620
    %v4688 = vpop.f32.mrb[0].mxu0
    %v4689 = vadd.f32 0.0, %v4688
    %v4690 = vpop.f32.mrb[0].mxu0
    %4691 = vdwg.mxu0
    %v4692 = vadd.f32 %v4617, %v4689
    %v4701 = vsel %vm363, %v4573, %v4566
    %v4702 = vsel %vm365, %v4580, %v4701
    %v4703 = vsel %vm367, %v4587, %v4702
    %v4704 = vsel %vm369, %v4594, %v4703
    %v4705 = vsel %vm371, %v4601, %v4704
    %v4706 = vsel %vm373, %v4608, %v4705
    %v4707 = vsel %vm375, %v4615, %v4706
    %v4709 = vadd.f32 %v4692, %v4707
    %v4710 = vmul.f32 %v4709, 0.5
    %v4711 = vtanh.pop %v4710
    %v4712 = vmul.f32 %v4711, 0.5
    %v4713 = vadd.f32 %v4712, 0.5
    %v4714 = vtanh.pop %v4709
    %v4715 = vmul.f32 %v4713, %v3798
    %4717 = vrot.lane.b32.xlu0 %v4714, 32
    %v4718 = vpop.permute.xlu0 %4717
    %v4720 = vmul.f32 %v4713, %v4718
    %4722 = vrot.lane.b32.xlu0 %v4720, 32
    %v4723 = vpop.permute.xlu0 %4722
    %v4725 = vadd.f32 %v4715, %v4723
    %v4726 = vtanh.pop %v4725
    %4728 = vrot.lane.b32.xlu0 %v4726, 32
    %v4729 = vpop.permute.xlu0 %4728
    %v4731 = vmul.f32 %v4713, %v4729
    %v4733 = vcombine.high %v4731, %v4731
    %v4735 = vunpack.c.l.s4 1966171168
    %v4736 = vunpack.c.0.s8 %v4735
    %v4737 = vlaneseq
    %v4738 = vshrl.u32 %v4737, 7
    %v4739 = vsub.s32 %v4736, %v4738
    %v4740 = vrot.slane %v4731, %v4739
    %v4742 = vunpack.c.l.s4 1966171168
    %v4743 = vunpack.c.0.s8 %v4742
    %v4744 = vlaneseq
    %v4745 = vshrl.u32 %v4744, 7
    %v4746 = vsub.s32 %v4743, %v4745
    %v4747 = vrot.slane %v4733, %v4746
    %v4748 = vcombine.high %v4740, %v4740
    %v4749 = vcombine.high %v4747, %v4747
    %v4751 = vunpack.c.l.s4 1966171168
    %v4752 = vunpack.c.0.s8 %v4751
    %v4753 = vlaneseq
    %v4754 = vshrl.u32 %v4753, 7
    %v4755 = vsub.s32 %v4752, %v4754
    %v4756 = vrot.slane %v4740, %v4755
    %v4758 = vunpack.c.l.s4 1966171168
    %v4759 = vunpack.c.0.s8 %v4758
    %v4760 = vlaneseq
    %v4761 = vshrl.u32 %v4760, 7
    %v4762 = vsub.s32 %v4759, %v4761
    %v4763 = vrot.slane %v4747, %v4762
    %v4765 = vunpack.c.l.s4 1966171168
    %v4766 = vunpack.c.0.s8 %v4765
    %v4767 = vlaneseq
    %v4768 = vshrl.u32 %v4767, 7
    %v4769 = vsub.s32 %v4766, %v4768
    %v4770 = vrot.slane %v4748, %v4769
    %v4772 = vunpack.c.l.s4 1966171168
    %v4773 = vunpack.c.0.s8 %v4772
    %v4774 = vlaneseq
    %v4775 = vshrl.u32 %v4774, 7
    %v4776 = vsub.s32 %v4773, %v4775
    %v4777 = vrot.slane %v4749, %v4776
    %v4778 = vcombine.high %v4756, %v4756
    %v4779 = vcombine.high %v4763, %v4763
    %v4780 = vcombine.high %v4770, %v4770
    %v4781 = vcombine.high %v4777, %v4777
    %v4782 = vlaneseq
    %v4783 = vshrl.u32 %v4782, 7
    %v4784 = vsub.s32 0, %v4783
    %v4785 = vrot.slane %v4756, %v4784
    %v4786 = vlaneseq
    %v4787 = vshrl.u32 %v4786, 7
    %v4788 = vsub.s32 0, %v4787
    %v4789 = vrot.slane %v4770, %v4788
    %v4790 = vlaneseq
    %v4791 = vshrl.u32 %v4790, 7
    %v4792 = vsub.s32 0, %v4791
    %v4793 = vrot.slane %v4778, %v4792
    %v4794 = vlaneseq
    %v4795 = vshrl.u32 %v4794, 7
    %v4796 = vsub.s32 0, %v4795
    %v4797 = vrot.slane %v4780, %v4796
    %v4798 = vlaneseq
    %v4799 = vshrl.u32 %v4798, 7
    %v4800 = vsub.s32 0, %v4799
    %v4801 = vrot.slane %v4763, %v4800
    %v4802 = vlaneseq
    %v4803 = vshrl.u32 %v4802, 7
    %v4804 = vsub.s32 0, %v4803
    %v4805 = vrot.slane %v4777, %v4804
    %v4806 = vlaneseq
    %v4807 = vshrl.u32 %v4806, 7
    %v4808 = vsub.s32 0, %v4807
    %v4809 = vrot.slane %v4779, %v4808
    %v4810 = vlaneseq
    %v4811 = vshrl.u32 %v4810, 7
    %v4812 = vsub.s32 0, %v4811
    %v4813 = vrot.slane %v4781, %v4812
    %4814 = vrot.lane.b32.xlu0 %v4785, 64
    %v4815 = vpop.permute.xlu0 %4814
    %4816 = vrot.lane.b32.xlu0 %v4789, 64
    %v4817 = vpop.permute.xlu0 %4816
    %4818 = vrot.lane.b32.xlu0 %v4793, 64
    %v4819 = vpop.permute.xlu0 %4818
    %4820 = vrot.lane.b32.xlu0 %v4797, 64
    %v4821 = vpop.permute.xlu0 %4820
    %4822 = vrot.lane.b32.xlu0 %v4801, 64
    %v4823 = vpop.permute.xlu0 %4822
    %4824 = vrot.lane.b32.xlu0 %v4805, 64
    %v4825 = vpop.permute.xlu0 %4824
    %4826 = vrot.lane.b32.xlu0 %v4809, 64
    %v4827 = vpop.permute.xlu0 %4826
    %4828 = vrot.lane.b32.xlu0 %v4813, 64
    %v4829 = vpop.permute.xlu0 %4828
    %4838 = vst.msk [vmem:[#allocation10 + $0x4] sm:$0x1] %vm1065, %v4815
    %4839 = vst.msk [vmem:[#allocation10 + $0xc] sm:$0x1] %vm1065, %v4817
    %4840 = vst.msk [vmem:[#allocation10 + $0x14] sm:$0x1] %vm1065, %v4819
    %4841 = vst.msk [vmem:[#allocation10 + $0x1c] sm:$0x1] %vm1065, %v4821
    %4842 = vst.msk [vmem:[#allocation10 + $0x24] sm:$0x1] %vm1065, %v4823
    %4843 = vst.msk [vmem:[#allocation10 + $0x2c] sm:$0x1] %vm1065, %v4825
    %4844 = vst.msk [vmem:[#allocation10 + $0x34] sm:$0x1] %vm1065, %v4827
    %4845 = vst.msk [vmem:[#allocation10 + $0x3c] sm:$0x1] %vm1065, %v4829
    %v4854 = vmul.f32 %v4785, %v1099
    %v4855 = vmul.f32 %v4785, %v1101
    %v4856 = vmul.f32 %v4789, %v1103
    %v4857 = vmul.f32 %v4789, %v1105
    %v4858 = vmul.f32 %v4793, %v1107
    %v4859 = vmul.f32 %v4793, %v1109
    %v4860 = vmul.f32 %v4797, %v1111
    %v4861 = vmul.f32 %v4797, %v1113
    %v4862 = vmul.f32 %v4801, %v1115
    %v4863 = vmul.f32 %v4801, %v1117
    %v4864 = vmul.f32 %v4805, %v1119
    %v4865 = vmul.f32 %v4805, %v1121
    %v4866 = vmul.f32 %v4809, %v1123
    %v4867 = vmul.f32 %v4809, %v1125
    %v4868 = vmul.f32 %v4813, %v1127
    %v4869 = vmul.f32 %v4813, %v1129
    %4886 = vrot.lane.b32.xlu0 %v4854, 64
    %v4887 = vpop.permute.xlu0 %4886
    %4888 = vrot.lane.b32.xlu0 %v4855, 64
    %v4889 = vpop.permute.xlu0 %4888
    %4890 = vrot.lane.b32.xlu0 %v4856, 64
    %v4891 = vpop.permute.xlu0 %4890
    %4892 = vrot.lane.b32.xlu0 %v4857, 64
    %v4893 = vpop.permute.xlu0 %4892
    %4894 = vrot.lane.b32.xlu0 %v4858, 64
    %v4895 = vpop.permute.xlu0 %4894
    %4896 = vrot.lane.b32.xlu0 %v4859, 64
    %v4897 = vpop.permute.xlu0 %4896
    %4898 = vrot.lane.b32.xlu0 %v4860, 64
    %v4899 = vpop.permute.xlu0 %4898
    %4900 = vrot.lane.b32.xlu0 %v4861, 64
    %v4901 = vpop.permute.xlu0 %4900
    %4902 = vrot.lane.b32.xlu0 %v4862, 64
    %v4903 = vpop.permute.xlu0 %4902
    %4904 = vrot.lane.b32.xlu0 %v4863, 64
    %v4905 = vpop.permute.xlu0 %4904
    %4906 = vrot.lane.b32.xlu0 %v4864, 64
    %v4907 = vpop.permute.xlu0 %4906
    %4908 = vrot.lane.b32.xlu0 %v4865, 64
    %v4909 = vpop.permute.xlu0 %4908
    %4910 = vrot.lane.b32.xlu0 %v4866, 64
    %v4911 = vpop.permute.xlu0 %4910
    %4912 = vrot.lane.b32.xlu0 %v4867, 64
    %v4913 = vpop.permute.xlu0 %4912
    %4914 = vrot.lane.b32.xlu0 %v4868, 64
    %v4915 = vpop.permute.xlu0 %4914
    %4916 = vrot.lane.b32.xlu0 %v4869, 64
    %v4917 = vpop.permute.xlu0 %4916
    %v4934 = vsel %vm109, %v4887, 0.0
    %4935 = vadd.xlane.f32.xlu0 %v4934
    %v4936 = vpop.xlane.xlu0 %4935
    %v4937 = vsel %vm109, %v4889, 0.0
    %4938 = vadd.xlane.f32.xlu0 %v4937
    %v4939 = vpop.xlane.xlu0 %4938
    %v4940 = vsel %vm109, %v4891, 0.0
    %4941 = vadd.xlane.f32.xlu0 %v4940
    %v4942 = vpop.xlane.xlu0 %4941
    %v4943 = vsel %vm109, %v4893, 0.0
    %4944 = vadd.xlane.f32.xlu0 %v4943
    %v4945 = vpop.xlane.xlu0 %4944
    %v4946 = vsel %vm109, %v4895, 0.0
    %4947 = vadd.xlane.f32.xlu0 %v4946
    %v4948 = vpop.xlane.xlu0 %4947
    %v4949 = vsel %vm109, %v4897, 0.0
    %4950 = vadd.xlane.f32.xlu0 %v4949
    %v4951 = vpop.xlane.xlu0 %4950
    %v4952 = vsel %vm109, %v4899, 0.0
    %4953 = vadd.xlane.f32.xlu0 %v4952
    %v4954 = vpop.xlane.xlu0 %4953
    %v4955 = vsel %vm109, %v4901, 0.0
    %4956 = vadd.xlane.f32.xlu0 %v4955
    %v4957 = vpop.xlane.xlu0 %4956
    %v4958 = vsel %vm109, %v4903, 0.0
    %4959 = vadd.xlane.f32.xlu0 %v4958
    %v4960 = vpop.xlane.xlu0 %4959
    %v4961 = vsel %vm109, %v4905, 0.0
    %4962 = vadd.xlane.f32.xlu0 %v4961
    %v4963 = vpop.xlane.xlu0 %4962
    %v4964 = vsel %vm109, %v4907, 0.0
    %4965 = vadd.xlane.f32.xlu0 %v4964
    %v4966 = vpop.xlane.xlu0 %4965
    %v4967 = vsel %vm109, %v4909, 0.0
    %4968 = vadd.xlane.f32.xlu0 %v4967
    %v4969 = vpop.xlane.xlu0 %4968
    %v4970 = vsel %vm109, %v4911, 0.0
    %4971 = vadd.xlane.f32.xlu0 %v4970
    %v4972 = vpop.xlane.xlu0 %4971
    %v4973 = vsel %vm109, %v4913, 0.0
    %4974 = vadd.xlane.f32.xlu0 %v4973
    %v4975 = vpop.xlane.xlu0 %4974
    %v4976 = vsel %vm109, %v4915, 0.0
    %4977 = vadd.xlane.f32.xlu0 %v4976
    %v4978 = vpop.xlane.xlu0 %4977
    %v4979 = vsel %vm109, %v4917, 0.0
    %4980 = vadd.xlane.f32.xlu0 %v4979
    %v4981 = vpop.xlane.xlu0 %4980
    %v4982 = vmul.f32 %v4936, 0.17677669
    %v4983 = vmul.f32 %v4939, 0.17677669
    %v4984 = vmul.f32 %v4942, 0.17677669
    %v4985 = vmul.f32 %v4945, 0.17677669
    %v4986 = vmul.f32 %v4948, 0.17677669
    %v4987 = vmul.f32 %v4951, 0.17677669
    %v4988 = vmul.f32 %v4954, 0.17677669
    %v4989 = vmul.f32 %v4957, 0.17677669
    %v4990 = vmul.f32 %v4960, 0.17677669
    %v4991 = vmul.f32 %v4963, 0.17677669
    %v4992 = vmul.f32 %v4966, 0.17677669
    %v4993 = vmul.f32 %v4969, 0.17677669
    %v4994 = vmul.f32 %v4972, 0.17677669
    %v4995 = vmul.f32 %v4975, 0.17677669
    %v4996 = vmul.f32 %v4978, 0.17677669
    %v4997 = vmul.f32 %v4981, 0.17677669
    %v5014 = vlaneseq
    %v5015 = vshrl.u32 %v5014, 7
    %v5016 = vsub.s32 %v288, %v5015
    %v5017 = vrot.slane %v4982, %v5016
    %v5018 = vlaneseq
    %v5019 = vshrl.u32 %v5018, 7
    %v5020 = vsub.s32 %v293, %v5019
    %v5021 = vrot.slane %v4983, %v5020
    %v5022 = vsel %vm298, %v5021, %v5017
    %v5023 = vlaneseq
    %v5024 = vshrl.u32 %v5023, 7
    %v5025 = vsub.s32 %v288, %v5024
    %v5026 = vrot.slane %v4984, %v5025
    %v5027 = vlaneseq
    %v5028 = vshrl.u32 %v5027, 7
    %v5029 = vsub.s32 %v293, %v5028
    %v5030 = vrot.slane %v4985, %v5029
    %v5031 = vsel %vm298, %v5030, %v5026
    %v5032 = vlaneseq
    %v5033 = vshrl.u32 %v5032, 7
    %v5034 = vsub.s32 %v288, %v5033
    %v5035 = vrot.slane %v4986, %v5034
    %v5036 = vlaneseq
    %v5037 = vshrl.u32 %v5036, 7
    %v5038 = vsub.s32 %v293, %v5037
    %v5039 = vrot.slane %v4987, %v5038
    %v5040 = vsel %vm298, %v5039, %v5035
    %v5041 = vlaneseq
    %v5042 = vshrl.u32 %v5041, 7
    %v5043 = vsub.s32 %v288, %v5042
    %v5044 = vrot.slane %v4988, %v5043
    %v5045 = vlaneseq
    %v5046 = vshrl.u32 %v5045, 7
    %v5047 = vsub.s32 %v293, %v5046
    %v5048 = vrot.slane %v4989, %v5047
    %v5049 = vsel %vm298, %v5048, %v5044
    %v5050 = vlaneseq
    %v5051 = vshrl.u32 %v5050, 7
    %v5052 = vsub.s32 %v288, %v5051
    %v5053 = vrot.slane %v4990, %v5052
    %v5054 = vlaneseq
    %v5055 = vshrl.u32 %v5054, 7
    %v5056 = vsub.s32 %v293, %v5055
    %v5057 = vrot.slane %v4991, %v5056
    %v5058 = vsel %vm298, %v5057, %v5053
    %v5059 = vlaneseq
    %v5060 = vshrl.u32 %v5059, 7
    %v5061 = vsub.s32 %v288, %v5060
    %v5062 = vrot.slane %v4992, %v5061
    %v5063 = vlaneseq
    %v5064 = vshrl.u32 %v5063, 7
    %v5065 = vsub.s32 %v293, %v5064
    %v5066 = vrot.slane %v4993, %v5065
    %v5067 = vsel %vm298, %v5066, %v5062
    %v5068 = vlaneseq
    %v5069 = vshrl.u32 %v5068, 7
    %v5070 = vsub.s32 %v288, %v5069
    %v5071 = vrot.slane %v4994, %v5070
    %v5072 = vlaneseq
    %v5073 = vshrl.u32 %v5072, 7
    %v5074 = vsub.s32 %v293, %v5073
    %v5075 = vrot.slane %v4995, %v5074
    %v5076 = vsel %vm298, %v5075, %v5071
    %v5077 = vlaneseq
    %v5078 = vshrl.u32 %v5077, 7
    %v5079 = vsub.s32 %v288, %v5078
    %v5080 = vrot.slane %v4996, %v5079
    %v5081 = vlaneseq
    %v5082 = vshrl.u32 %v5081, 7
    %v5083 = vsub.s32 %v293, %v5082
    %v5084 = vrot.slane %v4997, %v5083
    %v5085 = vsel %vm298, %v5084, %v5080
    %v5086 = vsel %vm363, %v5031, %v5022
    %v5087 = vsel %vm365, %v5040, %v5086
    %v5088 = vsel %vm367, %v5049, %v5087
    %v5089 = vsel %vm369, %v5058, %v5088
    %v5090 = vsel %vm371, %v5067, %v5089
    %v5091 = vsel %vm373, %v5076, %v5090
    %v5092 = vsel %vm375, %v5085, %v5091
    %v5094 = vsel %vm378, %v5092, -inf
    %5095 = vmax.xlane.f32.xlu0 %v5094
    %v5096 = vpop.xlane.xlu0 %5095
    %v5098 = vlaneseq
    %v5099 = vshrl.u32 %v5098, 7
    %v5100 = vsub.s32 0, %v5099
    %v5101 = vrot.slane %v5096, %v5100
    %v5102 = vlaneseq
    %v5103 = vshrl.u32 %v5102, 7
    %v5104 = vsub.s32 1, %v5103
    %v5105 = vrot.slane %v5096, %v5104
    %v5106 = vlaneseq
    %v5107 = vshrl.u32 %v5106, 7
    %v5108 = vsub.s32 2, %v5107
    %v5109 = vrot.slane %v5096, %v5108
    %v5110 = vlaneseq
    %v5111 = vshrl.u32 %v5110, 7
    %v5112 = vsub.s32 3, %v5111
    %v5113 = vrot.slane %v5096, %v5112
    %v5114 = vlaneseq
    %v5115 = vshrl.u32 %v5114, 7
    %v5116 = vsub.s32 4, %v5115
    %v5117 = vrot.slane %v5096, %v5116
    %v5118 = vlaneseq
    %v5119 = vshrl.u32 %v5118, 7
    %v5120 = vsub.s32 5, %v5119
    %v5121 = vrot.slane %v5096, %v5120
    %v5122 = vlaneseq
    %v5123 = vshrl.u32 %v5122, 7
    %v5124 = vsub.s32 6, %v5123
    %v5125 = vrot.slane %v5096, %v5124
    %v5126 = vlaneseq
    %v5127 = vshrl.u32 %v5126, 7
    %v5128 = vsub.s32 7, %v5127
    %v5129 = vrot.slane %v5096, %v5128
    %v5138 = vsub.f32 %v4982, %v5101
    %v5139 = vsub.f32 %v4983, %v5101
    %v5140 = vsub.f32 %v4984, %v5105
    %v5141 = vsub.f32 %v4985, %v5105
    %v5142 = vsub.f32 %v4986, %v5109
    %v5143 = vsub.f32 %v4987, %v5109
    %v5144 = vsub.f32 %v4988, %v5113
    %v5145 = vsub.f32 %v4989, %v5113
    %v5146 = vsub.f32 %v4990, %v5117
    %v5147 = vsub.f32 %v4991, %v5117
    %v5148 = vsub.f32 %v4992, %v5121
    %v5149 = vsub.f32 %v4993, %v5121
    %v5150 = vsub.f32 %v4994, %v5125
    %v5151 = vsub.f32 %v4995, %v5125
    %v5152 = vsub.f32 %v4996, %v5129
    %v5153 = vsub.f32 %v4997, %v5129
    %v5154 = vmul.f32 %v5138, 1.442695
    %v5155 = vpow.pop %v5154
    %v5156 = vmul.f32 %v5139, 1.442695
    %v5157 = vpow.pop %v5156
    %v5158 = vmul.f32 %v5140, 1.442695
    %v5159 = vpow.pop %v5158
    %v5160 = vmul.f32 %v5141, 1.442695
    %v5161 = vpow.pop %v5160
    %v5162 = vmul.f32 %v5142, 1.442695
    %v5163 = vpow.pop %v5162
    %v5164 = vmul.f32 %v5143, 1.442695
    %v5165 = vpow.pop %v5164
    %v5166 = vmul.f32 %v5144, 1.442695
    %v5167 = vpow.pop %v5166
    %v5168 = vmul.f32 %v5145, 1.442695
    %v5169 = vpow.pop %v5168
    %v5170 = vmul.f32 %v5146, 1.442695
    %v5171 = vpow.pop %v5170
    %v5172 = vmul.f32 %v5147, 1.442695
    %v5173 = vpow.pop %v5172
    %v5174 = vmul.f32 %v5148, 1.442695
    %v5175 = vpow.pop %v5174
    %v5176 = vmul.f32 %v5149, 1.442695
    %v5177 = vpow.pop %v5176
    %v5178 = vmul.f32 %v5150, 1.442695
    %v5179 = vpow.pop %v5178
    %v5180 = vmul.f32 %v5151, 1.442695
    %v5181 = vpow.pop %v5180
    %v5182 = vmul.f32 %v5152, 1.442695
    %v5183 = vpow.pop %v5182
    %v5184 = vmul.f32 %v5153, 1.442695
    %v5185 = vpow.pop %v5184
    %5202 = vset.pattern.permute.xlu0 0
    %5203 = vperm.xlu0 %5202, %v5155
    %v5204 = vpop.permute.xlu0 %5203
    %5205 = vset.pattern.permute.xlu0 0
    %5206 = vperm.xlu0 %5205, %v5157
    %v5207 = vpop.permute.xlu0 %5206
    %5208 = vset.pattern.permute.xlu0 0
    %5209 = vperm.xlu0 %5208, %v5159
    %v5210 = vpop.permute.xlu0 %5209
    %5211 = vset.pattern.permute.xlu0 0
    %5212 = vperm.xlu0 %5211, %v5161
    %v5213 = vpop.permute.xlu0 %5212
    %5214 = vset.pattern.permute.xlu0 0
    %5215 = vperm.xlu0 %5214, %v5163
    %v5216 = vpop.permute.xlu0 %5215
    %5217 = vset.pattern.permute.xlu0 0
    %5218 = vperm.xlu0 %5217, %v5165
    %v5219 = vpop.permute.xlu0 %5218
    %5220 = vset.pattern.permute.xlu0 0
    %5221 = vperm.xlu0 %5220, %v5167
    %v5222 = vpop.permute.xlu0 %5221
    %5223 = vset.pattern.permute.xlu0 0
    %5224 = vperm.xlu0 %5223, %v5169
    %v5225 = vpop.permute.xlu0 %5224
    %5226 = vset.pattern.permute.xlu0 0
    %5227 = vperm.xlu0 %5226, %v5171
    %v5228 = vpop.permute.xlu0 %5227
    %5229 = vset.pattern.permute.xlu0 0
    %5230 = vperm.xlu0 %5229, %v5173
    %v5231 = vpop.permute.xlu0 %5230
    %5232 = vset.pattern.permute.xlu0 0
    %5233 = vperm.xlu0 %5232, %v5175
    %v5234 = vpop.permute.xlu0 %5233
    %5235 = vset.pattern.permute.xlu0 0
    %5236 = vperm.xlu0 %5235, %v5177
    %v5237 = vpop.permute.xlu0 %5236
    %5238 = vset.pattern.permute.xlu0 0
    %5239 = vperm.xlu0 %5238, %v5179
    %v5240 = vpop.permute.xlu0 %5239
    %5241 = vset.pattern.permute.xlu0 0
    %5242 = vperm.xlu0 %5241, %v5181
    %v5243 = vpop.permute.xlu0 %5242
    %5244 = vset.pattern.permute.xlu0 0
    %5245 = vperm.xlu0 %5244, %v5183
    %v5246 = vpop.permute.xlu0 %5245
    %5247 = vset.pattern.permute.xlu0 0
    %5248 = vperm.xlu0 %5247, %v5185
    %v5249 = vpop.permute.xlu0 %5248
    %v5250 = vlaneseq
    %v5251 = vshrl.u32 %v5250, 7
    %v5252 = vsub.s32 %v288, %v5251
    %v5253 = vrot.slane %v5204, %v5252
    %v5254 = vlaneseq
    %v5255 = vshrl.u32 %v5254, 7
    %v5256 = vsub.s32 %v293, %v5255
    %v5257 = vrot.slane %v5207, %v5256
    %v5258 = vsel %vm298, %v5257, %v5253
    %v5259 = vlaneseq
    %v5260 = vshrl.u32 %v5259, 7
    %v5261 = vsub.s32 %v288, %v5260
    %v5262 = vrot.slane %v5210, %v5261
    %v5263 = vlaneseq
    %v5264 = vshrl.u32 %v5263, 7
    %v5265 = vsub.s32 %v293, %v5264
    %v5266 = vrot.slane %v5213, %v5265
    %v5267 = vsel %vm298, %v5266, %v5262
    %v5268 = vlaneseq
    %v5269 = vshrl.u32 %v5268, 7
    %v5270 = vsub.s32 %v288, %v5269
    %v5271 = vrot.slane %v5216, %v5270
    %v5272 = vlaneseq
    %v5273 = vshrl.u32 %v5272, 7
    %v5274 = vsub.s32 %v293, %v5273
    %v5275 = vrot.slane %v5219, %v5274
    %v5276 = vsel %vm298, %v5275, %v5271
    %v5277 = vlaneseq
    %v5278 = vshrl.u32 %v5277, 7
    %v5279 = vsub.s32 %v288, %v5278
    %v5280 = vrot.slane %v5222, %v5279
    %v5281 = vlaneseq
    %v5282 = vshrl.u32 %v5281, 7
    %v5283 = vsub.s32 %v293, %v5282
    %v5284 = vrot.slane %v5225, %v5283
    %v5285 = vsel %vm298, %v5284, %v5280
    %v5286 = vlaneseq
    %v5287 = vshrl.u32 %v5286, 7
    %v5288 = vsub.s32 %v288, %v5287
    %v5289 = vrot.slane %v5228, %v5288
    %v5290 = vlaneseq
    %v5291 = vshrl.u32 %v5290, 7
    %v5292 = vsub.s32 %v293, %v5291
    %v5293 = vrot.slane %v5231, %v5292
    %v5294 = vsel %vm298, %v5293, %v5289
    %v5295 = vlaneseq
    %v5296 = vshrl.u32 %v5295, 7
    %v5297 = vsub.s32 %v288, %v5296
    %v5298 = vrot.slane %v5234, %v5297
    %v5299 = vlaneseq
    %v5300 = vshrl.u32 %v5299, 7
    %v5301 = vsub.s32 %v293, %v5300
    %v5302 = vrot.slane %v5237, %v5301
    %v5303 = vsel %vm298, %v5302, %v5298
    %v5304 = vlaneseq
    %v5305 = vshrl.u32 %v5304, 7
    %v5306 = vsub.s32 %v288, %v5305
    %v5307 = vrot.slane %v5240, %v5306
    %v5308 = vlaneseq
    %v5309 = vshrl.u32 %v5308, 7
    %v5310 = vsub.s32 %v293, %v5309
    %v5311 = vrot.slane %v5243, %v5310
    %v5312 = vsel %vm298, %v5311, %v5307
    %v5313 = vlaneseq
    %v5314 = vshrl.u32 %v5313, 7
    %v5315 = vsub.s32 %v288, %v5314
    %v5316 = vrot.slane %v5246, %v5315
    %v5317 = vlaneseq
    %v5318 = vshrl.u32 %v5317, 7
    %v5319 = vsub.s32 %v293, %v5318
    %v5320 = vrot.slane %v5249, %v5319
    %v5321 = vsel %vm298, %v5320, %v5316
    %v5322 = vsel %vm363, %v5267, %v5258
    %v5323 = vsel %vm365, %v5276, %v5322
    %v5324 = vsel %vm367, %v5285, %v5323
    %v5325 = vsel %vm369, %v5294, %v5324
    %v5326 = vsel %vm371, %v5303, %v5325
    %v5327 = vsel %vm373, %v5312, %v5326
    %v5328 = vsel %vm375, %v5321, %v5327
    %v5330 = vsel %vm378, %v5328, 0.0
    %5331 = vadd.xlane.f32.xlu0 %v5330
    %v5332 = vpop.xlane.xlu0 %5331
    %v5333 = vrcp.pop %v5332
    %v5335 = vlaneseq
    %v5336 = vshrl.u32 %v5335, 7
    %v5337 = vsub.s32 0, %v5336
    %v5338 = vrot.slane %v5333, %v5337
    %v5339 = vlaneseq
    %v5340 = vshrl.u32 %v5339, 7
    %v5341 = vsub.s32 1, %v5340
    %v5342 = vrot.slane %v5333, %v5341
    %v5343 = vlaneseq
    %v5344 = vshrl.u32 %v5343, 7
    %v5345 = vsub.s32 2, %v5344
    %v5346 = vrot.slane %v5333, %v5345
    %v5347 = vlaneseq
    %v5348 = vshrl.u32 %v5347, 7
    %v5349 = vsub.s32 3, %v5348
    %v5350 = vrot.slane %v5333, %v5349
    %v5351 = vlaneseq
    %v5352 = vshrl.u32 %v5351, 7
    %v5353 = vsub.s32 4, %v5352
    %v5354 = vrot.slane %v5333, %v5353
    %v5355 = vlaneseq
    %v5356 = vshrl.u32 %v5355, 7
    %v5357 = vsub.s32 5, %v5356
    %v5358 = vrot.slane %v5333, %v5357
    %v5359 = vlaneseq
    %v5360 = vshrl.u32 %v5359, 7
    %v5361 = vsub.s32 6, %v5360
    %v5362 = vrot.slane %v5333, %v5361
    %v5363 = vlaneseq
    %v5364 = vshrl.u32 %v5363, 7
    %v5365 = vsub.s32 7, %v5364
    %v5366 = vrot.slane %v5333, %v5365
    %v5375 = vmul.f32 %v5155, %v5338
    %v5376 = vmul.f32 %v5157, %v5338
    %v5377 = vmul.f32 %v5159, %v5342
    %v5378 = vmul.f32 %v5161, %v5342
    %v5379 = vmul.f32 %v5163, %v5346
    %v5380 = vmul.f32 %v5165, %v5346
    %v5381 = vmul.f32 %v5167, %v5350
    %v5382 = vmul.f32 %v5169, %v5350
    %v5383 = vmul.f32 %v5171, %v5354
    %v5384 = vmul.f32 %v5173, %v5354
    %v5385 = vmul.f32 %v5175, %v5358
    %v5386 = vmul.f32 %v5177, %v5358
    %v5387 = vmul.f32 %v5179, %v5362
    %v5388 = vmul.f32 %v5181, %v5362
    %v5389 = vmul.f32 %v5183, %v5366
    %v5390 = vmul.f32 %v5185, %v5366
    %5392 = vset.pattern.permute.xlu0 0
    %5393 = vperm.xlu0 %5392, %v5375
    %v5394 = vpop.permute.xlu0 %5393
    %5397 = vset.pattern.permute.xlu0 0
    %5398 = vperm.xlu0 %5397, %v5376
    %v5399 = vpop.permute.xlu0 %5398
    %5402 = vset.pattern.permute.xlu0 0
    %5403 = vperm.xlu0 %5402, %v5377
    %v5404 = vpop.permute.xlu0 %5403
    %5407 = vset.pattern.permute.xlu0 0
    %5408 = vperm.xlu0 %5407, %v5378
    %v5409 = vpop.permute.xlu0 %5408
    %5412 = vset.pattern.permute.xlu0 0
    %5413 = vperm.xlu0 %5412, %v5379
    %v5414 = vpop.permute.xlu0 %5413
    %5417 = vset.pattern.permute.xlu0 0
    %5418 = vperm.xlu0 %5417, %v5380
    %v5419 = vpop.permute.xlu0 %5418
    %5422 = vset.pattern.permute.xlu0 0
    %5423 = vperm.xlu0 %5422, %v5381
    %v5424 = vpop.permute.xlu0 %5423
    %5427 = vset.pattern.permute.xlu0 0
    %5428 = vperm.xlu0 %5427, %v5382
    %v5429 = vpop.permute.xlu0 %5428
    %5432 = vset.pattern.permute.xlu0 0
    %5433 = vperm.xlu0 %5432, %v5383
    %v5434 = vpop.permute.xlu0 %5433
    %5437 = vset.pattern.permute.xlu0 0
    %5438 = vperm.xlu0 %5437, %v5384
    %v5439 = vpop.permute.xlu0 %5438
    %5442 = vset.pattern.permute.xlu0 0
    %5443 = vperm.xlu0 %5442, %v5385
    %v5444 = vpop.permute.xlu0 %5443
    %5447 = vset.pattern.permute.xlu0 0
    %5448 = vperm.xlu0 %5447, %v5386
    %v5449 = vpop.permute.xlu0 %5448
    %5452 = vset.pattern.permute.xlu0 0
    %5453 = vperm.xlu0 %5452, %v5387
    %v5454 = vpop.permute.xlu0 %5453
    %5457 = vset.pattern.permute.xlu0 0
    %5458 = vperm.xlu0 %5457, %v5388
    %v5459 = vpop.permute.xlu0 %5458
    %5462 = vset.pattern.permute.xlu0 0
    %5463 = vperm.xlu0 %5462, %v5389
    %v5464 = vpop.permute.xlu0 %5463
    %5467 = vset.pattern.permute.xlu0 0
    %5468 = vperm.xlu0 %5467, %v5390
    %v5469 = vpop.permute.xlu0 %5468
    %v5471 = vmul.f32 %v5394, %v89
    %v5472 = vmul.f32 %v5399, %v90
    %v5473 = vmul.f32 %v5404, %v91
    %v5474 = vmul.f32 %v5409, %v92
    %v5475 = vmul.f32 %v5414, %v93
    %v5476 = vmul.f32 %v5419, %v94
    %v5477 = vmul.f32 %v5424, %v95
    %v5478 = vmul.f32 %v5429, %v96
    %v5479 = vmul.f32 %v5434, %v97
    %v5480 = vmul.f32 %v5439, %v98
    %v5481 = vmul.f32 %v5444, %v99
    %v5482 = vmul.f32 %v5449, %v100
    %v5483 = vmul.f32 %v5454, %v101
    %v5484 = vmul.f32 %v5459, %v102
    %v5485 = vmul.f32 %v5464, %v103
    %v5486 = vmul.f32 %v5469, %v104
    %v5487 = vadd.f32 %v5471, %v5472
    %v5488 = vrot.slane %v5487, 4
    %v5489 = vadd.f32 %v5487, %v5488
    %v5490 = vrot.slane %v5489, 2
    %v5491 = vadd.f32 %v5489, %v5490
    %v5492 = vrot.slane %v5491, 1
    %v5493 = vadd.f32 %v5491, %v5492
    %v5494 = vadd.f32 %v5473, %v5474
    %v5495 = vrot.slane %v5494, 4
    %v5496 = vadd.f32 %v5494, %v5495
    %v5497 = vrot.slane %v5496, 2
    %v5498 = vadd.f32 %v5496, %v5497
    %v5499 = vrot.slane %v5498, 1
    %v5500 = vadd.f32 %v5498, %v5499
    %v5501 = vadd.f32 %v5475, %v5476
    %v5502 = vrot.slane %v5501, 4
    %v5503 = vadd.f32 %v5501, %v5502
    %v5504 = vrot.slane %v5503, 2
    %v5505 = vadd.f32 %v5503, %v5504
    %v5506 = vrot.slane %v5505, 1
    %v5507 = vadd.f32 %v5505, %v5506
    %v5508 = vadd.f32 %v5477, %v5478
    %v5509 = vrot.slane %v5508, 4
    %v5510 = vadd.f32 %v5508, %v5509
    %v5511 = vrot.slane %v5510, 2
    %v5512 = vadd.f32 %v5510, %v5511
    %v5513 = vrot.slane %v5512, 1
    %v5514 = vadd.f32 %v5512, %v5513
    %v5515 = vadd.f32 %v5479, %v5480
    %v5516 = vrot.slane %v5515, 4
    %v5517 = vadd.f32 %v5515, %v5516
    %v5518 = vrot.slane %v5517, 2
    %v5519 = vadd.f32 %v5517, %v5518
    %v5520 = vrot.slane %v5519, 1
    %v5521 = vadd.f32 %v5519, %v5520
    %v5522 = vadd.f32 %v5481, %v5482
    %v5523 = vrot.slane %v5522, 4
    %v5524 = vadd.f32 %v5522, %v5523
    %v5525 = vrot.slane %v5524, 2
    %v5526 = vadd.f32 %v5524, %v5525
    %v5527 = vrot.slane %v5526, 1
    %v5528 = vadd.f32 %v5526, %v5527
    %v5529 = vadd.f32 %v5483, %v5484
    %v5530 = vrot.slane %v5529, 4
    %v5531 = vadd.f32 %v5529, %v5530
    %v5532 = vrot.slane %v5531, 2
    %v5533 = vadd.f32 %v5531, %v5532
    %v5534 = vrot.slane %v5533, 1
    %v5535 = vadd.f32 %v5533, %v5534
    %v5536 = vadd.f32 %v5485, %v5486
    %v5537 = vrot.slane %v5536, 4
    %v5538 = vadd.f32 %v5536, %v5537
    %v5539 = vrot.slane %v5538, 2
    %v5540 = vadd.f32 %v5538, %v5539
    %v5541 = vrot.slane %v5540, 1
    %v5542 = vadd.f32 %v5540, %v5541
    %s5543 = scalar_lea.vmem [#allocation2], 40
    %v5544 = vld [vmem:[%s5543] sm:$0xff]
    %5545 = vrot.lane.b32.xlu0 %v4731, 64
    %v5546 = vpop.permute.xlu0 %5545
    %v5547 = vsel %vm109, %v5546, 0
    %5549 = vmatprep.subr.mxu0 0.0
    %5550 = vmatpush1.msra.mxu0 %v105
    %5551 = vmatprep.subr.mxu0 0.0
    %5552 = vmatpush1.msra.mxu0 %v106
    %5553 = vmatprep.subr.mxu0 0.0
    %5554 = vmatpush1.msra.mxu0 %v107
    %5555 = vmatprep.subr.mxu0 0.0
    %5556 = vmatpush1.msra.mxu0 %v108
    %5557 = vmatprep.subr.mxu0 0.0
    %5558 = vmatpush1.msra.mxu0 0.0
    %5559 = vmatprep.subr.mxu0 0.0
    %5560 = vmatpush1.msra.mxu0 0.0
    %5561 = vmatprep.subr.mxu0 0.0
    %5562 = vmatpush1.msra.mxu0 0.0
    %5563 = vmatprep.subr.mxu0 0.0
    %5564 = vmatpush1.msra.mxu0 0.0
    %5565 = vmatprep.subr.mxu0 0.0
    %5566 = vmatpush1.msra.mxu0 0.0
    %5567 = vmatprep.subr.mxu0 0.0
    %5568 = vmatpush1.msra.mxu0 0.0
    %5569 = vmatprep.subr.mxu0 0.0
    %5570 = vmatpush1.msra.mxu0 0.0
    %5571 = vmatprep.subr.mxu0 0.0
    %5572 = vmatpush1.msra.mxu0 0.0
    %5573 = vmatprep.subr.mxu0 0.0
    %5574 = vmatpush1.msra.mxu0 0.0
    %5575 = vmatprep.subr.mxu0 0.0
    %5576 = vmatpush1.msra.mxu0 0.0
    %5577 = vmatprep.subr.mxu0 0.0
    %5578 = vmatpush1.msra.mxu0 0.0
    %5579 = vmatprep.subr.mxu0 0.0
    %5580 = vmatpush1.msra.mxu0 0.0
    %5581 = vmatprep.subr.mxu0 0.0
    %5582 = vmatpush1.msra.mxu0 0.0
    %5583 = vmatprep.subr.mxu0 0.0
    %5584 = vmatpush1.msra.mxu0 0.0
    %5585 = vmatprep.subr.mxu0 0.0
    %5586 = vmatpush1.msra.mxu0 0.0
    %5587 = vmatprep.subr.mxu0 0.0
    %5588 = vmatpush1.msra.mxu0 0.0
    %5589 = vmatprep.subr.mxu0 0.0
    %5590 = vmatpush1.msra.mxu0 0.0
    %5591 = vmatprep.subr.mxu0 0.0
    %5592 = vmatpush1.msra.mxu0 0.0
    %5593 = vmatprep.subr.mxu0 0.0
    %5594 = vmatpush1.msra.mxu0 0.0
    %5595 = vmatprep.subr.mxu0 0.0
    %5596 = vmatpush1.msra.mxu0 0.0
    %5597 = vmatprep.subr.mxu0 0.0
    %5598 = vmatpush1.msra.mxu0 0.0
    %5599 = vmatprep.subr.mxu0 0.0
    %5600 = vmatpush1.msra.mxu0 0.0
    %5601 = vmatprep.subr.mxu0 0.0
    %5602 = vmatpush1.msra.mxu0 0.0
    %5603 = vmatprep.subr.mxu0 0.0
    %5604 = vmatpush1.msra.mxu0 0.0
    %5605 = vmatprep.subr.mxu0 0.0
    %5606 = vmatpush1.msra.mxu0 0.0
    %5607 = vmatprep.subr.mxu0 0.0
    %5608 = vmatpush1.msra.mxu0 0.0
    %5609 = vmatprep.subr.mxu0 0.0
    %5610 = vmatpush1.msra.mxu0 0.0
    %5611 = vmatprep.subr.mxu0 0.0
    %5612 = vmatpush1.msra.mxu0 0.0
    %5613 = vmatprep.mubr.f32.mxu0 0.0
    %5614 = vmatmul.mubr.f32.gmra.mrb[0].mxu0 %v5547
    %v5615 = vpop.f32.mrb[0].mxu0
    %v5616 = vadd.f32 0.0, %v5615
    %v5617 = vpop.f32.mrb[0].mxu0
    %5618 = vdwg.mxu0
    %v5619 = vadd.f32 %v5544, %v5616
    %v5628 = vsel %vm363, %v5500, %v5493
    %v5629 = vsel %vm365, %v5507, %v5628
    %v5630 = vsel %vm367, %v5514, %v5629
    %v5631 = vsel %vm369, %v5521, %v5630
    %v5632 = vsel %vm371, %v5528, %v5631
    %v5633 = vsel %vm373, %v5535, %v5632
    %v5634 = vsel %vm375, %v5542, %v5633
    %v5636 = vadd.f32 %v5619, %v5634
    %v5637 = vmul.f32 %v5636, 0.5
    %v5638 = vtanh.pop %v5637
    %v5639 = vmul.f32 %v5638, 0.5
    %v5640 = vadd.f32 %v5639, 0.5
    %v5641 = vtanh.pop %v5636
    %v5642 = vmul.f32 %v5640, %v4725
    %5644 = vrot.lane.b32.xlu0 %v5641, 32
    %v5645 = vpop.permute.xlu0 %5644
    %v5647 = vmul.f32 %v5640, %v5645
    %5649 = vrot.lane.b32.xlu0 %v5647, 32
    %v5650 = vpop.permute.xlu0 %5649
    %v5652 = vadd.f32 %v5642, %v5650
    %v5653 = vtanh.pop %v5652
    %5655 = vrot.lane.b32.xlu0 %v5653, 32
    %v5656 = vpop.permute.xlu0 %5655
    %v5658 = vmul.f32 %v5640, %v5656
    %v5660 = vcombine.high %v5658, %v5658
    %v5662 = vunpack.c.l.s4 1966171168
    %v5663 = vunpack.c.0.s8 %v5662
    %v5664 = vlaneseq
    %v5665 = vshrl.u32 %v5664, 7
    %v5666 = vsub.s32 %v5663, %v5665
    %v5667 = vrot.slane %v5658, %v5666
    %v5669 = vunpack.c.l.s4 1966171168
    %v5670 = vunpack.c.0.s8 %v5669
    %v5671 = vlaneseq
    %v5672 = vshrl.u32 %v5671, 7
    %v5673 = vsub.s32 %v5670, %v5672
    %v5674 = vrot.slane %v5660, %v5673
    %v5675 = vcombine.high %v5667, %v5667
    %v5676 = vcombine.high %v5674, %v5674
    %v5678 = vunpack.c.l.s4 1966171168
    %v5679 = vunpack.c.0.s8 %v5678
    %v5680 = vlaneseq
    %v5681 = vshrl.u32 %v5680, 7
    %v5682 = vsub.s32 %v5679, %v5681
    %v5683 = vrot.slane %v5667, %v5682
    %v5685 = vunpack.c.l.s4 1966171168
    %v5686 = vunpack.c.0.s8 %v5685
    %v5687 = vlaneseq
    %v5688 = vshrl.u32 %v5687, 7
    %v5689 = vsub.s32 %v5686, %v5688
    %v5690 = vrot.slane %v5674, %v5689
    %v5692 = vunpack.c.l.s4 1966171168
    %v5693 = vunpack.c.0.s8 %v5692
    %v5694 = vlaneseq
    %v5695 = vshrl.u32 %v5694, 7
    %v5696 = vsub.s32 %v5693, %v5695
    %v5697 = vrot.slane %v5675, %v5696
    %v5699 = vunpack.c.l.s4 1966171168
    %v5700 = vunpack.c.0.s8 %v5699
    %v5701 = vlaneseq
    %v5702 = vshrl.u32 %v5701, 7
    %v5703 = vsub.s32 %v5700, %v5702
    %v5704 = vrot.slane %v5676, %v5703
    %v5705 = vcombine.high %v5683, %v5683
    %v5706 = vcombine.high %v5690, %v5690
    %v5707 = vcombine.high %v5697, %v5697
    %v5708 = vcombine.high %v5704, %v5704
    %v5709 = vlaneseq
    %v5710 = vshrl.u32 %v5709, 7
    %v5711 = vsub.s32 0, %v5710
    %v5712 = vrot.slane %v5683, %v5711
    %v5713 = vlaneseq
    %v5714 = vshrl.u32 %v5713, 7
    %v5715 = vsub.s32 0, %v5714
    %v5716 = vrot.slane %v5697, %v5715
    %v5717 = vlaneseq
    %v5718 = vshrl.u32 %v5717, 7
    %v5719 = vsub.s32 0, %v5718
    %v5720 = vrot.slane %v5705, %v5719
    %v5721 = vlaneseq
    %v5722 = vshrl.u32 %v5721, 7
    %v5723 = vsub.s32 0, %v5722
    %v5724 = vrot.slane %v5707, %v5723
    %v5725 = vlaneseq
    %v5726 = vshrl.u32 %v5725, 7
    %v5727 = vsub.s32 0, %v5726
    %v5728 = vrot.slane %v5690, %v5727
    %v5729 = vlaneseq
    %v5730 = vshrl.u32 %v5729, 7
    %v5731 = vsub.s32 0, %v5730
    %v5732 = vrot.slane %v5704, %v5731
    %v5733 = vlaneseq
    %v5734 = vshrl.u32 %v5733, 7
    %v5735 = vsub.s32 0, %v5734
    %v5736 = vrot.slane %v5706, %v5735
    %v5737 = vlaneseq
    %v5738 = vshrl.u32 %v5737, 7
    %v5739 = vsub.s32 0, %v5738
    %v5740 = vrot.slane %v5708, %v5739
    %5741 = vrot.lane.b32.xlu0 %v5712, 64
    %v5742 = vpop.permute.xlu0 %5741
    %5743 = vrot.lane.b32.xlu0 %v5716, 64
    %v5744 = vpop.permute.xlu0 %5743
    %5745 = vrot.lane.b32.xlu0 %v5720, 64
    %v5746 = vpop.permute.xlu0 %5745
    %5747 = vrot.lane.b32.xlu0 %v5724, 64
    %v5748 = vpop.permute.xlu0 %5747
    %5749 = vrot.lane.b32.xlu0 %v5728, 64
    %v5750 = vpop.permute.xlu0 %5749
    %5751 = vrot.lane.b32.xlu0 %v5732, 64
    %v5752 = vpop.permute.xlu0 %5751
    %5753 = vrot.lane.b32.xlu0 %v5736, 64
    %v5754 = vpop.permute.xlu0 %5753
    %5755 = vrot.lane.b32.xlu0 %v5740, 64
    %v5756 = vpop.permute.xlu0 %5755
    %5765 = vst.msk [vmem:[#allocation10 + $0x5] sm:$0x1] %vm1065, %v5742
    %5766 = vst.msk [vmem:[#allocation10 + $0xd] sm:$0x1] %vm1065, %v5744
    %5767 = vst.msk [vmem:[#allocation10 + $0x15] sm:$0x1] %vm1065, %v5746
    %5768 = vst.msk [vmem:[#allocation10 + $0x1d] sm:$0x1] %vm1065, %v5748
    %5769 = vst.msk [vmem:[#allocation10 + $0x25] sm:$0x1] %vm1065, %v5750
    %5770 = vst.msk [vmem:[#allocation10 + $0x2d] sm:$0x1] %vm1065, %v5752
    %5771 = vst.msk [vmem:[#allocation10 + $0x35] sm:$0x1] %vm1065, %v5754
    %5772 = vst.msk [vmem:[#allocation10 + $0x3d] sm:$0x1] %vm1065, %v5756
    %v5781 = vmul.f32 %v5712, %v1099
    %v5782 = vmul.f32 %v5712, %v1101
    %v5783 = vmul.f32 %v5716, %v1103
    %v5784 = vmul.f32 %v5716, %v1105
    %v5785 = vmul.f32 %v5720, %v1107
    %v5786 = vmul.f32 %v5720, %v1109
    %v5787 = vmul.f32 %v5724, %v1111
    %v5788 = vmul.f32 %v5724, %v1113
    %v5789 = vmul.f32 %v5728, %v1115
    %v5790 = vmul.f32 %v5728, %v1117
    %v5791 = vmul.f32 %v5732, %v1119
    %v5792 = vmul.f32 %v5732, %v1121
    %v5793 = vmul.f32 %v5736, %v1123
    %v5794 = vmul.f32 %v5736, %v1125
    %v5795 = vmul.f32 %v5740, %v1127
    %v5796 = vmul.f32 %v5740, %v1129
    %5813 = vrot.lane.b32.xlu0 %v5781, 64
    %v5814 = vpop.permute.xlu0 %5813
    %5815 = vrot.lane.b32.xlu0 %v5782, 64
    %v5816 = vpop.permute.xlu0 %5815
    %5817 = vrot.lane.b32.xlu0 %v5783, 64
    %v5818 = vpop.permute.xlu0 %5817
    %5819 = vrot.lane.b32.xlu0 %v5784, 64
    %v5820 = vpop.permute.xlu0 %5819
    %5821 = vrot.lane.b32.xlu0 %v5785, 64
    %v5822 = vpop.permute.xlu0 %5821
    %5823 = vrot.lane.b32.xlu0 %v5786, 64
    %v5824 = vpop.permute.xlu0 %5823
    %5825 = vrot.lane.b32.xlu0 %v5787, 64
    %v5826 = vpop.permute.xlu0 %5825
    %5827 = vrot.lane.b32.xlu0 %v5788, 64
    %v5828 = vpop.permute.xlu0 %5827
    %5829 = vrot.lane.b32.xlu0 %v5789, 64
    %v5830 = vpop.permute.xlu0 %5829
    %5831 = vrot.lane.b32.xlu0 %v5790, 64
    %v5832 = vpop.permute.xlu0 %5831
    %5833 = vrot.lane.b32.xlu0 %v5791, 64
    %v5834 = vpop.permute.xlu0 %5833
    %5835 = vrot.lane.b32.xlu0 %v5792, 64
    %v5836 = vpop.permute.xlu0 %5835
    %5837 = vrot.lane.b32.xlu0 %v5793, 64
    %v5838 = vpop.permute.xlu0 %5837
    %5839 = vrot.lane.b32.xlu0 %v5794, 64
    %v5840 = vpop.permute.xlu0 %5839
    %5841 = vrot.lane.b32.xlu0 %v5795, 64
    %v5842 = vpop.permute.xlu0 %5841
    %5843 = vrot.lane.b32.xlu0 %v5796, 64
    %v5844 = vpop.permute.xlu0 %5843
    %v5861 = vsel %vm109, %v5814, 0.0
    %5862 = vadd.xlane.f32.xlu0 %v5861
    %v5863 = vpop.xlane.xlu0 %5862
    %v5864 = vsel %vm109, %v5816, 0.0
    %5865 = vadd.xlane.f32.xlu0 %v5864
    %v5866 = vpop.xlane.xlu0 %5865
    %v5867 = vsel %vm109, %v5818, 0.0
    %5868 = vadd.xlane.f32.xlu0 %v5867
    %v5869 = vpop.xlane.xlu0 %5868
    %v5870 = vsel %vm109, %v5820, 0.0
    %5871 = vadd.xlane.f32.xlu0 %v5870
    %v5872 = vpop.xlane.xlu0 %5871
    %v5873 = vsel %vm109, %v5822, 0.0
    %5874 = vadd.xlane.f32.xlu0 %v5873
    %v5875 = vpop.xlane.xlu0 %5874
    %v5876 = vsel %vm109, %v5824, 0.0
    %5877 = vadd.xlane.f32.xlu0 %v5876
    %v5878 = vpop.xlane.xlu0 %5877
    %v5879 = vsel %vm109, %v5826, 0.0
    %5880 = vadd.xlane.f32.xlu0 %v5879
    %v5881 = vpop.xlane.xlu0 %5880
    %v5882 = vsel %vm109, %v5828, 0.0
    %5883 = vadd.xlane.f32.xlu0 %v5882
    %v5884 = vpop.xlane.xlu0 %5883
    %v5885 = vsel %vm109, %v5830, 0.0
    %5886 = vadd.xlane.f32.xlu0 %v5885
    %v5887 = vpop.xlane.xlu0 %5886
    %v5888 = vsel %vm109, %v5832, 0.0
    %5889 = vadd.xlane.f32.xlu0 %v5888
    %v5890 = vpop.xlane.xlu0 %5889
    %v5891 = vsel %vm109, %v5834, 0.0
    %5892 = vadd.xlane.f32.xlu0 %v5891
    %v5893 = vpop.xlane.xlu0 %5892
    %v5894 = vsel %vm109, %v5836, 0.0
    %5895 = vadd.xlane.f32.xlu0 %v5894
    %v5896 = vpop.xlane.xlu0 %5895
    %v5897 = vsel %vm109, %v5838, 0.0
    %5898 = vadd.xlane.f32.xlu0 %v5897
    %v5899 = vpop.xlane.xlu0 %5898
    %v5900 = vsel %vm109, %v5840, 0.0
    %5901 = vadd.xlane.f32.xlu0 %v5900
    %v5902 = vpop.xlane.xlu0 %5901
    %v5903 = vsel %vm109, %v5842, 0.0
    %5904 = vadd.xlane.f32.xlu0 %v5903
    %v5905 = vpop.xlane.xlu0 %5904
    %v5906 = vsel %vm109, %v5844, 0.0
    %5907 = vadd.xlane.f32.xlu0 %v5906
    %v5908 = vpop.xlane.xlu0 %5907
    %v5909 = vmul.f32 %v5863, 0.17677669
    %v5910 = vmul.f32 %v5866, 0.17677669
    %v5911 = vmul.f32 %v5869, 0.17677669
    %v5912 = vmul.f32 %v5872, 0.17677669
    %v5913 = vmul.f32 %v5875, 0.17677669
    %v5914 = vmul.f32 %v5878, 0.17677669
    %v5915 = vmul.f32 %v5881, 0.17677669
    %v5916 = vmul.f32 %v5884, 0.17677669
    %v5917 = vmul.f32 %v5887, 0.17677669
    %v5918 = vmul.f32 %v5890, 0.17677669
    %v5919 = vmul.f32 %v5893, 0.17677669
    %v5920 = vmul.f32 %v5896, 0.17677669
    %v5921 = vmul.f32 %v5899, 0.17677669
    %v5922 = vmul.f32 %v5902, 0.17677669
    %v5923 = vmul.f32 %v5905, 0.17677669
    %v5924 = vmul.f32 %v5908, 0.17677669
    %v5941 = vlaneseq
    %v5942 = vshrl.u32 %v5941, 7
    %v5943 = vsub.s32 %v288, %v5942
    %v5944 = vrot.slane %v5909, %v5943
    %v5945 = vlaneseq
    %v5946 = vshrl.u32 %v5945, 7
    %v5947 = vsub.s32 %v293, %v5946
    %v5948 = vrot.slane %v5910, %v5947
    %v5949 = vsel %vm298, %v5948, %v5944
    %v5950 = vlaneseq
    %v5951 = vshrl.u32 %v5950, 7
    %v5952 = vsub.s32 %v288, %v5951
    %v5953 = vrot.slane %v5911, %v5952
    %v5954 = vlaneseq
    %v5955 = vshrl.u32 %v5954, 7
    %v5956 = vsub.s32 %v293, %v5955
    %v5957 = vrot.slane %v5912, %v5956
    %v5958 = vsel %vm298, %v5957, %v5953
    %v5959 = vlaneseq
    %v5960 = vshrl.u32 %v5959, 7
    %v5961 = vsub.s32 %v288, %v5960
    %v5962 = vrot.slane %v5913, %v5961
    %v5963 = vlaneseq
    %v5964 = vshrl.u32 %v5963, 7
    %v5965 = vsub.s32 %v293, %v5964
    %v5966 = vrot.slane %v5914, %v5965
    %v5967 = vsel %vm298, %v5966, %v5962
    %v5968 = vlaneseq
    %v5969 = vshrl.u32 %v5968, 7
    %v5970 = vsub.s32 %v288, %v5969
    %v5971 = vrot.slane %v5915, %v5970
    %v5972 = vlaneseq
    %v5973 = vshrl.u32 %v5972, 7
    %v5974 = vsub.s32 %v293, %v5973
    %v5975 = vrot.slane %v5916, %v5974
    %v5976 = vsel %vm298, %v5975, %v5971
    %v5977 = vlaneseq
    %v5978 = vshrl.u32 %v5977, 7
    %v5979 = vsub.s32 %v288, %v5978
    %v5980 = vrot.slane %v5917, %v5979
    %v5981 = vlaneseq
    %v5982 = vshrl.u32 %v5981, 7
    %v5983 = vsub.s32 %v293, %v5982
    %v5984 = vrot.slane %v5918, %v5983
    %v5985 = vsel %vm298, %v5984, %v5980
    %v5986 = vlaneseq
    %v5987 = vshrl.u32 %v5986, 7
    %v5988 = vsub.s32 %v288, %v5987
    %v5989 = vrot.slane %v5919, %v5988
    %v5990 = vlaneseq
    %v5991 = vshrl.u32 %v5990, 7
    %v5992 = vsub.s32 %v293, %v5991
    %v5993 = vrot.slane %v5920, %v5992
    %v5994 = vsel %vm298, %v5993, %v5989
    %v5995 = vlaneseq
    %v5996 = vshrl.u32 %v5995, 7
    %v5997 = vsub.s32 %v288, %v5996
    %v5998 = vrot.slane %v5921, %v5997
    %v5999 = vlaneseq
    %v6000 = vshrl.u32 %v5999, 7
    %v6001 = vsub.s32 %v293, %v6000
    %v6002 = vrot.slane %v5922, %v6001
    %v6003 = vsel %vm298, %v6002, %v5998
    %v6004 = vlaneseq
    %v6005 = vshrl.u32 %v6004, 7
    %v6006 = vsub.s32 %v288, %v6005
    %v6007 = vrot.slane %v5923, %v6006
    %v6008 = vlaneseq
    %v6009 = vshrl.u32 %v6008, 7
    %v6010 = vsub.s32 %v293, %v6009
    %v6011 = vrot.slane %v5924, %v6010
    %v6012 = vsel %vm298, %v6011, %v6007
    %v6013 = vsel %vm363, %v5958, %v5949
    %v6014 = vsel %vm365, %v5967, %v6013
    %v6015 = vsel %vm367, %v5976, %v6014
    %v6016 = vsel %vm369, %v5985, %v6015
    %v6017 = vsel %vm371, %v5994, %v6016
    %v6018 = vsel %vm373, %v6003, %v6017
    %v6019 = vsel %vm375, %v6012, %v6018
    %v6021 = vsel %vm378, %v6019, -inf
    %6022 = vmax.xlane.f32.xlu0 %v6021
    %v6023 = vpop.xlane.xlu0 %6022
    %v6025 = vlaneseq
    %v6026 = vshrl.u32 %v6025, 7
    %v6027 = vsub.s32 0, %v6026
    %v6028 = vrot.slane %v6023, %v6027
    %v6029 = vlaneseq
    %v6030 = vshrl.u32 %v6029, 7
    %v6031 = vsub.s32 1, %v6030
    %v6032 = vrot.slane %v6023, %v6031
    %v6033 = vlaneseq
    %v6034 = vshrl.u32 %v6033, 7
    %v6035 = vsub.s32 2, %v6034
    %v6036 = vrot.slane %v6023, %v6035
    %v6037 = vlaneseq
    %v6038 = vshrl.u32 %v6037, 7
    %v6039 = vsub.s32 3, %v6038
    %v6040 = vrot.slane %v6023, %v6039
    %v6041 = vlaneseq
    %v6042 = vshrl.u32 %v6041, 7
    %v6043 = vsub.s32 4, %v6042
    %v6044 = vrot.slane %v6023, %v6043
    %v6045 = vlaneseq
    %v6046 = vshrl.u32 %v6045, 7
    %v6047 = vsub.s32 5, %v6046
    %v6048 = vrot.slane %v6023, %v6047
    %v6049 = vlaneseq
    %v6050 = vshrl.u32 %v6049, 7
    %v6051 = vsub.s32 6, %v6050
    %v6052 = vrot.slane %v6023, %v6051
    %v6053 = vlaneseq
    %v6054 = vshrl.u32 %v6053, 7
    %v6055 = vsub.s32 7, %v6054
    %v6056 = vrot.slane %v6023, %v6055
    %v6065 = vsub.f32 %v5909, %v6028
    %v6066 = vsub.f32 %v5910, %v6028
    %v6067 = vsub.f32 %v5911, %v6032
    %v6068 = vsub.f32 %v5912, %v6032
    %v6069 = vsub.f32 %v5913, %v6036
    %v6070 = vsub.f32 %v5914, %v6036
    %v6071 = vsub.f32 %v5915, %v6040
    %v6072 = vsub.f32 %v5916, %v6040
    %v6073 = vsub.f32 %v5917, %v6044
    %v6074 = vsub.f32 %v5918, %v6044
    %v6075 = vsub.f32 %v5919, %v6048
    %v6076 = vsub.f32 %v5920, %v6048
    %v6077 = vsub.f32 %v5921, %v6052
    %v6078 = vsub.f32 %v5922, %v6052
    %v6079 = vsub.f32 %v5923, %v6056
    %v6080 = vsub.f32 %v5924, %v6056
    %v6081 = vmul.f32 %v6065, 1.442695
    %v6082 = vpow.pop %v6081
    %v6083 = vmul.f32 %v6066, 1.442695
    %v6084 = vpow.pop %v6083
    %v6085 = vmul.f32 %v6067, 1.442695
    %v6086 = vpow.pop %v6085
    %v6087 = vmul.f32 %v6068, 1.442695
    %v6088 = vpow.pop %v6087
    %v6089 = vmul.f32 %v6069, 1.442695
    %v6090 = vpow.pop %v6089
    %v6091 = vmul.f32 %v6070, 1.442695
    %v6092 = vpow.pop %v6091
    %v6093 = vmul.f32 %v6071, 1.442695
    %v6094 = vpow.pop %v6093
    %v6095 = vmul.f32 %v6072, 1.442695
    %v6096 = vpow.pop %v6095
    %v6097 = vmul.f32 %v6073, 1.442695
    %v6098 = vpow.pop %v6097
    %v6099 = vmul.f32 %v6074, 1.442695
    %v6100 = vpow.pop %v6099
    %v6101 = vmul.f32 %v6075, 1.442695
    %v6102 = vpow.pop %v6101
    %v6103 = vmul.f32 %v6076, 1.442695
    %v6104 = vpow.pop %v6103
    %v6105 = vmul.f32 %v6077, 1.442695
    %v6106 = vpow.pop %v6105
    %v6107 = vmul.f32 %v6078, 1.442695
    %v6108 = vpow.pop %v6107
    %v6109 = vmul.f32 %v6079, 1.442695
    %v6110 = vpow.pop %v6109
    %v6111 = vmul.f32 %v6080, 1.442695
    %v6112 = vpow.pop %v6111
    %6129 = vset.pattern.permute.xlu0 0
    %6130 = vperm.xlu0 %6129, %v6082
    %v6131 = vpop.permute.xlu0 %6130
    %6132 = vset.pattern.permute.xlu0 0
    %6133 = vperm.xlu0 %6132, %v6084
    %v6134 = vpop.permute.xlu0 %6133
    %6135 = vset.pattern.permute.xlu0 0
    %6136 = vperm.xlu0 %6135, %v6086
    %v6137 = vpop.permute.xlu0 %6136
    %6138 = vset.pattern.permute.xlu0 0
    %6139 = vperm.xlu0 %6138, %v6088
    %v6140 = vpop.permute.xlu0 %6139
    %6141 = vset.pattern.permute.xlu0 0
    %6142 = vperm.xlu0 %6141, %v6090
    %v6143 = vpop.permute.xlu0 %6142
    %6144 = vset.pattern.permute.xlu0 0
    %6145 = vperm.xlu0 %6144, %v6092
    %v6146 = vpop.permute.xlu0 %6145
    %6147 = vset.pattern.permute.xlu0 0
    %6148 = vperm.xlu0 %6147, %v6094
    %v6149 = vpop.permute.xlu0 %6148
    %6150 = vset.pattern.permute.xlu0 0
    %6151 = vperm.xlu0 %6150, %v6096
    %v6152 = vpop.permute.xlu0 %6151
    %6153 = vset.pattern.permute.xlu0 0
    %6154 = vperm.xlu0 %6153, %v6098
    %v6155 = vpop.permute.xlu0 %6154
    %6156 = vset.pattern.permute.xlu0 0
    %6157 = vperm.xlu0 %6156, %v6100
    %v6158 = vpop.permute.xlu0 %6157
    %6159 = vset.pattern.permute.xlu0 0
    %6160 = vperm.xlu0 %6159, %v6102
    %v6161 = vpop.permute.xlu0 %6160
    %6162 = vset.pattern.permute.xlu0 0
    %6163 = vperm.xlu0 %6162, %v6104
    %v6164 = vpop.permute.xlu0 %6163
    %6165 = vset.pattern.permute.xlu0 0
    %6166 = vperm.xlu0 %6165, %v6106
    %v6167 = vpop.permute.xlu0 %6166
    %6168 = vset.pattern.permute.xlu0 0
    %6169 = vperm.xlu0 %6168, %v6108
    %v6170 = vpop.permute.xlu0 %6169
    %6171 = vset.pattern.permute.xlu0 0
    %6172 = vperm.xlu0 %6171, %v6110
    %v6173 = vpop.permute.xlu0 %6172
    %6174 = vset.pattern.permute.xlu0 0
    %6175 = vperm.xlu0 %6174, %v6112
    %v6176 = vpop.permute.xlu0 %6175
    %v6177 = vlaneseq
    %v6178 = vshrl.u32 %v6177, 7
    %v6179 = vsub.s32 %v288, %v6178
    %v6180 = vrot.slane %v6131, %v6179
    %v6181 = vlaneseq
    %v6182 = vshrl.u32 %v6181, 7
    %v6183 = vsub.s32 %v293, %v6182
    %v6184 = vrot.slane %v6134, %v6183
    %v6185 = vsel %vm298, %v6184, %v6180
    %v6186 = vlaneseq
    %v6187 = vshrl.u32 %v6186, 7
    %v6188 = vsub.s32 %v288, %v6187
    %v6189 = vrot.slane %v6137, %v6188
    %v6190 = vlaneseq
    %v6191 = vshrl.u32 %v6190, 7
    %v6192 = vsub.s32 %v293, %v6191
    %v6193 = vrot.slane %v6140, %v6192
    %v6194 = vsel %vm298, %v6193, %v6189
    %v6195 = vlaneseq
    %v6196 = vshrl.u32 %v6195, 7
    %v6197 = vsub.s32 %v288, %v6196
    %v6198 = vrot.slane %v6143, %v6197
    %v6199 = vlaneseq
    %v6200 = vshrl.u32 %v6199, 7
    %v6201 = vsub.s32 %v293, %v6200
    %v6202 = vrot.slane %v6146, %v6201
    %v6203 = vsel %vm298, %v6202, %v6198
    %v6204 = vlaneseq
    %v6205 = vshrl.u32 %v6204, 7
    %v6206 = vsub.s32 %v288, %v6205
    %v6207 = vrot.slane %v6149, %v6206
    %v6208 = vlaneseq
    %v6209 = vshrl.u32 %v6208, 7
    %v6210 = vsub.s32 %v293, %v6209
    %v6211 = vrot.slane %v6152, %v6210
    %v6212 = vsel %vm298, %v6211, %v6207
    %v6213 = vlaneseq
    %v6214 = vshrl.u32 %v6213, 7
    %v6215 = vsub.s32 %v288, %v6214
    %v6216 = vrot.slane %v6155, %v6215
    %v6217 = vlaneseq
    %v6218 = vshrl.u32 %v6217, 7
    %v6219 = vsub.s32 %v293, %v6218
    %v6220 = vrot.slane %v6158, %v6219
    %v6221 = vsel %vm298, %v6220, %v6216
    %v6222 = vlaneseq
    %v6223 = vshrl.u32 %v6222, 7
    %v6224 = vsub.s32 %v288, %v6223
    %v6225 = vrot.slane %v6161, %v6224
    %v6226 = vlaneseq
    %v6227 = vshrl.u32 %v6226, 7
    %v6228 = vsub.s32 %v293, %v6227
    %v6229 = vrot.slane %v6164, %v6228
    %v6230 = vsel %vm298, %v6229, %v6225
    %v6231 = vlaneseq
    %v6232 = vshrl.u32 %v6231, 7
    %v6233 = vsub.s32 %v288, %v6232
    %v6234 = vrot.slane %v6167, %v6233
    %v6235 = vlaneseq
    %v6236 = vshrl.u32 %v6235, 7
    %v6237 = vsub.s32 %v293, %v6236
    %v6238 = vrot.slane %v6170, %v6237
    %v6239 = vsel %vm298, %v6238, %v6234
    %v6240 = vlaneseq
    %v6241 = vshrl.u32 %v6240, 7
    %v6242 = vsub.s32 %v288, %v6241
    %v6243 = vrot.slane %v6173, %v6242
    %v6244 = vlaneseq
    %v6245 = vshrl.u32 %v6244, 7
    %v6246 = vsub.s32 %v293, %v6245
    %v6247 = vrot.slane %v6176, %v6246
    %v6248 = vsel %vm298, %v6247, %v6243
    %v6249 = vsel %vm363, %v6194, %v6185
    %v6250 = vsel %vm365, %v6203, %v6249
    %v6251 = vsel %vm367, %v6212, %v6250
    %v6252 = vsel %vm369, %v6221, %v6251
    %v6253 = vsel %vm371, %v6230, %v6252
    %v6254 = vsel %vm373, %v6239, %v6253
    %v6255 = vsel %vm375, %v6248, %v6254
    %v6257 = vsel %vm378, %v6255, 0.0
    %6258 = vadd.xlane.f32.xlu0 %v6257
    %v6259 = vpop.xlane.xlu0 %6258
    %v6260 = vrcp.pop %v6259
    %v6262 = vlaneseq
    %v6263 = vshrl.u32 %v6262, 7
    %v6264 = vsub.s32 0, %v6263
    %v6265 = vrot.slane %v6260, %v6264
    %v6266 = vlaneseq
    %v6267 = vshrl.u32 %v6266, 7
    %v6268 = vsub.s32 1, %v6267
    %v6269 = vrot.slane %v6260, %v6268
    %v6270 = vlaneseq
    %v6271 = vshrl.u32 %v6270, 7
    %v6272 = vsub.s32 2, %v6271
    %v6273 = vrot.slane %v6260, %v6272
    %v6274 = vlaneseq
    %v6275 = vshrl.u32 %v6274, 7
    %v6276 = vsub.s32 3, %v6275
    %v6277 = vrot.slane %v6260, %v6276
    %v6278 = vlaneseq
    %v6279 = vshrl.u32 %v6278, 7
    %v6280 = vsub.s32 4, %v6279
    %v6281 = vrot.slane %v6260, %v6280
    %v6282 = vlaneseq
    %v6283 = vshrl.u32 %v6282, 7
    %v6284 = vsub.s32 5, %v6283
    %v6285 = vrot.slane %v6260, %v6284
    %v6286 = vlaneseq
    %v6287 = vshrl.u32 %v6286, 7
    %v6288 = vsub.s32 6, %v6287
    %v6289 = vrot.slane %v6260, %v6288
    %v6290 = vlaneseq
    %v6291 = vshrl.u32 %v6290, 7
    %v6292 = vsub.s32 7, %v6291
    %v6293 = vrot.slane %v6260, %v6292
    %v6302 = vmul.f32 %v6082, %v6265
    %v6303 = vmul.f32 %v6084, %v6265
    %v6304 = vmul.f32 %v6086, %v6269
    %v6305 = vmul.f32 %v6088, %v6269
    %v6306 = vmul.f32 %v6090, %v6273
    %v6307 = vmul.f32 %v6092, %v6273
    %v6308 = vmul.f32 %v6094, %v6277
    %v6309 = vmul.f32 %v6096, %v6277
    %v6310 = vmul.f32 %v6098, %v6281
    %v6311 = vmul.f32 %v6100, %v6281
    %v6312 = vmul.f32 %v6102, %v6285
    %v6313 = vmul.f32 %v6104, %v6285
    %v6314 = vmul.f32 %v6106, %v6289
    %v6315 = vmul.f32 %v6108, %v6289
    %v6316 = vmul.f32 %v6110, %v6293
    %v6317 = vmul.f32 %v6112, %v6293
    %6319 = vset.pattern.permute.xlu0 0
    %6320 = vperm.xlu0 %6319, %v6302
    %v6321 = vpop.permute.xlu0 %6320
    %6324 = vset.pattern.permute.xlu0 0
    %6325 = vperm.xlu0 %6324, %v6303
    %v6326 = vpop.permute.xlu0 %6325
    %6329 = vset.pattern.permute.xlu0 0
    %6330 = vperm.xlu0 %6329, %v6304
    %v6331 = vpop.permute.xlu0 %6330
    %6334 = vset.pattern.permute.xlu0 0
    %6335 = vperm.xlu0 %6334, %v6305
    %v6336 = vpop.permute.xlu0 %6335
    %6339 = vset.pattern.permute.xlu0 0
    %6340 = vperm.xlu0 %6339, %v6306
    %v6341 = vpop.permute.xlu0 %6340
    %6344 = vset.pattern.permute.xlu0 0
    %6345 = vperm.xlu0 %6344, %v6307
    %v6346 = vpop.permute.xlu0 %6345
    %6349 = vset.pattern.permute.xlu0 0
    %6350 = vperm.xlu0 %6349, %v6308
    %v6351 = vpop.permute.xlu0 %6350
    %6354 = vset.pattern.permute.xlu0 0
    %6355 = vperm.xlu0 %6354, %v6309
    %v6356 = vpop.permute.xlu0 %6355
    %6359 = vset.pattern.permute.xlu0 0
    %6360 = vperm.xlu0 %6359, %v6310
    %v6361 = vpop.permute.xlu0 %6360
    %6364 = vset.pattern.permute.xlu0 0
    %6365 = vperm.xlu0 %6364, %v6311
    %v6366 = vpop.permute.xlu0 %6365
    %6369 = vset.pattern.permute.xlu0 0
    %6370 = vperm.xlu0 %6369, %v6312
    %v6371 = vpop.permute.xlu0 %6370
    %6374 = vset.pattern.permute.xlu0 0
    %6375 = vperm.xlu0 %6374, %v6313
    %v6376 = vpop.permute.xlu0 %6375
    %6379 = vset.pattern.permute.xlu0 0
    %6380 = vperm.xlu0 %6379, %v6314
    %v6381 = vpop.permute.xlu0 %6380
    %6384 = vset.pattern.permute.xlu0 0
    %6385 = vperm.xlu0 %6384, %v6315
    %v6386 = vpop.permute.xlu0 %6385
    %6389 = vset.pattern.permute.xlu0 0
    %6390 = vperm.xlu0 %6389, %v6316
    %v6391 = vpop.permute.xlu0 %6390
    %6394 = vset.pattern.permute.xlu0 0
    %6395 = vperm.xlu0 %6394, %v6317
    %v6396 = vpop.permute.xlu0 %6395
    %v6398 = vmul.f32 %v6321, %v89
    %v6399 = vmul.f32 %v6326, %v90
    %v6400 = vmul.f32 %v6331, %v91
    %v6401 = vmul.f32 %v6336, %v92
    %v6402 = vmul.f32 %v6341, %v93
    %v6403 = vmul.f32 %v6346, %v94
    %v6404 = vmul.f32 %v6351, %v95
    %v6405 = vmul.f32 %v6356, %v96
    %v6406 = vmul.f32 %v6361, %v97
    %v6407 = vmul.f32 %v6366, %v98
    %v6408 = vmul.f32 %v6371, %v99
    %v6409 = vmul.f32 %v6376, %v100
    %v6410 = vmul.f32 %v6381, %v101
    %v6411 = vmul.f32 %v6386, %v102
    %v6412 = vmul.f32 %v6391, %v103
    %v6413 = vmul.f32 %v6396, %v104
    %v6414 = vadd.f32 %v6398, %v6399
    %v6415 = vrot.slane %v6414, 4
    %v6416 = vadd.f32 %v6414, %v6415
    %v6417 = vrot.slane %v6416, 2
    %v6418 = vadd.f32 %v6416, %v6417
    %v6419 = vrot.slane %v6418, 1
    %v6420 = vadd.f32 %v6418, %v6419
    %v6421 = vadd.f32 %v6400, %v6401
    %v6422 = vrot.slane %v6421, 4
    %v6423 = vadd.f32 %v6421, %v6422
    %v6424 = vrot.slane %v6423, 2
    %v6425 = vadd.f32 %v6423, %v6424
    %v6426 = vrot.slane %v6425, 1
    %v6427 = vadd.f32 %v6425, %v6426
    %v6428 = vadd.f32 %v6402, %v6403
    %v6429 = vrot.slane %v6428, 4
    %v6430 = vadd.f32 %v6428, %v6429
    %v6431 = vrot.slane %v6430, 2
    %v6432 = vadd.f32 %v6430, %v6431
    %v6433 = vrot.slane %v6432, 1
    %v6434 = vadd.f32 %v6432, %v6433
    %v6435 = vadd.f32 %v6404, %v6405
    %v6436 = vrot.slane %v6435, 4
    %v6437 = vadd.f32 %v6435, %v6436
    %v6438 = vrot.slane %v6437, 2
    %v6439 = vadd.f32 %v6437, %v6438
    %v6440 = vrot.slane %v6439, 1
    %v6441 = vadd.f32 %v6439, %v6440
    %v6442 = vadd.f32 %v6406, %v6407
    %v6443 = vrot.slane %v6442, 4
    %v6444 = vadd.f32 %v6442, %v6443
    %v6445 = vrot.slane %v6444, 2
    %v6446 = vadd.f32 %v6444, %v6445
    %v6447 = vrot.slane %v6446, 1
    %v6448 = vadd.f32 %v6446, %v6447
    %v6449 = vadd.f32 %v6408, %v6409
    %v6450 = vrot.slane %v6449, 4
    %v6451 = vadd.f32 %v6449, %v6450
    %v6452 = vrot.slane %v6451, 2
    %v6453 = vadd.f32 %v6451, %v6452
    %v6454 = vrot.slane %v6453, 1
    %v6455 = vadd.f32 %v6453, %v6454
    %v6456 = vadd.f32 %v6410, %v6411
    %v6457 = vrot.slane %v6456, 4
    %v6458 = vadd.f32 %v6456, %v6457
    %v6459 = vrot.slane %v6458, 2
    %v6460 = vadd.f32 %v6458, %v6459
    %v6461 = vrot.slane %v6460, 1
    %v6462 = vadd.f32 %v6460, %v6461
    %v6463 = vadd.f32 %v6412, %v6413
    %v6464 = vrot.slane %v6463, 4
    %v6465 = vadd.f32 %v6463, %v6464
    %v6466 = vrot.slane %v6465, 2
    %v6467 = vadd.f32 %v6465, %v6466
    %v6468 = vrot.slane %v6467, 1
    %v6469 = vadd.f32 %v6467, %v6468
    %s6470 = scalar_lea.vmem [#allocation2], 48
    %v6471 = vld [vmem:[%s6470] sm:$0xff]
    %6472 = vrot.lane.b32.xlu0 %v5658, 64
    %v6473 = vpop.permute.xlu0 %6472
    %v6474 = vsel %vm109, %v6473, 0
    %6476 = vmatprep.subr.mxu0 0.0
    %6477 = vmatpush1.msra.mxu0 %v105
    %6478 = vmatprep.subr.mxu0 0.0
    %6479 = vmatpush1.msra.mxu0 %v106
    %6480 = vmatprep.subr.mxu0 0.0
    %6481 = vmatpush1.msra.mxu0 %v107
    %6482 = vmatprep.subr.mxu0 0.0
    %6483 = vmatpush1.msra.mxu0 %v108
    %6484 = vmatprep.subr.mxu0 0.0
    %6485 = vmatpush1.msra.mxu0 0.0
    %6486 = vmatprep.subr.mxu0 0.0
    %6487 = vmatpush1.msra.mxu0 0.0
    %6488 = vmatprep.subr.mxu0 0.0
    %6489 = vmatpush1.msra.mxu0 0.0
    %6490 = vmatprep.subr.mxu0 0.0
    %6491 = vmatpush1.msra.mxu0 0.0
    %6492 = vmatprep.subr.mxu0 0.0
    %6493 = vmatpush1.msra.mxu0 0.0
    %6494 = vmatprep.subr.mxu0 0.0
    %6495 = vmatpush1.msra.mxu0 0.0
    %6496 = vmatprep.subr.mxu0 0.0
    %6497 = vmatpush1.msra.mxu0 0.0
    %6498 = vmatprep.subr.mxu0 0.0
    %6499 = vmatpush1.msra.mxu0 0.0
    %6500 = vmatprep.subr.mxu0 0.0
    %6501 = vmatpush1.msra.mxu0 0.0
    %6502 = vmatprep.subr.mxu0 0.0
    %6503 = vmatpush1.msra.mxu0 0.0
    %6504 = vmatprep.subr.mxu0 0.0
    %6505 = vmatpush1.msra.mxu0 0.0
    %6506 = vmatprep.subr.mxu0 0.0
    %6507 = vmatpush1.msra.mxu0 0.0
    %6508 = vmatprep.subr.mxu0 0.0
    %6509 = vmatpush1.msra.mxu0 0.0
    %6510 = vmatprep.subr.mxu0 0.0
    %6511 = vmatpush1.msra.mxu0 0.0
    %6512 = vmatprep.subr.mxu0 0.0
    %6513 = vmatpush1.msra.mxu0 0.0
    %6514 = vmatprep.subr.mxu0 0.0
    %6515 = vmatpush1.msra.mxu0 0.0
    %6516 = vmatprep.subr.mxu0 0.0
    %6517 = vmatpush1.msra.mxu0 0.0
    %6518 = vmatprep.subr.mxu0 0.0
    %6519 = vmatpush1.msra.mxu0 0.0
    %6520 = vmatprep.subr.mxu0 0.0
    %6521 = vmatpush1.msra.mxu0 0.0
    %6522 = vmatprep.subr.mxu0 0.0
    %6523 = vmatpush1.msra.mxu0 0.0
    %6524 = vmatprep.subr.mxu0 0.0
    %6525 = vmatpush1.msra.mxu0 0.0
    %6526 = vmatprep.subr.mxu0 0.0
    %6527 = vmatpush1.msra.mxu0 0.0
    %6528 = vmatprep.subr.mxu0 0.0
    %6529 = vmatpush1.msra.mxu0 0.0
    %6530 = vmatprep.subr.mxu0 0.0
    %6531 = vmatpush1.msra.mxu0 0.0
    %6532 = vmatprep.subr.mxu0 0.0
    %6533 = vmatpush1.msra.mxu0 0.0
    %6534 = vmatprep.subr.mxu0 0.0
    %6535 = vmatpush1.msra.mxu0 0.0
    %6536 = vmatprep.subr.mxu0 0.0
    %6537 = vmatpush1.msra.mxu0 0.0
    %6538 = vmatprep.subr.mxu0 0.0
    %6539 = vmatpush1.msra.mxu0 0.0
    %6540 = vmatprep.mubr.f32.mxu0 0.0
    %6541 = vmatmul.mubr.f32.gmra.mrb[0].mxu0 %v6474
    %v6542 = vpop.f32.mrb[0].mxu0
    %v6543 = vadd.f32 0.0, %v6542
    %v6544 = vpop.f32.mrb[0].mxu0
    %6545 = vdwg.mxu0
    %v6546 = vadd.f32 %v6471, %v6543
    %v6555 = vsel %vm363, %v6427, %v6420
    %v6556 = vsel %vm365, %v6434, %v6555
    %v6557 = vsel %vm367, %v6441, %v6556
    %v6558 = vsel %vm369, %v6448, %v6557
    %v6559 = vsel %vm371, %v6455, %v6558
    %v6560 = vsel %vm373, %v6462, %v6559
    %v6561 = vsel %vm375, %v6469, %v6560
    %v6563 = vadd.f32 %v6546, %v6561
    %v6564 = vmul.f32 %v6563, 0.5
    %v6565 = vtanh.pop %v6564
    %v6566 = vmul.f32 %v6565, 0.5
    %v6567 = vadd.f32 %v6566, 0.5
    %v6568 = vtanh.pop %v6563
    %v6569 = vmul.f32 %v6567, %v5652
    %6571 = vrot.lane.b32.xlu0 %v6568, 32
    %v6572 = vpop.permute.xlu0 %6571
    %v6574 = vmul.f32 %v6567, %v6572
    %6576 = vrot.lane.b32.xlu0 %v6574, 32
    %v6577 = vpop.permute.xlu0 %6576
    %v6579 = vadd.f32 %v6569, %v6577
    %v6580 = vtanh.pop %v6579
    %6582 = vrot.lane.b32.xlu0 %v6580, 32
    %v6583 = vpop.permute.xlu0 %6582
    %v6585 = vmul.f32 %v6567, %v6583
    %v6587 = vcombine.high %v6585, %v6585
    %v6589 = vunpack.c.l.s4 1966171168
    %v6590 = vunpack.c.0.s8 %v6589
    %v6591 = vlaneseq
    %v6592 = vshrl.u32 %v6591, 7
    %v6593 = vsub.s32 %v6590, %v6592
    %v6594 = vrot.slane %v6585, %v6593
    %v6596 = vunpack.c.l.s4 1966171168
    %v6597 = vunpack.c.0.s8 %v6596
    %v6598 = vlaneseq
    %v6599 = vshrl.u32 %v6598, 7
    %v6600 = vsub.s32 %v6597, %v6599
    %v6601 = vrot.slane %v6587, %v6600
    %v6602 = vcombine.high %v6594, %v6594
    %v6603 = vcombine.high %v6601, %v6601
    %v6605 = vunpack.c.l.s4 1966171168
    %v6606 = vunpack.c.0.s8 %v6605
    %v6607 = vlaneseq
    %v6608 = vshrl.u32 %v6607, 7
    %v6609 = vsub.s32 %v6606, %v6608
    %v6610 = vrot.slane %v6594, %v6609
    %v6612 = vunpack.c.l.s4 1966171168
    %v6613 = vunpack.c.0.s8 %v6612
    %v6614 = vlaneseq
    %v6615 = vshrl.u32 %v6614, 7
    %v6616 = vsub.s32 %v6613, %v6615
    %v6617 = vrot.slane %v6601, %v6616
    %v6619 = vunpack.c.l.s4 1966171168
    %v6620 = vunpack.c.0.s8 %v6619
    %v6621 = vlaneseq
    %v6622 = vshrl.u32 %v6621, 7
    %v6623 = vsub.s32 %v6620, %v6622
    %v6624 = vrot.slane %v6602, %v6623
    %v6626 = vunpack.c.l.s4 1966171168
    %v6627 = vunpack.c.0.s8 %v6626
    %v6628 = vlaneseq
    %v6629 = vshrl.u32 %v6628, 7
    %v6630 = vsub.s32 %v6627, %v6629
    %v6631 = vrot.slane %v6603, %v6630
    %v6632 = vcombine.high %v6610, %v6610
    %v6633 = vcombine.high %v6617, %v6617
    %v6634 = vcombine.high %v6624, %v6624
    %v6635 = vcombine.high %v6631, %v6631
    %v6636 = vlaneseq
    %v6637 = vshrl.u32 %v6636, 7
    %v6638 = vsub.s32 0, %v6637
    %v6639 = vrot.slane %v6610, %v6638
    %v6640 = vlaneseq
    %v6641 = vshrl.u32 %v6640, 7
    %v6642 = vsub.s32 0, %v6641
    %v6643 = vrot.slane %v6624, %v6642
    %v6644 = vlaneseq
    %v6645 = vshrl.u32 %v6644, 7
    %v6646 = vsub.s32 0, %v6645
    %v6647 = vrot.slane %v6632, %v6646
    %v6648 = vlaneseq
    %v6649 = vshrl.u32 %v6648, 7
    %v6650 = vsub.s32 0, %v6649
    %v6651 = vrot.slane %v6634, %v6650
    %v6652 = vlaneseq
    %v6653 = vshrl.u32 %v6652, 7
    %v6654 = vsub.s32 0, %v6653
    %v6655 = vrot.slane %v6617, %v6654
    %v6656 = vlaneseq
    %v6657 = vshrl.u32 %v6656, 7
    %v6658 = vsub.s32 0, %v6657
    %v6659 = vrot.slane %v6631, %v6658
    %v6660 = vlaneseq
    %v6661 = vshrl.u32 %v6660, 7
    %v6662 = vsub.s32 0, %v6661
    %v6663 = vrot.slane %v6633, %v6662
    %v6664 = vlaneseq
    %v6665 = vshrl.u32 %v6664, 7
    %v6666 = vsub.s32 0, %v6665
    %v6667 = vrot.slane %v6635, %v6666
    %6668 = vrot.lane.b32.xlu0 %v6639, 64
    %v6669 = vpop.permute.xlu0 %6668
    %6670 = vrot.lane.b32.xlu0 %v6643, 64
    %v6671 = vpop.permute.xlu0 %6670
    %6672 = vrot.lane.b32.xlu0 %v6647, 64
    %v6673 = vpop.permute.xlu0 %6672
    %6674 = vrot.lane.b32.xlu0 %v6651, 64
    %v6675 = vpop.permute.xlu0 %6674
    %6676 = vrot.lane.b32.xlu0 %v6655, 64
    %v6677 = vpop.permute.xlu0 %6676
    %6678 = vrot.lane.b32.xlu0 %v6659, 64
    %v6679 = vpop.permute.xlu0 %6678
    %6680 = vrot.lane.b32.xlu0 %v6663, 64
    %v6681 = vpop.permute.xlu0 %6680
    %6682 = vrot.lane.b32.xlu0 %v6667, 64
    %v6683 = vpop.permute.xlu0 %6682
    %6692 = vst.msk [vmem:[#allocation10 + $0x6] sm:$0x1] %vm1065, %v6669
    %6693 = vst.msk [vmem:[#allocation10 + $0xe] sm:$0x1] %vm1065, %v6671
    %6694 = vst.msk [vmem:[#allocation10 + $0x16] sm:$0x1] %vm1065, %v6673
    %6695 = vst.msk [vmem:[#allocation10 + $0x1e] sm:$0x1] %vm1065, %v6675
    %6696 = vst.msk [vmem:[#allocation10 + $0x26] sm:$0x1] %vm1065, %v6677
    %6697 = vst.msk [vmem:[#allocation10 + $0x2e] sm:$0x1] %vm1065, %v6679
    %6698 = vst.msk [vmem:[#allocation10 + $0x36] sm:$0x1] %vm1065, %v6681
    %6699 = vst.msk [vmem:[#allocation10 + $0x3e] sm:$0x1] %vm1065, %v6683
    %v6708 = vmul.f32 %v6639, %v1099
    %v6709 = vmul.f32 %v6639, %v1101
    %v6710 = vmul.f32 %v6643, %v1103
    %v6711 = vmul.f32 %v6643, %v1105
    %v6712 = vmul.f32 %v6647, %v1107
    %v6713 = vmul.f32 %v6647, %v1109
    %v6714 = vmul.f32 %v6651, %v1111
    %v6715 = vmul.f32 %v6651, %v1113
    %v6716 = vmul.f32 %v6655, %v1115
    %v6717 = vmul.f32 %v6655, %v1117
    %v6718 = vmul.f32 %v6659, %v1119
    %v6719 = vmul.f32 %v6659, %v1121
    %v6720 = vmul.f32 %v6663, %v1123
    %v6721 = vmul.f32 %v6663, %v1125
    %v6722 = vmul.f32 %v6667, %v1127
    %v6723 = vmul.f32 %v6667, %v1129
    %6740 = vrot.lane.b32.xlu0 %v6708, 64
    %v6741 = vpop.permute.xlu0 %6740
    %6742 = vrot.lane.b32.xlu0 %v6709, 64
    %v6743 = vpop.permute.xlu0 %6742
    %6744 = vrot.lane.b32.xlu0 %v6710, 64
    %v6745 = vpop.permute.xlu0 %6744
    %6746 = vrot.lane.b32.xlu0 %v6711, 64
    %v6747 = vpop.permute.xlu0 %6746
    %6748 = vrot.lane.b32.xlu0 %v6712, 64
    %v6749 = vpop.permute.xlu0 %6748
    %6750 = vrot.lane.b32.xlu0 %v6713, 64
    %v6751 = vpop.permute.xlu0 %6750
    %6752 = vrot.lane.b32.xlu0 %v6714, 64
    %v6753 = vpop.permute.xlu0 %6752
    %6754 = vrot.lane.b32.xlu0 %v6715, 64
    %v6755 = vpop.permute.xlu0 %6754
    %6756 = vrot.lane.b32.xlu0 %v6716, 64
    %v6757 = vpop.permute.xlu0 %6756
    %6758 = vrot.lane.b32.xlu0 %v6717, 64
    %v6759 = vpop.permute.xlu0 %6758
    %6760 = vrot.lane.b32.xlu0 %v6718, 64
    %v6761 = vpop.permute.xlu0 %6760
    %6762 = vrot.lane.b32.xlu0 %v6719, 64
    %v6763 = vpop.permute.xlu0 %6762
    %6764 = vrot.lane.b32.xlu0 %v6720, 64
    %v6765 = vpop.permute.xlu0 %6764
    %6766 = vrot.lane.b32.xlu0 %v6721, 64
    %v6767 = vpop.permute.xlu0 %6766
    %6768 = vrot.lane.b32.xlu0 %v6722, 64
    %v6769 = vpop.permute.xlu0 %6768
    %6770 = vrot.lane.b32.xlu0 %v6723, 64
    %v6771 = vpop.permute.xlu0 %6770
    %v6788 = vsel %vm109, %v6741, 0.0
    %6789 = vadd.xlane.f32.xlu0 %v6788
    %v6790 = vpop.xlane.xlu0 %6789
    %v6791 = vsel %vm109, %v6743, 0.0
    %6792 = vadd.xlane.f32.xlu0 %v6791
    %v6793 = vpop.xlane.xlu0 %6792
    %v6794 = vsel %vm109, %v6745, 0.0
    %6795 = vadd.xlane.f32.xlu0 %v6794
    %v6796 = vpop.xlane.xlu0 %6795
    %v6797 = vsel %vm109, %v6747, 0.0
    %6798 = vadd.xlane.f32.xlu0 %v6797
    %v6799 = vpop.xlane.xlu0 %6798
    %v6800 = vsel %vm109, %v6749, 0.0
    %6801 = vadd.xlane.f32.xlu0 %v6800
    %v6802 = vpop.xlane.xlu0 %6801
    %v6803 = vsel %vm109, %v6751, 0.0
    %6804 = vadd.xlane.f32.xlu0 %v6803
    %v6805 = vpop.xlane.xlu0 %6804
    %v6806 = vsel %vm109, %v6753, 0.0
    %6807 = vadd.xlane.f32.xlu0 %v6806
    %v6808 = vpop.xlane.xlu0 %6807
    %v6809 = vsel %vm109, %v6755, 0.0
    %6810 = vadd.xlane.f32.xlu0 %v6809
    %v6811 = vpop.xlane.xlu0 %6810
    %v6812 = vsel %vm109, %v6757, 0.0
    %6813 = vadd.xlane.f32.xlu0 %v6812
    %v6814 = vpop.xlane.xlu0 %6813
    %v6815 = vsel %vm109, %v6759, 0.0
    %6816 = vadd.xlane.f32.xlu0 %v6815
    %v6817 = vpop.xlane.xlu0 %6816
    %v6818 = vsel %vm109, %v6761, 0.0
    %6819 = vadd.xlane.f32.xlu0 %v6818
    %v6820 = vpop.xlane.xlu0 %6819
    %v6821 = vsel %vm109, %v6763, 0.0
    %6822 = vadd.xlane.f32.xlu0 %v6821
    %v6823 = vpop.xlane.xlu0 %6822
    %v6824 = vsel %vm109, %v6765, 0.0
    %6825 = vadd.xlane.f32.xlu0 %v6824
    %v6826 = vpop.xlane.xlu0 %6825
    %v6827 = vsel %vm109, %v6767, 0.0
    %6828 = vadd.xlane.f32.xlu0 %v6827
    %v6829 = vpop.xlane.xlu0 %6828
    %v6830 = vsel %vm109, %v6769, 0.0
    %6831 = vadd.xlane.f32.xlu0 %v6830
    %v6832 = vpop.xlane.xlu0 %6831
    %v6833 = vsel %vm109, %v6771, 0.0
    %6834 = vadd.xlane.f32.xlu0 %v6833
    %v6835 = vpop.xlane.xlu0 %6834
    %v6836 = vmul.f32 %v6790, 0.17677669
    %v6837 = vmul.f32 %v6793, 0.17677669
    %v6838 = vmul.f32 %v6796, 0.17677669
    %v6839 = vmul.f32 %v6799, 0.17677669
    %v6840 = vmul.f32 %v6802, 0.17677669
    %v6841 = vmul.f32 %v6805, 0.17677669
    %v6842 = vmul.f32 %v6808, 0.17677669
    %v6843 = vmul.f32 %v6811, 0.17677669
    %v6844 = vmul.f32 %v6814, 0.17677669
    %v6845 = vmul.f32 %v6817, 0.17677669
    %v6846 = vmul.f32 %v6820, 0.17677669
    %v6847 = vmul.f32 %v6823, 0.17677669
    %v6848 = vmul.f32 %v6826, 0.17677669
    %v6849 = vmul.f32 %v6829, 0.17677669
    %v6850 = vmul.f32 %v6832, 0.17677669
    %v6851 = vmul.f32 %v6835, 0.17677669
    %v6868 = vlaneseq
    %v6869 = vshrl.u32 %v6868, 7
    %v6870 = vsub.s32 %v288, %v6869
    %v6871 = vrot.slane %v6836, %v6870
    %v6872 = vlaneseq
    %v6873 = vshrl.u32 %v6872, 7
    %v6874 = vsub.s32 %v293, %v6873
    %v6875 = vrot.slane %v6837, %v6874
    %v6876 = vsel %vm298, %v6875, %v6871
    %v6877 = vlaneseq
    %v6878 = vshrl.u32 %v6877, 7
    %v6879 = vsub.s32 %v288, %v6878
    %v6880 = vrot.slane %v6838, %v6879
    %v6881 = vlaneseq
    %v6882 = vshrl.u32 %v6881, 7
    %v6883 = vsub.s32 %v293, %v6882
    %v6884 = vrot.slane %v6839, %v6883
    %v6885 = vsel %vm298, %v6884, %v6880
    %v6886 = vlaneseq
    %v6887 = vshrl.u32 %v6886, 7
    %v6888 = vsub.s32 %v288, %v6887
    %v6889 = vrot.slane %v6840, %v6888
    %v6890 = vlaneseq
    %v6891 = vshrl.u32 %v6890, 7
    %v6892 = vsub.s32 %v293, %v6891
    %v6893 = vrot.slane %v6841, %v6892
    %v6894 = vsel %vm298, %v6893, %v6889
    %v6895 = vlaneseq
    %v6896 = vshrl.u32 %v6895, 7
    %v6897 = vsub.s32 %v288, %v6896
    %v6898 = vrot.slane %v6842, %v6897
    %v6899 = vlaneseq
    %v6900 = vshrl.u32 %v6899, 7
    %v6901 = vsub.s32 %v293, %v6900
    %v6902 = vrot.slane %v6843, %v6901
    %v6903 = vsel %vm298, %v6902, %v6898
    %v6904 = vlaneseq
    %v6905 = vshrl.u32 %v6904, 7
    %v6906 = vsub.s32 %v288, %v6905
    %v6907 = vrot.slane %v6844, %v6906
    %v6908 = vlaneseq
    %v6909 = vshrl.u32 %v6908, 7
    %v6910 = vsub.s32 %v293, %v6909
    %v6911 = vrot.slane %v6845, %v6910
    %v6912 = vsel %vm298, %v6911, %v6907
    %v6913 = vlaneseq
    %v6914 = vshrl.u32 %v6913, 7
    %v6915 = vsub.s32 %v288, %v6914
    %v6916 = vrot.slane %v6846, %v6915
    %v6917 = vlaneseq
    %v6918 = vshrl.u32 %v6917, 7
    %v6919 = vsub.s32 %v293, %v6918
    %v6920 = vrot.slane %v6847, %v6919
    %v6921 = vsel %vm298, %v6920, %v6916
    %v6922 = vlaneseq
    %v6923 = vshrl.u32 %v6922, 7
    %v6924 = vsub.s32 %v288, %v6923
    %v6925 = vrot.slane %v6848, %v6924
    %v6926 = vlaneseq
    %v6927 = vshrl.u32 %v6926, 7
    %v6928 = vsub.s32 %v293, %v6927
    %v6929 = vrot.slane %v6849, %v6928
    %v6930 = vsel %vm298, %v6929, %v6925
    %v6931 = vlaneseq
    %v6932 = vshrl.u32 %v6931, 7
    %v6933 = vsub.s32 %v288, %v6932
    %v6934 = vrot.slane %v6850, %v6933
    %v6935 = vlaneseq
    %v6936 = vshrl.u32 %v6935, 7
    %v6937 = vsub.s32 %v293, %v6936
    %v6938 = vrot.slane %v6851, %v6937
    %v6939 = vsel %vm298, %v6938, %v6934
    %v6940 = vsel %vm363, %v6885, %v6876
    %v6941 = vsel %vm365, %v6894, %v6940
    %v6942 = vsel %vm367, %v6903, %v6941
    %v6943 = vsel %vm369, %v6912, %v6942
    %v6944 = vsel %vm371, %v6921, %v6943
    %v6945 = vsel %vm373, %v6930, %v6944
    %v6946 = vsel %vm375, %v6939, %v6945
    %v6948 = vsel %vm378, %v6946, -inf
    %6949 = vmax.xlane.f32.xlu0 %v6948
    %v6950 = vpop.xlane.xlu0 %6949
    %v6952 = vlaneseq
    %v6953 = vshrl.u32 %v6952, 7
    %v6954 = vsub.s32 0, %v6953
    %v6955 = vrot.slane %v6950, %v6954
    %v6956 = vlaneseq
    %v6957 = vshrl.u32 %v6956, 7
    %v6958 = vsub.s32 1, %v6957
    %v6959 = vrot.slane %v6950, %v6958
    %v6960 = vlaneseq
    %v6961 = vshrl.u32 %v6960, 7
    %v6962 = vsub.s32 2, %v6961
    %v6963 = vrot.slane %v6950, %v6962
    %v6964 = vlaneseq
    %v6965 = vshrl.u32 %v6964, 7
    %v6966 = vsub.s32 3, %v6965
    %v6967 = vrot.slane %v6950, %v6966
    %v6968 = vlaneseq
    %v6969 = vshrl.u32 %v6968, 7
    %v6970 = vsub.s32 4, %v6969
    %v6971 = vrot.slane %v6950, %v6970
    %v6972 = vlaneseq
    %v6973 = vshrl.u32 %v6972, 7
    %v6974 = vsub.s32 5, %v6973
    %v6975 = vrot.slane %v6950, %v6974
    %v6976 = vlaneseq
    %v6977 = vshrl.u32 %v6976, 7
    %v6978 = vsub.s32 6, %v6977
    %v6979 = vrot.slane %v6950, %v6978
    %v6980 = vlaneseq
    %v6981 = vshrl.u32 %v6980, 7
    %v6982 = vsub.s32 7, %v6981
    %v6983 = vrot.slane %v6950, %v6982
    %v6992 = vsub.f32 %v6836, %v6955
    %v6993 = vsub.f32 %v6837, %v6955
    %v6994 = vsub.f32 %v6838, %v6959
    %v6995 = vsub.f32 %v6839, %v6959
    %v6996 = vsub.f32 %v6840, %v6963
    %v6997 = vsub.f32 %v6841, %v6963
    %v6998 = vsub.f32 %v6842, %v6967
    %v6999 = vsub.f32 %v6843, %v6967
    %v7000 = vsub.f32 %v6844, %v6971
    %v7001 = vsub.f32 %v6845, %v6971
    %v7002 = vsub.f32 %v6846, %v6975
    %v7003 = vsub.f32 %v6847, %v6975
    %v7004 = vsub.f32 %v6848, %v6979
    %v7005 = vsub.f32 %v6849, %v6979
    %v7006 = vsub.f32 %v6850, %v6983
    %v7007 = vsub.f32 %v6851, %v6983
    %v7008 = vmul.f32 %v6992, 1.442695
    %v7009 = vpow.pop %v7008
    %v7010 = vmul.f32 %v6993, 1.442695
    %v7011 = vpow.pop %v7010
    %v7012 = vmul.f32 %v6994, 1.442695
    %v7013 = vpow.pop %v7012
    %v7014 = vmul.f32 %v6995, 1.442695
    %v7015 = vpow.pop %v7014
    %v7016 = vmul.f32 %v6996, 1.442695
    %v7017 = vpow.pop %v7016
    %v7018 = vmul.f32 %v6997, 1.442695
    %v7019 = vpow.pop %v7018
    %v7020 = vmul.f32 %v6998, 1.442695
    %v7021 = vpow.pop %v7020
    %v7022 = vmul.f32 %v6999, 1.442695
    %v7023 = vpow.pop %v7022
    %v7024 = vmul.f32 %v7000, 1.442695
    %v7025 = vpow.pop %v7024
    %v7026 = vmul.f32 %v7001, 1.442695
    %v7027 = vpow.pop %v7026
    %v7028 = vmul.f32 %v7002, 1.442695
    %v7029 = vpow.pop %v7028
    %v7030 = vmul.f32 %v7003, 1.442695
    %v7031 = vpow.pop %v7030
    %v7032 = vmul.f32 %v7004, 1.442695
    %v7033 = vpow.pop %v7032
    %v7034 = vmul.f32 %v7005, 1.442695
    %v7035 = vpow.pop %v7034
    %v7036 = vmul.f32 %v7006, 1.442695
    %v7037 = vpow.pop %v7036
    %v7038 = vmul.f32 %v7007, 1.442695
    %v7039 = vpow.pop %v7038
    %7056 = vset.pattern.permute.xlu0 0
    %7057 = vperm.xlu0 %7056, %v7009
    %v7058 = vpop.permute.xlu0 %7057
    %7059 = vset.pattern.permute.xlu0 0
    %7060 = vperm.xlu0 %7059, %v7011
    %v7061 = vpop.permute.xlu0 %7060
    %7062 = vset.pattern.permute.xlu0 0
    %7063 = vperm.xlu0 %7062, %v7013
    %v7064 = vpop.permute.xlu0 %7063
    %7065 = vset.pattern.permute.xlu0 0
    %7066 = vperm.xlu0 %7065, %v7015
    %v7067 = vpop.permute.xlu0 %7066
    %7068 = vset.pattern.permute.xlu0 0
    %7069 = vperm.xlu0 %7068, %v7017
    %v7070 = vpop.permute.xlu0 %7069
    %7071 = vset.pattern.permute.xlu0 0
    %7072 = vperm.xlu0 %7071, %v7019
    %v7073 = vpop.permute.xlu0 %7072
    %7074 = vset.pattern.permute.xlu0 0
    %7075 = vperm.xlu0 %7074, %v7021
    %v7076 = vpop.permute.xlu0 %7075
    %7077 = vset.pattern.permute.xlu0 0
    %7078 = vperm.xlu0 %7077, %v7023
    %v7079 = vpop.permute.xlu0 %7078
    %7080 = vset.pattern.permute.xlu0 0
    %7081 = vperm.xlu0 %7080, %v7025
    %v7082 = vpop.permute.xlu0 %7081
    %7083 = vset.pattern.permute.xlu0 0
    %7084 = vperm.xlu0 %7083, %v7027
    %v7085 = vpop.permute.xlu0 %7084
    %7086 = vset.pattern.permute.xlu0 0
    %7087 = vperm.xlu0 %7086, %v7029
    %v7088 = vpop.permute.xlu0 %7087
    %7089 = vset.pattern.permute.xlu0 0
    %7090 = vperm.xlu0 %7089, %v7031
    %v7091 = vpop.permute.xlu0 %7090
    %7092 = vset.pattern.permute.xlu0 0
    %7093 = vperm.xlu0 %7092, %v7033
    %v7094 = vpop.permute.xlu0 %7093
    %7095 = vset.pattern.permute.xlu0 0
    %7096 = vperm.xlu0 %7095, %v7035
    %v7097 = vpop.permute.xlu0 %7096
    %7098 = vset.pattern.permute.xlu0 0
    %7099 = vperm.xlu0 %7098, %v7037
    %v7100 = vpop.permute.xlu0 %7099
    %7101 = vset.pattern.permute.xlu0 0
    %7102 = vperm.xlu0 %7101, %v7039
    %v7103 = vpop.permute.xlu0 %7102
    %v7104 = vlaneseq
    %v7105 = vshrl.u32 %v7104, 7
    %v7106 = vsub.s32 %v288, %v7105
    %v7107 = vrot.slane %v7058, %v7106
    %v7108 = vlaneseq
    %v7109 = vshrl.u32 %v7108, 7
    %v7110 = vsub.s32 %v293, %v7109
    %v7111 = vrot.slane %v7061, %v7110
    %v7112 = vsel %vm298, %v7111, %v7107
    %v7113 = vlaneseq
    %v7114 = vshrl.u32 %v7113, 7
    %v7115 = vsub.s32 %v288, %v7114
    %v7116 = vrot.slane %v7064, %v7115
    %v7117 = vlaneseq
    %v7118 = vshrl.u32 %v7117, 7
    %v7119 = vsub.s32 %v293, %v7118
    %v7120 = vrot.slane %v7067, %v7119
    %v7121 = vsel %vm298, %v7120, %v7116
    %v7122 = vlaneseq
    %v7123 = vshrl.u32 %v7122, 7
    %v7124 = vsub.s32 %v288, %v7123
    %v7125 = vrot.slane %v7070, %v7124
    %v7126 = vlaneseq
    %v7127 = vshrl.u32 %v7126, 7
    %v7128 = vsub.s32 %v293, %v7127
    %v7129 = vrot.slane %v7073, %v7128
    %v7130 = vsel %vm298, %v7129, %v7125
    %v7131 = vlaneseq
    %v7132 = vshrl.u32 %v7131, 7
    %v7133 = vsub.s32 %v288, %v7132
    %v7134 = vrot.slane %v7076, %v7133
    %v7135 = vlaneseq
    %v7136 = vshrl.u32 %v7135, 7
    %v7137 = vsub.s32 %v293, %v7136
    %v7138 = vrot.slane %v7079, %v7137
    %v7139 = vsel %vm298, %v7138, %v7134
    %v7140 = vlaneseq
    %v7141 = vshrl.u32 %v7140, 7
    %v7142 = vsub.s32 %v288, %v7141
    %v7143 = vrot.slane %v7082, %v7142
    %v7144 = vlaneseq
    %v7145 = vshrl.u32 %v7144, 7
    %v7146 = vsub.s32 %v293, %v7145
    %v7147 = vrot.slane %v7085, %v7146
    %v7148 = vsel %vm298, %v7147, %v7143
    %v7149 = vlaneseq
    %v7150 = vshrl.u32 %v7149, 7
    %v7151 = vsub.s32 %v288, %v7150
    %v7152 = vrot.slane %v7088, %v7151
    %v7153 = vlaneseq
    %v7154 = vshrl.u32 %v7153, 7
    %v7155 = vsub.s32 %v293, %v7154
    %v7156 = vrot.slane %v7091, %v7155
    %v7157 = vsel %vm298, %v7156, %v7152
    %v7158 = vlaneseq
    %v7159 = vshrl.u32 %v7158, 7
    %v7160 = vsub.s32 %v288, %v7159
    %v7161 = vrot.slane %v7094, %v7160
    %v7162 = vlaneseq
    %v7163 = vshrl.u32 %v7162, 7
    %v7164 = vsub.s32 %v293, %v7163
    %v7165 = vrot.slane %v7097, %v7164
    %v7166 = vsel %vm298, %v7165, %v7161
    %v7167 = vlaneseq
    %v7168 = vshrl.u32 %v7167, 7
    %v7169 = vsub.s32 %v288, %v7168
    %v7170 = vrot.slane %v7100, %v7169
    %v7171 = vlaneseq
    %v7172 = vshrl.u32 %v7171, 7
    %v7173 = vsub.s32 %v293, %v7172
    %v7174 = vrot.slane %v7103, %v7173
    %v7175 = vsel %vm298, %v7174, %v7170
    %v7176 = vsel %vm363, %v7121, %v7112
    %v7177 = vsel %vm365, %v7130, %v7176
    %v7178 = vsel %vm367, %v7139, %v7177
    %v7179 = vsel %vm369, %v7148, %v7178
    %v7180 = vsel %vm371, %v7157, %v7179
    %v7181 = vsel %vm373, %v7166, %v7180
    %v7182 = vsel %vm375, %v7175, %v7181
    %v7184 = vsel %vm378, %v7182, 0.0
    %7185 = vadd.xlane.f32.xlu0 %v7184
    %v7186 = vpop.xlane.xlu0 %7185
    %v7187 = vrcp.pop %v7186
    %v7189 = vlaneseq
    %v7190 = vshrl.u32 %v7189, 7
    %v7191 = vsub.s32 0, %v7190
    %v7192 = vrot.slane %v7187, %v7191
    %v7193 = vlaneseq
    %v7194 = vshrl.u32 %v7193, 7
    %v7195 = vsub.s32 1, %v7194
    %v7196 = vrot.slane %v7187, %v7195
    %v7197 = vlaneseq
    %v7198 = vshrl.u32 %v7197, 7
    %v7199 = vsub.s32 2, %v7198
    %v7200 = vrot.slane %v7187, %v7199
    %v7201 = vlaneseq
    %v7202 = vshrl.u32 %v7201, 7
    %v7203 = vsub.s32 3, %v7202
    %v7204 = vrot.slane %v7187, %v7203
    %v7205 = vlaneseq
    %v7206 = vshrl.u32 %v7205, 7
    %v7207 = vsub.s32 4, %v7206
    %v7208 = vrot.slane %v7187, %v7207
    %v7209 = vlaneseq
    %v7210 = vshrl.u32 %v7209, 7
    %v7211 = vsub.s32 5, %v7210
    %v7212 = vrot.slane %v7187, %v7211
    %v7213 = vlaneseq
    %v7214 = vshrl.u32 %v7213, 7
    %v7215 = vsub.s32 6, %v7214
    %v7216 = vrot.slane %v7187, %v7215
    %v7217 = vlaneseq
    %v7218 = vshrl.u32 %v7217, 7
    %v7219 = vsub.s32 7, %v7218
    %v7220 = vrot.slane %v7187, %v7219
    %v7229 = vmul.f32 %v7009, %v7192
    %v7230 = vmul.f32 %v7011, %v7192
    %v7231 = vmul.f32 %v7013, %v7196
    %v7232 = vmul.f32 %v7015, %v7196
    %v7233 = vmul.f32 %v7017, %v7200
    %v7234 = vmul.f32 %v7019, %v7200
    %v7235 = vmul.f32 %v7021, %v7204
    %v7236 = vmul.f32 %v7023, %v7204
    %v7237 = vmul.f32 %v7025, %v7208
    %v7238 = vmul.f32 %v7027, %v7208
    %v7239 = vmul.f32 %v7029, %v7212
    %v7240 = vmul.f32 %v7031, %v7212
    %v7241 = vmul.f32 %v7033, %v7216
    %v7242 = vmul.f32 %v7035, %v7216
    %v7243 = vmul.f32 %v7037, %v7220
    %v7244 = vmul.f32 %v7039, %v7220
    %7246 = vset.pattern.permute.xlu0 0
    %7247 = vperm.xlu0 %7246, %v7229
    %v7248 = vpop.permute.xlu0 %7247
    %7251 = vset.pattern.permute.xlu0 0
    %7252 = vperm.xlu0 %7251, %v7230
    %v7253 = vpop.permute.xlu0 %7252
    %7256 = vset.pattern.permute.xlu0 0
    %7257 = vperm.xlu0 %7256, %v7231
    %v7258 = vpop.permute.xlu0 %7257
    %7261 = vset.pattern.permute.xlu0 0
    %7262 = vperm.xlu0 %7261, %v7232
    %v7263 = vpop.permute.xlu0 %7262
    %7266 = vset.pattern.permute.xlu0 0
    %7267 = vperm.xlu0 %7266, %v7233
    %v7268 = vpop.permute.xlu0 %7267
    %7271 = vset.pattern.permute.xlu0 0
    %7272 = vperm.xlu0 %7271, %v7234
    %v7273 = vpop.permute.xlu0 %7272
    %7276 = vset.pattern.permute.xlu0 0
    %7277 = vperm.xlu0 %7276, %v7235
    %v7278 = vpop.permute.xlu0 %7277
    %7281 = vset.pattern.permute.xlu0 0
    %7282 = vperm.xlu0 %7281, %v7236
    %v7283 = vpop.permute.xlu0 %7282
    %7286 = vset.pattern.permute.xlu0 0
    %7287 = vperm.xlu0 %7286, %v7237
    %v7288 = vpop.permute.xlu0 %7287
    %7291 = vset.pattern.permute.xlu0 0
    %7292 = vperm.xlu0 %7291, %v7238
    %v7293 = vpop.permute.xlu0 %7292
    %7296 = vset.pattern.permute.xlu0 0
    %7297 = vperm.xlu0 %7296, %v7239
    %v7298 = vpop.permute.xlu0 %7297
    %7301 = vset.pattern.permute.xlu0 0
    %7302 = vperm.xlu0 %7301, %v7240
    %v7303 = vpop.permute.xlu0 %7302
    %7306 = vset.pattern.permute.xlu0 0
    %7307 = vperm.xlu0 %7306, %v7241
    %v7308 = vpop.permute.xlu0 %7307
    %7311 = vset.pattern.permute.xlu0 0
    %7312 = vperm.xlu0 %7311, %v7242
    %v7313 = vpop.permute.xlu0 %7312
    %7316 = vset.pattern.permute.xlu0 0
    %7317 = vperm.xlu0 %7316, %v7243
    %v7318 = vpop.permute.xlu0 %7317
    %7321 = vset.pattern.permute.xlu0 0
    %7322 = vperm.xlu0 %7321, %v7244
    %v7323 = vpop.permute.xlu0 %7322
    %v7325 = vmul.f32 %v7248, %v89
    %v7326 = vmul.f32 %v7253, %v90
    %v7327 = vmul.f32 %v7258, %v91
    %v7328 = vmul.f32 %v7263, %v92
    %v7329 = vmul.f32 %v7268, %v93
    %v7330 = vmul.f32 %v7273, %v94
    %v7331 = vmul.f32 %v7278, %v95
    %v7332 = vmul.f32 %v7283, %v96
    %v7333 = vmul.f32 %v7288, %v97
    %v7334 = vmul.f32 %v7293, %v98
    %v7335 = vmul.f32 %v7298, %v99
    %v7336 = vmul.f32 %v7303, %v100
    %v7337 = vmul.f32 %v7308, %v101
    %v7338 = vmul.f32 %v7313, %v102
    %v7339 = vmul.f32 %v7318, %v103
    %v7340 = vmul.f32 %v7323, %v104
    %v7341 = vadd.f32 %v7325, %v7326
    %v7342 = vrot.slane %v7341, 4
    %v7343 = vadd.f32 %v7341, %v7342
    %v7344 = vrot.slane %v7343, 2
    %v7345 = vadd.f32 %v7343, %v7344
    %v7346 = vrot.slane %v7345, 1
    %v7347 = vadd.f32 %v7345, %v7346
    %v7348 = vadd.f32 %v7327, %v7328
    %v7349 = vrot.slane %v7348, 4
    %v7350 = vadd.f32 %v7348, %v7349
    %v7351 = vrot.slane %v7350, 2
    %v7352 = vadd.f32 %v7350, %v7351
    %v7353 = vrot.slane %v7352, 1
    %v7354 = vadd.f32 %v7352, %v7353
    %v7355 = vadd.f32 %v7329, %v7330
    %v7356 = vrot.slane %v7355, 4
    %v7357 = vadd.f32 %v7355, %v7356
    %v7358 = vrot.slane %v7357, 2
    %v7359 = vadd.f32 %v7357, %v7358
    %v7360 = vrot.slane %v7359, 1
    %v7361 = vadd.f32 %v7359, %v7360
    %v7362 = vadd.f32 %v7331, %v7332
    %v7363 = vrot.slane %v7362, 4
    %v7364 = vadd.f32 %v7362, %v7363
    %v7365 = vrot.slane %v7364, 2
    %v7366 = vadd.f32 %v7364, %v7365
    %v7367 = vrot.slane %v7366, 1
    %v7368 = vadd.f32 %v7366, %v7367
    %v7369 = vadd.f32 %v7333, %v7334
    %v7370 = vrot.slane %v7369, 4
    %v7371 = vadd.f32 %v7369, %v7370
    %v7372 = vrot.slane %v7371, 2
    %v7373 = vadd.f32 %v7371, %v7372
    %v7374 = vrot.slane %v7373, 1
    %v7375 = vadd.f32 %v7373, %v7374
    %v7376 = vadd.f32 %v7335, %v7336
    %v7377 = vrot.slane %v7376, 4
    %v7378 = vadd.f32 %v7376, %v7377
    %v7379 = vrot.slane %v7378, 2
    %v7380 = vadd.f32 %v7378, %v7379
    %v7381 = vrot.slane %v7380, 1
    %v7382 = vadd.f32 %v7380, %v7381
    %v7383 = vadd.f32 %v7337, %v7338
    %v7384 = vrot.slane %v7383, 4
    %v7385 = vadd.f32 %v7383, %v7384
    %v7386 = vrot.slane %v7385, 2
    %v7387 = vadd.f32 %v7385, %v7386
    %v7388 = vrot.slane %v7387, 1
    %v7389 = vadd.f32 %v7387, %v7388
    %v7390 = vadd.f32 %v7339, %v7340
    %v7391 = vrot.slane %v7390, 4
    %v7392 = vadd.f32 %v7390, %v7391
    %v7393 = vrot.slane %v7392, 2
    %v7394 = vadd.f32 %v7392, %v7393
    %v7395 = vrot.slane %v7394, 1
    %v7396 = vadd.f32 %v7394, %v7395
    %s7397 = scalar_lea.vmem [#allocation2], 56
    %v7398 = vld [vmem:[%s7397] sm:$0xff]
    %7399 = vrot.lane.b32.xlu0 %v6585, 64
    %v7400 = vpop.permute.xlu0 %7399
    %v7401 = vsel %vm109, %v7400, 0
    %7403 = vmatprep.subr.mxu0 0.0
    %7404 = vmatpush1.msra.mxu0 %v105
    %7405 = vmatprep.subr.mxu0 0.0
    %7406 = vmatpush1.msra.mxu0 %v106
    %7407 = vmatprep.subr.mxu0 0.0
    %7408 = vmatpush1.msra.mxu0 %v107
    %7409 = vmatprep.subr.mxu0 0.0
    %7410 = vmatpush1.msra.mxu0 %v108
    %7411 = vmatprep.subr.mxu0 0.0
    %7412 = vmatpush1.msra.mxu0 0.0
    %7413 = vmatprep.subr.mxu0 0.0
    %7414 = vmatpush1.msra.mxu0 0.0
    %7415 = vmatprep.subr.mxu0 0.0
    %7416 = vmatpush1.msra.mxu0 0.0
    %7417 = vmatprep.subr.mxu0 0.0
    %7418 = vmatpush1.msra.mxu0 0.0
    %7419 = vmatprep.subr.mxu0 0.0
    %7420 = vmatpush1.msra.mxu0 0.0
    %7421 = vmatprep.subr.mxu0 0.0
    %7422 = vmatpush1.msra.mxu0 0.0
    %7423 = vmatprep.subr.mxu0 0.0
    %7424 = vmatpush1.msra.mxu0 0.0
    %7425 = vmatprep.subr.mxu0 0.0
    %7426 = vmatpush1.msra.mxu0 0.0
    %7427 = vmatprep.subr.mxu0 0.0
    %7428 = vmatpush1.msra.mxu0 0.0
    %7429 = vmatprep.subr.mxu0 0.0
    %7430 = vmatpush1.msra.mxu0 0.0
    %7431 = vmatprep.subr.mxu0 0.0
    %7432 = vmatpush1.msra.mxu0 0.0
    %7433 = vmatprep.subr.mxu0 0.0
    %7434 = vmatpush1.msra.mxu0 0.0
    %7435 = vmatprep.subr.mxu0 0.0
    %7436 = vmatpush1.msra.mxu0 0.0
    %7437 = vmatprep.subr.mxu0 0.0
    %7438 = vmatpush1.msra.mxu0 0.0
    %7439 = vmatprep.subr.mxu0 0.0
    %7440 = vmatpush1.msra.mxu0 0.0
    %7441 = vmatprep.subr.mxu0 0.0
    %7442 = vmatpush1.msra.mxu0 0.0
    %7443 = vmatprep.subr.mxu0 0.0
    %7444 = vmatpush1.msra.mxu0 0.0
    %7445 = vmatprep.subr.mxu0 0.0
    %7446 = vmatpush1.msra.mxu0 0.0
    %7447 = vmatprep.subr.mxu0 0.0
    %7448 = vmatpush1.msra.mxu0 0.0
    %7449 = vmatprep.subr.mxu0 0.0
    %7450 = vmatpush1.msra.mxu0 0.0
    %7451 = vmatprep.subr.mxu0 0.0
    %7452 = vmatpush1.msra.mxu0 0.0
    %7453 = vmatprep.subr.mxu0 0.0
    %7454 = vmatpush1.msra.mxu0 0.0
    %7455 = vmatprep.subr.mxu0 0.0
    %7456 = vmatpush1.msra.mxu0 0.0
    %7457 = vmatprep.subr.mxu0 0.0
    %7458 = vmatpush1.msra.mxu0 0.0
    %7459 = vmatprep.subr.mxu0 0.0
    %7460 = vmatpush1.msra.mxu0 0.0
    %7461 = vmatprep.subr.mxu0 0.0
    %7462 = vmatpush1.msra.mxu0 0.0
    %7463 = vmatprep.subr.mxu0 0.0
    %7464 = vmatpush1.msra.mxu0 0.0
    %7465 = vmatprep.subr.mxu0 0.0
    %7466 = vmatpush1.msra.mxu0 0.0
    %7467 = vmatprep.mubr.f32.mxu0 0.0
    %7468 = vmatmul.mubr.f32.gmra.mrb[0].mxu0 %v7401
    %v7469 = vpop.f32.mrb[0].mxu0
    %v7470 = vadd.f32 0.0, %v7469
    %v7471 = vpop.f32.mrb[0].mxu0
    %7472 = vdwg.mxu0
    %v7473 = vadd.f32 %v7398, %v7470
    %v7482 = vsel %vm363, %v7354, %v7347
    %v7483 = vsel %vm365, %v7361, %v7482
    %v7484 = vsel %vm367, %v7368, %v7483
    %v7485 = vsel %vm369, %v7375, %v7484
    %v7486 = vsel %vm371, %v7382, %v7485
    %v7487 = vsel %vm373, %v7389, %v7486
    %v7488 = vsel %vm375, %v7396, %v7487
    %v7490 = vadd.f32 %v7473, %v7488
    %v7491 = vmul.f32 %v7490, 0.5
    %v7492 = vtanh.pop %v7491
    %v7493 = vmul.f32 %v7492, 0.5
    %v7494 = vadd.f32 %v7493, 0.5
    %v7495 = vtanh.pop %v7490
    %v7496 = vmul.f32 %v7494, %v6579
    %7498 = vrot.lane.b32.xlu0 %v7495, 32
    %v7499 = vpop.permute.xlu0 %7498
    %v7501 = vmul.f32 %v7494, %v7499
    %7503 = vrot.lane.b32.xlu0 %v7501, 32
    %v7504 = vpop.permute.xlu0 %7503
    %v7506 = vadd.f32 %v7496, %v7504
    %v7507 = vtanh.pop %v7506
    %7509 = vrot.lane.b32.xlu0 %v7507, 32
    %v7510 = vpop.permute.xlu0 %7509
    %v7512 = vmul.f32 %v7494, %v7510
    %v7514 = vcombine.high %v7512, %v7512
    %v7516 = vunpack.c.l.s4 1966171168
    %v7517 = vunpack.c.0.s8 %v7516
    %v7518 = vlaneseq
    %v7519 = vshrl.u32 %v7518, 7
    %v7520 = vsub.s32 %v7517, %v7519
    %v7521 = vrot.slane %v7512, %v7520
    %v7523 = vunpack.c.l.s4 1966171168
    %v7524 = vunpack.c.0.s8 %v7523
    %v7525 = vlaneseq
    %v7526 = vshrl.u32 %v7525, 7
    %v7527 = vsub.s32 %v7524, %v7526
    %v7528 = vrot.slane %v7514, %v7527
    %v7529 = vcombine.high %v7521, %v7521
    %v7530 = vcombine.high %v7528, %v7528
    %v7532 = vunpack.c.l.s4 1966171168
    %v7533 = vunpack.c.0.s8 %v7532
    %v7534 = vlaneseq
    %v7535 = vshrl.u32 %v7534, 7
    %v7536 = vsub.s32 %v7533, %v7535
    %v7537 = vrot.slane %v7521, %v7536
    %v7539 = vunpack.c.l.s4 1966171168
    %v7540 = vunpack.c.0.s8 %v7539
    %v7541 = vlaneseq
    %v7542 = vshrl.u32 %v7541, 7
    %v7543 = vsub.s32 %v7540, %v7542
    %v7544 = vrot.slane %v7528, %v7543
    %v7546 = vunpack.c.l.s4 1966171168
    %v7547 = vunpack.c.0.s8 %v7546
    %v7548 = vlaneseq
    %v7549 = vshrl.u32 %v7548, 7
    %v7550 = vsub.s32 %v7547, %v7549
    %v7551 = vrot.slane %v7529, %v7550
    %v7553 = vunpack.c.l.s4 1966171168
    %v7554 = vunpack.c.0.s8 %v7553
    %v7555 = vlaneseq
    %v7556 = vshrl.u32 %v7555, 7
    %v7557 = vsub.s32 %v7554, %v7556
    %v7558 = vrot.slane %v7530, %v7557
    %v7559 = vcombine.high %v7537, %v7537
    %v7560 = vcombine.high %v7544, %v7544
    %v7561 = vcombine.high %v7551, %v7551
    %v7562 = vcombine.high %v7558, %v7558
    %v7563 = vlaneseq
    %v7564 = vshrl.u32 %v7563, 7
    %v7565 = vsub.s32 0, %v7564
    %v7566 = vrot.slane %v7537, %v7565
    %v7567 = vlaneseq
    %v7568 = vshrl.u32 %v7567, 7
    %v7569 = vsub.s32 0, %v7568
    %v7570 = vrot.slane %v7551, %v7569
    %v7571 = vlaneseq
    %v7572 = vshrl.u32 %v7571, 7
    %v7573 = vsub.s32 0, %v7572
    %v7574 = vrot.slane %v7559, %v7573
    %v7575 = vlaneseq
    %v7576 = vshrl.u32 %v7575, 7
    %v7577 = vsub.s32 0, %v7576
    %v7578 = vrot.slane %v7561, %v7577
    %v7579 = vlaneseq
    %v7580 = vshrl.u32 %v7579, 7
    %v7581 = vsub.s32 0, %v7580
    %v7582 = vrot.slane %v7544, %v7581
    %v7583 = vlaneseq
    %v7584 = vshrl.u32 %v7583, 7
    %v7585 = vsub.s32 0, %v7584
    %v7586 = vrot.slane %v7558, %v7585
    %v7587 = vlaneseq
    %v7588 = vshrl.u32 %v7587, 7
    %v7589 = vsub.s32 0, %v7588
    %v7590 = vrot.slane %v7560, %v7589
    %v7591 = vlaneseq
    %v7592 = vshrl.u32 %v7591, 7
    %v7593 = vsub.s32 0, %v7592
    %v7594 = vrot.slane %v7562, %v7593
    %7595 = vrot.lane.b32.xlu0 %v7566, 64
    %v7596 = vpop.permute.xlu0 %7595
    %7597 = vrot.lane.b32.xlu0 %v7570, 64
    %v7598 = vpop.permute.xlu0 %7597
    %7599 = vrot.lane.b32.xlu0 %v7574, 64
    %v7600 = vpop.permute.xlu0 %7599
    %7601 = vrot.lane.b32.xlu0 %v7578, 64
    %v7602 = vpop.permute.xlu0 %7601
    %7603 = vrot.lane.b32.xlu0 %v7582, 64
    %v7604 = vpop.permute.xlu0 %7603
    %7605 = vrot.lane.b32.xlu0 %v7586, 64
    %v7606 = vpop.permute.xlu0 %7605
    %7607 = vrot.lane.b32.xlu0 %v7590, 64
    %v7608 = vpop.permute.xlu0 %7607
    %7609 = vrot.lane.b32.xlu0 %v7594, 64
    %v7610 = vpop.permute.xlu0 %7609
    %7619 = vst.msk [vmem:[#allocation10 + $0x7] sm:$0x1] %vm1065, %v7596
    %7620 = vst.msk [vmem:[#allocation10 + $0xf] sm:$0x1] %vm1065, %v7598
    %7621 = vst.msk [vmem:[#allocation10 + $0x17] sm:$0x1] %vm1065, %v7600
    %7622 = vst.msk [vmem:[#allocation10 + $0x1f] sm:$0x1] %vm1065, %v7602
    %7623 = vst.msk [vmem:[#allocation10 + $0x27] sm:$0x1] %vm1065, %v7604
    %7624 = vst.msk [vmem:[#allocation10 + $0x2f] sm:$0x1] %vm1065, %v7606
    %7625 = vst.msk [vmem:[#allocation10 + $0x37] sm:$0x1] %vm1065, %v7608
    %7626 = vst.msk [vmem:[#allocation10 + $0x3f] sm:$0x1] %vm1065, %v7610
    // Predicated region
    $region34: #{tpu_custom_call.1} parent=1 // pred_check
      _
    $region35: #{tpu_custom_call.1} parent=1 // pred_check_branch
      %7628 = sbr.rel (0) target = $region37
    $region36: #{tpu_custom_call.1} parent=1 // pred_region
      %s7630 = ssub.s32 1024, 1024
      %7631 = vsyncadd [#allocation4], %s7630
      %s7632 = sshll.u32 [#allocation10], 4
      %s7633 = int_to_ptr.vmem [resolvable:$true] %s7632
      %7638 = dma.vmem_to_hbm [thread:$0]  %s7633, 1024, %s4, [#allocation4], 128, 128, 8
    $region37: #{tpu_custom_call.1} parent=1 // pred_fallthru
      _
    // Predicated region
    $region38: #{tpu_custom_call.1} parent=1 // pred_check
      _
    $region39: #{tpu_custom_call.1} parent=1 // pred_check_branch
      %7640 = sbr.rel (0) target = $region41
    $region40: #{tpu_custom_call.1} parent=1 // pred_region
      %7641 = dma.done [#allocation4], 1024
    $region41: #{tpu_custom_call.1} parent=1 // pred_fallthru
      _
    %7642 = vsyncpa [#allocation3], 1
    %7643 = vsyncpa [#allocation6], 1
    %7644 = vsyncpa [#allocation9], 1
    %7645 = vsyncpa [#allocation4], 1

</llo_original>
